<compile_context>
chip_gen: v6e
topology: v6e:2x2x1
jax: 0.10.0
libtpu: 0.0.40
codegen_flags: <defaults>
</compile_context>

<pallas_src>
import jax
import jax.numpy as jnp
from jax.experimental import pallas as pl
from jax.experimental.pallas import tpu as pltpu

IN_DIM, H1, H2, OUT_DIM = 3072, 1500, 750, 150


def _fused_mlp_kernel(x_ref, w1_ref, b1_ref, w2_ref, b2_ref, w3_ref, b3_ref,
                      o_ref, acc_ref):
    """Fused 3-layer MLP. Grid axis 0 tiles the layer-1 contraction (K=3072).

    acc_ref holds the f32 (B, 1500) layer-1 accumulator; layers 2+3 run in the
    epilogue on the final reduction step, entirely from VMEM-resident W2/W3.
    """
    k = pl.program_id(0)

    @pl.when(k == 0)
    def _():
        acc_ref[...] = jnp.zeros_like(acc_ref)

    # bf16 x bf16 -> f32 accumulate on the MXU.
    acc_ref[...] += jnp.dot(x_ref[...], w1_ref[...],
                            preferred_element_type=jnp.float32)

    @pl.when(k == pl.num_programs(0) - 1)
    def _():
        h1 = jnp.maximum(acc_ref[...] + b1_ref[...], 0.0)
        h2 = jnp.dot(h1.astype(w2_ref.dtype), w2_ref[...],
                     preferred_element_type=jnp.float32) + b2_ref[...]
        h2 = jnp.maximum(h2, 0.0)
        out = jnp.dot(h2.astype(w3_ref.dtype), w3_ref[...],
                      preferred_element_type=jnp.float32) + b3_ref[...]
        o_ref[...] = out.astype(o_ref.dtype)


def mlp_clusterer_forward(x, prepped_params, *, tk=1024):
    """x: (B, 3072) f32. prepped_params: tuples of ((in,out) bf16 W, (1,out) f32 b)."""
    (w1t, b1), (w2t, b2), (w3t, b3) = prepped_params
    B, K = x.shape
    assert K == IN_DIM and K % tk == 0, (K, tk)
    xb = x.astype(w1t.dtype)  # bf16 activations; accumulation stays f32

    return pl.pallas_call(
        _fused_mlp_kernel,
        out_shape=jax.ShapeDtypeStruct((B, OUT_DIM), jnp.float32),
        grid_spec=pltpu.PrefetchScalarGridSpec(
            num_scalar_prefetch=0,
            grid=(K // tk,),
            in_specs=[
                pl.BlockSpec((B, tk), lambda k: (0, k)),        # x chunk
                pl.BlockSpec((tk, H1), lambda k: (k, 0)),       # W1 chunk (streamed)
                pl.BlockSpec((1, H1), lambda k: (0, 0)),        # b1 (resident)
                pl.BlockSpec((H1, H2), lambda k: (0, 0)),       # W2 (resident, 2.25 MB bf16)
                pl.BlockSpec((1, H2), lambda k: (0, 0)),        # b2 (resident)
                pl.BlockSpec((H2, OUT_DIM), lambda k: (0, 0)),  # W3 (resident)
                pl.BlockSpec((1, OUT_DIM), lambda k: (0, 0)),   # b3 (resident)
            ],
            out_specs=pl.BlockSpec((B, OUT_DIM), lambda k: (0, 0)),
            scratch_shapes=[pltpu.VMEM((B, H1), jnp.float32)],  # layer-1 accumulator
        ),
        compiler_params=pltpu.CompilerParams(
            dimension_semantics=("arbitrary",),
            vmem_limit_bytes=32 << 20,
        ),
    )(xb, w1t, b1, w2t, b2, w3t, b3)


def init_params(key):
    """Deterministic synthetic params with PyTorch nn.Linear init, (out, in) layout."""
    dims = [(IN_DIM, H1), (H1, H2), (H2, OUT_DIM)]
    params = []
    for fan_in, fan_out in dims:
        key, kw, kb = jax.random.split(key, 3)
        bound = 1.0 / jnp.sqrt(fan_in)
        w = jax.random.uniform(kw, (fan_out, fan_in), jnp.float32,
                               minval=-bound, maxval=bound)
        b = jax.random.uniform(kb, (fan_out,), jnp.float32,
                               minval=-bound, maxval=bound)
        params.append((w, b))
    return params


def prepare_params(params, dtype=jnp.bfloat16):
    """One-time conversion: (out,in) f32 -> (in,out) bf16 weights, (1,out) f32 biases.

    Done once outside the forward pass so no transpose/cast HBM traffic is paid
    per call.
    """
    return tuple(
        (jnp.asarray(w.T, dtype=dtype),
         jnp.asarray(b, jnp.float32).reshape(1, -1))
        for w, b in params
    )


def reference_forward_bf16(x, prepped_params):
    """Same-precision JAX reference (bf16 operands, f32 accumulation)."""
    (w1t, b1), (w2t, b2), (w3t, b3) = prepped_params
    h = x.astype(w1t.dtype)
    h = jnp.maximum(jnp.dot(h, w1t, preferred_element_type=jnp.float32) + b1, 0.0)
    h = jnp.maximum(
        jnp.dot(h.astype(w2t.dtype), w2t, preferred_element_type=jnp.float32) + b2, 0.0)
    return jnp.dot(h.astype(w3t.dtype), w3t, preferred_element_type=jnp.float32) + b3


def reference_forward_f32(x, params):
    """PyTorch-semantics f32 reference (x @ W.T + b)."""
    (w1, b1), (w2, b2), (w3, b3) = params
    h = jnp.maximum(x @ w1.T + b1, 0.0)
    h = jnp.maximum(h @ w2.T + b2, 0.0)
    return h @ w3.T + b3


if __name__ == "__main__":
    key = jax.random.PRNGKey(0)
    key, kx = jax.random.split(key)
    B = 4
    x = jax.random.normal(kx, (B, IN_DIM), jnp.float32)

    params = init_params(key)          # PyTorch (out, in) f32 layout
    prepped = prepare_params(params)   # one-time (in, out) bf16 layout

    out = mlp_clusterer_forward(x, prepped)
    out = jax.block_until_ready(out)

    ref_bf16 = reference_forward_bf16(x, prepped)
    ref_f32 = reference_forward_f32(x, params)

    assert out.shape == (B, OUT_DIM), out.shape
    # Tight check vs. the same-precision (bf16 operands / f32 accum) reference.
    assert jnp.allclose(out, ref_bf16, atol=1e-3, rtol=1e-3), (
        float(jnp.max(jnp.abs(out - ref_bf16))))
    # Loose sanity check vs. the full-f32 PyTorch-semantics reference.
    assert jnp.allclose(out, ref_f32, atol=1e-1, rtol=1e-1), (
        float(jnp.max(jnp.abs(out - ref_f32))))
    print("KERNEL_OK")
</pallas_src>

<mosaic_0001>
module attributes {stable_mosaic.version = 11 : i64} {
  func.func @_fused_mlp_kernel(%arg0: i32, %arg1: memref<4x1024xbf16, #tpu.memory_space<vmem>>, %arg2: memref<1024x1500xbf16, #tpu.memory_space<vmem>>, %arg3: memref<1x1500xf32, #tpu.memory_space<vmem>>, %arg4: memref<1500x750xbf16, #tpu.memory_space<vmem>>, %arg5: memref<1x750xf32, #tpu.memory_space<vmem>>, %arg6: memref<750x150xbf16, #tpu.memory_space<vmem>>, %arg7: memref<1x150xf32, #tpu.memory_space<vmem>>, %arg8: memref<4x150xf32, #tpu.memory_space<vmem>>, %arg9: memref<4x1500xf32, #tpu.memory_space<vmem>>) attributes {dimension_semantics = [#tpu.dimension_semantics<arbitrary>], iteration_bounds = array<i64: 3>, scalar_prefetch = 0 : i64, scratch_operands = 1 : i64, tpu.core_type = #tpu.core_type<tc>, window_params = [{transform_indices = @transform_0, window_bounds = array<i64: 4, 1024>}, {transform_indices = @transform_1, window_bounds = array<i64: 1024, 1500>}, {pipeline_mode = #tpu.pipeline_mode<synchronous>, transform_indices = @transform_2, window_bounds = array<i64: 1, 1500>}, {pipeline_mode = #tpu.pipeline_mode<synchronous>, transform_indices = @transform_3, window_bounds = array<i64: 1500, 750>}, {pipeline_mode = #tpu.pipeline_mode<synchronous>, transform_indices = @transform_4, window_bounds = array<i64: 1, 750>}, {pipeline_mode = #tpu.pipeline_mode<synchronous>, transform_indices = @transform_5, window_bounds = array<i64: 750, 150>}, {pipeline_mode = #tpu.pipeline_mode<synchronous>, transform_indices = @transform_6, window_bounds = array<i64: 1, 150>}, {pipeline_mode = #tpu.pipeline_mode<synchronous>, transform_indices = @transform_7, window_bounds = array<i64: 4, 150>}]} {
    %c0_i32 = arith.constant 0 : i32
    %0 = arith.cmpi eq, %arg0, %c0_i32 : i32
    %1 = arith.extui %0 : i1 to i32
    %c0_i32_0 = arith.constant 0 : i32
    %2 = arith.cmpi ne, %1, %c0_i32_0 : i32
    scf.if %2 {
      %cst_9 = arith.constant 0.000000e+00 : f32
      %12 = vector.broadcast %cst_9 : f32 to vector<4x1500xf32>
      %c0_10 = arith.constant 0 : index
      %c0_11 = arith.constant 0 : index
      %13 = vector.load %arg9[%c0_10, %c0_11] : memref<4x1500xf32, #tpu.memory_space<vmem>>, vector<4x1500xf32>
      tpu.vector_store %arg9[%c0_10, %c0_11], %12 {strides = array<i32>} : memref<4x1500xf32, #tpu.memory_space<vmem>>, vector<4x1500xf32>,
    } else {
    }
    %c0 = arith.constant 0 : index
    %c0_1 = arith.constant 0 : index
    %3 = vector.load %arg9[%c0, %c0_1] : memref<4x1500xf32, #tpu.memory_space<vmem>>, vector<4x1500xf32>
    %c0_2 = arith.constant 0 : index
    %c0_3 = arith.constant 0 : index
    %4 = vector.load %arg1[%c0_2, %c0_3] : memref<4x1024xbf16, #tpu.memory_space<vmem>>, vector<4x1024xbf16>
    %c0_4 = arith.constant 0 : index
    %c0_5 = arith.constant 0 : index
    %5 = vector.load %arg2[%c0_4, %c0_5] : memref<1024x1500xbf16, #tpu.memory_space<vmem>>, vector<1024x1500xbf16>
    %cst = arith.constant dense<0.000000e+00> : vector<4x1500xf32>
    %6 = tpu.matmul %4, %5, %cst {dimension_numbers = #tpu.dot_dimension_numbers<[1], [0], [0], [1], [0, 0, 1, 1], [], []>} : vector<4x1024xbf16>, vector<1024x1500xbf16>, vector<4x1500xf32> -> vector<4x1500xf32>
    %7 = arith.addf %3, %6 : vector<4x1500xf32>
    %c0_6 = arith.constant 0 : index
    %c0_7 = arith.constant 0 : index
    %8 = vector.load %arg9[%c0_6, %c0_7] : memref<4x1500xf32, #tpu.memory_space<vmem>>, vector<4x1500xf32>
    tpu.vector_store %arg9[%c0_6, %c0_7], %7 {strides = array<i32>} : memref<4x1500xf32, #tpu.memory_space<vmem>>, vector<4x1500xf32>,
    %c2_i32 = arith.constant 2 : i32
    %9 = arith.cmpi eq, %arg0, %c2_i32 : i32
    %10 = arith.extui %9 : i1 to i32
    %c0_i32_8 = arith.constant 0 : i32
    %11 = arith.cmpi ne, %10, %c0_i32_8 : i32
    scf.if %11 {
      %c0_9 = arith.constant 0 : index
      %c0_10 = arith.constant 0 : index
      %12 = vector.load %arg9[%c0_9, %c0_10] : memref<4x1500xf32, #tpu.memory_space<vmem>>, vector<4x1500xf32>
      %c0_11 = arith.constant 0 : index
      %c0_12 = arith.constant 0 : index
      %13 = vector.load %arg3[%c0_11, %c0_12] : memref<1x1500xf32, #tpu.memory_space<vmem>>, vector<1x1500xf32>
      %14 = vector.broadcast %13 : vector<1x1500xf32> to vector<4x1500xf32>
      %15 = arith.addf %12, %14 : vector<4x1500xf32>
      %cst_13 = arith.constant 0.000000e+00 : f32
      %16 = vector.broadcast %cst_13 : f32 to vector<4x1500xf32>
      %17 = arith.maximumf %15, %16 : vector<4x1500xf32>
      %18 = arith.truncf %17 : vector<4x1500xf32> to vector<4x1500xbf16>
      %c0_14 = arith.constant 0 : index
      %c0_15 = arith.constant 0 : index
      %19 = vector.load %arg4[%c0_14, %c0_15] : memref<1500x750xbf16, #tpu.memory_space<vmem>>, vector<1500x750xbf16>
      %cst_16 = arith.constant dense<0.000000e+00> : vector<4x750xf32>
      %20 = tpu.matmul %18, %19, %cst_16 {dimension_numbers = #tpu.dot_dimension_numbers<[1], [0], [0], [1], [0, 0, 1, 1], [], []>} : vector<4x1500xbf16>, vector<1500x750xbf16>, vector<4x750xf32> -> vector<4x750xf32>
      %c0_17 = arith.constant 0 : index
      %c0_18 = arith.constant 0 : index
      %21 = vector.load %arg5[%c0_17, %c0_18] : memref<1x750xf32, #tpu.memory_space<vmem>>, vector<1x750xf32>
      %22 = vector.broadcast %21 : vector<1x750xf32> to vector<4x750xf32>
      %23 = arith.addf %20, %22 : vector<4x750xf32>
      %cst_19 = arith.constant 0.000000e+00 : f32
      %24 = vector.broadcast %cst_19 : f32 to vector<4x750xf32>
      %25 = arith.maximumf %23, %24 : vector<4x750xf32>
      %26 = arith.truncf %25 : vector<4x750xf32> to vector<4x750xbf16>
      %c0_20 = arith.constant 0 : index
      %c0_21 = arith.constant 0 : index
      %27 = vector.load %arg6[%c0_20, %c0_21] : memref<750x150xbf16, #tpu.memory_space<vmem>>, vector<750x150xbf16>
      %cst_22 = arith.constant dense<0.000000e+00> : vector<4x150xf32>
      %28 = tpu.matmul %26, %27, %cst_22 {dimension_numbers = #tpu.dot_dimension_numbers<[1], [0], [0], [1], [0, 0, 1, 1], [], []>} : vector<4x750xbf16>, vector<750x150xbf16>, vector<4x150xf32> -> vector<4x150xf32>
      %c0_23 = arith.constant 0 : index
      %c0_24 = arith.constant 0 : index
      %29 = vector.load %arg7[%c0_23, %c0_24] : memref<1x150xf32, #tpu.memory_space<vmem>>, vector<1x150xf32>
      %30 = vector.broadcast %29 : vector<1x150xf32> to vector<4x150xf32>
      %31 = arith.addf %28, %30 : vector<4x150xf32>
      %c0_25 = arith.constant 0 : index
      %c0_26 = arith.constant 0 : index
      %32 = vector.load %arg8[%c0_25, %c0_26] : memref<4x150xf32, #tpu.memory_space<vmem>>, vector<4x150xf32>
      tpu.vector_store %arg8[%c0_25, %c0_26], %31 {strides = array<i32>} : memref<4x150xf32, #tpu.memory_space<vmem>>, vector<4x150xf32>,
    } else {
    }
    return
  }
  func.func @transform_0(%arg0: i32) -> (i32, i32) {
    %c0_i32 = arith.constant 0 : i32
    %c0_i32_0 = arith.constant 0 : i32
    return %c0_i32, %arg0 : i32, i32
  }
  func.func @transform_1(%arg0: i32) -> (i32, i32) {
    %c0_i32 = arith.constant 0 : i32
    %c0_i32_0 = arith.constant 0 : i32
    return %arg0, %c0_i32 : i32, i32
  }
  func.func @transform_2(%arg0: i32) -> (i32, i32) {
    %c0_i32 = arith.constant 0 : i32
    %c0_i32_0 = arith.constant 0 : i32
    %c0_i32_1 = arith.constant 0 : i32
    return %c0_i32, %c0_i32_0 : i32, i32
  }
  func.func @transform_3(%arg0: i32) -> (i32, i32) {
    %c0_i32 = arith.constant 0 : i32
    %c0_i32_0 = arith.constant 0 : i32
    %c0_i32_1 = arith.constant 0 : i32
    return %c0_i32, %c0_i32_0 : i32, i32
  }
  func.func @transform_4(%arg0: i32) -> (i32, i32) {
    %c0_i32 = arith.constant 0 : i32
    %c0_i32_0 = arith.constant 0 : i32
    %c0_i32_1 = arith.constant 0 : i32
    return %c0_i32, %c0_i32_0 : i32, i32
  }
  func.func @transform_5(%arg0: i32) -> (i32, i32) {
    %c0_i32 = arith.constant 0 : i32
    %c0_i32_0 = arith.constant 0 : i32
    %c0_i32_1 = arith.constant 0 : i32
    return %c0_i32, %c0_i32_0 : i32, i32
  }
  func.func @transform_6(%arg0: i32) -> (i32, i32) {
    %c0_i32 = arith.constant 0 : i32
    %c0_i32_0 = arith.constant 0 : i32
    %c0_i32_1 = arith.constant 0 : i32
    return %c0_i32, %c0_i32_0 : i32, i32
  }
  func.func @transform_7(%arg0: i32) -> (i32, i32) {
    %c0_i32 = arith.constant 0 : i32
    %c0_i32_0 = arith.constant 0 : i32
    %c0_i32_1 = arith.constant 0 : i32
    return %c0_i32, %c0_i32_0 : i32, i32
  }
}

</mosaic_0001>

<llo_original>
// kernel: tpu_custom_call.1
$region0: #{tpu_custom_call.1}
  #allocation0 [shape = 'u32[]', space=smem, size = 0x4, offset = 0x4, fixed_abs, tag = 'smem constant byte address 0x4 - core index']
  #allocation1 [shape = 'u32[144,128]{1,0:T(1,128)}', space=vmem, size = 0x12000, scoped, tag = 'internal scratch']
  #allocation2 [shape = 'f32[4,1500]{1,0:T(4,128)}', space=vmem, size = 0x6000, scoped, tag = 'scratch operand']
  %s0 = inlined_call_operand.vmem [shape: bf16[4,3072], index: 0, kind: input, shape index: {}]
  %s1 = inlined_call_operand.vmem [shape: bf16[3072,1500], index: 1, kind: input, shape index: {}]
  %s2 = inlined_call_operand.vmem [shape: f32[1,1500], index: 2, kind: input, shape index: {}]
  %s3 = inlined_call_operand.vmem [shape: bf16[1500,750], index: 3, kind: input, shape index: {}]
  %s4 = inlined_call_operand.vmem [shape: f32[1,750], index: 4, kind: input, shape index: {}]
  %s5 = inlined_call_operand.vmem [shape: bf16[750,150], index: 5, kind: input, shape index: {}]
  %s6 = inlined_call_operand.vmem [shape: f32[1,150], index: 6, kind: input, shape index: {}]
  %s7 = inlined_call_operand.hbm [shape: f32[4,150], index: 7, kind: output, shape index: {}]
  %s8 = sld [smem:[#allocation0]]
  $region69: #{tpu_custom_call.1} parent=0
    _
  %s10 = ssub.s32 1, %s8
  %s11 = scalar_select 0, %s10, %s8
  $region1: #{tpu_custom_call.1} parent=0
    #allocation3 [shape = 'u8[4096]{0}', space=vmem, size = 0x1000, scoped, tag = 'output window, operand 0, single buffered']
    #allocation4 [shape = 's32[2]{0}', space=sflag, size = 0x8, scoped, tag = 'scoped memory for tpu_custom_call.1']
    %12 = vsyncpa [#allocation4], 0
    loop: start=0, step=1, limit=5
    $region2: #{tpu_custom_call.1} parent=1 // loop_pre_header
      _
    $region3: #{tpu_custom_call.1} parent=1 // loop_header
      %s14 = sphi 0, %s18
      %p15 = scmp.ge.s32.totalorder %s14, 5
      %s24 = sphi 0, %s26
      %s27 = sphi 0, %s24
      %s28 = sphi 0, %s27
      %s44 = sphi 0, %s28
      %s50 = sphi 0, %s52
      %s53 = sphi 0, %s50
      %s54 = sphi 0, %s53
      %s70 = sphi 0, %s54
      %s74 = sphi 0, %s74
      %s76 = sphi 0, %s74
      %s77 = sphi 0, %s76
      %s91 = sphi 0, %s77
      %s95 = sphi 0, %s95
      %s97 = sphi 0, %s95
      %s98 = sphi 0, %s97
      %s112 = sphi 0, %s98
      %s116 = sphi 0, %s116
      %s118 = sphi 0, %s116
      %s119 = sphi 0, %s118
      %s133 = sphi 0, %s119
      %s137 = sphi 0, %s137
      %s139 = sphi 0, %s137
      %s140 = sphi 0, %s139
      %s154 = sphi 0, %s140
      %s158 = sphi 0, %s158
      %s160 = sphi 0, %s158
      %s161 = sphi 0, %s160
      %s175 = sphi 0, %s161
      %s179 = sphi 0, %s179
      %s181 = sphi 0, %s179
      %s182 = sphi 0, %s181
      %s196 = sphi 0, %s182
    $region4: #{tpu_custom_call.1} parent=1 // loop_header_branch
      %17 = sbr.rel (%p15) target = $region8
    $region5: #{tpu_custom_call.1} parent=1 // loop_body
      %s19 = ssub.s32 %s14, 1
      %s20 = ssub.s32 %s14, 2
      %s21 = sadd.s32 %s14, 1
      %s22 = ssub.s32 %s14, %s21
      %p23 = scmp.eq.s32.totalorder %s22, 0
      %s25 = sadd.s32 %s24, 1
      %s26 = scalar_select %p23, %s24, %s25
      %p29 = pneg %p23
      %p30 = scmp.eq.s32.totalorder %s14, 2
      %p31 = por %p29, %p30
      %p32 = scmp.ne.s32.totalorder %s24, %s27
      %p33 = scmp.eq.s32.totalorder %s14, 0
      %p34 = por %p32, %p33
      %p35 = scmp.ne.s32.totalorder %s24, %s27
      %p36 = scmp.eq.s32.totalorder %s19, 2
      %p37 = por %p35, %p36
      %p38 = scmp.ne.s32.totalorder %s27, %s28
      %p39 = scmp.eq.s32.totalorder %s19, 0
      %p40 = por %p38, %p39
      %p41 = scmp.ne.s32.totalorder %s27, %s28
      %p42 = scmp.eq.s32.totalorder %s20, 2
      %p43 = por %p41, %p42
      %p45 = scmp.ne.s32.totalorder %s28, %s44
      %p46 = scmp.eq.s32.totalorder %s20, 0
      %p47 = por %p45, %p46
      %s48 = ssub.s32 %s14, %s21
      %p49 = scmp.eq.s32.totalorder %s48, 0
      %s51 = sadd.s32 %s50, 1
      %s52 = scalar_select %p49, %s50, %s51
      %p55 = pneg %p49
      %p56 = scmp.eq.s32.totalorder %s14, 2
      %p57 = por %p55, %p56
      %p58 = scmp.ne.s32.totalorder %s50, %s53
      %p59 = scmp.eq.s32.totalorder %s14, 0
      %p60 = por %p58, %p59
      %p61 = scmp.ne.s32.totalorder %s50, %s53
      %p62 = scmp.eq.s32.totalorder %s19, 2
      %p63 = por %p61, %p62
      %p64 = scmp.ne.s32.totalorder %s53, %s54
      %p65 = scmp.eq.s32.totalorder %s19, 0
      %p66 = por %p64, %p65
      %p67 = scmp.ne.s32.totalorder %s53, %s54
      %p68 = scmp.eq.s32.totalorder %s20, 2
      %p69 = por %p67, %p68
      %p71 = scmp.ne.s32.totalorder %s54, %s70
      %p72 = scmp.eq.s32.totalorder %s20, 0
      %p73 = por %p71, %p72
      %s75 = sadd.s32 %s74, 1
      %p78 = scmp.eq.s32.totalorder %s14, 2
      %p79 = scmp.ne.s32.totalorder %s74, %s76
      %p80 = scmp.eq.s32.totalorder %s14, 0
      %p81 = por %p79, %p80
      %p82 = scmp.ne.s32.totalorder %s74, %s76
      %p83 = scmp.eq.s32.totalorder %s19, 2
      %p84 = por %p82, %p83
      %p85 = scmp.ne.s32.totalorder %s76, %s77
      %p86 = scmp.eq.s32.totalorder %s19, 0
      %p87 = por %p85, %p86
      %p88 = scmp.ne.s32.totalorder %s76, %s77
      %p89 = scmp.eq.s32.totalorder %s20, 2
      %p90 = por %p88, %p89
      %p92 = scmp.ne.s32.totalorder %s77, %s91
      %p93 = scmp.eq.s32.totalorder %s20, 0
      %p94 = por %p92, %p93
      %s96 = sadd.s32 %s95, 1
      %p99 = scmp.eq.s32.totalorder %s14, 2
      %p100 = scmp.ne.s32.totalorder %s95, %s97
      %p101 = scmp.eq.s32.totalorder %s14, 0
      %p102 = por %p100, %p101
      %p103 = scmp.ne.s32.totalorder %s95, %s97
      %p104 = scmp.eq.s32.totalorder %s19, 2
      %p105 = por %p103, %p104
      %p106 = scmp.ne.s32.totalorder %s97, %s98
      %p107 = scmp.eq.s32.totalorder %s19, 0
      %p108 = por %p106, %p107
      %p109 = scmp.ne.s32.totalorder %s97, %s98
      %p110 = scmp.eq.s32.totalorder %s20, 2
      %p111 = por %p109, %p110
      %p113 = scmp.ne.s32.totalorder %s98, %s112
      %p114 = scmp.eq.s32.totalorder %s20, 0
      %p115 = por %p113, %p114
      %s117 = sadd.s32 %s116, 1
      %p120 = scmp.eq.s32.totalorder %s14, 2
      %p121 = scmp.ne.s32.totalorder %s116, %s118
      %p122 = scmp.eq.s32.totalorder %s14, 0
      %p123 = por %p121, %p122
      %p124 = scmp.ne.s32.totalorder %s116, %s118
      %p125 = scmp.eq.s32.totalorder %s19, 2
      %p126 = por %p124, %p125
      %p127 = scmp.ne.s32.totalorder %s118, %s119
      %p128 = scmp.eq.s32.totalorder %s19, 0
      %p129 = por %p127, %p128
      %p130 = scmp.ne.s32.totalorder %s118, %s119
      %p131 = scmp.eq.s32.totalorder %s20, 2
      %p132 = por %p130, %p131
      %p134 = scmp.ne.s32.totalorder %s119, %s133
      %p135 = scmp.eq.s32.totalorder %s20, 0
      %p136 = por %p134, %p135
      %s138 = sadd.s32 %s137, 1
      %p141 = scmp.eq.s32.totalorder %s14, 2
      %p142 = scmp.ne.s32.totalorder %s137, %s139
      %p143 = scmp.eq.s32.totalorder %s14, 0
      %p144 = por %p142, %p143
      %p145 = scmp.ne.s32.totalorder %s137, %s139
      %p146 = scmp.eq.s32.totalorder %s19, 2
      %p147 = por %p145, %p146
      %p148 = scmp.ne.s32.totalorder %s139, %s140
      %p149 = scmp.eq.s32.totalorder %s19, 0
      %p150 = por %p148, %p149
      %p151 = scmp.ne.s32.totalorder %s139, %s140
      %p152 = scmp.eq.s32.totalorder %s20, 2
      %p153 = por %p151, %p152
      %p155 = scmp.ne.s32.totalorder %s140, %s154
      %p156 = scmp.eq.s32.totalorder %s20, 0
      %p157 = por %p155, %p156
      %s159 = sadd.s32 %s158, 1
      %p162 = scmp.eq.s32.totalorder %s14, 2
      %p163 = scmp.ne.s32.totalorder %s158, %s160
      %p164 = scmp.eq.s32.totalorder %s14, 0
      %p165 = por %p163, %p164
      %p166 = scmp.ne.s32.totalorder %s158, %s160
      %p167 = scmp.eq.s32.totalorder %s19, 2
      %p168 = por %p166, %p167
      %p169 = scmp.ne.s32.totalorder %s160, %s161
      %p170 = scmp.eq.s32.totalorder %s19, 0
      %p171 = por %p169, %p170
      %p172 = scmp.ne.s32.totalorder %s160, %s161
      %p173 = scmp.eq.s32.totalorder %s20, 2
      %p174 = por %p172, %p173
      %p176 = scmp.ne.s32.totalorder %s161, %s175
      %p177 = scmp.eq.s32.totalorder %s20, 0
      %p178 = por %p176, %p177
      %s180 = sadd.s32 %s179, 1
      %p183 = scmp.eq.s32.totalorder %s14, 2
      %p184 = scmp.ne.s32.totalorder %s179, %s181
      %p185 = scmp.eq.s32.totalorder %s14, 0
      %p186 = por %p184, %p185
      %p187 = scmp.ne.s32.totalorder %s179, %s181
      %p188 = scmp.eq.s32.totalorder %s19, 2
      %p189 = por %p187, %p188
      %p190 = scmp.ne.s32.totalorder %s181, %s182
      %p191 = scmp.eq.s32.totalorder %s19, 0
      %p192 = por %p190, %p191
      %p193 = scmp.ne.s32.totalorder %s181, %s182
      %p194 = scmp.eq.s32.totalorder %s20, 2
      %p195 = por %p193, %p194
      %p197 = scmp.ne.s32.totalorder %s182, %s196
      %p198 = scmp.eq.s32.totalorder %s20, 0
      %p199 = por %p197, %p198
      %p200 = scmp.le.s32.totalorder 1, %s14
      %p201 = scmp.lt.s32.totalorder %s14, 4
      %p202 = pnand %p200, %p201
      %p203 = pneg %p202
      // Predicated region
      $region9: #{tpu_custom_call.1} parent=5 // pred_check
        _
      $region10: #{tpu_custom_call.1} parent=5 // pred_check_branch
        %205 = sbr.rel (%p202) target = $region12
      $region11: #{tpu_custom_call.1} parent=5 // pred_region
        %s206 = ssub.s32 %s14, 1
        // Predicated region
        $region13: #{tpu_custom_call.1} parent=11 // pred_check
          %p207 = pneg %p87
        $region14: #{tpu_custom_call.1} parent=11 // pred_check_branch
          %209 = sbr.rel (%p207) target = $region16
        $region15: #{tpu_custom_call.1} parent=11 // pred_region
          _
        $region16: #{tpu_custom_call.1} parent=11 // pred_fallthru
          _
        // Predicated region
        $region17: #{tpu_custom_call.1} parent=11 // pred_check
          %p210 = pneg %p108
        $region18: #{tpu_custom_call.1} parent=11 // pred_check_branch
          %212 = sbr.rel (%p210) target = $region20
        $region19: #{tpu_custom_call.1} parent=11 // pred_region
          _
        $region20: #{tpu_custom_call.1} parent=11 // pred_fallthru
          _
        // Predicated region
        $region21: #{tpu_custom_call.1} parent=11 // pred_check
          %p213 = pneg %p129
        $region22: #{tpu_custom_call.1} parent=11 // pred_check_branch
          %215 = sbr.rel (%p213) target = $region24
        $region23: #{tpu_custom_call.1} parent=11 // pred_region
          _
        $region24: #{tpu_custom_call.1} parent=11 // pred_fallthru
          _
        // Predicated region
        $region25: #{tpu_custom_call.1} parent=11 // pred_check
          %p216 = pneg %p150
        $region26: #{tpu_custom_call.1} parent=11 // pred_check_branch
          %218 = sbr.rel (%p216) target = $region28
        $region27: #{tpu_custom_call.1} parent=11 // pred_region
          _
        $region28: #{tpu_custom_call.1} parent=11 // pred_fallthru
          _
        // Predicated region
        $region29: #{tpu_custom_call.1} parent=11 // pred_check
          %p219 = pneg %p171
        $region30: #{tpu_custom_call.1} parent=11 // pred_check_branch
          %221 = sbr.rel (%p219) target = $region32
        $region31: #{tpu_custom_call.1} parent=11 // pred_region
          _
        $region32: #{tpu_custom_call.1} parent=11 // pred_fallthru
          _
      $region12: #{tpu_custom_call.1} parent=5 // pred_fallthru
        _
      %p222 = scmp.lt.s32.totalorder %s14, 3
      // Predicated region
      $region33: #{tpu_custom_call.1} parent=5 // pred_check
        %p223 = pneg %p222
      $region34: #{tpu_custom_call.1} parent=5 // pred_check_branch
        %225 = sbr.rel (%p223) target = $region36
      $region35: #{tpu_custom_call.1} parent=5 // pred_region
        // Predicated region
        $region37: #{tpu_custom_call.1} parent=35 // pred_check
          %p226 = pneg %p34
        $region38: #{tpu_custom_call.1} parent=35 // pred_check_branch
          %228 = sbr.rel (%p226) target = $region40
        $region39: #{tpu_custom_call.1} parent=35 // pred_region
          %s229 = smul.u32 8, %s14
          %p230 = scmp.lt.s32.totalorder %s229, 23
          %s231 = scalar_select %p230, %s229, 23
          %s232 = smul.addr %s231, 2
          %s233 = scalar_lea.vmem %s0, %s232
          %s234 = smul.u32 8, %s14
        $region40: #{tpu_custom_call.1} parent=35 // pred_fallthru
          _
        // Predicated region
        $region41: #{tpu_custom_call.1} parent=35 // pred_check
          %p235 = pneg %p60
        $region42: #{tpu_custom_call.1} parent=35 // pred_check_branch
          %237 = sbr.rel (%p235) target = $region44
        $region43: #{tpu_custom_call.1} parent=35 // pred_region
          %s238 = smul.u32 128, %s14
          %p239 = scmp.lt.s32.totalorder %s238, 383
          %s240 = scalar_select %p239, %s238, 383
          %s241 = smul.addr %s240, 12
          %s242 = smul.addr %s241, 4
          %s243 = scalar_lea.vmem %s1, %s242
          %s244 = smul.u32 128, %s14
        $region44: #{tpu_custom_call.1} parent=35 // pred_fallthru
          _
      $region36: #{tpu_custom_call.1} parent=5 // pred_fallthru
        _
      %p245 = scmp.le.s32.totalorder 1, %s14
      %p246 = scmp.lt.s32.totalorder %s14, 4
      %p247 = pnand %p245, %p246
      %p248 = pneg %p247
      // Predicated region
      $region45: #{tpu_custom_call.1} parent=5 // pred_check
        _
      $region46: #{tpu_custom_call.1} parent=5 // pred_check_branch
        %250 = sbr.rel (%p247) target = $region48
      $region47: #{tpu_custom_call.1} parent=5 // pred_region
        %s251 = ssub.s32 %s14, 1
        %s252 = smul.u32 8, %s19
        %p253 = scmp.lt.s32.totalorder %s252, 23
        %s254 = scalar_select %p253, %s252, 23
        %s255 = smul.addr %s254, 2
        %s256 = scalar_lea.vmem %s0, %s255
        %p257 = pneg %p40
        %p258 = pneg %p37
        %s259 = smul.u32 128, %s19
        %p260 = scmp.lt.s32.totalorder %s259, 383
        %s261 = scalar_select %p260, %s259, 383
        %s262 = smul.addr %s261, 12
        %s263 = smul.addr %s262, 4
        %s264 = scalar_lea.vmem %s1, %s263
        %p265 = pneg %p66
        %p266 = pneg %p63
        %p267 = pneg %p87
        %p268 = pneg %p84
        %p269 = pneg %p108
        %p270 = pneg %p105
        %p271 = pneg %p129
        %p272 = pneg %p126
        %p273 = pneg %p150
        %p274 = pneg %p147
        %p275 = pneg %p171
        %p276 = pneg %p168
        %p277 = pneg %p192
        %p278 = pneg %p189
        %s279 = smul.u32 8, %s19
        %p280 = scmp.lt.s32.totalorder %s279, 23
        %s281 = scalar_select %p280, %s279, 23
        %s282 = smul.addr %s281, 2
        %s283 = scalar_lea.vmem %s0, %s282
        %s284 = smul.u32 8, %s19
        %s285 = smul.u32 128, %s19
        %p286 = scmp.lt.s32.totalorder %s285, 383
        %s287 = scalar_select %p286, %s285, 383
        %s288 = smul.addr %s287, 12
        %s289 = smul.addr %s288, 4
        %s290 = scalar_lea.vmem %s1, %s289
        %s291 = smul.u32 128, %s19
        %p293 = scmp.eq.s32.totalorder %s19, 0
        // Predicated region
        $region49: #{tpu_custom_call.1} parent=47 // pred_check
          %p294 = pneg %p293
        $region50: #{tpu_custom_call.1} parent=47 // pred_check_branch
          %296 = sbr.rel (%p294) target = $region52
        $region51: #{tpu_custom_call.1} parent=47 // pred_region
          %297 = vst [vmem:[#allocation2] sm:$0xff] 0.0
          %298 = vst [vmem:[#allocation2 + $0x8] sm:$0xff] 0.0
          %299 = vst [vmem:[#allocation2 + $0x10] sm:$0xff] 0.0
          %300 = vst [vmem:[#allocation2 + $0x18] sm:$0xff] 0.0
          %301 = vst [vmem:[#allocation2 + $0x20] sm:$0xff] 0.0
          %vm302 = vcmask 1043456
          %vm303 = vcmask 752644
          %vm304 = vmor %vm303, %vm302
          %305 = vst.msk [vmem:[#allocation2 + $0x28] sm:$0xff] %vm304, 0.0
        $region52: #{tpu_custom_call.1} parent=47 // pred_fallthru
          _
        %v306 = vld [vmem:[#allocation2] sm:$0xff]
        %v307 = vld [vmem:[#allocation2 + $0x8] sm:$0xff]
        %v308 = vld [vmem:[#allocation2 + $0x10] sm:$0xff]
        %v309 = vld [vmem:[#allocation2 + $0x18] sm:$0xff]
        %v310 = vld [vmem:[#allocation2 + $0x20] sm:$0xff]
        %v311 = vld [vmem:[#allocation2 + $0x28] sm:$0xff]
        %v312 = vld [vmem:[%s283] sm:$0xff]
        %v313 = vld [vmem:[%s283 + $0x8] sm:$0xff]
        %v314 = vld [vmem:[%s290] sm:$0xff]
        %v315 = vld [vmem:[%s290 + $0x8] sm:$0xff]
        %v316 = vld [vmem:[%s290 + $0x10] sm:$0xff]
        %v317 = vld [vmem:[%s290 + $0x18] sm:$0xff]
        %v318 = vld [vmem:[%s290 + $0x20] sm:$0xff]
        %v319 = vld [vmem:[%s290 + $0x28] sm:$0xff]
        %v320 = vld [vmem:[%s290 + $0x30] sm:$0xff]
        %v321 = vld [vmem:[%s290 + $0x38] sm:$0xff]
        %v322 = vld [vmem:[%s290 + $0x40] sm:$0xff]
        %v323 = vld [vmem:[%s290 + $0x48] sm:$0xff]
        %v324 = vld [vmem:[%s290 + $0x50] sm:$0xff]
        %v325 = vld [vmem:[%s290 + $0x58] sm:$0xff]
        %v326 = vld [vmem:[%s290 + $0x60] sm:$0xff]
        %v327 = vld [vmem:[%s290 + $0x68] sm:$0xff]
        %v328 = vld [vmem:[%s290 + $0x70] sm:$0xff]
        %v329 = vld [vmem:[%s290 + $0x78] sm:$0xff]
        %v330 = vld [vmem:[%s290 + $0x80] sm:$0xff]
        %v331 = vld [vmem:[%s290 + $0x88] sm:$0xff]
        %v332 = vld [vmem:[%s290 + $0x90] sm:$0xff]
        %v333 = vld [vmem:[%s290 + $0x98] sm:$0xff]
        %v334 = vld [vmem:[%s290 + $0xa0] sm:$0xff]
        %v335 = vld [vmem:[%s290 + $0xa8] sm:$0xff]
        %v336 = vld [vmem:[%s290 + $0xb0] sm:$0xff]
        %v337 = vld [vmem:[%s290 + $0xb8] sm:$0xff]
        %v338 = vld [vmem:[%s290 + $0xc0] sm:$0xff]
        %v339 = vld [vmem:[%s290 + $0xc8] sm:$0xff]
        %v340 = vld [vmem:[%s290 + $0xd0] sm:$0xff]
        %v341 = vld [vmem:[%s290 + $0xd8] sm:$0xff]
        %v342 = vld [vmem:[%s290 + $0xe0] sm:$0xff]
        %v343 = vld [vmem:[%s290 + $0xe8] sm:$0xff]
        %v344 = vld [vmem:[%s290 + $0xf0] sm:$0xff]
        %v345 = vld [vmem:[%s290 + $0xf8] sm:$0xff]
        %v346 = vld [vmem:[%s290 + $0x100] sm:$0xff]
        %v347 = vld [vmem:[%s290 + $0x108] sm:$0xff]
        %v348 = vld [vmem:[%s290 + $0x110] sm:$0xff]
        %v349 = vld [vmem:[%s290 + $0x118] sm:$0xff]
        %v350 = vld [vmem:[%s290 + $0x120] sm:$0xff]
        %v351 = vld [vmem:[%s290 + $0x128] sm:$0xff]
        %v352 = vld [vmem:[%s290 + $0x130] sm:$0xff]
        %v353 = vld [vmem:[%s290 + $0x138] sm:$0xff]
        %v354 = vld [vmem:[%s290 + $0x140] sm:$0xff]
        %v355 = vld [vmem:[%s290 + $0x148] sm:$0xff]
        %v356 = vld [vmem:[%s290 + $0x150] sm:$0xff]
        %v357 = vld [vmem:[%s290 + $0x158] sm:$0xff]
        %v358 = vld [vmem:[%s290 + $0x160] sm:$0xff]
        %v359 = vld [vmem:[%s290 + $0x168] sm:$0xff]
        %v360 = vld [vmem:[%s290 + $0x170] sm:$0xff]
        %v361 = vld [vmem:[%s290 + $0x178] sm:$0xff]
        %v362 = vld [vmem:[%s290 + $0x180] sm:$0xff]
        %v363 = vld [vmem:[%s290 + $0x188] sm:$0xff]
        %v364 = vld [vmem:[%s290 + $0x190] sm:$0xff]
        %v365 = vld [vmem:[%s290 + $0x198] sm:$0xff]
        %v366 = vld [vmem:[%s290 + $0x1a0] sm:$0xff]
        %v367 = vld [vmem:[%s290 + $0x1a8] sm:$0xff]
        %v368 = vld [vmem:[%s290 + $0x1b0] sm:$0xff]
        %v369 = vld [vmem:[%s290 + $0x1b8] sm:$0xff]
        %v370 = vld [vmem:[%s290 + $0x1c0] sm:$0xff]
        %v371 = vld [vmem:[%s290 + $0x1c8] sm:$0xff]
        %v372 = vld [vmem:[%s290 + $0x1d0] sm:$0xff]
        %v373 = vld [vmem:[%s290 + $0x1d8] sm:$0xff]
        %v374 = vld [vmem:[%s290 + $0x1e0] sm:$0xff]
        %v375 = vld [vmem:[%s290 + $0x1e8] sm:$0xff]
        %v376 = vld [vmem:[%s290 + $0x1f0] sm:$0xff]
        %v377 = vld [vmem:[%s290 + $0x1f8] sm:$0xff]
        %v378 = vld [vmem:[%s290 + $0x200] sm:$0xff]
        %v379 = vld [vmem:[%s290 + $0x208] sm:$0xff]
        %v380 = vld [vmem:[%s290 + $0x210] sm:$0xff]
        %v381 = vld [vmem:[%s290 + $0x218] sm:$0xff]
        %v382 = vld [vmem:[%s290 + $0x220] sm:$0xff]
        %v383 = vld [vmem:[%s290 + $0x228] sm:$0xff]
        %v384 = vld [vmem:[%s290 + $0x230] sm:$0xff]
        %v385 = vld [vmem:[%s290 + $0x238] sm:$0xff]
        %v386 = vld [vmem:[%s290 + $0x240] sm:$0xff]
        %v387 = vld [vmem:[%s290 + $0x248] sm:$0xff]
        %v388 = vld [vmem:[%s290 + $0x250] sm:$0xff]
        %v389 = vld [vmem:[%s290 + $0x258] sm:$0xff]
        %v390 = vld [vmem:[%s290 + $0x260] sm:$0xff]
        %v391 = vld [vmem:[%s290 + $0x268] sm:$0xff]
        %v392 = vld [vmem:[%s290 + $0x270] sm:$0xff]
        %v393 = vld [vmem:[%s290 + $0x278] sm:$0xff]
        %v394 = vld [vmem:[%s290 + $0x280] sm:$0xff]
        %v395 = vld [vmem:[%s290 + $0x288] sm:$0xff]
        %v396 = vld [vmem:[%s290 + $0x290] sm:$0xff]
        %v397 = vld [vmem:[%s290 + $0x298] sm:$0xff]
        %v398 = vld [vmem:[%s290 + $0x2a0] sm:$0xff]
        %v399 = vld [vmem:[%s290 + $0x2a8] sm:$0xff]
        %v400 = vld [vmem:[%s290 + $0x2b0] sm:$0xff]
        %v401 = vld [vmem:[%s290 + $0x2b8] sm:$0xff]
        %v402 = vld [vmem:[%s290 + $0x2c0] sm:$0xff]
        %v403 = vld [vmem:[%s290 + $0x2c8] sm:$0xff]
        %v404 = vld [vmem:[%s290 + $0x2d0] sm:$0xff]
        %v405 = vld [vmem:[%s290 + $0x2d8] sm:$0xff]
        %v406 = vld [vmem:[%s290 + $0x2e0] sm:$0xff]
        %v407 = vld [vmem:[%s290 + $0x2e8] sm:$0xff]
        %v408 = vld [vmem:[%s290 + $0x2f0] sm:$0xff]
        %v409 = vld [vmem:[%s290 + $0x2f8] sm:$0xff]
        %v410 = vld [vmem:[%s290 + $0x300] sm:$0xff]
        %v411 = vld [vmem:[%s290 + $0x308] sm:$0xff]
        %v412 = vld [vmem:[%s290 + $0x310] sm:$0xff]
        %v413 = vld [vmem:[%s290 + $0x318] sm:$0xff]
        %v414 = vld [vmem:[%s290 + $0x320] sm:$0xff]
        %v415 = vld [vmem:[%s290 + $0x328] sm:$0xff]
        %v416 = vld [vmem:[%s290 + $0x330] sm:$0xff]
        %v417 = vld [vmem:[%s290 + $0x338] sm:$0xff]
        %v418 = vld [vmem:[%s290 + $0x340] sm:$0xff]
        %v419 = vld [vmem:[%s290 + $0x348] sm:$0xff]
        %v420 = vld [vmem:[%s290 + $0x350] sm:$0xff]
        %v421 = vld [vmem:[%s290 + $0x358] sm:$0xff]
        %v422 = vld [vmem:[%s290 + $0x360] sm:$0xff]
        %v423 = vld [vmem:[%s290 + $0x368] sm:$0xff]
        %v424 = vld [vmem:[%s290 + $0x370] sm:$0xff]
        %v425 = vld [vmem:[%s290 + $0x378] sm:$0xff]
        %v426 = vld [vmem:[%s290 + $0x380] sm:$0xff]
        %v427 = vld [vmem:[%s290 + $0x388] sm:$0xff]
        %v428 = vld [vmem:[%s290 + $0x390] sm:$0xff]
        %v429 = vld [vmem:[%s290 + $0x398] sm:$0xff]
        %v430 = vld [vmem:[%s290 + $0x3a0] sm:$0xff]
        %v431 = vld [vmem:[%s290 + $0x3a8] sm:$0xff]
        %v432 = vld [vmem:[%s290 + $0x3b0] sm:$0xff]
        %v433 = vld [vmem:[%s290 + $0x3b8] sm:$0xff]
        %v434 = vld [vmem:[%s290 + $0x3c0] sm:$0xff]
        %v435 = vld [vmem:[%s290 + $0x3c8] sm:$0xff]
        %v436 = vld [vmem:[%s290 + $0x3d0] sm:$0xff]
        %v437 = vld [vmem:[%s290 + $0x3d8] sm:$0xff]
        %v438 = vld [vmem:[%s290 + $0x3e0] sm:$0xff]
        %v439 = vld [vmem:[%s290 + $0x3e8] sm:$0xff]
        %v440 = vld [vmem:[%s290 + $0x3f0] sm:$0xff]
        %v441 = vld [vmem:[%s290 + $0x3f8] sm:$0xff]
        %v442 = vld [vmem:[%s290 + $0x400] sm:$0xff]
        %v443 = vld [vmem:[%s290 + $0x408] sm:$0xff]
        %v444 = vld [vmem:[%s290 + $0x410] sm:$0xff]
        %v445 = vld [vmem:[%s290 + $0x418] sm:$0xff]
        %v446 = vld [vmem:[%s290 + $0x420] sm:$0xff]
        %v447 = vld [vmem:[%s290 + $0x428] sm:$0xff]
        %v448 = vld [vmem:[%s290 + $0x430] sm:$0xff]
        %v449 = vld [vmem:[%s290 + $0x438] sm:$0xff]
        %v450 = vld [vmem:[%s290 + $0x440] sm:$0xff]
        %v451 = vld [vmem:[%s290 + $0x448] sm:$0xff]
        %v452 = vld [vmem:[%s290 + $0x450] sm:$0xff]
        %v453 = vld [vmem:[%s290 + $0x458] sm:$0xff]
        %v454 = vld [vmem:[%s290 + $0x460] sm:$0xff]
        %v455 = vld [vmem:[%s290 + $0x468] sm:$0xff]
        %v456 = vld [vmem:[%s290 + $0x470] sm:$0xff]
        %v457 = vld [vmem:[%s290 + $0x478] sm:$0xff]
        %v458 = vld [vmem:[%s290 + $0x480] sm:$0xff]
        %v459 = vld [vmem:[%s290 + $0x488] sm:$0xff]
        %v460 = vld [vmem:[%s290 + $0x490] sm:$0xff]
        %v461 = vld [vmem:[%s290 + $0x498] sm:$0xff]
        %v462 = vld [vmem:[%s290 + $0x4a0] sm:$0xff]
        %v463 = vld [vmem:[%s290 + $0x4a8] sm:$0xff]
        %v464 = vld [vmem:[%s290 + $0x4b0] sm:$0xff]
        %v465 = vld [vmem:[%s290 + $0x4b8] sm:$0xff]
        %v466 = vld [vmem:[%s290 + $0x4c0] sm:$0xff]
        %v467 = vld [vmem:[%s290 + $0x4c8] sm:$0xff]
        %v468 = vld [vmem:[%s290 + $0x4d0] sm:$0xff]
        %v469 = vld [vmem:[%s290 + $0x4d8] sm:$0xff]
        %v470 = vld [vmem:[%s290 + $0x4e0] sm:$0xff]
        %v471 = vld [vmem:[%s290 + $0x4e8] sm:$0xff]
        %v472 = vld [vmem:[%s290 + $0x4f0] sm:$0xff]
        %v473 = vld [vmem:[%s290 + $0x4f8] sm:$0xff]
        %v474 = vld [vmem:[%s290 + $0x500] sm:$0xff]
        %v475 = vld [vmem:[%s290 + $0x508] sm:$0xff]
        %v476 = vld [vmem:[%s290 + $0x510] sm:$0xff]
        %v477 = vld [vmem:[%s290 + $0x518] sm:$0xff]
        %v478 = vld [vmem:[%s290 + $0x520] sm:$0xff]
        %v479 = vld [vmem:[%s290 + $0x528] sm:$0xff]
        %v480 = vld [vmem:[%s290 + $0x530] sm:$0xff]
        %v481 = vld [vmem:[%s290 + $0x538] sm:$0xff]
        %v482 = vld [vmem:[%s290 + $0x540] sm:$0xff]
        %v483 = vld [vmem:[%s290 + $0x548] sm:$0xff]
        %v484 = vld [vmem:[%s290 + $0x550] sm:$0xff]
        %v485 = vld [vmem:[%s290 + $0x558] sm:$0xff]
        %v486 = vld [vmem:[%s290 + $0x560] sm:$0xff]
        %v487 = vld [vmem:[%s290 + $0x568] sm:$0xff]
        %v488 = vld [vmem:[%s290 + $0x570] sm:$0xff]
        %v489 = vld [vmem:[%s290 + $0x578] sm:$0xff]
        %v490 = vld [vmem:[%s290 + $0x580] sm:$0xff]
        %v491 = vld [vmem:[%s290 + $0x588] sm:$0xff]
        %v492 = vld [vmem:[%s290 + $0x590] sm:$0xff]
        %v493 = vld [vmem:[%s290 + $0x598] sm:$0xff]
        %v494 = vld [vmem:[%s290 + $0x5a0] sm:$0xff]
        %v495 = vld [vmem:[%s290 + $0x5a8] sm:$0xff]
        %v496 = vld [vmem:[%s290 + $0x5b0] sm:$0xff]
        %v497 = vld [vmem:[%s290 + $0x5b8] sm:$0xff]
        %v498 = vld [vmem:[%s290 + $0x5c0] sm:$0xff]
        %v499 = vld [vmem:[%s290 + $0x5c8] sm:$0xff]
        %v500 = vld [vmem:[%s290 + $0x5d0] sm:$0xff]
        %v501 = vld [vmem:[%s290 + $0x5d8] sm:$0xff]
        %v502 = vld [vmem:[%s290 + $0x5e0] sm:$0xff]
        %v503 = vld [vmem:[%s290 + $0x5e8] sm:$0xff]
        %v504 = vld [vmem:[%s290 + $0x5f0] sm:$0xff]
        %v505 = vld [vmem:[%s290 + $0x5f8] sm:$0xff]
        %v506 = vld [vmem:[%s290 + $0x600] sm:$0xff]
        %v507 = vld [vmem:[%s290 + $0x608] sm:$0xff]
        %v508 = vld [vmem:[%s290 + $0x610] sm:$0xff]
        %v509 = vld [vmem:[%s290 + $0x618] sm:$0xff]
        %v510 = vld [vmem:[%s290 + $0x620] sm:$0xff]
        %v511 = vld [vmem:[%s290 + $0x628] sm:$0xff]
        %v512 = vld [vmem:[%s290 + $0x630] sm:$0xff]
        %v513 = vld [vmem:[%s290 + $0x638] sm:$0xff]
        %v514 = vld [vmem:[%s290 + $0x640] sm:$0xff]
        %v515 = vld [vmem:[%s290 + $0x648] sm:$0xff]
        %v516 = vld [vmem:[%s290 + $0x650] sm:$0xff]
        %v517 = vld [vmem:[%s290 + $0x658] sm:$0xff]
        %v518 = vld [vmem:[%s290 + $0x660] sm:$0xff]
        %v519 = vld [vmem:[%s290 + $0x668] sm:$0xff]
        %v520 = vld [vmem:[%s290 + $0x670] sm:$0xff]
        %v521 = vld [vmem:[%s290 + $0x678] sm:$0xff]
        %v522 = vld [vmem:[%s290 + $0x680] sm:$0xff]
        %v523 = vld [vmem:[%s290 + $0x688] sm:$0xff]
        %v524 = vld [vmem:[%s290 + $0x690] sm:$0xff]
        %v525 = vld [vmem:[%s290 + $0x698] sm:$0xff]
        %v526 = vld [vmem:[%s290 + $0x6a0] sm:$0xff]
        %v527 = vld [vmem:[%s290 + $0x6a8] sm:$0xff]
        %v528 = vld [vmem:[%s290 + $0x6b0] sm:$0xff]
        %v529 = vld [vmem:[%s290 + $0x6b8] sm:$0xff]
        %v530 = vld [vmem:[%s290 + $0x6c0] sm:$0xff]
        %v531 = vld [vmem:[%s290 + $0x6c8] sm:$0xff]
        %v532 = vld [vmem:[%s290 + $0x6d0] sm:$0xff]
        %v533 = vld [vmem:[%s290 + $0x6d8] sm:$0xff]
        %v534 = vld [vmem:[%s290 + $0x6e0] sm:$0xff]
        %v535 = vld [vmem:[%s290 + $0x6e8] sm:$0xff]
        %v536 = vld [vmem:[%s290 + $0x6f0] sm:$0xff]
        %v537 = vld [vmem:[%s290 + $0x6f8] sm:$0xff]
        %v538 = vld [vmem:[%s290 + $0x700] sm:$0xff]
        %v539 = vld [vmem:[%s290 + $0x708] sm:$0xff]
        %v540 = vld [vmem:[%s290 + $0x710] sm:$0xff]
        %v541 = vld [vmem:[%s290 + $0x718] sm:$0xff]
        %v542 = vld [vmem:[%s290 + $0x720] sm:$0xff]
        %v543 = vld [vmem:[%s290 + $0x728] sm:$0xff]
        %v544 = vld [vmem:[%s290 + $0x730] sm:$0xff]
        %v545 = vld [vmem:[%s290 + $0x738] sm:$0xff]
        %v546 = vld [vmem:[%s290 + $0x740] sm:$0xff]
        %v547 = vld [vmem:[%s290 + $0x748] sm:$0xff]
        %v548 = vld [vmem:[%s290 + $0x750] sm:$0xff]
        %v549 = vld [vmem:[%s290 + $0x758] sm:$0xff]
        %v550 = vld [vmem:[%s290 + $0x760] sm:$0xff]
        %v551 = vld [vmem:[%s290 + $0x768] sm:$0xff]
        %v552 = vld [vmem:[%s290 + $0x770] sm:$0xff]
        %v553 = vld [vmem:[%s290 + $0x778] sm:$0xff]
        %v554 = vld [vmem:[%s290 + $0x780] sm:$0xff]
        %v555 = vld [vmem:[%s290 + $0x788] sm:$0xff]
        %v556 = vld [vmem:[%s290 + $0x790] sm:$0xff]
        %v557 = vld [vmem:[%s290 + $0x798] sm:$0xff]
        %v558 = vld [vmem:[%s290 + $0x7a0] sm:$0xff]
        %v559 = vld [vmem:[%s290 + $0x7a8] sm:$0xff]
        %v560 = vld [vmem:[%s290 + $0x7b0] sm:$0xff]
        %v561 = vld [vmem:[%s290 + $0x7b8] sm:$0xff]
        %v562 = vld [vmem:[%s290 + $0x7c0] sm:$0xff]
        %v563 = vld [vmem:[%s290 + $0x7c8] sm:$0xff]
        %v564 = vld [vmem:[%s290 + $0x7d0] sm:$0xff]
        %v565 = vld [vmem:[%s290 + $0x7d8] sm:$0xff]
        %v566 = vld [vmem:[%s290 + $0x7e0] sm:$0xff]
        %v567 = vld [vmem:[%s290 + $0x7e8] sm:$0xff]
        %v568 = vld [vmem:[%s290 + $0x7f0] sm:$0xff]
        %v569 = vld [vmem:[%s290 + $0x7f8] sm:$0xff]
        %v570 = vld [vmem:[%s290 + $0x800] sm:$0xff]
        %v571 = vld [vmem:[%s290 + $0x808] sm:$0xff]
        %v572 = vld [vmem:[%s290 + $0x810] sm:$0xff]
        %v573 = vld [vmem:[%s290 + $0x818] sm:$0xff]
        %v574 = vld [vmem:[%s290 + $0x820] sm:$0xff]
        %v575 = vld [vmem:[%s290 + $0x828] sm:$0xff]
        %v576 = vld [vmem:[%s290 + $0x830] sm:$0xff]
        %v577 = vld [vmem:[%s290 + $0x838] sm:$0xff]
        %v578 = vld [vmem:[%s290 + $0x840] sm:$0xff]
        %v579 = vld [vmem:[%s290 + $0x848] sm:$0xff]
        %v580 = vld [vmem:[%s290 + $0x850] sm:$0xff]
        %v581 = vld [vmem:[%s290 + $0x858] sm:$0xff]
        %v582 = vld [vmem:[%s290 + $0x860] sm:$0xff]
        %v583 = vld [vmem:[%s290 + $0x868] sm:$0xff]
        %v584 = vld [vmem:[%s290 + $0x870] sm:$0xff]
        %v585 = vld [vmem:[%s290 + $0x878] sm:$0xff]
        %v586 = vld [vmem:[%s290 + $0x880] sm:$0xff]
        %v587 = vld [vmem:[%s290 + $0x888] sm:$0xff]
        %v588 = vld [vmem:[%s290 + $0x890] sm:$0xff]
        %v589 = vld [vmem:[%s290 + $0x898] sm:$0xff]
        %v590 = vld [vmem:[%s290 + $0x8a0] sm:$0xff]
        %v591 = vld [vmem:[%s290 + $0x8a8] sm:$0xff]
        %v592 = vld [vmem:[%s290 + $0x8b0] sm:$0xff]
        %v593 = vld [vmem:[%s290 + $0x8b8] sm:$0xff]
        %v594 = vld [vmem:[%s290 + $0x8c0] sm:$0xff]
        %v595 = vld [vmem:[%s290 + $0x8c8] sm:$0xff]
        %v596 = vld [vmem:[%s290 + $0x8d0] sm:$0xff]
        %v597 = vld [vmem:[%s290 + $0x8d8] sm:$0xff]
        %v598 = vld [vmem:[%s290 + $0x8e0] sm:$0xff]
        %v599 = vld [vmem:[%s290 + $0x8e8] sm:$0xff]
        %v600 = vld [vmem:[%s290 + $0x8f0] sm:$0xff]
        %v601 = vld [vmem:[%s290 + $0x8f8] sm:$0xff]
        %v602 = vld [vmem:[%s290 + $0x900] sm:$0xff]
        %v603 = vld [vmem:[%s290 + $0x908] sm:$0xff]
        %v604 = vld [vmem:[%s290 + $0x910] sm:$0xff]
        %v605 = vld [vmem:[%s290 + $0x918] sm:$0xff]
        %v606 = vld [vmem:[%s290 + $0x920] sm:$0xff]
        %v607 = vld [vmem:[%s290 + $0x928] sm:$0xff]
        %v608 = vld [vmem:[%s290 + $0x930] sm:$0xff]
        %v609 = vld [vmem:[%s290 + $0x938] sm:$0xff]
        %v610 = vld [vmem:[%s290 + $0x940] sm:$0xff]
        %v611 = vld [vmem:[%s290 + $0x948] sm:$0xff]
        %v612 = vld [vmem:[%s290 + $0x950] sm:$0xff]
        %v613 = vld [vmem:[%s290 + $0x958] sm:$0xff]
        %v614 = vld [vmem:[%s290 + $0x960] sm:$0xff]
        %v615 = vld [vmem:[%s290 + $0x968] sm:$0xff]
        %v616 = vld [vmem:[%s290 + $0x970] sm:$0xff]
        %v617 = vld [vmem:[%s290 + $0x978] sm:$0xff]
        %v618 = vld [vmem:[%s290 + $0x980] sm:$0xff]
        %v619 = vld [vmem:[%s290 + $0x988] sm:$0xff]
        %v620 = vld [vmem:[%s290 + $0x990] sm:$0xff]
        %v621 = vld [vmem:[%s290 + $0x998] sm:$0xff]
        %v622 = vld [vmem:[%s290 + $0x9a0] sm:$0xff]
        %v623 = vld [vmem:[%s290 + $0x9a8] sm:$0xff]
        %v624 = vld [vmem:[%s290 + $0x9b0] sm:$0xff]
        %v625 = vld [vmem:[%s290 + $0x9b8] sm:$0xff]
        %v626 = vld [vmem:[%s290 + $0x9c0] sm:$0xff]
        %v627 = vld [vmem:[%s290 + $0x9c8] sm:$0xff]
        %v628 = vld [vmem:[%s290 + $0x9d0] sm:$0xff]
        %v629 = vld [vmem:[%s290 + $0x9d8] sm:$0xff]
        %v630 = vld [vmem:[%s290 + $0x9e0] sm:$0xff]
        %v631 = vld [vmem:[%s290 + $0x9e8] sm:$0xff]
        %v632 = vld [vmem:[%s290 + $0x9f0] sm:$0xff]
        %v633 = vld [vmem:[%s290 + $0x9f8] sm:$0xff]
        %v634 = vld [vmem:[%s290 + $0xa00] sm:$0xff]
        %v635 = vld [vmem:[%s290 + $0xa08] sm:$0xff]
        %v636 = vld [vmem:[%s290 + $0xa10] sm:$0xff]
        %v637 = vld [vmem:[%s290 + $0xa18] sm:$0xff]
        %v638 = vld [vmem:[%s290 + $0xa20] sm:$0xff]
        %v639 = vld [vmem:[%s290 + $0xa28] sm:$0xff]
        %v640 = vld [vmem:[%s290 + $0xa30] sm:$0xff]
        %v641 = vld [vmem:[%s290 + $0xa38] sm:$0xff]
        %v642 = vld [vmem:[%s290 + $0xa40] sm:$0xff]
        %v643 = vld [vmem:[%s290 + $0xa48] sm:$0xff]
        %v644 = vld [vmem:[%s290 + $0xa50] sm:$0xff]
        %v645 = vld [vmem:[%s290 + $0xa58] sm:$0xff]
        %v646 = vld [vmem:[%s290 + $0xa60] sm:$0xff]
        %v647 = vld [vmem:[%s290 + $0xa68] sm:$0xff]
        %v648 = vld [vmem:[%s290 + $0xa70] sm:$0xff]
        %v649 = vld [vmem:[%s290 + $0xa78] sm:$0xff]
        %v650 = vld [vmem:[%s290 + $0xa80] sm:$0xff]
        %v651 = vld [vmem:[%s290 + $0xa88] sm:$0xff]
        %v652 = vld [vmem:[%s290 + $0xa90] sm:$0xff]
        %v653 = vld [vmem:[%s290 + $0xa98] sm:$0xff]
        %v654 = vld [vmem:[%s290 + $0xaa0] sm:$0xff]
        %v655 = vld [vmem:[%s290 + $0xaa8] sm:$0xff]
        %v656 = vld [vmem:[%s290 + $0xab0] sm:$0xff]
        %v657 = vld [vmem:[%s290 + $0xab8] sm:$0xff]
        %v658 = vld [vmem:[%s290 + $0xac0] sm:$0xff]
        %v659 = vld [vmem:[%s290 + $0xac8] sm:$0xff]
        %v660 = vld [vmem:[%s290 + $0xad0] sm:$0xff]
        %v661 = vld [vmem:[%s290 + $0xad8] sm:$0xff]
        %v662 = vld [vmem:[%s290 + $0xae0] sm:$0xff]
        %v663 = vld [vmem:[%s290 + $0xae8] sm:$0xff]
        %v664 = vld [vmem:[%s290 + $0xaf0] sm:$0xff]
        %v665 = vld [vmem:[%s290 + $0xaf8] sm:$0xff]
        %v666 = vld [vmem:[%s290 + $0xb00] sm:$0xff]
        %v667 = vld [vmem:[%s290 + $0xb08] sm:$0xff]
        %v668 = vld [vmem:[%s290 + $0xb10] sm:$0xff]
        %v669 = vld [vmem:[%s290 + $0xb18] sm:$0xff]
        %v670 = vld [vmem:[%s290 + $0xb20] sm:$0xff]
        %v671 = vld [vmem:[%s290 + $0xb28] sm:$0xff]
        %v672 = vld [vmem:[%s290 + $0xb30] sm:$0xff]
        %v673 = vld [vmem:[%s290 + $0xb38] sm:$0xff]
        %v674 = vld [vmem:[%s290 + $0xb40] sm:$0xff]
        %v675 = vld [vmem:[%s290 + $0xb48] sm:$0xff]
        %v676 = vld [vmem:[%s290 + $0xb50] sm:$0xff]
        %v677 = vld [vmem:[%s290 + $0xb58] sm:$0xff]
        %v678 = vld [vmem:[%s290 + $0xb60] sm:$0xff]
        %v679 = vld [vmem:[%s290 + $0xb68] sm:$0xff]
        %v680 = vld [vmem:[%s290 + $0xb70] sm:$0xff]
        %v681 = vld [vmem:[%s290 + $0xb78] sm:$0xff]
        %v682 = vld [vmem:[%s290 + $0xb80] sm:$0xff]
        %v683 = vld [vmem:[%s290 + $0xb88] sm:$0xff]
        %v684 = vld [vmem:[%s290 + $0xb90] sm:$0xff]
        %v685 = vld [vmem:[%s290 + $0xb98] sm:$0xff]
        %v686 = vld [vmem:[%s290 + $0xba0] sm:$0xff]
        %v687 = vld [vmem:[%s290 + $0xba8] sm:$0xff]
        %v688 = vld [vmem:[%s290 + $0xbb0] sm:$0xff]
        %v689 = vld [vmem:[%s290 + $0xbb8] sm:$0xff]
        %v690 = vld [vmem:[%s290 + $0xbc0] sm:$0xff]
        %v691 = vld [vmem:[%s290 + $0xbc8] sm:$0xff]
        %v692 = vld [vmem:[%s290 + $0xbd0] sm:$0xff]
        %v693 = vld [vmem:[%s290 + $0xbd8] sm:$0xff]
        %v694 = vld [vmem:[%s290 + $0xbe0] sm:$0xff]
        %v695 = vld [vmem:[%s290 + $0xbe8] sm:$0xff]
        %v696 = vld [vmem:[%s290 + $0xbf0] sm:$0xff]
        %v697 = vld [vmem:[%s290 + $0xbf8] sm:$0xff]
        %v698 = vld [vmem:[%s290 + $0xc00] sm:$0xff]
        %v699 = vld [vmem:[%s290 + $0xc08] sm:$0xff]
        %v700 = vld [vmem:[%s290 + $0xc10] sm:$0xff]
        %v701 = vld [vmem:[%s290 + $0xc18] sm:$0xff]
        %v702 = vld [vmem:[%s290 + $0xc20] sm:$0xff]
        %v703 = vld [vmem:[%s290 + $0xc28] sm:$0xff]
        %v704 = vld [vmem:[%s290 + $0xc30] sm:$0xff]
        %v705 = vld [vmem:[%s290 + $0xc38] sm:$0xff]
        %v706 = vld [vmem:[%s290 + $0xc40] sm:$0xff]
        %v707 = vld [vmem:[%s290 + $0xc48] sm:$0xff]
        %v708 = vld [vmem:[%s290 + $0xc50] sm:$0xff]
        %v709 = vld [vmem:[%s290 + $0xc58] sm:$0xff]
        %v710 = vld [vmem:[%s290 + $0xc60] sm:$0xff]
        %v711 = vld [vmem:[%s290 + $0xc68] sm:$0xff]
        %v712 = vld [vmem:[%s290 + $0xc70] sm:$0xff]
        %v713 = vld [vmem:[%s290 + $0xc78] sm:$0xff]
        %v714 = vld [vmem:[%s290 + $0xc80] sm:$0xff]
        %v715 = vld [vmem:[%s290 + $0xc88] sm:$0xff]
        %v716 = vld [vmem:[%s290 + $0xc90] sm:$0xff]
        %v717 = vld [vmem:[%s290 + $0xc98] sm:$0xff]
        %v718 = vld [vmem:[%s290 + $0xca0] sm:$0xff]
        %v719 = vld [vmem:[%s290 + $0xca8] sm:$0xff]
        %v720 = vld [vmem:[%s290 + $0xcb0] sm:$0xff]
        %v721 = vld [vmem:[%s290 + $0xcb8] sm:$0xff]
        %v722 = vld [vmem:[%s290 + $0xcc0] sm:$0xff]
        %v723 = vld [vmem:[%s290 + $0xcc8] sm:$0xff]
        %v724 = vld [vmem:[%s290 + $0xcd0] sm:$0xff]
        %v725 = vld [vmem:[%s290 + $0xcd8] sm:$0xff]
        %v726 = vld [vmem:[%s290 + $0xce0] sm:$0xff]
        %v727 = vld [vmem:[%s290 + $0xce8] sm:$0xff]
        %v728 = vld [vmem:[%s290 + $0xcf0] sm:$0xff]
        %v729 = vld [vmem:[%s290 + $0xcf8] sm:$0xff]
        %v730 = vld [vmem:[%s290 + $0xd00] sm:$0xff]
        %v731 = vld [vmem:[%s290 + $0xd08] sm:$0xff]
        %v732 = vld [vmem:[%s290 + $0xd10] sm:$0xff]
        %v733 = vld [vmem:[%s290 + $0xd18] sm:$0xff]
        %v734 = vld [vmem:[%s290 + $0xd20] sm:$0xff]
        %v735 = vld [vmem:[%s290 + $0xd28] sm:$0xff]
        %v736 = vld [vmem:[%s290 + $0xd30] sm:$0xff]
        %v737 = vld [vmem:[%s290 + $0xd38] sm:$0xff]
        %v738 = vld [vmem:[%s290 + $0xd40] sm:$0xff]
        %v739 = vld [vmem:[%s290 + $0xd48] sm:$0xff]
        %v740 = vld [vmem:[%s290 + $0xd50] sm:$0xff]
        %v741 = vld [vmem:[%s290 + $0xd58] sm:$0xff]
        %v742 = vld [vmem:[%s290 + $0xd60] sm:$0xff]
        %v743 = vld [vmem:[%s290 + $0xd68] sm:$0xff]
        %v744 = vld [vmem:[%s290 + $0xd70] sm:$0xff]
        %v745 = vld [vmem:[%s290 + $0xd78] sm:$0xff]
        %v746 = vld [vmem:[%s290 + $0xd80] sm:$0xff]
        %v747 = vld [vmem:[%s290 + $0xd88] sm:$0xff]
        %v748 = vld [vmem:[%s290 + $0xd90] sm:$0xff]
        %v749 = vld [vmem:[%s290 + $0xd98] sm:$0xff]
        %v750 = vld [vmem:[%s290 + $0xda0] sm:$0xff]
        %v751 = vld [vmem:[%s290 + $0xda8] sm:$0xff]
        %v752 = vld [vmem:[%s290 + $0xdb0] sm:$0xff]
        %v753 = vld [vmem:[%s290 + $0xdb8] sm:$0xff]
        %v754 = vld [vmem:[%s290 + $0xdc0] sm:$0xff]
        %v755 = vld [vmem:[%s290 + $0xdc8] sm:$0xff]
        %v756 = vld [vmem:[%s290 + $0xdd0] sm:$0xff]
        %v757 = vld [vmem:[%s290 + $0xdd8] sm:$0xff]
        %v758 = vld [vmem:[%s290 + $0xde0] sm:$0xff]
        %v759 = vld [vmem:[%s290 + $0xde8] sm:$0xff]
        %v760 = vld [vmem:[%s290 + $0xdf0] sm:$0xff]
        %v761 = vld [vmem:[%s290 + $0xdf8] sm:$0xff]
        %v762 = vld [vmem:[%s290 + $0xe00] sm:$0xff]
        %v763 = vld [vmem:[%s290 + $0xe08] sm:$0xff]
        %v764 = vld [vmem:[%s290 + $0xe10] sm:$0xff]
        %v765 = vld [vmem:[%s290 + $0xe18] sm:$0xff]
        %v766 = vld [vmem:[%s290 + $0xe20] sm:$0xff]
        %v767 = vld [vmem:[%s290 + $0xe28] sm:$0xff]
        %v768 = vld [vmem:[%s290 + $0xe30] sm:$0xff]
        %v769 = vld [vmem:[%s290 + $0xe38] sm:$0xff]
        %v770 = vld [vmem:[%s290 + $0xe40] sm:$0xff]
        %v771 = vld [vmem:[%s290 + $0xe48] sm:$0xff]
        %v772 = vld [vmem:[%s290 + $0xe50] sm:$0xff]
        %v773 = vld [vmem:[%s290 + $0xe58] sm:$0xff]
        %v774 = vld [vmem:[%s290 + $0xe60] sm:$0xff]
        %v775 = vld [vmem:[%s290 + $0xe68] sm:$0xff]
        %v776 = vld [vmem:[%s290 + $0xe70] sm:$0xff]
        %v777 = vld [vmem:[%s290 + $0xe78] sm:$0xff]
        %v778 = vld [vmem:[%s290 + $0xe80] sm:$0xff]
        %v779 = vld [vmem:[%s290 + $0xe88] sm:$0xff]
        %v780 = vld [vmem:[%s290 + $0xe90] sm:$0xff]
        %v781 = vld [vmem:[%s290 + $0xe98] sm:$0xff]
        %v782 = vld [vmem:[%s290 + $0xea0] sm:$0xff]
        %v783 = vld [vmem:[%s290 + $0xea8] sm:$0xff]
        %v784 = vld [vmem:[%s290 + $0xeb0] sm:$0xff]
        %v785 = vld [vmem:[%s290 + $0xeb8] sm:$0xff]
        %v786 = vld [vmem:[%s290 + $0xec0] sm:$0xff]
        %v787 = vld [vmem:[%s290 + $0xec8] sm:$0xff]
        %v788 = vld [vmem:[%s290 + $0xed0] sm:$0xff]
        %v789 = vld [vmem:[%s290 + $0xed8] sm:$0xff]
        %v790 = vld [vmem:[%s290 + $0xee0] sm:$0xff]
        %v791 = vld [vmem:[%s290 + $0xee8] sm:$0xff]
        %v792 = vld [vmem:[%s290 + $0xef0] sm:$0xff]
        %v793 = vld [vmem:[%s290 + $0xef8] sm:$0xff]
        %v794 = vld [vmem:[%s290 + $0xf00] sm:$0xff]
        %v795 = vld [vmem:[%s290 + $0xf08] sm:$0xff]
        %v796 = vld [vmem:[%s290 + $0xf10] sm:$0xff]
        %v797 = vld [vmem:[%s290 + $0xf18] sm:$0xff]
        %v798 = vld [vmem:[%s290 + $0xf20] sm:$0xff]
        %v799 = vld [vmem:[%s290 + $0xf28] sm:$0xff]
        %v800 = vld [vmem:[%s290 + $0xf30] sm:$0xff]
        %v801 = vld [vmem:[%s290 + $0xf38] sm:$0xff]
        %v802 = vld [vmem:[%s290 + $0xf40] sm:$0xff]
        %v803 = vld [vmem:[%s290 + $0xf48] sm:$0xff]
        %v804 = vld [vmem:[%s290 + $0xf50] sm:$0xff]
        %v805 = vld [vmem:[%s290 + $0xf58] sm:$0xff]
        %v806 = vld [vmem:[%s290 + $0xf60] sm:$0xff]
        %v807 = vld [vmem:[%s290 + $0xf68] sm:$0xff]
        %v808 = vld [vmem:[%s290 + $0xf70] sm:$0xff]
        %v809 = vld [vmem:[%s290 + $0xf78] sm:$0xff]
        %v810 = vld [vmem:[%s290 + $0xf80] sm:$0xff]
        %v811 = vld [vmem:[%s290 + $0xf88] sm:$0xff]
        %v812 = vld [vmem:[%s290 + $0xf90] sm:$0xff]
        %v813 = vld [vmem:[%s290 + $0xf98] sm:$0xff]
        %v814 = vld [vmem:[%s290 + $0xfa0] sm:$0xff]
        %v815 = vld [vmem:[%s290 + $0xfa8] sm:$0xff]
        %v816 = vld [vmem:[%s290 + $0xfb0] sm:$0xff]
        %v817 = vld [vmem:[%s290 + $0xfb8] sm:$0xff]
        %v818 = vld [vmem:[%s290 + $0xfc0] sm:$0xff]
        %v819 = vld [vmem:[%s290 + $0xfc8] sm:$0xff]
        %v820 = vld [vmem:[%s290 + $0xfd0] sm:$0xff]
        %v821 = vld [vmem:[%s290 + $0xfd8] sm:$0xff]
        %v822 = vld [vmem:[%s290 + $0xfe0] sm:$0xff]
        %v823 = vld [vmem:[%s290 + $0xfe8] sm:$0xff]
        %v824 = vld [vmem:[%s290 + $0xff0] sm:$0xff]
        %v825 = vld [vmem:[%s290 + $0xff8] sm:$0xff]
        %v826 = vld [vmem:[%s290 + $0x1000] sm:$0xff]
        %v827 = vld [vmem:[%s290 + $0x1008] sm:$0xff]
        %v828 = vld [vmem:[%s290 + $0x1010] sm:$0xff]
        %v829 = vld [vmem:[%s290 + $0x1018] sm:$0xff]
        %v830 = vld [vmem:[%s290 + $0x1020] sm:$0xff]
        %v831 = vld [vmem:[%s290 + $0x1028] sm:$0xff]
        %v832 = vld [vmem:[%s290 + $0x1030] sm:$0xff]
        %v833 = vld [vmem:[%s290 + $0x1038] sm:$0xff]
        %v834 = vld [vmem:[%s290 + $0x1040] sm:$0xff]
        %v835 = vld [vmem:[%s290 + $0x1048] sm:$0xff]
        %v836 = vld [vmem:[%s290 + $0x1050] sm:$0xff]
        %v837 = vld [vmem:[%s290 + $0x1058] sm:$0xff]
        %v838 = vld [vmem:[%s290 + $0x1060] sm:$0xff]
        %v839 = vld [vmem:[%s290 + $0x1068] sm:$0xff]
        %v840 = vld [vmem:[%s290 + $0x1070] sm:$0xff]
        %v841 = vld [vmem:[%s290 + $0x1078] sm:$0xff]
        %v842 = vld [vmem:[%s290 + $0x1080] sm:$0xff]
        %v843 = vld [vmem:[%s290 + $0x1088] sm:$0xff]
        %v844 = vld [vmem:[%s290 + $0x1090] sm:$0xff]
        %v845 = vld [vmem:[%s290 + $0x1098] sm:$0xff]
        %v846 = vld [vmem:[%s290 + $0x10a0] sm:$0xff]
        %v847 = vld [vmem:[%s290 + $0x10a8] sm:$0xff]
        %v848 = vld [vmem:[%s290 + $0x10b0] sm:$0xff]
        %v849 = vld [vmem:[%s290 + $0x10b8] sm:$0xff]
        %v850 = vld [vmem:[%s290 + $0x10c0] sm:$0xff]
        %v851 = vld [vmem:[%s290 + $0x10c8] sm:$0xff]
        %v852 = vld [vmem:[%s290 + $0x10d0] sm:$0xff]
        %v853 = vld [vmem:[%s290 + $0x10d8] sm:$0xff]
        %v854 = vld [vmem:[%s290 + $0x10e0] sm:$0xff]
        %v855 = vld [vmem:[%s290 + $0x10e8] sm:$0xff]
        %v856 = vld [vmem:[%s290 + $0x10f0] sm:$0xff]
        %v857 = vld [vmem:[%s290 + $0x10f8] sm:$0xff]
        %v858 = vld [vmem:[%s290 + $0x1100] sm:$0xff]
        %v859 = vld [vmem:[%s290 + $0x1108] sm:$0xff]
        %v860 = vld [vmem:[%s290 + $0x1110] sm:$0xff]
        %v861 = vld [vmem:[%s290 + $0x1118] sm:$0xff]
        %v862 = vld [vmem:[%s290 + $0x1120] sm:$0xff]
        %v863 = vld [vmem:[%s290 + $0x1128] sm:$0xff]
        %v864 = vld [vmem:[%s290 + $0x1130] sm:$0xff]
        %v865 = vld [vmem:[%s290 + $0x1138] sm:$0xff]
        %v866 = vld [vmem:[%s290 + $0x1140] sm:$0xff]
        %v867 = vld [vmem:[%s290 + $0x1148] sm:$0xff]
        %v868 = vld [vmem:[%s290 + $0x1150] sm:$0xff]
        %v869 = vld [vmem:[%s290 + $0x1158] sm:$0xff]
        %v870 = vld [vmem:[%s290 + $0x1160] sm:$0xff]
        %v871 = vld [vmem:[%s290 + $0x1168] sm:$0xff]
        %v872 = vld [vmem:[%s290 + $0x1170] sm:$0xff]
        %v873 = vld [vmem:[%s290 + $0x1178] sm:$0xff]
        %v874 = vld [vmem:[%s290 + $0x1180] sm:$0xff]
        %v875 = vld [vmem:[%s290 + $0x1188] sm:$0xff]
        %v876 = vld [vmem:[%s290 + $0x1190] sm:$0xff]
        %v877 = vld [vmem:[%s290 + $0x1198] sm:$0xff]
        %v878 = vld [vmem:[%s290 + $0x11a0] sm:$0xff]
        %v879 = vld [vmem:[%s290 + $0x11a8] sm:$0xff]
        %v880 = vld [vmem:[%s290 + $0x11b0] sm:$0xff]
        %v881 = vld [vmem:[%s290 + $0x11b8] sm:$0xff]
        %v882 = vld [vmem:[%s290 + $0x11c0] sm:$0xff]
        %v883 = vld [vmem:[%s290 + $0x11c8] sm:$0xff]
        %v884 = vld [vmem:[%s290 + $0x11d0] sm:$0xff]
        %v885 = vld [vmem:[%s290 + $0x11d8] sm:$0xff]
        %v886 = vld [vmem:[%s290 + $0x11e0] sm:$0xff]
        %v887 = vld [vmem:[%s290 + $0x11e8] sm:$0xff]
        %v888 = vld [vmem:[%s290 + $0x11f0] sm:$0xff]
        %v889 = vld [vmem:[%s290 + $0x11f8] sm:$0xff]
        %v890 = vld [vmem:[%s290 + $0x1200] sm:$0xff]
        %v891 = vld [vmem:[%s290 + $0x1208] sm:$0xff]
        %v892 = vld [vmem:[%s290 + $0x1210] sm:$0xff]
        %v893 = vld [vmem:[%s290 + $0x1218] sm:$0xff]
        %v894 = vld [vmem:[%s290 + $0x1220] sm:$0xff]
        %v895 = vld [vmem:[%s290 + $0x1228] sm:$0xff]
        %v896 = vld [vmem:[%s290 + $0x1230] sm:$0xff]
        %v897 = vld [vmem:[%s290 + $0x1238] sm:$0xff]
        %v898 = vld [vmem:[%s290 + $0x1240] sm:$0xff]
        %v899 = vld [vmem:[%s290 + $0x1248] sm:$0xff]
        %v900 = vld [vmem:[%s290 + $0x1250] sm:$0xff]
        %v901 = vld [vmem:[%s290 + $0x1258] sm:$0xff]
        %v902 = vld [vmem:[%s290 + $0x1260] sm:$0xff]
        %v903 = vld [vmem:[%s290 + $0x1268] sm:$0xff]
        %v904 = vld [vmem:[%s290 + $0x1270] sm:$0xff]
        %v905 = vld [vmem:[%s290 + $0x1278] sm:$0xff]
        %v906 = vld [vmem:[%s290 + $0x1280] sm:$0xff]
        %v907 = vld [vmem:[%s290 + $0x1288] sm:$0xff]
        %v908 = vld [vmem:[%s290 + $0x1290] sm:$0xff]
        %v909 = vld [vmem:[%s290 + $0x1298] sm:$0xff]
        %v910 = vld [vmem:[%s290 + $0x12a0] sm:$0xff]
        %v911 = vld [vmem:[%s290 + $0x12a8] sm:$0xff]
        %v912 = vld [vmem:[%s290 + $0x12b0] sm:$0xff]
        %v913 = vld [vmem:[%s290 + $0x12b8] sm:$0xff]
        %v914 = vld [vmem:[%s290 + $0x12c0] sm:$0xff]
        %v915 = vld [vmem:[%s290 + $0x12c8] sm:$0xff]
        %v916 = vld [vmem:[%s290 + $0x12d0] sm:$0xff]
        %v917 = vld [vmem:[%s290 + $0x12d8] sm:$0xff]
        %v918 = vld [vmem:[%s290 + $0x12e0] sm:$0xff]
        %v919 = vld [vmem:[%s290 + $0x12e8] sm:$0xff]
        %v920 = vld [vmem:[%s290 + $0x12f0] sm:$0xff]
        %v921 = vld [vmem:[%s290 + $0x12f8] sm:$0xff]
        %v922 = vld [vmem:[%s290 + $0x1300] sm:$0xff]
        %v923 = vld [vmem:[%s290 + $0x1308] sm:$0xff]
        %v924 = vld [vmem:[%s290 + $0x1310] sm:$0xff]
        %v925 = vld [vmem:[%s290 + $0x1318] sm:$0xff]
        %v926 = vld [vmem:[%s290 + $0x1320] sm:$0xff]
        %v927 = vld [vmem:[%s290 + $0x1328] sm:$0xff]
        %v928 = vld [vmem:[%s290 + $0x1330] sm:$0xff]
        %v929 = vld [vmem:[%s290 + $0x1338] sm:$0xff]
        %v930 = vld [vmem:[%s290 + $0x1340] sm:$0xff]
        %v931 = vld [vmem:[%s290 + $0x1348] sm:$0xff]
        %v932 = vld [vmem:[%s290 + $0x1350] sm:$0xff]
        %v933 = vld [vmem:[%s290 + $0x1358] sm:$0xff]
        %v934 = vld [vmem:[%s290 + $0x1360] sm:$0xff]
        %v935 = vld [vmem:[%s290 + $0x1368] sm:$0xff]
        %v936 = vld [vmem:[%s290 + $0x1370] sm:$0xff]
        %v937 = vld [vmem:[%s290 + $0x1378] sm:$0xff]
        %v938 = vld [vmem:[%s290 + $0x1380] sm:$0xff]
        %v939 = vld [vmem:[%s290 + $0x1388] sm:$0xff]
        %v940 = vld [vmem:[%s290 + $0x1390] sm:$0xff]
        %v941 = vld [vmem:[%s290 + $0x1398] sm:$0xff]
        %v942 = vld [vmem:[%s290 + $0x13a0] sm:$0xff]
        %v943 = vld [vmem:[%s290 + $0x13a8] sm:$0xff]
        %v944 = vld [vmem:[%s290 + $0x13b0] sm:$0xff]
        %v945 = vld [vmem:[%s290 + $0x13b8] sm:$0xff]
        %v946 = vld [vmem:[%s290 + $0x13c0] sm:$0xff]
        %v947 = vld [vmem:[%s290 + $0x13c8] sm:$0xff]
        %v948 = vld [vmem:[%s290 + $0x13d0] sm:$0xff]
        %v949 = vld [vmem:[%s290 + $0x13d8] sm:$0xff]
        %v950 = vld [vmem:[%s290 + $0x13e0] sm:$0xff]
        %v951 = vld [vmem:[%s290 + $0x13e8] sm:$0xff]
        %v952 = vld [vmem:[%s290 + $0x13f0] sm:$0xff]
        %v953 = vld [vmem:[%s290 + $0x13f8] sm:$0xff]
        %v954 = vld [vmem:[%s290 + $0x1400] sm:$0xff]
        %v955 = vld [vmem:[%s290 + $0x1408] sm:$0xff]
        %v956 = vld [vmem:[%s290 + $0x1410] sm:$0xff]
        %v957 = vld [vmem:[%s290 + $0x1418] sm:$0xff]
        %v958 = vld [vmem:[%s290 + $0x1420] sm:$0xff]
        %v959 = vld [vmem:[%s290 + $0x1428] sm:$0xff]
        %v960 = vld [vmem:[%s290 + $0x1430] sm:$0xff]
        %v961 = vld [vmem:[%s290 + $0x1438] sm:$0xff]
        %v962 = vld [vmem:[%s290 + $0x1440] sm:$0xff]
        %v963 = vld [vmem:[%s290 + $0x1448] sm:$0xff]
        %v964 = vld [vmem:[%s290 + $0x1450] sm:$0xff]
        %v965 = vld [vmem:[%s290 + $0x1458] sm:$0xff]
        %v966 = vld [vmem:[%s290 + $0x1460] sm:$0xff]
        %v967 = vld [vmem:[%s290 + $0x1468] sm:$0xff]
        %v968 = vld [vmem:[%s290 + $0x1470] sm:$0xff]
        %v969 = vld [vmem:[%s290 + $0x1478] sm:$0xff]
        %v970 = vld [vmem:[%s290 + $0x1480] sm:$0xff]
        %v971 = vld [vmem:[%s290 + $0x1488] sm:$0xff]
        %v972 = vld [vmem:[%s290 + $0x1490] sm:$0xff]
        %v973 = vld [vmem:[%s290 + $0x1498] sm:$0xff]
        %v974 = vld [vmem:[%s290 + $0x14a0] sm:$0xff]
        %v975 = vld [vmem:[%s290 + $0x14a8] sm:$0xff]
        %v976 = vld [vmem:[%s290 + $0x14b0] sm:$0xff]
        %v977 = vld [vmem:[%s290 + $0x14b8] sm:$0xff]
        %v978 = vld [vmem:[%s290 + $0x14c0] sm:$0xff]
        %v979 = vld [vmem:[%s290 + $0x14c8] sm:$0xff]
        %v980 = vld [vmem:[%s290 + $0x14d0] sm:$0xff]
        %v981 = vld [vmem:[%s290 + $0x14d8] sm:$0xff]
        %v982 = vld [vmem:[%s290 + $0x14e0] sm:$0xff]
        %v983 = vld [vmem:[%s290 + $0x14e8] sm:$0xff]
        %v984 = vld [vmem:[%s290 + $0x14f0] sm:$0xff]
        %v985 = vld [vmem:[%s290 + $0x14f8] sm:$0xff]
        %v986 = vld [vmem:[%s290 + $0x1500] sm:$0xff]
        %v987 = vld [vmem:[%s290 + $0x1508] sm:$0xff]
        %v988 = vld [vmem:[%s290 + $0x1510] sm:$0xff]
        %v989 = vld [vmem:[%s290 + $0x1518] sm:$0xff]
        %v990 = vld [vmem:[%s290 + $0x1520] sm:$0xff]
        %v991 = vld [vmem:[%s290 + $0x1528] sm:$0xff]
        %v992 = vld [vmem:[%s290 + $0x1530] sm:$0xff]
        %v993 = vld [vmem:[%s290 + $0x1538] sm:$0xff]
        %v994 = vld [vmem:[%s290 + $0x1540] sm:$0xff]
        %v995 = vld [vmem:[%s290 + $0x1548] sm:$0xff]
        %v996 = vld [vmem:[%s290 + $0x1550] sm:$0xff]
        %v997 = vld [vmem:[%s290 + $0x1558] sm:$0xff]
        %v998 = vld [vmem:[%s290 + $0x1560] sm:$0xff]
        %v999 = vld [vmem:[%s290 + $0x1568] sm:$0xff]
        %v1000 = vld [vmem:[%s290 + $0x1570] sm:$0xff]
        %v1001 = vld [vmem:[%s290 + $0x1578] sm:$0xff]
        %v1002 = vld [vmem:[%s290 + $0x1580] sm:$0xff]
        %v1003 = vld [vmem:[%s290 + $0x1588] sm:$0xff]
        %v1004 = vld [vmem:[%s290 + $0x1590] sm:$0xff]
        %v1005 = vld [vmem:[%s290 + $0x1598] sm:$0xff]
        %v1006 = vld [vmem:[%s290 + $0x15a0] sm:$0xff]
        %v1007 = vld [vmem:[%s290 + $0x15a8] sm:$0xff]
        %v1008 = vld [vmem:[%s290 + $0x15b0] sm:$0xff]
        %v1009 = vld [vmem:[%s290 + $0x15b8] sm:$0xff]
        %v1010 = vld [vmem:[%s290 + $0x15c0] sm:$0xff]
        %v1011 = vld [vmem:[%s290 + $0x15c8] sm:$0xff]
        %v1012 = vld [vmem:[%s290 + $0x15d0] sm:$0xff]
        %v1013 = vld [vmem:[%s290 + $0x15d8] sm:$0xff]
        %v1014 = vld [vmem:[%s290 + $0x15e0] sm:$0xff]
        %v1015 = vld [vmem:[%s290 + $0x15e8] sm:$0xff]
        %v1016 = vld [vmem:[%s290 + $0x15f0] sm:$0xff]
        %v1017 = vld [vmem:[%s290 + $0x15f8] sm:$0xff]
        %v1018 = vld [vmem:[%s290 + $0x1600] sm:$0xff]
        %v1019 = vld [vmem:[%s290 + $0x1608] sm:$0xff]
        %v1020 = vld [vmem:[%s290 + $0x1610] sm:$0xff]
        %v1021 = vld [vmem:[%s290 + $0x1618] sm:$0xff]
        %v1022 = vld [vmem:[%s290 + $0x1620] sm:$0xff]
        %v1023 = vld [vmem:[%s290 + $0x1628] sm:$0xff]
        %v1024 = vld [vmem:[%s290 + $0x1630] sm:$0xff]
        %v1025 = vld [vmem:[%s290 + $0x1638] sm:$0xff]
        %v1026 = vld [vmem:[%s290 + $0x1640] sm:$0xff]
        %v1027 = vld [vmem:[%s290 + $0x1648] sm:$0xff]
        %v1028 = vld [vmem:[%s290 + $0x1650] sm:$0xff]
        %v1029 = vld [vmem:[%s290 + $0x1658] sm:$0xff]
        %v1030 = vld [vmem:[%s290 + $0x1660] sm:$0xff]
        %v1031 = vld [vmem:[%s290 + $0x1668] sm:$0xff]
        %v1032 = vld [vmem:[%s290 + $0x1670] sm:$0xff]
        %v1033 = vld [vmem:[%s290 + $0x1678] sm:$0xff]
        %v1034 = vld [vmem:[%s290 + $0x1680] sm:$0xff]
        %v1035 = vld [vmem:[%s290 + $0x1688] sm:$0xff]
        %v1036 = vld [vmem:[%s290 + $0x1690] sm:$0xff]
        %v1037 = vld [vmem:[%s290 + $0x1698] sm:$0xff]
        %v1038 = vld [vmem:[%s290 + $0x16a0] sm:$0xff]
        %v1039 = vld [vmem:[%s290 + $0x16a8] sm:$0xff]
        %v1040 = vld [vmem:[%s290 + $0x16b0] sm:$0xff]
        %v1041 = vld [vmem:[%s290 + $0x16b8] sm:$0xff]
        %v1042 = vld [vmem:[%s290 + $0x16c0] sm:$0xff]
        %v1043 = vld [vmem:[%s290 + $0x16c8] sm:$0xff]
        %v1044 = vld [vmem:[%s290 + $0x16d0] sm:$0xff]
        %v1045 = vld [vmem:[%s290 + $0x16d8] sm:$0xff]
        %v1046 = vld [vmem:[%s290 + $0x16e0] sm:$0xff]
        %v1047 = vld [vmem:[%s290 + $0x16e8] sm:$0xff]
        %v1048 = vld [vmem:[%s290 + $0x16f0] sm:$0xff]
        %v1049 = vld [vmem:[%s290 + $0x16f8] sm:$0xff]
        %v1050 = vld [vmem:[%s290 + $0x1700] sm:$0xff]
        %v1051 = vld [vmem:[%s290 + $0x1708] sm:$0xff]
        %v1052 = vld [vmem:[%s290 + $0x1710] sm:$0xff]
        %v1053 = vld [vmem:[%s290 + $0x1718] sm:$0xff]
        %v1054 = vld [vmem:[%s290 + $0x1720] sm:$0xff]
        %v1055 = vld [vmem:[%s290 + $0x1728] sm:$0xff]
        %v1056 = vld [vmem:[%s290 + $0x1730] sm:$0xff]
        %v1057 = vld [vmem:[%s290 + $0x1738] sm:$0xff]
        %v1058 = vld [vmem:[%s290 + $0x1740] sm:$0xff]
        %v1059 = vld [vmem:[%s290 + $0x1748] sm:$0xff]
        %v1060 = vld [vmem:[%s290 + $0x1750] sm:$0xff]
        %v1061 = vld [vmem:[%s290 + $0x1758] sm:$0xff]
        %v1062 = vld [vmem:[%s290 + $0x1760] sm:$0xff]
        %v1063 = vld [vmem:[%s290 + $0x1768] sm:$0xff]
        %v1064 = vld [vmem:[%s290 + $0x1770] sm:$0xff]
        %v1065 = vld [vmem:[%s290 + $0x1778] sm:$0xff]
        %v1066 = vld [vmem:[%s290 + $0x1780] sm:$0xff]
        %v1067 = vld [vmem:[%s290 + $0x1788] sm:$0xff]
        %v1068 = vld [vmem:[%s290 + $0x1790] sm:$0xff]
        %v1069 = vld [vmem:[%s290 + $0x1798] sm:$0xff]
        %v1070 = vld [vmem:[%s290 + $0x17a0] sm:$0xff]
        %v1071 = vld [vmem:[%s290 + $0x17a8] sm:$0xff]
        %v1072 = vld [vmem:[%s290 + $0x17b0] sm:$0xff]
        %v1073 = vld [vmem:[%s290 + $0x17b8] sm:$0xff]
        %v1074 = vld [vmem:[%s290 + $0x17c0] sm:$0xff]
        %v1075 = vld [vmem:[%s290 + $0x17c8] sm:$0xff]
        %v1076 = vld [vmem:[%s290 + $0x17d0] sm:$0xff]
        %v1077 = vld [vmem:[%s290 + $0x17d8] sm:$0xff]
        %v1078 = vld [vmem:[%s290 + $0x17e0] sm:$0xff]
        %v1079 = vld [vmem:[%s290 + $0x17e8] sm:$0xff]
        %v1080 = vld [vmem:[%s290 + $0x17f0] sm:$0xff]
        %v1081 = vld [vmem:[%s290 + $0x17f8] sm:$0xff]
        %v1084 = vcombine.high %v312, %v312
        %v1086 = vunpack.c.l.s4 1983009808
        %v1087 = vunpack.c.0.s8 %v1086
        %v1088 = vlaneseq
        %v1089 = vshrl.u32 %v1088, 7
        %v1090 = vsub.s32 %v1087, %v1089
        %v1091 = vrot.slane %v312, %v1090
        %v1093 = vunpack.c.l.s4 1983009808
        %v1094 = vunpack.c.0.s8 %v1093
        %v1095 = vlaneseq
        %v1096 = vshrl.u32 %v1095, 7
        %v1097 = vsub.s32 %v1094, %v1096
        %v1098 = vrot.slane %v1084, %v1097
        %v1099 = vcombine.high %v1091, %v1091
        %v1100 = vcombine.high %v1098, %v1098
        %v1101 = vcombine.high %v313, %v313
        %v1103 = vunpack.c.l.s4 1983009808
        %v1104 = vunpack.c.0.s8 %v1103
        %v1105 = vlaneseq
        %v1106 = vshrl.u32 %v1105, 7
        %v1107 = vsub.s32 %v1104, %v1106
        %v1108 = vrot.slane %v313, %v1107
        %v1110 = vunpack.c.l.s4 1983009808
        %v1111 = vunpack.c.0.s8 %v1110
        %v1112 = vlaneseq
        %v1113 = vshrl.u32 %v1112, 7
        %v1114 = vsub.s32 %v1111, %v1113
        %v1115 = vrot.slane %v1101, %v1114
        %v1116 = vcombine.high %v1108, %v1108
        %v1117 = vcombine.high %v1115, %v1115
        %v1894 = vunpack.c.l.b16 %v314
        %v1895 = vunpack.c.h.b16 %v314
        %v1896 = vunpack.c.l.b16 %v315
        %v1897 = vunpack.c.h.b16 %v315
        %v1898 = vunpack.c.l.b16 %v316
        %v1899 = vunpack.c.h.b16 %v316
        %v1900 = vunpack.c.l.b16 %v317
        %v1901 = vunpack.c.h.b16 %v317
        %v1902 = vunpack.c.l.b16 %v318
        %v1903 = vunpack.c.h.b16 %v318
        %v1904 = vunpack.c.l.b16 %v319
        %v1905 = vunpack.c.h.b16 %v319
        %v1906 = vunpack.c.l.b16 %v320
        %v1907 = vunpack.c.h.b16 %v320
        %v1908 = vunpack.c.l.b16 %v321
        %v1909 = vunpack.c.h.b16 %v321
        %v1910 = vunpack.c.l.b16 %v322
        %v1911 = vunpack.c.h.b16 %v322
        %v1912 = vunpack.c.l.b16 %v323
        %v1913 = vunpack.c.h.b16 %v323
        %v1914 = vunpack.c.l.b16 %v324
        %v1915 = vunpack.c.h.b16 %v324
        %v1916 = vunpack.c.l.b16 %v325
        %v1917 = vunpack.c.h.b16 %v325
        %v1918 = vunpack.c.l.b16 %v326
        %v1919 = vunpack.c.h.b16 %v326
        %v1920 = vunpack.c.l.b16 %v327
        %v1921 = vunpack.c.h.b16 %v327
        %v1922 = vunpack.c.l.b16 %v328
        %v1923 = vunpack.c.h.b16 %v328
        %v1924 = vunpack.c.l.b16 %v329
        %v1925 = vunpack.c.h.b16 %v329
        %v1926 = vunpack.c.l.b16 %v330
        %v1927 = vunpack.c.h.b16 %v330
        %v1928 = vunpack.c.l.b16 %v331
        %v1929 = vunpack.c.h.b16 %v331
        %v1930 = vunpack.c.l.b16 %v332
        %v1931 = vunpack.c.h.b16 %v332
        %v1932 = vunpack.c.l.b16 %v333
        %v1933 = vunpack.c.h.b16 %v333
        %v1934 = vunpack.c.l.b16 %v334
        %v1935 = vunpack.c.h.b16 %v334
        %v1936 = vunpack.c.l.b16 %v335
        %v1937 = vunpack.c.h.b16 %v335
        %v1938 = vunpack.c.l.b16 %v336
        %v1939 = vunpack.c.h.b16 %v336
        %v1940 = vunpack.c.l.b16 %v337
        %v1941 = vunpack.c.h.b16 %v337
        %v1942 = vunpack.c.l.b16 %v338
        %v1943 = vunpack.c.h.b16 %v338
        %v1944 = vunpack.c.l.b16 %v339
        %v1945 = vunpack.c.h.b16 %v339
        %v1946 = vunpack.c.l.b16 %v340
        %v1947 = vunpack.c.h.b16 %v340
        %v1948 = vunpack.c.l.b16 %v341
        %v1949 = vunpack.c.h.b16 %v341
        %v1950 = vunpack.c.l.b16 %v342
        %v1951 = vunpack.c.h.b16 %v342
        %v1952 = vunpack.c.l.b16 %v343
        %v1953 = vunpack.c.h.b16 %v343
        %v1954 = vunpack.c.l.b16 %v344
        %v1955 = vunpack.c.h.b16 %v344
        %v1956 = vunpack.c.l.b16 %v345
        %v1957 = vunpack.c.h.b16 %v345
        %v1958 = vunpack.c.l.b16 %v346
        %v1959 = vunpack.c.h.b16 %v346
        %v1960 = vunpack.c.l.b16 %v347
        %v1961 = vunpack.c.h.b16 %v347
        %v1962 = vunpack.c.l.b16 %v348
        %v1963 = vunpack.c.h.b16 %v348
        %v1964 = vunpack.c.l.b16 %v349
        %v1965 = vunpack.c.h.b16 %v349
        %v1966 = vunpack.c.l.b16 %v350
        %v1967 = vunpack.c.h.b16 %v350
        %v1968 = vunpack.c.l.b16 %v351
        %v1969 = vunpack.c.h.b16 %v351
        %v1970 = vunpack.c.l.b16 %v352
        %v1971 = vunpack.c.h.b16 %v352
        %v1972 = vunpack.c.l.b16 %v353
        %v1973 = vunpack.c.h.b16 %v353
        %v1974 = vunpack.c.l.b16 %v354
        %v1975 = vunpack.c.h.b16 %v354
        %v1976 = vunpack.c.l.b16 %v355
        %v1977 = vunpack.c.h.b16 %v355
        %v1978 = vunpack.c.l.b16 %v356
        %v1979 = vunpack.c.h.b16 %v356
        %v1980 = vunpack.c.l.b16 %v357
        %v1981 = vunpack.c.h.b16 %v357
        %v1982 = vunpack.c.l.b16 %v358
        %v1983 = vunpack.c.h.b16 %v358
        %v1984 = vunpack.c.l.b16 %v359
        %v1985 = vunpack.c.h.b16 %v359
        %v1986 = vunpack.c.l.b16 %v360
        %v1987 = vunpack.c.h.b16 %v360
        %v1988 = vunpack.c.l.b16 %v361
        %v1989 = vunpack.c.h.b16 %v361
        %v1990 = vunpack.c.l.b16 %v362
        %v1991 = vunpack.c.h.b16 %v362
        %v1992 = vunpack.c.l.b16 %v363
        %v1993 = vunpack.c.h.b16 %v363
        %v1994 = vunpack.c.l.b16 %v364
        %v1995 = vunpack.c.h.b16 %v364
        %v1996 = vunpack.c.l.b16 %v365
        %v1997 = vunpack.c.h.b16 %v365
        %v1998 = vunpack.c.l.b16 %v366
        %v1999 = vunpack.c.h.b16 %v366
        %v2000 = vunpack.c.l.b16 %v367
        %v2001 = vunpack.c.h.b16 %v367
        %v2002 = vunpack.c.l.b16 %v368
        %v2003 = vunpack.c.h.b16 %v368
        %v2004 = vunpack.c.l.b16 %v369
        %v2005 = vunpack.c.h.b16 %v369
        %v2006 = vunpack.c.l.b16 %v370
        %v2007 = vunpack.c.h.b16 %v370
        %v2008 = vunpack.c.l.b16 %v371
        %v2009 = vunpack.c.h.b16 %v371
        %v2010 = vunpack.c.l.b16 %v372
        %v2011 = vunpack.c.h.b16 %v372
        %v2012 = vunpack.c.l.b16 %v373
        %v2013 = vunpack.c.h.b16 %v373
        %v2014 = vunpack.c.l.b16 %v374
        %v2015 = vunpack.c.h.b16 %v374
        %v2016 = vunpack.c.l.b16 %v375
        %v2017 = vunpack.c.h.b16 %v375
        %v2018 = vunpack.c.l.b16 %v376
        %v2019 = vunpack.c.h.b16 %v376
        %v2020 = vunpack.c.l.b16 %v377
        %v2021 = vunpack.c.h.b16 %v377
        %v2022 = vunpack.c.l.b16 %v378
        %v2023 = vunpack.c.h.b16 %v378
        %v2024 = vunpack.c.l.b16 %v379
        %v2025 = vunpack.c.h.b16 %v379
        %v2026 = vunpack.c.l.b16 %v380
        %v2027 = vunpack.c.h.b16 %v380
        %v2028 = vunpack.c.l.b16 %v381
        %v2029 = vunpack.c.h.b16 %v381
        %v2030 = vunpack.c.l.b16 %v382
        %v2031 = vunpack.c.h.b16 %v382
        %v2032 = vunpack.c.l.b16 %v383
        %v2033 = vunpack.c.h.b16 %v383
        %v2034 = vunpack.c.l.b16 %v384
        %v2035 = vunpack.c.h.b16 %v384
        %v2036 = vunpack.c.l.b16 %v385
        %v2037 = vunpack.c.h.b16 %v385
        %v2038 = vunpack.c.l.b16 %v386
        %v2039 = vunpack.c.h.b16 %v386
        %v2040 = vunpack.c.l.b16 %v387
        %v2041 = vunpack.c.h.b16 %v387
        %v2042 = vunpack.c.l.b16 %v388
        %v2043 = vunpack.c.h.b16 %v388
        %v2044 = vunpack.c.l.b16 %v389
        %v2045 = vunpack.c.h.b16 %v389
        %v2046 = vunpack.c.l.b16 %v390
        %v2047 = vunpack.c.h.b16 %v390
        %v2048 = vunpack.c.l.b16 %v391
        %v2049 = vunpack.c.h.b16 %v391
        %v2050 = vunpack.c.l.b16 %v392
        %v2051 = vunpack.c.h.b16 %v392
        %v2052 = vunpack.c.l.b16 %v393
        %v2053 = vunpack.c.h.b16 %v393
        %v2054 = vunpack.c.l.b16 %v394
        %v2055 = vunpack.c.h.b16 %v394
        %v2056 = vunpack.c.l.b16 %v395
        %v2057 = vunpack.c.h.b16 %v395
        %v2058 = vunpack.c.l.b16 %v396
        %v2059 = vunpack.c.h.b16 %v396
        %v2060 = vunpack.c.l.b16 %v397
        %v2061 = vunpack.c.h.b16 %v397
        %v2062 = vunpack.c.l.b16 %v398
        %v2063 = vunpack.c.h.b16 %v398
        %v2064 = vunpack.c.l.b16 %v399
        %v2065 = vunpack.c.h.b16 %v399
        %v2066 = vunpack.c.l.b16 %v400
        %v2067 = vunpack.c.h.b16 %v400
        %v2068 = vunpack.c.l.b16 %v401
        %v2069 = vunpack.c.h.b16 %v401
        %v2070 = vunpack.c.l.b16 %v402
        %v2071 = vunpack.c.h.b16 %v402
        %v2072 = vunpack.c.l.b16 %v403
        %v2073 = vunpack.c.h.b16 %v403
        %v2074 = vunpack.c.l.b16 %v404
        %v2075 = vunpack.c.h.b16 %v404
        %v2076 = vunpack.c.l.b16 %v405
        %v2077 = vunpack.c.h.b16 %v405
        %v2078 = vunpack.c.l.b16 %v406
        %v2079 = vunpack.c.h.b16 %v406
        %v2080 = vunpack.c.l.b16 %v407
        %v2081 = vunpack.c.h.b16 %v407
        %v2082 = vunpack.c.l.b16 %v408
        %v2083 = vunpack.c.h.b16 %v408
        %v2084 = vunpack.c.l.b16 %v409
        %v2085 = vunpack.c.h.b16 %v409
        %v2086 = vunpack.c.l.b16 %v410
        %v2087 = vunpack.c.h.b16 %v410
        %v2088 = vunpack.c.l.b16 %v411
        %v2089 = vunpack.c.h.b16 %v411
        %v2090 = vunpack.c.l.b16 %v412
        %v2091 = vunpack.c.h.b16 %v412
        %v2092 = vunpack.c.l.b16 %v413
        %v2093 = vunpack.c.h.b16 %v413
        %v2094 = vunpack.c.l.b16 %v414
        %v2095 = vunpack.c.h.b16 %v414
        %v2096 = vunpack.c.l.b16 %v415
        %v2097 = vunpack.c.h.b16 %v415
        %v2098 = vunpack.c.l.b16 %v416
        %v2099 = vunpack.c.h.b16 %v416
        %v2100 = vunpack.c.l.b16 %v417
        %v2101 = vunpack.c.h.b16 %v417
        %v2102 = vunpack.c.l.b16 %v418
        %v2103 = vunpack.c.h.b16 %v418
        %v2104 = vunpack.c.l.b16 %v419
        %v2105 = vunpack.c.h.b16 %v419
        %v2106 = vunpack.c.l.b16 %v420
        %v2107 = vunpack.c.h.b16 %v420
        %v2108 = vunpack.c.l.b16 %v421
        %v2109 = vunpack.c.h.b16 %v421
        %v2110 = vunpack.c.l.b16 %v422
        %v2111 = vunpack.c.h.b16 %v422
        %v2112 = vunpack.c.l.b16 %v423
        %v2113 = vunpack.c.h.b16 %v423
        %v2114 = vunpack.c.l.b16 %v424
        %v2115 = vunpack.c.h.b16 %v424
        %v2116 = vunpack.c.l.b16 %v425
        %v2117 = vunpack.c.h.b16 %v425
        %v2118 = vunpack.c.l.b16 %v426
        %v2119 = vunpack.c.h.b16 %v426
        %v2120 = vunpack.c.l.b16 %v427
        %v2121 = vunpack.c.h.b16 %v427
        %v2122 = vunpack.c.l.b16 %v428
        %v2123 = vunpack.c.h.b16 %v428
        %v2124 = vunpack.c.l.b16 %v429
        %v2125 = vunpack.c.h.b16 %v429
        %v2126 = vunpack.c.l.b16 %v430
        %v2127 = vunpack.c.h.b16 %v430
        %v2128 = vunpack.c.l.b16 %v431
        %v2129 = vunpack.c.h.b16 %v431
        %v2130 = vunpack.c.l.b16 %v432
        %v2131 = vunpack.c.h.b16 %v432
        %v2132 = vunpack.c.l.b16 %v433
        %v2133 = vunpack.c.h.b16 %v433
        %v2134 = vunpack.c.l.b16 %v434
        %v2135 = vunpack.c.h.b16 %v434
        %v2136 = vunpack.c.l.b16 %v435
        %v2137 = vunpack.c.h.b16 %v435
        %v2138 = vunpack.c.l.b16 %v436
        %v2139 = vunpack.c.h.b16 %v436
        %v2140 = vunpack.c.l.b16 %v437
        %v2141 = vunpack.c.h.b16 %v437
        %v2142 = vunpack.c.l.b16 %v438
        %v2143 = vunpack.c.h.b16 %v438
        %v2144 = vunpack.c.l.b16 %v439
        %v2145 = vunpack.c.h.b16 %v439
        %v2146 = vunpack.c.l.b16 %v440
        %v2147 = vunpack.c.h.b16 %v440
        %v2148 = vunpack.c.l.b16 %v441
        %v2149 = vunpack.c.h.b16 %v441
        %v2150 = vunpack.c.l.b16 %v442
        %v2151 = vunpack.c.h.b16 %v442
        %v2152 = vunpack.c.l.b16 %v443
        %v2153 = vunpack.c.h.b16 %v443
        %v2154 = vunpack.c.l.b16 %v444
        %v2155 = vunpack.c.h.b16 %v444
        %v2156 = vunpack.c.l.b16 %v445
        %v2157 = vunpack.c.h.b16 %v445
        %v2158 = vunpack.c.l.b16 %v446
        %v2159 = vunpack.c.h.b16 %v446
        %v2160 = vunpack.c.l.b16 %v447
        %v2161 = vunpack.c.h.b16 %v447
        %v2162 = vunpack.c.l.b16 %v448
        %v2163 = vunpack.c.h.b16 %v448
        %v2164 = vunpack.c.l.b16 %v449
        %v2165 = vunpack.c.h.b16 %v449
        %v2166 = vunpack.c.l.b16 %v450
        %v2167 = vunpack.c.h.b16 %v450
        %v2168 = vunpack.c.l.b16 %v451
        %v2169 = vunpack.c.h.b16 %v451
        %v2170 = vunpack.c.l.b16 %v452
        %v2171 = vunpack.c.h.b16 %v452
        %v2172 = vunpack.c.l.b16 %v453
        %v2173 = vunpack.c.h.b16 %v453
        %v2174 = vunpack.c.l.b16 %v454
        %v2175 = vunpack.c.h.b16 %v454
        %v2176 = vunpack.c.l.b16 %v455
        %v2177 = vunpack.c.h.b16 %v455
        %v2178 = vunpack.c.l.b16 %v456
        %v2179 = vunpack.c.h.b16 %v456
        %v2180 = vunpack.c.l.b16 %v457
        %v2181 = vunpack.c.h.b16 %v457
        %v2182 = vunpack.c.l.b16 %v458
        %v2183 = vunpack.c.h.b16 %v458
        %v2184 = vunpack.c.l.b16 %v459
        %v2185 = vunpack.c.h.b16 %v459
        %v2186 = vunpack.c.l.b16 %v460
        %v2187 = vunpack.c.h.b16 %v460
        %v2188 = vunpack.c.l.b16 %v461
        %v2189 = vunpack.c.h.b16 %v461
        %v2190 = vunpack.c.l.b16 %v462
        %v2191 = vunpack.c.h.b16 %v462
        %v2192 = vunpack.c.l.b16 %v463
        %v2193 = vunpack.c.h.b16 %v463
        %v2194 = vunpack.c.l.b16 %v464
        %v2195 = vunpack.c.h.b16 %v464
        %v2196 = vunpack.c.l.b16 %v465
        %v2197 = vunpack.c.h.b16 %v465
        %v2198 = vunpack.c.l.b16 %v466
        %v2199 = vunpack.c.h.b16 %v466
        %v2200 = vunpack.c.l.b16 %v467
        %v2201 = vunpack.c.h.b16 %v467
        %v2202 = vunpack.c.l.b16 %v468
        %v2203 = vunpack.c.h.b16 %v468
        %v2204 = vunpack.c.l.b16 %v469
        %v2205 = vunpack.c.h.b16 %v469
        %v2206 = vunpack.c.l.b16 %v470
        %v2207 = vunpack.c.h.b16 %v470
        %v2208 = vunpack.c.l.b16 %v471
        %v2209 = vunpack.c.h.b16 %v471
        %v2210 = vunpack.c.l.b16 %v472
        %v2211 = vunpack.c.h.b16 %v472
        %v2212 = vunpack.c.l.b16 %v473
        %v2213 = vunpack.c.h.b16 %v473
        %v2214 = vunpack.c.l.b16 %v474
        %v2215 = vunpack.c.h.b16 %v474
        %v2216 = vunpack.c.l.b16 %v475
        %v2217 = vunpack.c.h.b16 %v475
        %v2218 = vunpack.c.l.b16 %v476
        %v2219 = vunpack.c.h.b16 %v476
        %v2220 = vunpack.c.l.b16 %v477
        %v2221 = vunpack.c.h.b16 %v477
        %v2222 = vunpack.c.l.b16 %v478
        %v2223 = vunpack.c.h.b16 %v478
        %v2224 = vunpack.c.l.b16 %v479
        %v2225 = vunpack.c.h.b16 %v479
        %v2226 = vunpack.c.l.b16 %v480
        %v2227 = vunpack.c.h.b16 %v480
        %v2228 = vunpack.c.l.b16 %v481
        %v2229 = vunpack.c.h.b16 %v481
        %v2230 = vunpack.c.l.b16 %v482
        %v2231 = vunpack.c.h.b16 %v482
        %v2232 = vunpack.c.l.b16 %v483
        %v2233 = vunpack.c.h.b16 %v483
        %v2234 = vunpack.c.l.b16 %v484
        %v2235 = vunpack.c.h.b16 %v484
        %v2236 = vunpack.c.l.b16 %v485
        %v2237 = vunpack.c.h.b16 %v485
        %v2238 = vunpack.c.l.b16 %v486
        %v2239 = vunpack.c.h.b16 %v486
        %v2240 = vunpack.c.l.b16 %v487
        %v2241 = vunpack.c.h.b16 %v487
        %v2242 = vunpack.c.l.b16 %v488
        %v2243 = vunpack.c.h.b16 %v488
        %v2244 = vunpack.c.l.b16 %v489
        %v2245 = vunpack.c.h.b16 %v489
        %v2246 = vunpack.c.l.b16 %v490
        %v2247 = vunpack.c.h.b16 %v490
        %v2248 = vunpack.c.l.b16 %v491
        %v2249 = vunpack.c.h.b16 %v491
        %v2250 = vunpack.c.l.b16 %v492
        %v2251 = vunpack.c.h.b16 %v492
        %v2252 = vunpack.c.l.b16 %v493
        %v2253 = vunpack.c.h.b16 %v493
        %v2254 = vunpack.c.l.b16 %v494
        %v2255 = vunpack.c.h.b16 %v494
        %v2256 = vunpack.c.l.b16 %v495
        %v2257 = vunpack.c.h.b16 %v495
        %v2258 = vunpack.c.l.b16 %v496
        %v2259 = vunpack.c.h.b16 %v496
        %v2260 = vunpack.c.l.b16 %v497
        %v2261 = vunpack.c.h.b16 %v497
        %v2262 = vunpack.c.l.b16 %v498
        %v2263 = vunpack.c.h.b16 %v498
        %v2264 = vunpack.c.l.b16 %v499
        %v2265 = vunpack.c.h.b16 %v499
        %v2266 = vunpack.c.l.b16 %v500
        %v2267 = vunpack.c.h.b16 %v500
        %v2268 = vunpack.c.l.b16 %v501
        %v2269 = vunpack.c.h.b16 %v501
        %v2270 = vunpack.c.l.b16 %v502
        %v2271 = vunpack.c.h.b16 %v502
        %v2272 = vunpack.c.l.b16 %v503
        %v2273 = vunpack.c.h.b16 %v503
        %v2274 = vunpack.c.l.b16 %v504
        %v2275 = vunpack.c.h.b16 %v504
        %v2276 = vunpack.c.l.b16 %v505
        %v2277 = vunpack.c.h.b16 %v505
        %v2278 = vunpack.c.l.b16 %v506
        %v2279 = vunpack.c.h.b16 %v506
        %v2280 = vunpack.c.l.b16 %v507
        %v2281 = vunpack.c.h.b16 %v507
        %v2282 = vunpack.c.l.b16 %v508
        %v2283 = vunpack.c.h.b16 %v508
        %v2284 = vunpack.c.l.b16 %v509
        %v2285 = vunpack.c.h.b16 %v509
        %v2286 = vunpack.c.l.b16 %v510
        %v2287 = vunpack.c.h.b16 %v510
        %v2288 = vunpack.c.l.b16 %v511
        %v2289 = vunpack.c.h.b16 %v511
        %v2290 = vunpack.c.l.b16 %v512
        %v2291 = vunpack.c.h.b16 %v512
        %v2292 = vunpack.c.l.b16 %v513
        %v2293 = vunpack.c.h.b16 %v513
        %v2294 = vunpack.c.l.b16 %v514
        %v2295 = vunpack.c.h.b16 %v514
        %v2296 = vunpack.c.l.b16 %v515
        %v2297 = vunpack.c.h.b16 %v515
        %v2298 = vunpack.c.l.b16 %v516
        %v2299 = vunpack.c.h.b16 %v516
        %v2300 = vunpack.c.l.b16 %v517
        %v2301 = vunpack.c.h.b16 %v517
        %v2302 = vunpack.c.l.b16 %v518
        %v2303 = vunpack.c.h.b16 %v518
        %v2304 = vunpack.c.l.b16 %v519
        %v2305 = vunpack.c.h.b16 %v519
        %v2306 = vunpack.c.l.b16 %v520
        %v2307 = vunpack.c.h.b16 %v520
        %v2308 = vunpack.c.l.b16 %v521
        %v2309 = vunpack.c.h.b16 %v521
        %v2310 = vunpack.c.l.b16 %v522
        %v2311 = vunpack.c.h.b16 %v522
        %v2312 = vunpack.c.l.b16 %v523
        %v2313 = vunpack.c.h.b16 %v523
        %v2314 = vunpack.c.l.b16 %v524
        %v2315 = vunpack.c.h.b16 %v524
        %v2316 = vunpack.c.l.b16 %v525
        %v2317 = vunpack.c.h.b16 %v525
        %v2318 = vunpack.c.l.b16 %v526
        %v2319 = vunpack.c.h.b16 %v526
        %v2320 = vunpack.c.l.b16 %v527
        %v2321 = vunpack.c.h.b16 %v527
        %v2322 = vunpack.c.l.b16 %v528
        %v2323 = vunpack.c.h.b16 %v528
        %v2324 = vunpack.c.l.b16 %v529
        %v2325 = vunpack.c.h.b16 %v529
        %v2326 = vunpack.c.l.b16 %v530
        %v2327 = vunpack.c.h.b16 %v530
        %v2328 = vunpack.c.l.b16 %v531
        %v2329 = vunpack.c.h.b16 %v531
        %v2330 = vunpack.c.l.b16 %v532
        %v2331 = vunpack.c.h.b16 %v532
        %v2332 = vunpack.c.l.b16 %v533
        %v2333 = vunpack.c.h.b16 %v533
        %v2334 = vunpack.c.l.b16 %v534
        %v2335 = vunpack.c.h.b16 %v534
        %v2336 = vunpack.c.l.b16 %v535
        %v2337 = vunpack.c.h.b16 %v535
        %v2338 = vunpack.c.l.b16 %v536
        %v2339 = vunpack.c.h.b16 %v536
        %v2340 = vunpack.c.l.b16 %v537
        %v2341 = vunpack.c.h.b16 %v537
        %v2342 = vunpack.c.l.b16 %v538
        %v2343 = vunpack.c.h.b16 %v538
        %v2344 = vunpack.c.l.b16 %v539
        %v2345 = vunpack.c.h.b16 %v539
        %v2346 = vunpack.c.l.b16 %v540
        %v2347 = vunpack.c.h.b16 %v540
        %v2348 = vunpack.c.l.b16 %v541
        %v2349 = vunpack.c.h.b16 %v541
        %v2350 = vunpack.c.l.b16 %v542
        %v2351 = vunpack.c.h.b16 %v542
        %v2352 = vunpack.c.l.b16 %v543
        %v2353 = vunpack.c.h.b16 %v543
        %v2354 = vunpack.c.l.b16 %v544
        %v2355 = vunpack.c.h.b16 %v544
        %v2356 = vunpack.c.l.b16 %v545
        %v2357 = vunpack.c.h.b16 %v545
        %v2358 = vunpack.c.l.b16 %v546
        %v2359 = vunpack.c.h.b16 %v546
        %v2360 = vunpack.c.l.b16 %v547
        %v2361 = vunpack.c.h.b16 %v547
        %v2362 = vunpack.c.l.b16 %v548
        %v2363 = vunpack.c.h.b16 %v548
        %v2364 = vunpack.c.l.b16 %v549
        %v2365 = vunpack.c.h.b16 %v549
        %v2366 = vunpack.c.l.b16 %v550
        %v2367 = vunpack.c.h.b16 %v550
        %v2368 = vunpack.c.l.b16 %v551
        %v2369 = vunpack.c.h.b16 %v551
        %v2370 = vunpack.c.l.b16 %v552
        %v2371 = vunpack.c.h.b16 %v552
        %v2372 = vunpack.c.l.b16 %v553
        %v2373 = vunpack.c.h.b16 %v553
        %v2374 = vunpack.c.l.b16 %v554
        %v2375 = vunpack.c.h.b16 %v554
        %v2376 = vunpack.c.l.b16 %v555
        %v2377 = vunpack.c.h.b16 %v555
        %v2378 = vunpack.c.l.b16 %v556
        %v2379 = vunpack.c.h.b16 %v556
        %v2380 = vunpack.c.l.b16 %v557
        %v2381 = vunpack.c.h.b16 %v557
        %v2382 = vunpack.c.l.b16 %v558
        %v2383 = vunpack.c.h.b16 %v558
        %v2384 = vunpack.c.l.b16 %v559
        %v2385 = vunpack.c.h.b16 %v559
        %v2386 = vunpack.c.l.b16 %v560
        %v2387 = vunpack.c.h.b16 %v560
        %v2388 = vunpack.c.l.b16 %v561
        %v2389 = vunpack.c.h.b16 %v561
        %v2390 = vunpack.c.l.b16 %v562
        %v2391 = vunpack.c.h.b16 %v562
        %v2392 = vunpack.c.l.b16 %v563
        %v2393 = vunpack.c.h.b16 %v563
        %v2394 = vunpack.c.l.b16 %v564
        %v2395 = vunpack.c.h.b16 %v564
        %v2396 = vunpack.c.l.b16 %v565
        %v2397 = vunpack.c.h.b16 %v565
        %v2398 = vunpack.c.l.b16 %v566
        %v2399 = vunpack.c.h.b16 %v566
        %v2400 = vunpack.c.l.b16 %v567
        %v2401 = vunpack.c.h.b16 %v567
        %v2402 = vunpack.c.l.b16 %v568
        %v2403 = vunpack.c.h.b16 %v568
        %v2404 = vunpack.c.l.b16 %v569
        %v2405 = vunpack.c.h.b16 %v569
        %v2406 = vunpack.c.l.b16 %v570
        %v2407 = vunpack.c.h.b16 %v570
        %v2408 = vunpack.c.l.b16 %v571
        %v2409 = vunpack.c.h.b16 %v571
        %v2410 = vunpack.c.l.b16 %v572
        %v2411 = vunpack.c.h.b16 %v572
        %v2412 = vunpack.c.l.b16 %v573
        %v2413 = vunpack.c.h.b16 %v573
        %v2414 = vunpack.c.l.b16 %v574
        %v2415 = vunpack.c.h.b16 %v574
        %v2416 = vunpack.c.l.b16 %v575
        %v2417 = vunpack.c.h.b16 %v575
        %v2418 = vunpack.c.l.b16 %v576
        %v2419 = vunpack.c.h.b16 %v576
        %v2420 = vunpack.c.l.b16 %v577
        %v2421 = vunpack.c.h.b16 %v577
        %v2422 = vunpack.c.l.b16 %v578
        %v2423 = vunpack.c.h.b16 %v578
        %v2424 = vunpack.c.l.b16 %v579
        %v2425 = vunpack.c.h.b16 %v579
        %v2426 = vunpack.c.l.b16 %v580
        %v2427 = vunpack.c.h.b16 %v580
        %v2428 = vunpack.c.l.b16 %v581
        %v2429 = vunpack.c.h.b16 %v581
        %v2430 = vunpack.c.l.b16 %v582
        %v2431 = vunpack.c.h.b16 %v582
        %v2432 = vunpack.c.l.b16 %v583
        %v2433 = vunpack.c.h.b16 %v583
        %v2434 = vunpack.c.l.b16 %v584
        %v2435 = vunpack.c.h.b16 %v584
        %v2436 = vunpack.c.l.b16 %v585
        %v2437 = vunpack.c.h.b16 %v585
        %v2438 = vunpack.c.l.b16 %v586
        %v2439 = vunpack.c.h.b16 %v586
        %v2440 = vunpack.c.l.b16 %v587
        %v2441 = vunpack.c.h.b16 %v587
        %v2442 = vunpack.c.l.b16 %v588
        %v2443 = vunpack.c.h.b16 %v588
        %v2444 = vunpack.c.l.b16 %v589
        %v2445 = vunpack.c.h.b16 %v589
        %v2446 = vunpack.c.l.b16 %v590
        %v2447 = vunpack.c.h.b16 %v590
        %v2448 = vunpack.c.l.b16 %v591
        %v2449 = vunpack.c.h.b16 %v591
        %v2450 = vunpack.c.l.b16 %v592
        %v2451 = vunpack.c.h.b16 %v592
        %v2452 = vunpack.c.l.b16 %v593
        %v2453 = vunpack.c.h.b16 %v593
        %v2454 = vunpack.c.l.b16 %v594
        %v2455 = vunpack.c.h.b16 %v594
        %v2456 = vunpack.c.l.b16 %v595
        %v2457 = vunpack.c.h.b16 %v595
        %v2458 = vunpack.c.l.b16 %v596
        %v2459 = vunpack.c.h.b16 %v596
        %v2460 = vunpack.c.l.b16 %v597
        %v2461 = vunpack.c.h.b16 %v597
        %v2462 = vunpack.c.l.b16 %v598
        %v2463 = vunpack.c.h.b16 %v598
        %v2464 = vunpack.c.l.b16 %v599
        %v2465 = vunpack.c.h.b16 %v599
        %v2466 = vunpack.c.l.b16 %v600
        %v2467 = vunpack.c.h.b16 %v600
        %v2468 = vunpack.c.l.b16 %v601
        %v2469 = vunpack.c.h.b16 %v601
        %v2470 = vunpack.c.l.b16 %v602
        %v2471 = vunpack.c.h.b16 %v602
        %v2472 = vunpack.c.l.b16 %v603
        %v2473 = vunpack.c.h.b16 %v603
        %v2474 = vunpack.c.l.b16 %v604
        %v2475 = vunpack.c.h.b16 %v604
        %v2476 = vunpack.c.l.b16 %v605
        %v2477 = vunpack.c.h.b16 %v605
        %v2478 = vunpack.c.l.b16 %v606
        %v2479 = vunpack.c.h.b16 %v606
        %v2480 = vunpack.c.l.b16 %v607
        %v2481 = vunpack.c.h.b16 %v607
        %v2482 = vunpack.c.l.b16 %v608
        %v2483 = vunpack.c.h.b16 %v608
        %v2484 = vunpack.c.l.b16 %v609
        %v2485 = vunpack.c.h.b16 %v609
        %v2486 = vunpack.c.l.b16 %v610
        %v2487 = vunpack.c.h.b16 %v610
        %v2488 = vunpack.c.l.b16 %v611
        %v2489 = vunpack.c.h.b16 %v611
        %v2490 = vunpack.c.l.b16 %v612
        %v2491 = vunpack.c.h.b16 %v612
        %v2492 = vunpack.c.l.b16 %v613
        %v2493 = vunpack.c.h.b16 %v613
        %v2494 = vunpack.c.l.b16 %v614
        %v2495 = vunpack.c.h.b16 %v614
        %v2496 = vunpack.c.l.b16 %v615
        %v2497 = vunpack.c.h.b16 %v615
        %v2498 = vunpack.c.l.b16 %v616
        %v2499 = vunpack.c.h.b16 %v616
        %v2500 = vunpack.c.l.b16 %v617
        %v2501 = vunpack.c.h.b16 %v617
        %v2502 = vunpack.c.l.b16 %v618
        %v2503 = vunpack.c.h.b16 %v618
        %v2504 = vunpack.c.l.b16 %v619
        %v2505 = vunpack.c.h.b16 %v619
        %v2506 = vunpack.c.l.b16 %v620
        %v2507 = vunpack.c.h.b16 %v620
        %v2508 = vunpack.c.l.b16 %v621
        %v2509 = vunpack.c.h.b16 %v621
        %v2510 = vunpack.c.l.b16 %v622
        %v2511 = vunpack.c.h.b16 %v622
        %v2512 = vunpack.c.l.b16 %v623
        %v2513 = vunpack.c.h.b16 %v623
        %v2514 = vunpack.c.l.b16 %v624
        %v2515 = vunpack.c.h.b16 %v624
        %v2516 = vunpack.c.l.b16 %v625
        %v2517 = vunpack.c.h.b16 %v625
        %v2518 = vunpack.c.l.b16 %v626
        %v2519 = vunpack.c.h.b16 %v626
        %v2520 = vunpack.c.l.b16 %v627
        %v2521 = vunpack.c.h.b16 %v627
        %v2522 = vunpack.c.l.b16 %v628
        %v2523 = vunpack.c.h.b16 %v628
        %v2524 = vunpack.c.l.b16 %v629
        %v2525 = vunpack.c.h.b16 %v629
        %v2526 = vunpack.c.l.b16 %v630
        %v2527 = vunpack.c.h.b16 %v630
        %v2528 = vunpack.c.l.b16 %v631
        %v2529 = vunpack.c.h.b16 %v631
        %v2530 = vunpack.c.l.b16 %v632
        %v2531 = vunpack.c.h.b16 %v632
        %v2532 = vunpack.c.l.b16 %v633
        %v2533 = vunpack.c.h.b16 %v633
        %v2534 = vunpack.c.l.b16 %v634
        %v2535 = vunpack.c.h.b16 %v634
        %v2536 = vunpack.c.l.b16 %v635
        %v2537 = vunpack.c.h.b16 %v635
        %v2538 = vunpack.c.l.b16 %v636
        %v2539 = vunpack.c.h.b16 %v636
        %v2540 = vunpack.c.l.b16 %v637
        %v2541 = vunpack.c.h.b16 %v637
        %v2542 = vunpack.c.l.b16 %v638
        %v2543 = vunpack.c.h.b16 %v638
        %v2544 = vunpack.c.l.b16 %v639
        %v2545 = vunpack.c.h.b16 %v639
        %v2546 = vunpack.c.l.b16 %v640
        %v2547 = vunpack.c.h.b16 %v640
        %v2548 = vunpack.c.l.b16 %v641
        %v2549 = vunpack.c.h.b16 %v641
        %v2550 = vunpack.c.l.b16 %v642
        %v2551 = vunpack.c.h.b16 %v642
        %v2552 = vunpack.c.l.b16 %v643
        %v2553 = vunpack.c.h.b16 %v643
        %v2554 = vunpack.c.l.b16 %v644
        %v2555 = vunpack.c.h.b16 %v644
        %v2556 = vunpack.c.l.b16 %v645
        %v2557 = vunpack.c.h.b16 %v645
        %v2558 = vunpack.c.l.b16 %v646
        %v2559 = vunpack.c.h.b16 %v646
        %v2560 = vunpack.c.l.b16 %v647
        %v2561 = vunpack.c.h.b16 %v647
        %v2562 = vunpack.c.l.b16 %v648
        %v2563 = vunpack.c.h.b16 %v648
        %v2564 = vunpack.c.l.b16 %v649
        %v2565 = vunpack.c.h.b16 %v649
        %v2566 = vunpack.c.l.b16 %v650
        %v2567 = vunpack.c.h.b16 %v650
        %v2568 = vunpack.c.l.b16 %v651
        %v2569 = vunpack.c.h.b16 %v651
        %v2570 = vunpack.c.l.b16 %v652
        %v2571 = vunpack.c.h.b16 %v652
        %v2572 = vunpack.c.l.b16 %v653
        %v2573 = vunpack.c.h.b16 %v653
        %v2574 = vunpack.c.l.b16 %v654
        %v2575 = vunpack.c.h.b16 %v654
        %v2576 = vunpack.c.l.b16 %v655
        %v2577 = vunpack.c.h.b16 %v655
        %v2578 = vunpack.c.l.b16 %v656
        %v2579 = vunpack.c.h.b16 %v656
        %v2580 = vunpack.c.l.b16 %v657
        %v2581 = vunpack.c.h.b16 %v657
        %v2582 = vunpack.c.l.b16 %v658
        %v2583 = vunpack.c.h.b16 %v658
        %v2584 = vunpack.c.l.b16 %v659
        %v2585 = vunpack.c.h.b16 %v659
        %v2586 = vunpack.c.l.b16 %v660
        %v2587 = vunpack.c.h.b16 %v660
        %v2588 = vunpack.c.l.b16 %v661
        %v2589 = vunpack.c.h.b16 %v661
        %v2590 = vunpack.c.l.b16 %v662
        %v2591 = vunpack.c.h.b16 %v662
        %v2592 = vunpack.c.l.b16 %v663
        %v2593 = vunpack.c.h.b16 %v663
        %v2594 = vunpack.c.l.b16 %v664
        %v2595 = vunpack.c.h.b16 %v664
        %v2596 = vunpack.c.l.b16 %v665
        %v2597 = vunpack.c.h.b16 %v665
        %v2598 = vunpack.c.l.b16 %v666
        %v2599 = vunpack.c.h.b16 %v666
        %v2600 = vunpack.c.l.b16 %v667
        %v2601 = vunpack.c.h.b16 %v667
        %v2602 = vunpack.c.l.b16 %v668
        %v2603 = vunpack.c.h.b16 %v668
        %v2604 = vunpack.c.l.b16 %v669
        %v2605 = vunpack.c.h.b16 %v669
        %v2606 = vunpack.c.l.b16 %v670
        %v2607 = vunpack.c.h.b16 %v670
        %v2608 = vunpack.c.l.b16 %v671
        %v2609 = vunpack.c.h.b16 %v671
        %v2610 = vunpack.c.l.b16 %v672
        %v2611 = vunpack.c.h.b16 %v672
        %v2612 = vunpack.c.l.b16 %v673
        %v2613 = vunpack.c.h.b16 %v673
        %v2614 = vunpack.c.l.b16 %v674
        %v2615 = vunpack.c.h.b16 %v674
        %v2616 = vunpack.c.l.b16 %v675
        %v2617 = vunpack.c.h.b16 %v675
        %v2618 = vunpack.c.l.b16 %v676
        %v2619 = vunpack.c.h.b16 %v676
        %v2620 = vunpack.c.l.b16 %v677
        %v2621 = vunpack.c.h.b16 %v677
        %v2622 = vunpack.c.l.b16 %v678
        %v2623 = vunpack.c.h.b16 %v678
        %v2624 = vunpack.c.l.b16 %v679
        %v2625 = vunpack.c.h.b16 %v679
        %v2626 = vunpack.c.l.b16 %v680
        %v2627 = vunpack.c.h.b16 %v680
        %v2628 = vunpack.c.l.b16 %v681
        %v2629 = vunpack.c.h.b16 %v681
        %v2630 = vunpack.c.l.b16 %v682
        %v2631 = vunpack.c.h.b16 %v682
        %v2632 = vunpack.c.l.b16 %v683
        %v2633 = vunpack.c.h.b16 %v683
        %v2634 = vunpack.c.l.b16 %v684
        %v2635 = vunpack.c.h.b16 %v684
        %v2636 = vunpack.c.l.b16 %v685
        %v2637 = vunpack.c.h.b16 %v685
        %v2638 = vunpack.c.l.b16 %v686
        %v2639 = vunpack.c.h.b16 %v686
        %v2640 = vunpack.c.l.b16 %v687
        %v2641 = vunpack.c.h.b16 %v687
        %v2642 = vunpack.c.l.b16 %v688
        %v2643 = vunpack.c.h.b16 %v688
        %v2644 = vunpack.c.l.b16 %v689
        %v2645 = vunpack.c.h.b16 %v689
        %v2646 = vunpack.c.l.b16 %v690
        %v2647 = vunpack.c.h.b16 %v690
        %v2648 = vunpack.c.l.b16 %v691
        %v2649 = vunpack.c.h.b16 %v691
        %v2650 = vunpack.c.l.b16 %v692
        %v2651 = vunpack.c.h.b16 %v692
        %v2652 = vunpack.c.l.b16 %v693
        %v2653 = vunpack.c.h.b16 %v693
        %v2654 = vunpack.c.l.b16 %v694
        %v2655 = vunpack.c.h.b16 %v694
        %v2656 = vunpack.c.l.b16 %v695
        %v2657 = vunpack.c.h.b16 %v695
        %v2658 = vunpack.c.l.b16 %v696
        %v2659 = vunpack.c.h.b16 %v696
        %v2660 = vunpack.c.l.b16 %v697
        %v2661 = vunpack.c.h.b16 %v697
        %v2662 = vunpack.c.l.b16 %v698
        %v2663 = vunpack.c.h.b16 %v698
        %v2664 = vunpack.c.l.b16 %v699
        %v2665 = vunpack.c.h.b16 %v699
        %v2666 = vunpack.c.l.b16 %v700
        %v2667 = vunpack.c.h.b16 %v700
        %v2668 = vunpack.c.l.b16 %v701
        %v2669 = vunpack.c.h.b16 %v701
        %v2670 = vunpack.c.l.b16 %v702
        %v2671 = vunpack.c.h.b16 %v702
        %v2672 = vunpack.c.l.b16 %v703
        %v2673 = vunpack.c.h.b16 %v703
        %v2674 = vunpack.c.l.b16 %v704
        %v2675 = vunpack.c.h.b16 %v704
        %v2676 = vunpack.c.l.b16 %v705
        %v2677 = vunpack.c.h.b16 %v705
        %v2678 = vunpack.c.l.b16 %v706
        %v2679 = vunpack.c.h.b16 %v706
        %v2680 = vunpack.c.l.b16 %v707
        %v2681 = vunpack.c.h.b16 %v707
        %v2682 = vunpack.c.l.b16 %v708
        %v2683 = vunpack.c.h.b16 %v708
        %v2684 = vunpack.c.l.b16 %v709
        %v2685 = vunpack.c.h.b16 %v709
        %v2686 = vunpack.c.l.b16 %v710
        %v2687 = vunpack.c.h.b16 %v710
        %v2688 = vunpack.c.l.b16 %v711
        %v2689 = vunpack.c.h.b16 %v711
        %v2690 = vunpack.c.l.b16 %v712
        %v2691 = vunpack.c.h.b16 %v712
        %v2692 = vunpack.c.l.b16 %v713
        %v2693 = vunpack.c.h.b16 %v713
        %v2694 = vunpack.c.l.b16 %v714
        %v2695 = vunpack.c.h.b16 %v714
        %v2696 = vunpack.c.l.b16 %v715
        %v2697 = vunpack.c.h.b16 %v715
        %v2698 = vunpack.c.l.b16 %v716
        %v2699 = vunpack.c.h.b16 %v716
        %v2700 = vunpack.c.l.b16 %v717
        %v2701 = vunpack.c.h.b16 %v717
        %v2702 = vunpack.c.l.b16 %v718
        %v2703 = vunpack.c.h.b16 %v718
        %v2704 = vunpack.c.l.b16 %v719
        %v2705 = vunpack.c.h.b16 %v719
        %v2706 = vunpack.c.l.b16 %v720
        %v2707 = vunpack.c.h.b16 %v720
        %v2708 = vunpack.c.l.b16 %v721
        %v2709 = vunpack.c.h.b16 %v721
        %v2710 = vunpack.c.l.b16 %v722
        %v2711 = vunpack.c.h.b16 %v722
        %v2712 = vunpack.c.l.b16 %v723
        %v2713 = vunpack.c.h.b16 %v723
        %v2714 = vunpack.c.l.b16 %v724
        %v2715 = vunpack.c.h.b16 %v724
        %v2716 = vunpack.c.l.b16 %v725
        %v2717 = vunpack.c.h.b16 %v725
        %v2718 = vunpack.c.l.b16 %v726
        %v2719 = vunpack.c.h.b16 %v726
        %v2720 = vunpack.c.l.b16 %v727
        %v2721 = vunpack.c.h.b16 %v727
        %v2722 = vunpack.c.l.b16 %v728
        %v2723 = vunpack.c.h.b16 %v728
        %v2724 = vunpack.c.l.b16 %v729
        %v2725 = vunpack.c.h.b16 %v729
        %v2726 = vunpack.c.l.b16 %v730
        %v2727 = vunpack.c.h.b16 %v730
        %v2728 = vunpack.c.l.b16 %v731
        %v2729 = vunpack.c.h.b16 %v731
        %v2730 = vunpack.c.l.b16 %v732
        %v2731 = vunpack.c.h.b16 %v732
        %v2732 = vunpack.c.l.b16 %v733
        %v2733 = vunpack.c.h.b16 %v733
        %v2734 = vunpack.c.l.b16 %v734
        %v2735 = vunpack.c.h.b16 %v734
        %v2736 = vunpack.c.l.b16 %v735
        %v2737 = vunpack.c.h.b16 %v735
        %v2738 = vunpack.c.l.b16 %v736
        %v2739 = vunpack.c.h.b16 %v736
        %v2740 = vunpack.c.l.b16 %v737
        %v2741 = vunpack.c.h.b16 %v737
        %v2742 = vunpack.c.l.b16 %v738
        %v2743 = vunpack.c.h.b16 %v738
        %v2744 = vunpack.c.l.b16 %v739
        %v2745 = vunpack.c.h.b16 %v739
        %v2746 = vunpack.c.l.b16 %v740
        %v2747 = vunpack.c.h.b16 %v740
        %v2748 = vunpack.c.l.b16 %v741
        %v2749 = vunpack.c.h.b16 %v741
        %v2750 = vunpack.c.l.b16 %v742
        %v2751 = vunpack.c.h.b16 %v742
        %v2752 = vunpack.c.l.b16 %v743
        %v2753 = vunpack.c.h.b16 %v743
        %v2754 = vunpack.c.l.b16 %v744
        %v2755 = vunpack.c.h.b16 %v744
        %v2756 = vunpack.c.l.b16 %v745
        %v2757 = vunpack.c.h.b16 %v745
        %v2758 = vunpack.c.l.b16 %v746
        %v2759 = vunpack.c.h.b16 %v746
        %v2760 = vunpack.c.l.b16 %v747
        %v2761 = vunpack.c.h.b16 %v747
        %v2762 = vunpack.c.l.b16 %v748
        %v2763 = vunpack.c.h.b16 %v748
        %v2764 = vunpack.c.l.b16 %v749
        %v2765 = vunpack.c.h.b16 %v749
        %v2766 = vunpack.c.l.b16 %v750
        %v2767 = vunpack.c.h.b16 %v750
        %v2768 = vunpack.c.l.b16 %v751
        %v2769 = vunpack.c.h.b16 %v751
        %v2770 = vunpack.c.l.b16 %v752
        %v2771 = vunpack.c.h.b16 %v752
        %v2772 = vunpack.c.l.b16 %v753
        %v2773 = vunpack.c.h.b16 %v753
        %v2774 = vunpack.c.l.b16 %v754
        %v2775 = vunpack.c.h.b16 %v754
        %v2776 = vunpack.c.l.b16 %v755
        %v2777 = vunpack.c.h.b16 %v755
        %v2778 = vunpack.c.l.b16 %v756
        %v2779 = vunpack.c.h.b16 %v756
        %v2780 = vunpack.c.l.b16 %v757
        %v2781 = vunpack.c.h.b16 %v757
        %v2782 = vunpack.c.l.b16 %v758
        %v2783 = vunpack.c.h.b16 %v758
        %v2784 = vunpack.c.l.b16 %v759
        %v2785 = vunpack.c.h.b16 %v759
        %v2786 = vunpack.c.l.b16 %v760
        %v2787 = vunpack.c.h.b16 %v760
        %v2788 = vunpack.c.l.b16 %v761
        %v2789 = vunpack.c.h.b16 %v761
        %v2790 = vunpack.c.l.b16 %v762
        %v2791 = vunpack.c.h.b16 %v762
        %v2792 = vunpack.c.l.b16 %v763
        %v2793 = vunpack.c.h.b16 %v763
        %v2794 = vunpack.c.l.b16 %v764
        %v2795 = vunpack.c.h.b16 %v764
        %v2796 = vunpack.c.l.b16 %v765
        %v2797 = vunpack.c.h.b16 %v765
        %v2798 = vunpack.c.l.b16 %v766
        %v2799 = vunpack.c.h.b16 %v766
        %v2800 = vunpack.c.l.b16 %v767
        %v2801 = vunpack.c.h.b16 %v767
        %v2802 = vunpack.c.l.b16 %v768
        %v2803 = vunpack.c.h.b16 %v768
        %v2804 = vunpack.c.l.b16 %v769
        %v2805 = vunpack.c.h.b16 %v769
        %v2806 = vunpack.c.l.b16 %v770
        %v2807 = vunpack.c.h.b16 %v770
        %v2808 = vunpack.c.l.b16 %v771
        %v2809 = vunpack.c.h.b16 %v771
        %v2810 = vunpack.c.l.b16 %v772
        %v2811 = vunpack.c.h.b16 %v772
        %v2812 = vunpack.c.l.b16 %v773
        %v2813 = vunpack.c.h.b16 %v773
        %v2814 = vunpack.c.l.b16 %v774
        %v2815 = vunpack.c.h.b16 %v774
        %v2816 = vunpack.c.l.b16 %v775
        %v2817 = vunpack.c.h.b16 %v775
        %v2818 = vunpack.c.l.b16 %v776
        %v2819 = vunpack.c.h.b16 %v776
        %v2820 = vunpack.c.l.b16 %v777
        %v2821 = vunpack.c.h.b16 %v777
        %v2822 = vunpack.c.l.b16 %v778
        %v2823 = vunpack.c.h.b16 %v778
        %v2824 = vunpack.c.l.b16 %v779
        %v2825 = vunpack.c.h.b16 %v779
        %v2826 = vunpack.c.l.b16 %v780
        %v2827 = vunpack.c.h.b16 %v780
        %v2828 = vunpack.c.l.b16 %v781
        %v2829 = vunpack.c.h.b16 %v781
        %v2830 = vunpack.c.l.b16 %v782
        %v2831 = vunpack.c.h.b16 %v782
        %v2832 = vunpack.c.l.b16 %v783
        %v2833 = vunpack.c.h.b16 %v783
        %v2834 = vunpack.c.l.b16 %v784
        %v2835 = vunpack.c.h.b16 %v784
        %v2836 = vunpack.c.l.b16 %v785
        %v2837 = vunpack.c.h.b16 %v785
        %v2838 = vunpack.c.l.b16 %v786
        %v2839 = vunpack.c.h.b16 %v786
        %v2840 = vunpack.c.l.b16 %v787
        %v2841 = vunpack.c.h.b16 %v787
        %v2842 = vunpack.c.l.b16 %v788
        %v2843 = vunpack.c.h.b16 %v788
        %v2844 = vunpack.c.l.b16 %v789
        %v2845 = vunpack.c.h.b16 %v789
        %v2846 = vunpack.c.l.b16 %v790
        %v2847 = vunpack.c.h.b16 %v790
        %v2848 = vunpack.c.l.b16 %v791
        %v2849 = vunpack.c.h.b16 %v791
        %v2850 = vunpack.c.l.b16 %v792
        %v2851 = vunpack.c.h.b16 %v792
        %v2852 = vunpack.c.l.b16 %v793
        %v2853 = vunpack.c.h.b16 %v793
        %v2854 = vunpack.c.l.b16 %v794
        %v2855 = vunpack.c.h.b16 %v794
        %v2856 = vunpack.c.l.b16 %v795
        %v2857 = vunpack.c.h.b16 %v795
        %v2858 = vunpack.c.l.b16 %v796
        %v2859 = vunpack.c.h.b16 %v796
        %v2860 = vunpack.c.l.b16 %v797
        %v2861 = vunpack.c.h.b16 %v797
        %v2862 = vunpack.c.l.b16 %v798
        %v2863 = vunpack.c.h.b16 %v798
        %v2864 = vunpack.c.l.b16 %v799
        %v2865 = vunpack.c.h.b16 %v799
        %v2866 = vunpack.c.l.b16 %v800
        %v2867 = vunpack.c.h.b16 %v800
        %v2868 = vunpack.c.l.b16 %v801
        %v2869 = vunpack.c.h.b16 %v801
        %v2870 = vunpack.c.l.b16 %v802
        %v2871 = vunpack.c.h.b16 %v802
        %v2872 = vunpack.c.l.b16 %v803
        %v2873 = vunpack.c.h.b16 %v803
        %v2874 = vunpack.c.l.b16 %v804
        %v2875 = vunpack.c.h.b16 %v804
        %v2876 = vunpack.c.l.b16 %v805
        %v2877 = vunpack.c.h.b16 %v805
        %v2878 = vunpack.c.l.b16 %v806
        %v2879 = vunpack.c.h.b16 %v806
        %v2880 = vunpack.c.l.b16 %v807
        %v2881 = vunpack.c.h.b16 %v807
        %v2882 = vunpack.c.l.b16 %v808
        %v2883 = vunpack.c.h.b16 %v808
        %v2884 = vunpack.c.l.b16 %v809
        %v2885 = vunpack.c.h.b16 %v809
        %v2886 = vunpack.c.l.b16 %v810
        %v2887 = vunpack.c.h.b16 %v810
        %v2888 = vunpack.c.l.b16 %v811
        %v2889 = vunpack.c.h.b16 %v811
        %v2890 = vunpack.c.l.b16 %v812
        %v2891 = vunpack.c.h.b16 %v812
        %v2892 = vunpack.c.l.b16 %v813
        %v2893 = vunpack.c.h.b16 %v813
        %v2894 = vunpack.c.l.b16 %v814
        %v2895 = vunpack.c.h.b16 %v814
        %v2896 = vunpack.c.l.b16 %v815
        %v2897 = vunpack.c.h.b16 %v815
        %v2898 = vunpack.c.l.b16 %v816
        %v2899 = vunpack.c.h.b16 %v816
        %v2900 = vunpack.c.l.b16 %v817
        %v2901 = vunpack.c.h.b16 %v817
        %v2902 = vunpack.c.l.b16 %v818
        %v2903 = vunpack.c.h.b16 %v818
        %v2904 = vunpack.c.l.b16 %v819
        %v2905 = vunpack.c.h.b16 %v819
        %v2906 = vunpack.c.l.b16 %v820
        %v2907 = vunpack.c.h.b16 %v820
        %v2908 = vunpack.c.l.b16 %v821
        %v2909 = vunpack.c.h.b16 %v821
        %v2910 = vunpack.c.l.b16 %v822
        %v2911 = vunpack.c.h.b16 %v822
        %v2912 = vunpack.c.l.b16 %v823
        %v2913 = vunpack.c.h.b16 %v823
        %v2914 = vunpack.c.l.b16 %v824
        %v2915 = vunpack.c.h.b16 %v824
        %v2916 = vunpack.c.l.b16 %v825
        %v2917 = vunpack.c.h.b16 %v825
        %v2918 = vunpack.c.l.b16 %v826
        %v2919 = vunpack.c.h.b16 %v826
        %v2920 = vunpack.c.l.b16 %v827
        %v2921 = vunpack.c.h.b16 %v827
        %v2922 = vunpack.c.l.b16 %v828
        %v2923 = vunpack.c.h.b16 %v828
        %v2924 = vunpack.c.l.b16 %v829
        %v2925 = vunpack.c.h.b16 %v829
        %v2926 = vunpack.c.l.b16 %v830
        %v2927 = vunpack.c.h.b16 %v830
        %v2928 = vunpack.c.l.b16 %v831
        %v2929 = vunpack.c.h.b16 %v831
        %v2930 = vunpack.c.l.b16 %v832
        %v2931 = vunpack.c.h.b16 %v832
        %v2932 = vunpack.c.l.b16 %v833
        %v2933 = vunpack.c.h.b16 %v833
        %v2934 = vunpack.c.l.b16 %v834
        %v2935 = vunpack.c.h.b16 %v834
        %v2936 = vunpack.c.l.b16 %v835
        %v2937 = vunpack.c.h.b16 %v835
        %v2938 = vunpack.c.l.b16 %v836
        %v2939 = vunpack.c.h.b16 %v836
        %v2940 = vunpack.c.l.b16 %v837
        %v2941 = vunpack.c.h.b16 %v837
        %v2942 = vunpack.c.l.b16 %v838
        %v2943 = vunpack.c.h.b16 %v838
        %v2944 = vunpack.c.l.b16 %v839
        %v2945 = vunpack.c.h.b16 %v839
        %v2946 = vunpack.c.l.b16 %v840
        %v2947 = vunpack.c.h.b16 %v840
        %v2948 = vunpack.c.l.b16 %v841
        %v2949 = vunpack.c.h.b16 %v841
        %v2950 = vunpack.c.l.b16 %v842
        %v2951 = vunpack.c.h.b16 %v842
        %v2952 = vunpack.c.l.b16 %v843
        %v2953 = vunpack.c.h.b16 %v843
        %v2954 = vunpack.c.l.b16 %v844
        %v2955 = vunpack.c.h.b16 %v844
        %v2956 = vunpack.c.l.b16 %v845
        %v2957 = vunpack.c.h.b16 %v845
        %v2958 = vunpack.c.l.b16 %v846
        %v2959 = vunpack.c.h.b16 %v846
        %v2960 = vunpack.c.l.b16 %v847
        %v2961 = vunpack.c.h.b16 %v847
        %v2962 = vunpack.c.l.b16 %v848
        %v2963 = vunpack.c.h.b16 %v848
        %v2964 = vunpack.c.l.b16 %v849
        %v2965 = vunpack.c.h.b16 %v849
        %v2966 = vunpack.c.l.b16 %v850
        %v2967 = vunpack.c.h.b16 %v850
        %v2968 = vunpack.c.l.b16 %v851
        %v2969 = vunpack.c.h.b16 %v851
        %v2970 = vunpack.c.l.b16 %v852
        %v2971 = vunpack.c.h.b16 %v852
        %v2972 = vunpack.c.l.b16 %v853
        %v2973 = vunpack.c.h.b16 %v853
        %v2974 = vunpack.c.l.b16 %v854
        %v2975 = vunpack.c.h.b16 %v854
        %v2976 = vunpack.c.l.b16 %v855
        %v2977 = vunpack.c.h.b16 %v855
        %v2978 = vunpack.c.l.b16 %v856
        %v2979 = vunpack.c.h.b16 %v856
        %v2980 = vunpack.c.l.b16 %v857
        %v2981 = vunpack.c.h.b16 %v857
        %v2982 = vunpack.c.l.b16 %v858
        %v2983 = vunpack.c.h.b16 %v858
        %v2984 = vunpack.c.l.b16 %v859
        %v2985 = vunpack.c.h.b16 %v859
        %v2986 = vunpack.c.l.b16 %v860
        %v2987 = vunpack.c.h.b16 %v860
        %v2988 = vunpack.c.l.b16 %v861
        %v2989 = vunpack.c.h.b16 %v861
        %v2990 = vunpack.c.l.b16 %v862
        %v2991 = vunpack.c.h.b16 %v862
        %v2992 = vunpack.c.l.b16 %v863
        %v2993 = vunpack.c.h.b16 %v863
        %v2994 = vunpack.c.l.b16 %v864
        %v2995 = vunpack.c.h.b16 %v864
        %v2996 = vunpack.c.l.b16 %v865
        %v2997 = vunpack.c.h.b16 %v865
        %v2998 = vunpack.c.l.b16 %v866
        %v2999 = vunpack.c.h.b16 %v866
        %v3000 = vunpack.c.l.b16 %v867
        %v3001 = vunpack.c.h.b16 %v867
        %v3002 = vunpack.c.l.b16 %v868
        %v3003 = vunpack.c.h.b16 %v868
        %v3004 = vunpack.c.l.b16 %v869
        %v3005 = vunpack.c.h.b16 %v869
        %v3006 = vunpack.c.l.b16 %v870
        %v3007 = vunpack.c.h.b16 %v870
        %v3008 = vunpack.c.l.b16 %v871
        %v3009 = vunpack.c.h.b16 %v871
        %v3010 = vunpack.c.l.b16 %v872
        %v3011 = vunpack.c.h.b16 %v872
        %v3012 = vunpack.c.l.b16 %v873
        %v3013 = vunpack.c.h.b16 %v873
        %v3014 = vunpack.c.l.b16 %v874
        %v3015 = vunpack.c.h.b16 %v874
        %v3016 = vunpack.c.l.b16 %v875
        %v3017 = vunpack.c.h.b16 %v875
        %v3018 = vunpack.c.l.b16 %v876
        %v3019 = vunpack.c.h.b16 %v876
        %v3020 = vunpack.c.l.b16 %v877
        %v3021 = vunpack.c.h.b16 %v877
        %v3022 = vunpack.c.l.b16 %v878
        %v3023 = vunpack.c.h.b16 %v878
        %v3024 = vunpack.c.l.b16 %v879
        %v3025 = vunpack.c.h.b16 %v879
        %v3026 = vunpack.c.l.b16 %v880
        %v3027 = vunpack.c.h.b16 %v880
        %v3028 = vunpack.c.l.b16 %v881
        %v3029 = vunpack.c.h.b16 %v881
        %v3030 = vunpack.c.l.b16 %v882
        %v3031 = vunpack.c.h.b16 %v882
        %v3032 = vunpack.c.l.b16 %v883
        %v3033 = vunpack.c.h.b16 %v883
        %v3034 = vunpack.c.l.b16 %v884
        %v3035 = vunpack.c.h.b16 %v884
        %v3036 = vunpack.c.l.b16 %v885
        %v3037 = vunpack.c.h.b16 %v885
        %v3038 = vunpack.c.l.b16 %v886
        %v3039 = vunpack.c.h.b16 %v886
        %v3040 = vunpack.c.l.b16 %v887
        %v3041 = vunpack.c.h.b16 %v887
        %v3042 = vunpack.c.l.b16 %v888
        %v3043 = vunpack.c.h.b16 %v888
        %v3044 = vunpack.c.l.b16 %v889
        %v3045 = vunpack.c.h.b16 %v889
        %v3046 = vunpack.c.l.b16 %v890
        %v3047 = vunpack.c.h.b16 %v890
        %v3048 = vunpack.c.l.b16 %v891
        %v3049 = vunpack.c.h.b16 %v891
        %v3050 = vunpack.c.l.b16 %v892
        %v3051 = vunpack.c.h.b16 %v892
        %v3052 = vunpack.c.l.b16 %v893
        %v3053 = vunpack.c.h.b16 %v893
        %v3054 = vunpack.c.l.b16 %v894
        %v3055 = vunpack.c.h.b16 %v894
        %v3056 = vunpack.c.l.b16 %v895
        %v3057 = vunpack.c.h.b16 %v895
        %v3058 = vunpack.c.l.b16 %v896
        %v3059 = vunpack.c.h.b16 %v896
        %v3060 = vunpack.c.l.b16 %v897
        %v3061 = vunpack.c.h.b16 %v897
        %v3062 = vunpack.c.l.b16 %v898
        %v3063 = vunpack.c.h.b16 %v898
        %v3064 = vunpack.c.l.b16 %v899
        %v3065 = vunpack.c.h.b16 %v899
        %v3066 = vunpack.c.l.b16 %v900
        %v3067 = vunpack.c.h.b16 %v900
        %v3068 = vunpack.c.l.b16 %v901
        %v3069 = vunpack.c.h.b16 %v901
        %v3070 = vunpack.c.l.b16 %v902
        %v3071 = vunpack.c.h.b16 %v902
        %v3072 = vunpack.c.l.b16 %v903
        %v3073 = vunpack.c.h.b16 %v903
        %v3074 = vunpack.c.l.b16 %v904
        %v3075 = vunpack.c.h.b16 %v904
        %v3076 = vunpack.c.l.b16 %v905
        %v3077 = vunpack.c.h.b16 %v905
        %v3078 = vunpack.c.l.b16 %v906
        %v3079 = vunpack.c.h.b16 %v906
        %v3080 = vunpack.c.l.b16 %v907
        %v3081 = vunpack.c.h.b16 %v907
        %v3082 = vunpack.c.l.b16 %v908
        %v3083 = vunpack.c.h.b16 %v908
        %v3084 = vunpack.c.l.b16 %v909
        %v3085 = vunpack.c.h.b16 %v909
        %v3086 = vunpack.c.l.b16 %v910
        %v3087 = vunpack.c.h.b16 %v910
        %v3088 = vunpack.c.l.b16 %v911
        %v3089 = vunpack.c.h.b16 %v911
        %v3090 = vunpack.c.l.b16 %v912
        %v3091 = vunpack.c.h.b16 %v912
        %v3092 = vunpack.c.l.b16 %v913
        %v3093 = vunpack.c.h.b16 %v913
        %v3094 = vunpack.c.l.b16 %v914
        %v3095 = vunpack.c.h.b16 %v914
        %v3096 = vunpack.c.l.b16 %v915
        %v3097 = vunpack.c.h.b16 %v915
        %v3098 = vunpack.c.l.b16 %v916
        %v3099 = vunpack.c.h.b16 %v916
        %v3100 = vunpack.c.l.b16 %v917
        %v3101 = vunpack.c.h.b16 %v917
        %v3102 = vunpack.c.l.b16 %v918
        %v3103 = vunpack.c.h.b16 %v918
        %v3104 = vunpack.c.l.b16 %v919
        %v3105 = vunpack.c.h.b16 %v919
        %v3106 = vunpack.c.l.b16 %v920
        %v3107 = vunpack.c.h.b16 %v920
        %v3108 = vunpack.c.l.b16 %v921
        %v3109 = vunpack.c.h.b16 %v921
        %v3110 = vunpack.c.l.b16 %v922
        %v3111 = vunpack.c.h.b16 %v922
        %v3112 = vunpack.c.l.b16 %v923
        %v3113 = vunpack.c.h.b16 %v923
        %v3114 = vunpack.c.l.b16 %v924
        %v3115 = vunpack.c.h.b16 %v924
        %v3116 = vunpack.c.l.b16 %v925
        %v3117 = vunpack.c.h.b16 %v925
        %v3118 = vunpack.c.l.b16 %v926
        %v3119 = vunpack.c.h.b16 %v926
        %v3120 = vunpack.c.l.b16 %v927
        %v3121 = vunpack.c.h.b16 %v927
        %v3122 = vunpack.c.l.b16 %v928
        %v3123 = vunpack.c.h.b16 %v928
        %v3124 = vunpack.c.l.b16 %v929
        %v3125 = vunpack.c.h.b16 %v929
        %v3126 = vunpack.c.l.b16 %v930
        %v3127 = vunpack.c.h.b16 %v930
        %v3128 = vunpack.c.l.b16 %v931
        %v3129 = vunpack.c.h.b16 %v931
        %v3130 = vunpack.c.l.b16 %v932
        %v3131 = vunpack.c.h.b16 %v932
        %v3132 = vunpack.c.l.b16 %v933
        %v3133 = vunpack.c.h.b16 %v933
        %v3134 = vunpack.c.l.b16 %v934
        %v3135 = vunpack.c.h.b16 %v934
        %v3136 = vunpack.c.l.b16 %v935
        %v3137 = vunpack.c.h.b16 %v935
        %v3138 = vunpack.c.l.b16 %v936
        %v3139 = vunpack.c.h.b16 %v936
        %v3140 = vunpack.c.l.b16 %v937
        %v3141 = vunpack.c.h.b16 %v937
        %v3142 = vunpack.c.l.b16 %v938
        %v3143 = vunpack.c.h.b16 %v938
        %v3144 = vunpack.c.l.b16 %v939
        %v3145 = vunpack.c.h.b16 %v939
        %v3146 = vunpack.c.l.b16 %v940
        %v3147 = vunpack.c.h.b16 %v940
        %v3148 = vunpack.c.l.b16 %v941
        %v3149 = vunpack.c.h.b16 %v941
        %v3150 = vunpack.c.l.b16 %v942
        %v3151 = vunpack.c.h.b16 %v942
        %v3152 = vunpack.c.l.b16 %v943
        %v3153 = vunpack.c.h.b16 %v943
        %v3154 = vunpack.c.l.b16 %v944
        %v3155 = vunpack.c.h.b16 %v944
        %v3156 = vunpack.c.l.b16 %v945
        %v3157 = vunpack.c.h.b16 %v945
        %v3158 = vunpack.c.l.b16 %v946
        %v3159 = vunpack.c.h.b16 %v946
        %v3160 = vunpack.c.l.b16 %v947
        %v3161 = vunpack.c.h.b16 %v947
        %v3162 = vunpack.c.l.b16 %v948
        %v3163 = vunpack.c.h.b16 %v948
        %v3164 = vunpack.c.l.b16 %v949
        %v3165 = vunpack.c.h.b16 %v949
        %v3166 = vunpack.c.l.b16 %v950
        %v3167 = vunpack.c.h.b16 %v950
        %v3168 = vunpack.c.l.b16 %v951
        %v3169 = vunpack.c.h.b16 %v951
        %v3170 = vunpack.c.l.b16 %v952
        %v3171 = vunpack.c.h.b16 %v952
        %v3172 = vunpack.c.l.b16 %v953
        %v3173 = vunpack.c.h.b16 %v953
        %v3174 = vunpack.c.l.b16 %v954
        %v3175 = vunpack.c.h.b16 %v954
        %v3176 = vunpack.c.l.b16 %v955
        %v3177 = vunpack.c.h.b16 %v955
        %v3178 = vunpack.c.l.b16 %v956
        %v3179 = vunpack.c.h.b16 %v956
        %v3180 = vunpack.c.l.b16 %v957
        %v3181 = vunpack.c.h.b16 %v957
        %v3182 = vunpack.c.l.b16 %v958
        %v3183 = vunpack.c.h.b16 %v958
        %v3184 = vunpack.c.l.b16 %v959
        %v3185 = vunpack.c.h.b16 %v959
        %v3186 = vunpack.c.l.b16 %v960
        %v3187 = vunpack.c.h.b16 %v960
        %v3188 = vunpack.c.l.b16 %v961
        %v3189 = vunpack.c.h.b16 %v961
        %v3190 = vunpack.c.l.b16 %v962
        %v3191 = vunpack.c.h.b16 %v962
        %v3192 = vunpack.c.l.b16 %v963
        %v3193 = vunpack.c.h.b16 %v963
        %v3194 = vunpack.c.l.b16 %v964
        %v3195 = vunpack.c.h.b16 %v964
        %v3196 = vunpack.c.l.b16 %v965
        %v3197 = vunpack.c.h.b16 %v965
        %v3198 = vunpack.c.l.b16 %v966
        %v3199 = vunpack.c.h.b16 %v966
        %v3200 = vunpack.c.l.b16 %v967
        %v3201 = vunpack.c.h.b16 %v967
        %v3202 = vunpack.c.l.b16 %v968
        %v3203 = vunpack.c.h.b16 %v968
        %v3204 = vunpack.c.l.b16 %v969
        %v3205 = vunpack.c.h.b16 %v969
        %v3206 = vunpack.c.l.b16 %v970
        %v3207 = vunpack.c.h.b16 %v970
        %v3208 = vunpack.c.l.b16 %v971
        %v3209 = vunpack.c.h.b16 %v971
        %v3210 = vunpack.c.l.b16 %v972
        %v3211 = vunpack.c.h.b16 %v972
        %v3212 = vunpack.c.l.b16 %v973
        %v3213 = vunpack.c.h.b16 %v973
        %v3214 = vunpack.c.l.b16 %v974
        %v3215 = vunpack.c.h.b16 %v974
        %v3216 = vunpack.c.l.b16 %v975
        %v3217 = vunpack.c.h.b16 %v975
        %v3218 = vunpack.c.l.b16 %v976
        %v3219 = vunpack.c.h.b16 %v976
        %v3220 = vunpack.c.l.b16 %v977
        %v3221 = vunpack.c.h.b16 %v977
        %v3222 = vunpack.c.l.b16 %v978
        %v3223 = vunpack.c.h.b16 %v978
        %v3224 = vunpack.c.l.b16 %v979
        %v3225 = vunpack.c.h.b16 %v979
        %v3226 = vunpack.c.l.b16 %v980
        %v3227 = vunpack.c.h.b16 %v980
        %v3228 = vunpack.c.l.b16 %v981
        %v3229 = vunpack.c.h.b16 %v981
        %v3230 = vunpack.c.l.b16 %v982
        %v3231 = vunpack.c.h.b16 %v982
        %v3232 = vunpack.c.l.b16 %v983
        %v3233 = vunpack.c.h.b16 %v983
        %v3234 = vunpack.c.l.b16 %v984
        %v3235 = vunpack.c.h.b16 %v984
        %v3236 = vunpack.c.l.b16 %v985
        %v3237 = vunpack.c.h.b16 %v985
        %v3238 = vunpack.c.l.b16 %v986
        %v3239 = vunpack.c.h.b16 %v986
        %v3240 = vunpack.c.l.b16 %v987
        %v3241 = vunpack.c.h.b16 %v987
        %v3242 = vunpack.c.l.b16 %v988
        %v3243 = vunpack.c.h.b16 %v988
        %v3244 = vunpack.c.l.b16 %v989
        %v3245 = vunpack.c.h.b16 %v989
        %v3246 = vunpack.c.l.b16 %v990
        %v3247 = vunpack.c.h.b16 %v990
        %v3248 = vunpack.c.l.b16 %v991
        %v3249 = vunpack.c.h.b16 %v991
        %v3250 = vunpack.c.l.b16 %v992
        %v3251 = vunpack.c.h.b16 %v992
        %v3252 = vunpack.c.l.b16 %v993
        %v3253 = vunpack.c.h.b16 %v993
        %v3254 = vunpack.c.l.b16 %v994
        %v3255 = vunpack.c.h.b16 %v994
        %v3256 = vunpack.c.l.b16 %v995
        %v3257 = vunpack.c.h.b16 %v995
        %v3258 = vunpack.c.l.b16 %v996
        %v3259 = vunpack.c.h.b16 %v996
        %v3260 = vunpack.c.l.b16 %v997
        %v3261 = vunpack.c.h.b16 %v997
        %v3262 = vunpack.c.l.b16 %v998
        %v3263 = vunpack.c.h.b16 %v998
        %v3264 = vunpack.c.l.b16 %v999
        %v3265 = vunpack.c.h.b16 %v999
        %v3266 = vunpack.c.l.b16 %v1000
        %v3267 = vunpack.c.h.b16 %v1000
        %v3268 = vunpack.c.l.b16 %v1001
        %v3269 = vunpack.c.h.b16 %v1001
        %v3270 = vunpack.c.l.b16 %v1002
        %v3271 = vunpack.c.h.b16 %v1002
        %v3272 = vunpack.c.l.b16 %v1003
        %v3273 = vunpack.c.h.b16 %v1003
        %v3274 = vunpack.c.l.b16 %v1004
        %v3275 = vunpack.c.h.b16 %v1004
        %v3276 = vunpack.c.l.b16 %v1005
        %v3277 = vunpack.c.h.b16 %v1005
        %v3278 = vunpack.c.l.b16 %v1006
        %v3279 = vunpack.c.h.b16 %v1006
        %v3280 = vunpack.c.l.b16 %v1007
        %v3281 = vunpack.c.h.b16 %v1007
        %v3282 = vunpack.c.l.b16 %v1008
        %v3283 = vunpack.c.h.b16 %v1008
        %v3284 = vunpack.c.l.b16 %v1009
        %v3285 = vunpack.c.h.b16 %v1009
        %v3286 = vunpack.c.l.b16 %v1010
        %v3287 = vunpack.c.h.b16 %v1010
        %v3288 = vunpack.c.l.b16 %v1011
        %v3289 = vunpack.c.h.b16 %v1011
        %v3290 = vunpack.c.l.b16 %v1012
        %v3291 = vunpack.c.h.b16 %v1012
        %v3292 = vunpack.c.l.b16 %v1013
        %v3293 = vunpack.c.h.b16 %v1013
        %v3294 = vunpack.c.l.b16 %v1014
        %v3295 = vunpack.c.h.b16 %v1014
        %v3296 = vunpack.c.l.b16 %v1015
        %v3297 = vunpack.c.h.b16 %v1015
        %v3298 = vunpack.c.l.b16 %v1016
        %v3299 = vunpack.c.h.b16 %v1016
        %v3300 = vunpack.c.l.b16 %v1017
        %v3301 = vunpack.c.h.b16 %v1017
        %v3302 = vunpack.c.l.b16 %v1018
        %v3303 = vunpack.c.h.b16 %v1018
        %v3304 = vunpack.c.l.b16 %v1019
        %v3305 = vunpack.c.h.b16 %v1019
        %v3306 = vunpack.c.l.b16 %v1020
        %v3307 = vunpack.c.h.b16 %v1020
        %v3308 = vunpack.c.l.b16 %v1021
        %v3309 = vunpack.c.h.b16 %v1021
        %v3310 = vunpack.c.l.b16 %v1022
        %v3311 = vunpack.c.h.b16 %v1022
        %v3312 = vunpack.c.l.b16 %v1023
        %v3313 = vunpack.c.h.b16 %v1023
        %v3314 = vunpack.c.l.b16 %v1024
        %v3315 = vunpack.c.h.b16 %v1024
        %v3316 = vunpack.c.l.b16 %v1025
        %v3317 = vunpack.c.h.b16 %v1025
        %v3318 = vunpack.c.l.b16 %v1026
        %v3319 = vunpack.c.h.b16 %v1026
        %v3320 = vunpack.c.l.b16 %v1027
        %v3321 = vunpack.c.h.b16 %v1027
        %v3322 = vunpack.c.l.b16 %v1028
        %v3323 = vunpack.c.h.b16 %v1028
        %v3324 = vunpack.c.l.b16 %v1029
        %v3325 = vunpack.c.h.b16 %v1029
        %v3326 = vunpack.c.l.b16 %v1030
        %v3327 = vunpack.c.h.b16 %v1030
        %v3328 = vunpack.c.l.b16 %v1031
        %v3329 = vunpack.c.h.b16 %v1031
        %v3330 = vunpack.c.l.b16 %v1032
        %v3331 = vunpack.c.h.b16 %v1032
        %v3332 = vunpack.c.l.b16 %v1033
        %v3333 = vunpack.c.h.b16 %v1033
        %v3334 = vunpack.c.l.b16 %v1034
        %v3335 = vunpack.c.h.b16 %v1034
        %v3336 = vunpack.c.l.b16 %v1035
        %v3337 = vunpack.c.h.b16 %v1035
        %v3338 = vunpack.c.l.b16 %v1036
        %v3339 = vunpack.c.h.b16 %v1036
        %v3340 = vunpack.c.l.b16 %v1037
        %v3341 = vunpack.c.h.b16 %v1037
        %v3342 = vunpack.c.l.b16 %v1038
        %v3343 = vunpack.c.h.b16 %v1038
        %v3344 = vunpack.c.l.b16 %v1039
        %v3345 = vunpack.c.h.b16 %v1039
        %v3346 = vunpack.c.l.b16 %v1040
        %v3347 = vunpack.c.h.b16 %v1040
        %v3348 = vunpack.c.l.b16 %v1041
        %v3349 = vunpack.c.h.b16 %v1041
        %v3350 = vunpack.c.l.b16 %v1042
        %v3351 = vunpack.c.h.b16 %v1042
        %v3352 = vunpack.c.l.b16 %v1043
        %v3353 = vunpack.c.h.b16 %v1043
        %v3354 = vunpack.c.l.b16 %v1044
        %v3355 = vunpack.c.h.b16 %v1044
        %v3356 = vunpack.c.l.b16 %v1045
        %v3357 = vunpack.c.h.b16 %v1045
        %v3358 = vunpack.c.l.b16 %v1046
        %v3359 = vunpack.c.h.b16 %v1046
        %v3360 = vunpack.c.l.b16 %v1047
        %v3361 = vunpack.c.h.b16 %v1047
        %v3362 = vunpack.c.l.b16 %v1048
        %v3363 = vunpack.c.h.b16 %v1048
        %v3364 = vunpack.c.l.b16 %v1049
        %v3365 = vunpack.c.h.b16 %v1049
        %v3366 = vunpack.c.l.b16 %v1050
        %v3367 = vunpack.c.h.b16 %v1050
        %v3368 = vunpack.c.l.b16 %v1051
        %v3369 = vunpack.c.h.b16 %v1051
        %v3370 = vunpack.c.l.b16 %v1052
        %v3371 = vunpack.c.h.b16 %v1052
        %v3372 = vunpack.c.l.b16 %v1053
        %v3373 = vunpack.c.h.b16 %v1053
        %v3374 = vunpack.c.l.b16 %v1054
        %v3375 = vunpack.c.h.b16 %v1054
        %v3376 = vunpack.c.l.b16 %v1055
        %v3377 = vunpack.c.h.b16 %v1055
        %v3378 = vunpack.c.l.b16 %v1056
        %v3379 = vunpack.c.h.b16 %v1056
        %v3380 = vunpack.c.l.b16 %v1057
        %v3381 = vunpack.c.h.b16 %v1057
        %v3382 = vunpack.c.l.b16 %v1058
        %v3383 = vunpack.c.h.b16 %v1058
        %v3384 = vunpack.c.l.b16 %v1059
        %v3385 = vunpack.c.h.b16 %v1059
        %v3386 = vunpack.c.l.b16 %v1060
        %v3387 = vunpack.c.h.b16 %v1060
        %v3388 = vunpack.c.l.b16 %v1061
        %v3389 = vunpack.c.h.b16 %v1061
        %v3390 = vunpack.c.l.b16 %v1062
        %v3391 = vunpack.c.h.b16 %v1062
        %v3392 = vunpack.c.l.b16 %v1063
        %v3393 = vunpack.c.h.b16 %v1063
        %v3394 = vunpack.c.l.b16 %v1064
        %v3395 = vunpack.c.h.b16 %v1064
        %v3396 = vunpack.c.l.b16 %v1065
        %v3397 = vunpack.c.h.b16 %v1065
        %v3398 = vunpack.c.l.b16 %v1066
        %v3399 = vunpack.c.h.b16 %v1066
        %v3400 = vunpack.c.l.b16 %v1067
        %v3401 = vunpack.c.h.b16 %v1067
        %v3402 = vunpack.c.l.b16 %v1068
        %v3403 = vunpack.c.h.b16 %v1068
        %v3404 = vunpack.c.l.b16 %v1069
        %v3405 = vunpack.c.h.b16 %v1069
        %v3406 = vunpack.c.l.b16 %v1070
        %v3407 = vunpack.c.h.b16 %v1070
        %v3408 = vunpack.c.l.b16 %v1071
        %v3409 = vunpack.c.h.b16 %v1071
        %v3410 = vunpack.c.l.b16 %v1072
        %v3411 = vunpack.c.h.b16 %v1072
        %v3412 = vunpack.c.l.b16 %v1073
        %v3413 = vunpack.c.h.b16 %v1073
        %v3414 = vunpack.c.l.b16 %v1074
        %v3415 = vunpack.c.h.b16 %v1074
        %v3416 = vunpack.c.l.b16 %v1075
        %v3417 = vunpack.c.h.b16 %v1075
        %v3418 = vunpack.c.l.b16 %v1076
        %v3419 = vunpack.c.h.b16 %v1076
        %v3420 = vunpack.c.l.b16 %v1077
        %v3421 = vunpack.c.h.b16 %v1077
        %v3422 = vunpack.c.l.b16 %v1078
        %v3423 = vunpack.c.h.b16 %v1078
        %v3424 = vunpack.c.l.b16 %v1079
        %v3425 = vunpack.c.h.b16 %v1079
        %v3426 = vunpack.c.l.b16 %v1080
        %v3427 = vunpack.c.h.b16 %v1080
        %v3428 = vunpack.c.l.b16 %v1081
        %v3429 = vunpack.c.h.b16 %v1081
        %v3430 = vpack.c.b16 %v1906, %v1894
        %v3431 = vpack.c.b16 %v1907, %v1895
        %v3432 = vpack.c.b16 %v1908, %v1896
        %v3433 = vpack.c.b16 %v1909, %v1897
        %v3434 = vpack.c.b16 %v1910, %v1898
        %v3435 = vpack.c.b16 %v1911, %v1899
        %v3436 = vpack.c.b16 %v1912, %v1900
        %v3437 = vpack.c.b16 %v1913, %v1901
        %v3438 = vpack.c.b16 %v1914, %v1902
        %v3439 = vpack.c.b16 %v1915, %v1903
        %v3440 = vpack.c.b16 %v1916, %v1904
        %v3441 = vpack.c.b16 %v1917, %v1905
        %v3442 = vpack.c.b16 %v1930, %v1918
        %v3443 = vpack.c.b16 %v1931, %v1919
        %v3444 = vpack.c.b16 %v1932, %v1920
        %v3445 = vpack.c.b16 %v1933, %v1921
        %v3446 = vpack.c.b16 %v1934, %v1922
        %v3447 = vpack.c.b16 %v1935, %v1923
        %v3448 = vpack.c.b16 %v1936, %v1924
        %v3449 = vpack.c.b16 %v1937, %v1925
        %v3450 = vpack.c.b16 %v1938, %v1926
        %v3451 = vpack.c.b16 %v1939, %v1927
        %v3452 = vpack.c.b16 %v1940, %v1928
        %v3453 = vpack.c.b16 %v1941, %v1929
        %v3454 = vpack.c.b16 %v1954, %v1942
        %v3455 = vpack.c.b16 %v1955, %v1943
        %v3456 = vpack.c.b16 %v1956, %v1944
        %v3457 = vpack.c.b16 %v1957, %v1945
        %v3458 = vpack.c.b16 %v1958, %v1946
        %v3459 = vpack.c.b16 %v1959, %v1947
        %v3460 = vpack.c.b16 %v1960, %v1948
        %v3461 = vpack.c.b16 %v1961, %v1949
        %v3462 = vpack.c.b16 %v1962, %v1950
        %v3463 = vpack.c.b16 %v1963, %v1951
        %v3464 = vpack.c.b16 %v1964, %v1952
        %v3465 = vpack.c.b16 %v1965, %v1953
        %v3466 = vpack.c.b16 %v1978, %v1966
        %v3467 = vpack.c.b16 %v1979, %v1967
        %v3468 = vpack.c.b16 %v1980, %v1968
        %v3469 = vpack.c.b16 %v1981, %v1969
        %v3470 = vpack.c.b16 %v1982, %v1970
        %v3471 = vpack.c.b16 %v1983, %v1971
        %v3472 = vpack.c.b16 %v1984, %v1972
        %v3473 = vpack.c.b16 %v1985, %v1973
        %v3474 = vpack.c.b16 %v1986, %v1974
        %v3475 = vpack.c.b16 %v1987, %v1975
        %v3476 = vpack.c.b16 %v1988, %v1976
        %v3477 = vpack.c.b16 %v1989, %v1977
        %v3478 = vpack.c.b16 %v2002, %v1990
        %v3479 = vpack.c.b16 %v2003, %v1991
        %v3480 = vpack.c.b16 %v2004, %v1992
        %v3481 = vpack.c.b16 %v2005, %v1993
        %v3482 = vpack.c.b16 %v2006, %v1994
        %v3483 = vpack.c.b16 %v2007, %v1995
        %v3484 = vpack.c.b16 %v2008, %v1996
        %v3485 = vpack.c.b16 %v2009, %v1997
        %v3486 = vpack.c.b16 %v2010, %v1998
        %v3487 = vpack.c.b16 %v2011, %v1999
        %v3488 = vpack.c.b16 %v2012, %v2000
        %v3489 = vpack.c.b16 %v2013, %v2001
        %v3490 = vpack.c.b16 %v2026, %v2014
        %v3491 = vpack.c.b16 %v2027, %v2015
        %v3492 = vpack.c.b16 %v2028, %v2016
        %v3493 = vpack.c.b16 %v2029, %v2017
        %v3494 = vpack.c.b16 %v2030, %v2018
        %v3495 = vpack.c.b16 %v2031, %v2019
        %v3496 = vpack.c.b16 %v2032, %v2020
        %v3497 = vpack.c.b16 %v2033, %v2021
        %v3498 = vpack.c.b16 %v2034, %v2022
        %v3499 = vpack.c.b16 %v2035, %v2023
        %v3500 = vpack.c.b16 %v2036, %v2024
        %v3501 = vpack.c.b16 %v2037, %v2025
        %v3502 = vpack.c.b16 %v2050, %v2038
        %v3503 = vpack.c.b16 %v2051, %v2039
        %v3504 = vpack.c.b16 %v2052, %v2040
        %v3505 = vpack.c.b16 %v2053, %v2041
        %v3506 = vpack.c.b16 %v2054, %v2042
        %v3507 = vpack.c.b16 %v2055, %v2043
        %v3508 = vpack.c.b16 %v2056, %v2044
        %v3509 = vpack.c.b16 %v2057, %v2045
        %v3510 = vpack.c.b16 %v2058, %v2046
        %v3511 = vpack.c.b16 %v2059, %v2047
        %v3512 = vpack.c.b16 %v2060, %v2048
        %v3513 = vpack.c.b16 %v2061, %v2049
        %v3514 = vpack.c.b16 %v2074, %v2062
        %v3515 = vpack.c.b16 %v2075, %v2063
        %v3516 = vpack.c.b16 %v2076, %v2064
        %v3517 = vpack.c.b16 %v2077, %v2065
        %v3518 = vpack.c.b16 %v2078, %v2066
        %v3519 = vpack.c.b16 %v2079, %v2067
        %v3520 = vpack.c.b16 %v2080, %v2068
        %v3521 = vpack.c.b16 %v2081, %v2069
        %v3522 = vpack.c.b16 %v2082, %v2070
        %v3523 = vpack.c.b16 %v2083, %v2071
        %v3524 = vpack.c.b16 %v2084, %v2072
        %v3525 = vpack.c.b16 %v2085, %v2073
        %v3526 = vpack.c.b16 %v2098, %v2086
        %v3527 = vpack.c.b16 %v2099, %v2087
        %v3528 = vpack.c.b16 %v2100, %v2088
        %v3529 = vpack.c.b16 %v2101, %v2089
        %v3530 = vpack.c.b16 %v2102, %v2090
        %v3531 = vpack.c.b16 %v2103, %v2091
        %v3532 = vpack.c.b16 %v2104, %v2092
        %v3533 = vpack.c.b16 %v2105, %v2093
        %v3534 = vpack.c.b16 %v2106, %v2094
        %v3535 = vpack.c.b16 %v2107, %v2095
        %v3536 = vpack.c.b16 %v2108, %v2096
        %v3537 = vpack.c.b16 %v2109, %v2097
        %v3538 = vpack.c.b16 %v2122, %v2110
        %v3539 = vpack.c.b16 %v2123, %v2111
        %v3540 = vpack.c.b16 %v2124, %v2112
        %v3541 = vpack.c.b16 %v2125, %v2113
        %v3542 = vpack.c.b16 %v2126, %v2114
        %v3543 = vpack.c.b16 %v2127, %v2115
        %v3544 = vpack.c.b16 %v2128, %v2116
        %v3545 = vpack.c.b16 %v2129, %v2117
        %v3546 = vpack.c.b16 %v2130, %v2118
        %v3547 = vpack.c.b16 %v2131, %v2119
        %v3548 = vpack.c.b16 %v2132, %v2120
        %v3549 = vpack.c.b16 %v2133, %v2121
        %v3550 = vpack.c.b16 %v2146, %v2134
        %v3551 = vpack.c.b16 %v2147, %v2135
        %v3552 = vpack.c.b16 %v2148, %v2136
        %v3553 = vpack.c.b16 %v2149, %v2137
        %v3554 = vpack.c.b16 %v2150, %v2138
        %v3555 = vpack.c.b16 %v2151, %v2139
        %v3556 = vpack.c.b16 %v2152, %v2140
        %v3557 = vpack.c.b16 %v2153, %v2141
        %v3558 = vpack.c.b16 %v2154, %v2142
        %v3559 = vpack.c.b16 %v2155, %v2143
        %v3560 = vpack.c.b16 %v2156, %v2144
        %v3561 = vpack.c.b16 %v2157, %v2145
        %v3562 = vpack.c.b16 %v2170, %v2158
        %v3563 = vpack.c.b16 %v2171, %v2159
        %v3564 = vpack.c.b16 %v2172, %v2160
        %v3565 = vpack.c.b16 %v2173, %v2161
        %v3566 = vpack.c.b16 %v2174, %v2162
        %v3567 = vpack.c.b16 %v2175, %v2163
        %v3568 = vpack.c.b16 %v2176, %v2164
        %v3569 = vpack.c.b16 %v2177, %v2165
        %v3570 = vpack.c.b16 %v2178, %v2166
        %v3571 = vpack.c.b16 %v2179, %v2167
        %v3572 = vpack.c.b16 %v2180, %v2168
        %v3573 = vpack.c.b16 %v2181, %v2169
        %v3574 = vpack.c.b16 %v2194, %v2182
        %v3575 = vpack.c.b16 %v2195, %v2183
        %v3576 = vpack.c.b16 %v2196, %v2184
        %v3577 = vpack.c.b16 %v2197, %v2185
        %v3578 = vpack.c.b16 %v2198, %v2186
        %v3579 = vpack.c.b16 %v2199, %v2187
        %v3580 = vpack.c.b16 %v2200, %v2188
        %v3581 = vpack.c.b16 %v2201, %v2189
        %v3582 = vpack.c.b16 %v2202, %v2190
        %v3583 = vpack.c.b16 %v2203, %v2191
        %v3584 = vpack.c.b16 %v2204, %v2192
        %v3585 = vpack.c.b16 %v2205, %v2193
        %v3586 = vpack.c.b16 %v2218, %v2206
        %v3587 = vpack.c.b16 %v2219, %v2207
        %v3588 = vpack.c.b16 %v2220, %v2208
        %v3589 = vpack.c.b16 %v2221, %v2209
        %v3590 = vpack.c.b16 %v2222, %v2210
        %v3591 = vpack.c.b16 %v2223, %v2211
        %v3592 = vpack.c.b16 %v2224, %v2212
        %v3593 = vpack.c.b16 %v2225, %v2213
        %v3594 = vpack.c.b16 %v2226, %v2214
        %v3595 = vpack.c.b16 %v2227, %v2215
        %v3596 = vpack.c.b16 %v2228, %v2216
        %v3597 = vpack.c.b16 %v2229, %v2217
        %v3598 = vpack.c.b16 %v2242, %v2230
        %v3599 = vpack.c.b16 %v2243, %v2231
        %v3600 = vpack.c.b16 %v2244, %v2232
        %v3601 = vpack.c.b16 %v2245, %v2233
        %v3602 = vpack.c.b16 %v2246, %v2234
        %v3603 = vpack.c.b16 %v2247, %v2235
        %v3604 = vpack.c.b16 %v2248, %v2236
        %v3605 = vpack.c.b16 %v2249, %v2237
        %v3606 = vpack.c.b16 %v2250, %v2238
        %v3607 = vpack.c.b16 %v2251, %v2239
        %v3608 = vpack.c.b16 %v2252, %v2240
        %v3609 = vpack.c.b16 %v2253, %v2241
        %v3610 = vpack.c.b16 %v2266, %v2254
        %v3611 = vpack.c.b16 %v2267, %v2255
        %v3612 = vpack.c.b16 %v2268, %v2256
        %v3613 = vpack.c.b16 %v2269, %v2257
        %v3614 = vpack.c.b16 %v2270, %v2258
        %v3615 = vpack.c.b16 %v2271, %v2259
        %v3616 = vpack.c.b16 %v2272, %v2260
        %v3617 = vpack.c.b16 %v2273, %v2261
        %v3618 = vpack.c.b16 %v2274, %v2262
        %v3619 = vpack.c.b16 %v2275, %v2263
        %v3620 = vpack.c.b16 %v2276, %v2264
        %v3621 = vpack.c.b16 %v2277, %v2265
        %v3622 = vpack.c.b16 %v2290, %v2278
        %v3623 = vpack.c.b16 %v2291, %v2279
        %v3624 = vpack.c.b16 %v2292, %v2280
        %v3625 = vpack.c.b16 %v2293, %v2281
        %v3626 = vpack.c.b16 %v2294, %v2282
        %v3627 = vpack.c.b16 %v2295, %v2283
        %v3628 = vpack.c.b16 %v2296, %v2284
        %v3629 = vpack.c.b16 %v2297, %v2285
        %v3630 = vpack.c.b16 %v2298, %v2286
        %v3631 = vpack.c.b16 %v2299, %v2287
        %v3632 = vpack.c.b16 %v2300, %v2288
        %v3633 = vpack.c.b16 %v2301, %v2289
        %v3634 = vpack.c.b16 %v2314, %v2302
        %v3635 = vpack.c.b16 %v2315, %v2303
        %v3636 = vpack.c.b16 %v2316, %v2304
        %v3637 = vpack.c.b16 %v2317, %v2305
        %v3638 = vpack.c.b16 %v2318, %v2306
        %v3639 = vpack.c.b16 %v2319, %v2307
        %v3640 = vpack.c.b16 %v2320, %v2308
        %v3641 = vpack.c.b16 %v2321, %v2309
        %v3642 = vpack.c.b16 %v2322, %v2310
        %v3643 = vpack.c.b16 %v2323, %v2311
        %v3644 = vpack.c.b16 %v2324, %v2312
        %v3645 = vpack.c.b16 %v2325, %v2313
        %v3646 = vpack.c.b16 %v2338, %v2326
        %v3647 = vpack.c.b16 %v2339, %v2327
        %v3648 = vpack.c.b16 %v2340, %v2328
        %v3649 = vpack.c.b16 %v2341, %v2329
        %v3650 = vpack.c.b16 %v2342, %v2330
        %v3651 = vpack.c.b16 %v2343, %v2331
        %v3652 = vpack.c.b16 %v2344, %v2332
        %v3653 = vpack.c.b16 %v2345, %v2333
        %v3654 = vpack.c.b16 %v2346, %v2334
        %v3655 = vpack.c.b16 %v2347, %v2335
        %v3656 = vpack.c.b16 %v2348, %v2336
        %v3657 = vpack.c.b16 %v2349, %v2337
        %v3658 = vpack.c.b16 %v2362, %v2350
        %v3659 = vpack.c.b16 %v2363, %v2351
        %v3660 = vpack.c.b16 %v2364, %v2352
        %v3661 = vpack.c.b16 %v2365, %v2353
        %v3662 = vpack.c.b16 %v2366, %v2354
        %v3663 = vpack.c.b16 %v2367, %v2355
        %v3664 = vpack.c.b16 %v2368, %v2356
        %v3665 = vpack.c.b16 %v2369, %v2357
        %v3666 = vpack.c.b16 %v2370, %v2358
        %v3667 = vpack.c.b16 %v2371, %v2359
        %v3668 = vpack.c.b16 %v2372, %v2360
        %v3669 = vpack.c.b16 %v2373, %v2361
        %v3670 = vpack.c.b16 %v2386, %v2374
        %v3671 = vpack.c.b16 %v2387, %v2375
        %v3672 = vpack.c.b16 %v2388, %v2376
        %v3673 = vpack.c.b16 %v2389, %v2377
        %v3674 = vpack.c.b16 %v2390, %v2378
        %v3675 = vpack.c.b16 %v2391, %v2379
        %v3676 = vpack.c.b16 %v2392, %v2380
        %v3677 = vpack.c.b16 %v2393, %v2381
        %v3678 = vpack.c.b16 %v2394, %v2382
        %v3679 = vpack.c.b16 %v2395, %v2383
        %v3680 = vpack.c.b16 %v2396, %v2384
        %v3681 = vpack.c.b16 %v2397, %v2385
        %v3682 = vpack.c.b16 %v2410, %v2398
        %v3683 = vpack.c.b16 %v2411, %v2399
        %v3684 = vpack.c.b16 %v2412, %v2400
        %v3685 = vpack.c.b16 %v2413, %v2401
        %v3686 = vpack.c.b16 %v2414, %v2402
        %v3687 = vpack.c.b16 %v2415, %v2403
        %v3688 = vpack.c.b16 %v2416, %v2404
        %v3689 = vpack.c.b16 %v2417, %v2405
        %v3690 = vpack.c.b16 %v2418, %v2406
        %v3691 = vpack.c.b16 %v2419, %v2407
        %v3692 = vpack.c.b16 %v2420, %v2408
        %v3693 = vpack.c.b16 %v2421, %v2409
        %v3694 = vpack.c.b16 %v2434, %v2422
        %v3695 = vpack.c.b16 %v2435, %v2423
        %v3696 = vpack.c.b16 %v2436, %v2424
        %v3697 = vpack.c.b16 %v2437, %v2425
        %v3698 = vpack.c.b16 %v2438, %v2426
        %v3699 = vpack.c.b16 %v2439, %v2427
        %v3700 = vpack.c.b16 %v2440, %v2428
        %v3701 = vpack.c.b16 %v2441, %v2429
        %v3702 = vpack.c.b16 %v2442, %v2430
        %v3703 = vpack.c.b16 %v2443, %v2431
        %v3704 = vpack.c.b16 %v2444, %v2432
        %v3705 = vpack.c.b16 %v2445, %v2433
        %v3706 = vpack.c.b16 %v2458, %v2446
        %v3707 = vpack.c.b16 %v2459, %v2447
        %v3708 = vpack.c.b16 %v2460, %v2448
        %v3709 = vpack.c.b16 %v2461, %v2449
        %v3710 = vpack.c.b16 %v2462, %v2450
        %v3711 = vpack.c.b16 %v2463, %v2451
        %v3712 = vpack.c.b16 %v2464, %v2452
        %v3713 = vpack.c.b16 %v2465, %v2453
        %v3714 = vpack.c.b16 %v2466, %v2454
        %v3715 = vpack.c.b16 %v2467, %v2455
        %v3716 = vpack.c.b16 %v2468, %v2456
        %v3717 = vpack.c.b16 %v2469, %v2457
        %v3718 = vpack.c.b16 %v2482, %v2470
        %v3719 = vpack.c.b16 %v2483, %v2471
        %v3720 = vpack.c.b16 %v2484, %v2472
        %v3721 = vpack.c.b16 %v2485, %v2473
        %v3722 = vpack.c.b16 %v2486, %v2474
        %v3723 = vpack.c.b16 %v2487, %v2475
        %v3724 = vpack.c.b16 %v2488, %v2476
        %v3725 = vpack.c.b16 %v2489, %v2477
        %v3726 = vpack.c.b16 %v2490, %v2478
        %v3727 = vpack.c.b16 %v2491, %v2479
        %v3728 = vpack.c.b16 %v2492, %v2480
        %v3729 = vpack.c.b16 %v2493, %v2481
        %v3730 = vpack.c.b16 %v2506, %v2494
        %v3731 = vpack.c.b16 %v2507, %v2495
        %v3732 = vpack.c.b16 %v2508, %v2496
        %v3733 = vpack.c.b16 %v2509, %v2497
        %v3734 = vpack.c.b16 %v2510, %v2498
        %v3735 = vpack.c.b16 %v2511, %v2499
        %v3736 = vpack.c.b16 %v2512, %v2500
        %v3737 = vpack.c.b16 %v2513, %v2501
        %v3738 = vpack.c.b16 %v2514, %v2502
        %v3739 = vpack.c.b16 %v2515, %v2503
        %v3740 = vpack.c.b16 %v2516, %v2504
        %v3741 = vpack.c.b16 %v2517, %v2505
        %v3742 = vpack.c.b16 %v2530, %v2518
        %v3743 = vpack.c.b16 %v2531, %v2519
        %v3744 = vpack.c.b16 %v2532, %v2520
        %v3745 = vpack.c.b16 %v2533, %v2521
        %v3746 = vpack.c.b16 %v2534, %v2522
        %v3747 = vpack.c.b16 %v2535, %v2523
        %v3748 = vpack.c.b16 %v2536, %v2524
        %v3749 = vpack.c.b16 %v2537, %v2525
        %v3750 = vpack.c.b16 %v2538, %v2526
        %v3751 = vpack.c.b16 %v2539, %v2527
        %v3752 = vpack.c.b16 %v2540, %v2528
        %v3753 = vpack.c.b16 %v2541, %v2529
        %v3754 = vpack.c.b16 %v2554, %v2542
        %v3755 = vpack.c.b16 %v2555, %v2543
        %v3756 = vpack.c.b16 %v2556, %v2544
        %v3757 = vpack.c.b16 %v2557, %v2545
        %v3758 = vpack.c.b16 %v2558, %v2546
        %v3759 = vpack.c.b16 %v2559, %v2547
        %v3760 = vpack.c.b16 %v2560, %v2548
        %v3761 = vpack.c.b16 %v2561, %v2549
        %v3762 = vpack.c.b16 %v2562, %v2550
        %v3763 = vpack.c.b16 %v2563, %v2551
        %v3764 = vpack.c.b16 %v2564, %v2552
        %v3765 = vpack.c.b16 %v2565, %v2553
        %v3766 = vpack.c.b16 %v2578, %v2566
        %v3767 = vpack.c.b16 %v2579, %v2567
        %v3768 = vpack.c.b16 %v2580, %v2568
        %v3769 = vpack.c.b16 %v2581, %v2569
        %v3770 = vpack.c.b16 %v2582, %v2570
        %v3771 = vpack.c.b16 %v2583, %v2571
        %v3772 = vpack.c.b16 %v2584, %v2572
        %v3773 = vpack.c.b16 %v2585, %v2573
        %v3774 = vpack.c.b16 %v2586, %v2574
        %v3775 = vpack.c.b16 %v2587, %v2575
        %v3776 = vpack.c.b16 %v2588, %v2576
        %v3777 = vpack.c.b16 %v2589, %v2577
        %v3778 = vpack.c.b16 %v2602, %v2590
        %v3779 = vpack.c.b16 %v2603, %v2591
        %v3780 = vpack.c.b16 %v2604, %v2592
        %v3781 = vpack.c.b16 %v2605, %v2593
        %v3782 = vpack.c.b16 %v2606, %v2594
        %v3783 = vpack.c.b16 %v2607, %v2595
        %v3784 = vpack.c.b16 %v2608, %v2596
        %v3785 = vpack.c.b16 %v2609, %v2597
        %v3786 = vpack.c.b16 %v2610, %v2598
        %v3787 = vpack.c.b16 %v2611, %v2599
        %v3788 = vpack.c.b16 %v2612, %v2600
        %v3789 = vpack.c.b16 %v2613, %v2601
        %v3790 = vpack.c.b16 %v2626, %v2614
        %v3791 = vpack.c.b16 %v2627, %v2615
        %v3792 = vpack.c.b16 %v2628, %v2616
        %v3793 = vpack.c.b16 %v2629, %v2617
        %v3794 = vpack.c.b16 %v2630, %v2618
        %v3795 = vpack.c.b16 %v2631, %v2619
        %v3796 = vpack.c.b16 %v2632, %v2620
        %v3797 = vpack.c.b16 %v2633, %v2621
        %v3798 = vpack.c.b16 %v2634, %v2622
        %v3799 = vpack.c.b16 %v2635, %v2623
        %v3800 = vpack.c.b16 %v2636, %v2624
        %v3801 = vpack.c.b16 %v2637, %v2625
        %v3802 = vpack.c.b16 %v2650, %v2638
        %v3803 = vpack.c.b16 %v2651, %v2639
        %v3804 = vpack.c.b16 %v2652, %v2640
        %v3805 = vpack.c.b16 %v2653, %v2641
        %v3806 = vpack.c.b16 %v2654, %v2642
        %v3807 = vpack.c.b16 %v2655, %v2643
        %v3808 = vpack.c.b16 %v2656, %v2644
        %v3809 = vpack.c.b16 %v2657, %v2645
        %v3810 = vpack.c.b16 %v2658, %v2646
        %v3811 = vpack.c.b16 %v2659, %v2647
        %v3812 = vpack.c.b16 %v2660, %v2648
        %v3813 = vpack.c.b16 %v2661, %v2649
        %v3814 = vpack.c.b16 %v2674, %v2662
        %v3815 = vpack.c.b16 %v2675, %v2663
        %v3816 = vpack.c.b16 %v2676, %v2664
        %v3817 = vpack.c.b16 %v2677, %v2665
        %v3818 = vpack.c.b16 %v2678, %v2666
        %v3819 = vpack.c.b16 %v2679, %v2667
        %v3820 = vpack.c.b16 %v2680, %v2668
        %v3821 = vpack.c.b16 %v2681, %v2669
        %v3822 = vpack.c.b16 %v2682, %v2670
        %v3823 = vpack.c.b16 %v2683, %v2671
        %v3824 = vpack.c.b16 %v2684, %v2672
        %v3825 = vpack.c.b16 %v2685, %v2673
        %v3826 = vpack.c.b16 %v2698, %v2686
        %v3827 = vpack.c.b16 %v2699, %v2687
        %v3828 = vpack.c.b16 %v2700, %v2688
        %v3829 = vpack.c.b16 %v2701, %v2689
        %v3830 = vpack.c.b16 %v2702, %v2690
        %v3831 = vpack.c.b16 %v2703, %v2691
        %v3832 = vpack.c.b16 %v2704, %v2692
        %v3833 = vpack.c.b16 %v2705, %v2693
        %v3834 = vpack.c.b16 %v2706, %v2694
        %v3835 = vpack.c.b16 %v2707, %v2695
        %v3836 = vpack.c.b16 %v2708, %v2696
        %v3837 = vpack.c.b16 %v2709, %v2697
        %v3838 = vpack.c.b16 %v2722, %v2710
        %v3839 = vpack.c.b16 %v2723, %v2711
        %v3840 = vpack.c.b16 %v2724, %v2712
        %v3841 = vpack.c.b16 %v2725, %v2713
        %v3842 = vpack.c.b16 %v2726, %v2714
        %v3843 = vpack.c.b16 %v2727, %v2715
        %v3844 = vpack.c.b16 %v2728, %v2716
        %v3845 = vpack.c.b16 %v2729, %v2717
        %v3846 = vpack.c.b16 %v2730, %v2718
        %v3847 = vpack.c.b16 %v2731, %v2719
        %v3848 = vpack.c.b16 %v2732, %v2720
        %v3849 = vpack.c.b16 %v2733, %v2721
        %v3850 = vpack.c.b16 %v2746, %v2734
        %v3851 = vpack.c.b16 %v2747, %v2735
        %v3852 = vpack.c.b16 %v2748, %v2736
        %v3853 = vpack.c.b16 %v2749, %v2737
        %v3854 = vpack.c.b16 %v2750, %v2738
        %v3855 = vpack.c.b16 %v2751, %v2739
        %v3856 = vpack.c.b16 %v2752, %v2740
        %v3857 = vpack.c.b16 %v2753, %v2741
        %v3858 = vpack.c.b16 %v2754, %v2742
        %v3859 = vpack.c.b16 %v2755, %v2743
        %v3860 = vpack.c.b16 %v2756, %v2744
        %v3861 = vpack.c.b16 %v2757, %v2745
        %v3862 = vpack.c.b16 %v2770, %v2758
        %v3863 = vpack.c.b16 %v2771, %v2759
        %v3864 = vpack.c.b16 %v2772, %v2760
        %v3865 = vpack.c.b16 %v2773, %v2761
        %v3866 = vpack.c.b16 %v2774, %v2762
        %v3867 = vpack.c.b16 %v2775, %v2763
        %v3868 = vpack.c.b16 %v2776, %v2764
        %v3869 = vpack.c.b16 %v2777, %v2765
        %v3870 = vpack.c.b16 %v2778, %v2766
        %v3871 = vpack.c.b16 %v2779, %v2767
        %v3872 = vpack.c.b16 %v2780, %v2768
        %v3873 = vpack.c.b16 %v2781, %v2769
        %v3874 = vpack.c.b16 %v2794, %v2782
        %v3875 = vpack.c.b16 %v2795, %v2783
        %v3876 = vpack.c.b16 %v2796, %v2784
        %v3877 = vpack.c.b16 %v2797, %v2785
        %v3878 = vpack.c.b16 %v2798, %v2786
        %v3879 = vpack.c.b16 %v2799, %v2787
        %v3880 = vpack.c.b16 %v2800, %v2788
        %v3881 = vpack.c.b16 %v2801, %v2789
        %v3882 = vpack.c.b16 %v2802, %v2790
        %v3883 = vpack.c.b16 %v2803, %v2791
        %v3884 = vpack.c.b16 %v2804, %v2792
        %v3885 = vpack.c.b16 %v2805, %v2793
        %v3886 = vpack.c.b16 %v2818, %v2806
        %v3887 = vpack.c.b16 %v2819, %v2807
        %v3888 = vpack.c.b16 %v2820, %v2808
        %v3889 = vpack.c.b16 %v2821, %v2809
        %v3890 = vpack.c.b16 %v2822, %v2810
        %v3891 = vpack.c.b16 %v2823, %v2811
        %v3892 = vpack.c.b16 %v2824, %v2812
        %v3893 = vpack.c.b16 %v2825, %v2813
        %v3894 = vpack.c.b16 %v2826, %v2814
        %v3895 = vpack.c.b16 %v2827, %v2815
        %v3896 = vpack.c.b16 %v2828, %v2816
        %v3897 = vpack.c.b16 %v2829, %v2817
        %v3898 = vpack.c.b16 %v2842, %v2830
        %v3899 = vpack.c.b16 %v2843, %v2831
        %v3900 = vpack.c.b16 %v2844, %v2832
        %v3901 = vpack.c.b16 %v2845, %v2833
        %v3902 = vpack.c.b16 %v2846, %v2834
        %v3903 = vpack.c.b16 %v2847, %v2835
        %v3904 = vpack.c.b16 %v2848, %v2836
        %v3905 = vpack.c.b16 %v2849, %v2837
        %v3906 = vpack.c.b16 %v2850, %v2838
        %v3907 = vpack.c.b16 %v2851, %v2839
        %v3908 = vpack.c.b16 %v2852, %v2840
        %v3909 = vpack.c.b16 %v2853, %v2841
        %v3910 = vpack.c.b16 %v2866, %v2854
        %v3911 = vpack.c.b16 %v2867, %v2855
        %v3912 = vpack.c.b16 %v2868, %v2856
        %v3913 = vpack.c.b16 %v2869, %v2857
        %v3914 = vpack.c.b16 %v2870, %v2858
        %v3915 = vpack.c.b16 %v2871, %v2859
        %v3916 = vpack.c.b16 %v2872, %v2860
        %v3917 = vpack.c.b16 %v2873, %v2861
        %v3918 = vpack.c.b16 %v2874, %v2862
        %v3919 = vpack.c.b16 %v2875, %v2863
        %v3920 = vpack.c.b16 %v2876, %v2864
        %v3921 = vpack.c.b16 %v2877, %v2865
        %v3922 = vpack.c.b16 %v2890, %v2878
        %v3923 = vpack.c.b16 %v2891, %v2879
        %v3924 = vpack.c.b16 %v2892, %v2880
        %v3925 = vpack.c.b16 %v2893, %v2881
        %v3926 = vpack.c.b16 %v2894, %v2882
        %v3927 = vpack.c.b16 %v2895, %v2883
        %v3928 = vpack.c.b16 %v2896, %v2884
        %v3929 = vpack.c.b16 %v2897, %v2885
        %v3930 = vpack.c.b16 %v2898, %v2886
        %v3931 = vpack.c.b16 %v2899, %v2887
        %v3932 = vpack.c.b16 %v2900, %v2888
        %v3933 = vpack.c.b16 %v2901, %v2889
        %v3934 = vpack.c.b16 %v2914, %v2902
        %v3935 = vpack.c.b16 %v2915, %v2903
        %v3936 = vpack.c.b16 %v2916, %v2904
        %v3937 = vpack.c.b16 %v2917, %v2905
        %v3938 = vpack.c.b16 %v2918, %v2906
        %v3939 = vpack.c.b16 %v2919, %v2907
        %v3940 = vpack.c.b16 %v2920, %v2908
        %v3941 = vpack.c.b16 %v2921, %v2909
        %v3942 = vpack.c.b16 %v2922, %v2910
        %v3943 = vpack.c.b16 %v2923, %v2911
        %v3944 = vpack.c.b16 %v2924, %v2912
        %v3945 = vpack.c.b16 %v2925, %v2913
        %v3946 = vpack.c.b16 %v2938, %v2926
        %v3947 = vpack.c.b16 %v2939, %v2927
        %v3948 = vpack.c.b16 %v2940, %v2928
        %v3949 = vpack.c.b16 %v2941, %v2929
        %v3950 = vpack.c.b16 %v2942, %v2930
        %v3951 = vpack.c.b16 %v2943, %v2931
        %v3952 = vpack.c.b16 %v2944, %v2932
        %v3953 = vpack.c.b16 %v2945, %v2933
        %v3954 = vpack.c.b16 %v2946, %v2934
        %v3955 = vpack.c.b16 %v2947, %v2935
        %v3956 = vpack.c.b16 %v2948, %v2936
        %v3957 = vpack.c.b16 %v2949, %v2937
        %v3958 = vpack.c.b16 %v2962, %v2950
        %v3959 = vpack.c.b16 %v2963, %v2951
        %v3960 = vpack.c.b16 %v2964, %v2952
        %v3961 = vpack.c.b16 %v2965, %v2953
        %v3962 = vpack.c.b16 %v2966, %v2954
        %v3963 = vpack.c.b16 %v2967, %v2955
        %v3964 = vpack.c.b16 %v2968, %v2956
        %v3965 = vpack.c.b16 %v2969, %v2957
        %v3966 = vpack.c.b16 %v2970, %v2958
        %v3967 = vpack.c.b16 %v2971, %v2959
        %v3968 = vpack.c.b16 %v2972, %v2960
        %v3969 = vpack.c.b16 %v2973, %v2961
        %v3970 = vpack.c.b16 %v2986, %v2974
        %v3971 = vpack.c.b16 %v2987, %v2975
        %v3972 = vpack.c.b16 %v2988, %v2976
        %v3973 = vpack.c.b16 %v2989, %v2977
        %v3974 = vpack.c.b16 %v2990, %v2978
        %v3975 = vpack.c.b16 %v2991, %v2979
        %v3976 = vpack.c.b16 %v2992, %v2980
        %v3977 = vpack.c.b16 %v2993, %v2981
        %v3978 = vpack.c.b16 %v2994, %v2982
        %v3979 = vpack.c.b16 %v2995, %v2983
        %v3980 = vpack.c.b16 %v2996, %v2984
        %v3981 = vpack.c.b16 %v2997, %v2985
        %v3982 = vpack.c.b16 %v3010, %v2998
        %v3983 = vpack.c.b16 %v3011, %v2999
        %v3984 = vpack.c.b16 %v3012, %v3000
        %v3985 = vpack.c.b16 %v3013, %v3001
        %v3986 = vpack.c.b16 %v3014, %v3002
        %v3987 = vpack.c.b16 %v3015, %v3003
        %v3988 = vpack.c.b16 %v3016, %v3004
        %v3989 = vpack.c.b16 %v3017, %v3005
        %v3990 = vpack.c.b16 %v3018, %v3006
        %v3991 = vpack.c.b16 %v3019, %v3007
        %v3992 = vpack.c.b16 %v3020, %v3008
        %v3993 = vpack.c.b16 %v3021, %v3009
        %v3994 = vpack.c.b16 %v3034, %v3022
        %v3995 = vpack.c.b16 %v3035, %v3023
        %v3996 = vpack.c.b16 %v3036, %v3024
        %v3997 = vpack.c.b16 %v3037, %v3025
        %v3998 = vpack.c.b16 %v3038, %v3026
        %v3999 = vpack.c.b16 %v3039, %v3027
        %v4000 = vpack.c.b16 %v3040, %v3028
        %v4001 = vpack.c.b16 %v3041, %v3029
        %v4002 = vpack.c.b16 %v3042, %v3030
        %v4003 = vpack.c.b16 %v3043, %v3031
        %v4004 = vpack.c.b16 %v3044, %v3032
        %v4005 = vpack.c.b16 %v3045, %v3033
        %v4006 = vpack.c.b16 %v3058, %v3046
        %v4007 = vpack.c.b16 %v3059, %v3047
        %v4008 = vpack.c.b16 %v3060, %v3048
        %v4009 = vpack.c.b16 %v3061, %v3049
        %v4010 = vpack.c.b16 %v3062, %v3050
        %v4011 = vpack.c.b16 %v3063, %v3051
        %v4012 = vpack.c.b16 %v3064, %v3052
        %v4013 = vpack.c.b16 %v3065, %v3053
        %v4014 = vpack.c.b16 %v3066, %v3054
        %v4015 = vpack.c.b16 %v3067, %v3055
        %v4016 = vpack.c.b16 %v3068, %v3056
        %v4017 = vpack.c.b16 %v3069, %v3057
        %v4018 = vpack.c.b16 %v3082, %v3070
        %v4019 = vpack.c.b16 %v3083, %v3071
        %v4020 = vpack.c.b16 %v3084, %v3072
        %v4021 = vpack.c.b16 %v3085, %v3073
        %v4022 = vpack.c.b16 %v3086, %v3074
        %v4023 = vpack.c.b16 %v3087, %v3075
        %v4024 = vpack.c.b16 %v3088, %v3076
        %v4025 = vpack.c.b16 %v3089, %v3077
        %v4026 = vpack.c.b16 %v3090, %v3078
        %v4027 = vpack.c.b16 %v3091, %v3079
        %v4028 = vpack.c.b16 %v3092, %v3080
        %v4029 = vpack.c.b16 %v3093, %v3081
        %v4030 = vpack.c.b16 %v3106, %v3094
        %v4031 = vpack.c.b16 %v3107, %v3095
        %v4032 = vpack.c.b16 %v3108, %v3096
        %v4033 = vpack.c.b16 %v3109, %v3097
        %v4034 = vpack.c.b16 %v3110, %v3098
        %v4035 = vpack.c.b16 %v3111, %v3099
        %v4036 = vpack.c.b16 %v3112, %v3100
        %v4037 = vpack.c.b16 %v3113, %v3101
        %v4038 = vpack.c.b16 %v3114, %v3102
        %v4039 = vpack.c.b16 %v3115, %v3103
        %v4040 = vpack.c.b16 %v3116, %v3104
        %v4041 = vpack.c.b16 %v3117, %v3105
        %v4042 = vpack.c.b16 %v3130, %v3118
        %v4043 = vpack.c.b16 %v3131, %v3119
        %v4044 = vpack.c.b16 %v3132, %v3120
        %v4045 = vpack.c.b16 %v3133, %v3121
        %v4046 = vpack.c.b16 %v3134, %v3122
        %v4047 = vpack.c.b16 %v3135, %v3123
        %v4048 = vpack.c.b16 %v3136, %v3124
        %v4049 = vpack.c.b16 %v3137, %v3125
        %v4050 = vpack.c.b16 %v3138, %v3126
        %v4051 = vpack.c.b16 %v3139, %v3127
        %v4052 = vpack.c.b16 %v3140, %v3128
        %v4053 = vpack.c.b16 %v3141, %v3129
        %v4054 = vpack.c.b16 %v3154, %v3142
        %v4055 = vpack.c.b16 %v3155, %v3143
        %v4056 = vpack.c.b16 %v3156, %v3144
        %v4057 = vpack.c.b16 %v3157, %v3145
        %v4058 = vpack.c.b16 %v3158, %v3146
        %v4059 = vpack.c.b16 %v3159, %v3147
        %v4060 = vpack.c.b16 %v3160, %v3148
        %v4061 = vpack.c.b16 %v3161, %v3149
        %v4062 = vpack.c.b16 %v3162, %v3150
        %v4063 = vpack.c.b16 %v3163, %v3151
        %v4064 = vpack.c.b16 %v3164, %v3152
        %v4065 = vpack.c.b16 %v3165, %v3153
        %v4066 = vpack.c.b16 %v3178, %v3166
        %v4067 = vpack.c.b16 %v3179, %v3167
        %v4068 = vpack.c.b16 %v3180, %v3168
        %v4069 = vpack.c.b16 %v3181, %v3169
        %v4070 = vpack.c.b16 %v3182, %v3170
        %v4071 = vpack.c.b16 %v3183, %v3171
        %v4072 = vpack.c.b16 %v3184, %v3172
        %v4073 = vpack.c.b16 %v3185, %v3173
        %v4074 = vpack.c.b16 %v3186, %v3174
        %v4075 = vpack.c.b16 %v3187, %v3175
        %v4076 = vpack.c.b16 %v3188, %v3176
        %v4077 = vpack.c.b16 %v3189, %v3177
        %v4078 = vpack.c.b16 %v3202, %v3190
        %v4079 = vpack.c.b16 %v3203, %v3191
        %v4080 = vpack.c.b16 %v3204, %v3192
        %v4081 = vpack.c.b16 %v3205, %v3193
        %v4082 = vpack.c.b16 %v3206, %v3194
        %v4083 = vpack.c.b16 %v3207, %v3195
        %v4084 = vpack.c.b16 %v3208, %v3196
        %v4085 = vpack.c.b16 %v3209, %v3197
        %v4086 = vpack.c.b16 %v3210, %v3198
        %v4087 = vpack.c.b16 %v3211, %v3199
        %v4088 = vpack.c.b16 %v3212, %v3200
        %v4089 = vpack.c.b16 %v3213, %v3201
        %v4090 = vpack.c.b16 %v3226, %v3214
        %v4091 = vpack.c.b16 %v3227, %v3215
        %v4092 = vpack.c.b16 %v3228, %v3216
        %v4093 = vpack.c.b16 %v3229, %v3217
        %v4094 = vpack.c.b16 %v3230, %v3218
        %v4095 = vpack.c.b16 %v3231, %v3219
        %v4096 = vpack.c.b16 %v3232, %v3220
        %v4097 = vpack.c.b16 %v3233, %v3221
        %v4098 = vpack.c.b16 %v3234, %v3222
        %v4099 = vpack.c.b16 %v3235, %v3223
        %v4100 = vpack.c.b16 %v3236, %v3224
        %v4101 = vpack.c.b16 %v3237, %v3225
        %v4102 = vpack.c.b16 %v3250, %v3238
        %v4103 = vpack.c.b16 %v3251, %v3239
        %v4104 = vpack.c.b16 %v3252, %v3240
        %v4105 = vpack.c.b16 %v3253, %v3241
        %v4106 = vpack.c.b16 %v3254, %v3242
        %v4107 = vpack.c.b16 %v3255, %v3243
        %v4108 = vpack.c.b16 %v3256, %v3244
        %v4109 = vpack.c.b16 %v3257, %v3245
        %v4110 = vpack.c.b16 %v3258, %v3246
        %v4111 = vpack.c.b16 %v3259, %v3247
        %v4112 = vpack.c.b16 %v3260, %v3248
        %v4113 = vpack.c.b16 %v3261, %v3249
        %v4114 = vpack.c.b16 %v3274, %v3262
        %v4115 = vpack.c.b16 %v3275, %v3263
        %v4116 = vpack.c.b16 %v3276, %v3264
        %v4117 = vpack.c.b16 %v3277, %v3265
        %v4118 = vpack.c.b16 %v3278, %v3266
        %v4119 = vpack.c.b16 %v3279, %v3267
        %v4120 = vpack.c.b16 %v3280, %v3268
        %v4121 = vpack.c.b16 %v3281, %v3269
        %v4122 = vpack.c.b16 %v3282, %v3270
        %v4123 = vpack.c.b16 %v3283, %v3271
        %v4124 = vpack.c.b16 %v3284, %v3272
        %v4125 = vpack.c.b16 %v3285, %v3273
        %v4126 = vpack.c.b16 %v3298, %v3286
        %v4127 = vpack.c.b16 %v3299, %v3287
        %v4128 = vpack.c.b16 %v3300, %v3288
        %v4129 = vpack.c.b16 %v3301, %v3289
        %v4130 = vpack.c.b16 %v3302, %v3290
        %v4131 = vpack.c.b16 %v3303, %v3291
        %v4132 = vpack.c.b16 %v3304, %v3292
        %v4133 = vpack.c.b16 %v3305, %v3293
        %v4134 = vpack.c.b16 %v3306, %v3294
        %v4135 = vpack.c.b16 %v3307, %v3295
        %v4136 = vpack.c.b16 %v3308, %v3296
        %v4137 = vpack.c.b16 %v3309, %v3297
        %v4138 = vpack.c.b16 %v3322, %v3310
        %v4139 = vpack.c.b16 %v3323, %v3311
        %v4140 = vpack.c.b16 %v3324, %v3312
        %v4141 = vpack.c.b16 %v3325, %v3313
        %v4142 = vpack.c.b16 %v3326, %v3314
        %v4143 = vpack.c.b16 %v3327, %v3315
        %v4144 = vpack.c.b16 %v3328, %v3316
        %v4145 = vpack.c.b16 %v3329, %v3317
        %v4146 = vpack.c.b16 %v3330, %v3318
        %v4147 = vpack.c.b16 %v3331, %v3319
        %v4148 = vpack.c.b16 %v3332, %v3320
        %v4149 = vpack.c.b16 %v3333, %v3321
        %v4150 = vpack.c.b16 %v3346, %v3334
        %v4151 = vpack.c.b16 %v3347, %v3335
        %v4152 = vpack.c.b16 %v3348, %v3336
        %v4153 = vpack.c.b16 %v3349, %v3337
        %v4154 = vpack.c.b16 %v3350, %v3338
        %v4155 = vpack.c.b16 %v3351, %v3339
        %v4156 = vpack.c.b16 %v3352, %v3340
        %v4157 = vpack.c.b16 %v3353, %v3341
        %v4158 = vpack.c.b16 %v3354, %v3342
        %v4159 = vpack.c.b16 %v3355, %v3343
        %v4160 = vpack.c.b16 %v3356, %v3344
        %v4161 = vpack.c.b16 %v3357, %v3345
        %v4162 = vpack.c.b16 %v3370, %v3358
        %v4163 = vpack.c.b16 %v3371, %v3359
        %v4164 = vpack.c.b16 %v3372, %v3360
        %v4165 = vpack.c.b16 %v3373, %v3361
        %v4166 = vpack.c.b16 %v3374, %v3362
        %v4167 = vpack.c.b16 %v3375, %v3363
        %v4168 = vpack.c.b16 %v3376, %v3364
        %v4169 = vpack.c.b16 %v3377, %v3365
        %v4170 = vpack.c.b16 %v3378, %v3366
        %v4171 = vpack.c.b16 %v3379, %v3367
        %v4172 = vpack.c.b16 %v3380, %v3368
        %v4173 = vpack.c.b16 %v3381, %v3369
        %v4174 = vpack.c.b16 %v3394, %v3382
        %v4175 = vpack.c.b16 %v3395, %v3383
        %v4176 = vpack.c.b16 %v3396, %v3384
        %v4177 = vpack.c.b16 %v3397, %v3385
        %v4178 = vpack.c.b16 %v3398, %v3386
        %v4179 = vpack.c.b16 %v3399, %v3387
        %v4180 = vpack.c.b16 %v3400, %v3388
        %v4181 = vpack.c.b16 %v3401, %v3389
        %v4182 = vpack.c.b16 %v3402, %v3390
        %v4183 = vpack.c.b16 %v3403, %v3391
        %v4184 = vpack.c.b16 %v3404, %v3392
        %v4185 = vpack.c.b16 %v3405, %v3393
        %v4186 = vpack.c.b16 %v3418, %v3406
        %v4187 = vpack.c.b16 %v3419, %v3407
        %v4188 = vpack.c.b16 %v3420, %v3408
        %v4189 = vpack.c.b16 %v3421, %v3409
        %v4190 = vpack.c.b16 %v3422, %v3410
        %v4191 = vpack.c.b16 %v3423, %v3411
        %v4192 = vpack.c.b16 %v3424, %v3412
        %v4193 = vpack.c.b16 %v3425, %v3413
        %v4194 = vpack.c.b16 %v3426, %v3414
        %v4195 = vpack.c.b16 %v3427, %v3415
        %v4196 = vpack.c.b16 %v3428, %v3416
        %v4197 = vpack.c.b16 %v3429, %v3417
        %4966 = vmatprep.subr.bf16.mxu0 %v3515
        %4967 = vmatpush1.bf16.msra.mxu0 %v3514
        %4968 = vmatprep.subr.bf16.mxu0 %v3503
        %4969 = vmatpush1.bf16.msra.mxu0 %v3502
        %4970 = vmatprep.subr.bf16.mxu0 %v3491
        %4971 = vmatpush1.bf16.msra.mxu0 %v3490
        %4972 = vmatprep.subr.bf16.mxu0 %v3479
        %4973 = vmatpush1.bf16.msra.mxu0 %v3478
        %4974 = vmatprep.subr.bf16.mxu0 %v3467
        %4975 = vmatpush1.bf16.msra.mxu0 %v3466
        %4976 = vmatprep.subr.bf16.mxu0 %v3455
        %4977 = vmatpush1.bf16.msra.mxu0 %v3454
        %4978 = vmatprep.subr.bf16.mxu0 %v3443
        %4979 = vmatpush1.bf16.msra.mxu0 %v3442
        %4980 = vmatprep.subr.bf16.mxu0 %v3431
        %4981 = vmatpush1.bf16.msra.mxu0 %v3430
        %4982 = vmatprep.subr.bf16.mxu0 %v3611
        %4983 = vmatpush2.bf16.msra.mxu0 %v3610
        %4984 = vmatprep.subr.bf16.mxu0 %v3599
        %4985 = vmatpush2.bf16.msra.mxu0 %v3598
        %4986 = vmatprep.subr.bf16.mxu0 %v3587
        %4987 = vmatpush2.bf16.msra.mxu0 %v3586
        %4988 = vmatprep.subr.bf16.mxu0 %v3575
        %4989 = vmatpush2.bf16.msra.mxu0 %v3574
        %4990 = vmatprep.subr.bf16.mxu0 %v3563
        %4991 = vmatpush2.bf16.msra.mxu0 %v3562
        %4992 = vmatprep.subr.bf16.mxu0 %v3551
        %4993 = vmatpush2.bf16.msra.mxu0 %v3550
        %4994 = vmatprep.subr.bf16.mxu0 %v3539
        %4995 = vmatpush2.bf16.msra.mxu0 %v3538
        %4996 = vmatprep.subr.bf16.mxu0 %v3527
        %4997 = vmatpush2.bf16.msra.mxu0 %v3526
        %4998 = vmatprep.mubr.bf16.mxu0 %v1099
        %4999 = vmatmul.mubr.bf16.gmra.mxu0 %v1091
        %v5000 = vpop.f32.mrf.mxu0
        %v5001 = vadd.f32 0.0, %v5000
        %v5002 = vpop.f32.mrf.mxu0
        %v5003 = vadd.f32 0.0, %v5002
        %v5004 = vpop.f32.mrf.mxu0
        %v5005 = vpop.f32.mrf.mxu0
        %5006 = vdwg.mxu0
        %5007 = vmatprep.subr.bf16.mxu0 %v3707
        %5008 = vmatpush1.bf16.msra.mxu0 %v3706
        %5009 = vmatprep.subr.bf16.mxu0 %v3695
        %5010 = vmatpush1.bf16.msra.mxu0 %v3694
        %5011 = vmatprep.subr.bf16.mxu0 %v3683
        %5012 = vmatpush1.bf16.msra.mxu0 %v3682
        %5013 = vmatprep.subr.bf16.mxu0 %v3671
        %5014 = vmatpush1.bf16.msra.mxu0 %v3670
        %5015 = vmatprep.subr.bf16.mxu0 %v3659
        %5016 = vmatpush1.bf16.msra.mxu0 %v3658
        %5017 = vmatprep.subr.bf16.mxu0 %v3647
        %5018 = vmatpush1.bf16.msra.mxu0 %v3646
        %5019 = vmatprep.subr.bf16.mxu0 %v3635
        %5020 = vmatpush1.bf16.msra.mxu0 %v3634
        %5021 = vmatprep.subr.bf16.mxu0 %v3623
        %5022 = vmatpush1.bf16.msra.mxu0 %v3622
        %5023 = vmatprep.subr.bf16.mxu0 %v3803
        %5024 = vmatpush2.bf16.msra.mxu0 %v3802
        %5025 = vmatprep.subr.bf16.mxu0 %v3791
        %5026 = vmatpush2.bf16.msra.mxu0 %v3790
        %5027 = vmatprep.subr.bf16.mxu0 %v3779
        %5028 = vmatpush2.bf16.msra.mxu0 %v3778
        %5029 = vmatprep.subr.bf16.mxu0 %v3767
        %5030 = vmatpush2.bf16.msra.mxu0 %v3766
        %5031 = vmatprep.subr.bf16.mxu0 %v3755
        %5032 = vmatpush2.bf16.msra.mxu0 %v3754
        %5033 = vmatprep.subr.bf16.mxu0 %v3743
        %5034 = vmatpush2.bf16.msra.mxu0 %v3742
        %5035 = vmatprep.subr.bf16.mxu0 %v3731
        %5036 = vmatpush2.bf16.msra.mxu0 %v3730
        %5037 = vmatprep.subr.bf16.mxu0 %v3719
        %5038 = vmatpush2.bf16.msra.mxu0 %v3718
        %5039 = vmatprep.mubr.bf16.mxu0 %v1100
        %5040 = vmatmul.mubr.bf16.gmra.mxu0 %v1098
        %v5041 = vpop.f32.mrf.mxu0
        %v5042 = vadd.f32 %v5001, %v5041
        %v5043 = vpop.f32.mrf.mxu0
        %v5044 = vadd.f32 %v5003, %v5043
        %v5045 = vpop.f32.mrf.mxu0
        %v5046 = vpop.f32.mrf.mxu0
        %5047 = vdwg.mxu0
        %5048 = vmatprep.subr.bf16.mxu0 %v3899
        %5049 = vmatpush1.bf16.msra.mxu0 %v3898
        %5050 = vmatprep.subr.bf16.mxu0 %v3887
        %5051 = vmatpush1.bf16.msra.mxu0 %v3886
        %5052 = vmatprep.subr.bf16.mxu0 %v3875
        %5053 = vmatpush1.bf16.msra.mxu0 %v3874
        %5054 = vmatprep.subr.bf16.mxu0 %v3863
        %5055 = vmatpush1.bf16.msra.mxu0 %v3862
        %5056 = vmatprep.subr.bf16.mxu0 %v3851
        %5057 = vmatpush1.bf16.msra.mxu0 %v3850
        %5058 = vmatprep.subr.bf16.mxu0 %v3839
        %5059 = vmatpush1.bf16.msra.mxu0 %v3838
        %5060 = vmatprep.subr.bf16.mxu0 %v3827
        %5061 = vmatpush1.bf16.msra.mxu0 %v3826
        %5062 = vmatprep.subr.bf16.mxu0 %v3815
        %5063 = vmatpush1.bf16.msra.mxu0 %v3814
        %5064 = vmatprep.subr.bf16.mxu0 %v3995
        %5065 = vmatpush2.bf16.msra.mxu0 %v3994
        %5066 = vmatprep.subr.bf16.mxu0 %v3983
        %5067 = vmatpush2.bf16.msra.mxu0 %v3982
        %5068 = vmatprep.subr.bf16.mxu0 %v3971
        %5069 = vmatpush2.bf16.msra.mxu0 %v3970
        %5070 = vmatprep.subr.bf16.mxu0 %v3959
        %5071 = vmatpush2.bf16.msra.mxu0 %v3958
        %5072 = vmatprep.subr.bf16.mxu0 %v3947
        %5073 = vmatpush2.bf16.msra.mxu0 %v3946
        %5074 = vmatprep.subr.bf16.mxu0 %v3935
        %5075 = vmatpush2.bf16.msra.mxu0 %v3934
        %5076 = vmatprep.subr.bf16.mxu0 %v3923
        %5077 = vmatpush2.bf16.msra.mxu0 %v3922
        %5078 = vmatprep.subr.bf16.mxu0 %v3911
        %5079 = vmatpush2.bf16.msra.mxu0 %v3910
        %5080 = vmatprep.mubr.bf16.mxu0 %v1116
        %5081 = vmatmul.mubr.bf16.gmra.mxu0 %v1108
        %v5082 = vpop.f32.mrf.mxu0
        %v5083 = vadd.f32 %v5042, %v5082
        %v5084 = vpop.f32.mrf.mxu0
        %v5085 = vadd.f32 %v5044, %v5084
        %v5086 = vpop.f32.mrf.mxu0
        %v5087 = vpop.f32.mrf.mxu0
        %5088 = vdwg.mxu0
        %5089 = vmatprep.subr.bf16.mxu0 %v4091
        %5090 = vmatpush1.bf16.msra.mxu0 %v4090
        %5091 = vmatprep.subr.bf16.mxu0 %v4079
        %5092 = vmatpush1.bf16.msra.mxu0 %v4078
        %5093 = vmatprep.subr.bf16.mxu0 %v4067
        %5094 = vmatpush1.bf16.msra.mxu0 %v4066
        %5095 = vmatprep.subr.bf16.mxu0 %v4055
        %5096 = vmatpush1.bf16.msra.mxu0 %v4054
        %5097 = vmatprep.subr.bf16.mxu0 %v4043
        %5098 = vmatpush1.bf16.msra.mxu0 %v4042
        %5099 = vmatprep.subr.bf16.mxu0 %v4031
        %5100 = vmatpush1.bf16.msra.mxu0 %v4030
        %5101 = vmatprep.subr.bf16.mxu0 %v4019
        %5102 = vmatpush1.bf16.msra.mxu0 %v4018
        %5103 = vmatprep.subr.bf16.mxu0 %v4007
        %5104 = vmatpush1.bf16.msra.mxu0 %v4006
        %5105 = vmatprep.subr.bf16.mxu0 %v4187
        %5106 = vmatpush2.bf16.msra.mxu0 %v4186
        %5107 = vmatprep.subr.bf16.mxu0 %v4175
        %5108 = vmatpush2.bf16.msra.mxu0 %v4174
        %5109 = vmatprep.subr.bf16.mxu0 %v4163
        %5110 = vmatpush2.bf16.msra.mxu0 %v4162
        %5111 = vmatprep.subr.bf16.mxu0 %v4151
        %5112 = vmatpush2.bf16.msra.mxu0 %v4150
        %5113 = vmatprep.subr.bf16.mxu0 %v4139
        %5114 = vmatpush2.bf16.msra.mxu0 %v4138
        %5115 = vmatprep.subr.bf16.mxu0 %v4127
        %5116 = vmatpush2.bf16.msra.mxu0 %v4126
        %5117 = vmatprep.subr.bf16.mxu0 %v4115
        %5118 = vmatpush2.bf16.msra.mxu0 %v4114
        %5119 = vmatprep.subr.bf16.mxu0 %v4103
        %5120 = vmatpush2.bf16.msra.mxu0 %v4102
        %5121 = vmatprep.mubr.bf16.mxu0 %v1117
        %5122 = vmatmul.mubr.bf16.gmra.mxu0 %v1115
        %v5123 = vpop.f32.mrf.mxu0
        %v5124 = vadd.f32 %v5083, %v5123
        %v5125 = vpop.f32.mrf.mxu0
        %v5126 = vadd.f32 %v5085, %v5125
        %v5127 = vpop.f32.mrf.mxu0
        %v5128 = vpop.f32.mrf.mxu0
        %5129 = vdwg.mxu0
        %5130 = vmatprep.subr.bf16.mxu0 %v3517
        %5131 = vmatpush1.bf16.msra.mxu0 %v3516
        %5132 = vmatprep.subr.bf16.mxu0 %v3505
        %5133 = vmatpush1.bf16.msra.mxu0 %v3504
        %5134 = vmatprep.subr.bf16.mxu0 %v3493
        %5135 = vmatpush1.bf16.msra.mxu0 %v3492
        %5136 = vmatprep.subr.bf16.mxu0 %v3481
        %5137 = vmatpush1.bf16.msra.mxu0 %v3480
        %5138 = vmatprep.subr.bf16.mxu0 %v3469
        %5139 = vmatpush1.bf16.msra.mxu0 %v3468
        %5140 = vmatprep.subr.bf16.mxu0 %v3457
        %5141 = vmatpush1.bf16.msra.mxu0 %v3456
        %5142 = vmatprep.subr.bf16.mxu0 %v3445
        %5143 = vmatpush1.bf16.msra.mxu0 %v3444
        %5144 = vmatprep.subr.bf16.mxu0 %v3433
        %5145 = vmatpush1.bf16.msra.mxu0 %v3432
        %5146 = vmatprep.subr.bf16.mxu0 %v3613
        %5147 = vmatpush2.bf16.msra.mxu0 %v3612
        %5148 = vmatprep.subr.bf16.mxu0 %v3601
        %5149 = vmatpush2.bf16.msra.mxu0 %v3600
        %5150 = vmatprep.subr.bf16.mxu0 %v3589
        %5151 = vmatpush2.bf16.msra.mxu0 %v3588
        %5152 = vmatprep.subr.bf16.mxu0 %v3577
        %5153 = vmatpush2.bf16.msra.mxu0 %v3576
        %5154 = vmatprep.subr.bf16.mxu0 %v3565
        %5155 = vmatpush2.bf16.msra.mxu0 %v3564
        %5156 = vmatprep.subr.bf16.mxu0 %v3553
        %5157 = vmatpush2.bf16.msra.mxu0 %v3552
        %5158 = vmatprep.subr.bf16.mxu0 %v3541
        %5159 = vmatpush2.bf16.msra.mxu0 %v3540
        %5160 = vmatprep.subr.bf16.mxu0 %v3529
        %5161 = vmatpush2.bf16.msra.mxu0 %v3528
        %5162 = vmatprep.mubr.bf16.mxu0 %v1099
        %5163 = vmatmul.mubr.bf16.gmra.mxu0 %v1091
        %v5164 = vpop.f32.mrf.mxu0
        %v5165 = vadd.f32 0.0, %v5164
        %v5166 = vpop.f32.mrf.mxu0
        %v5167 = vadd.f32 0.0, %v5166
        %v5168 = vpop.f32.mrf.mxu0
        %v5169 = vpop.f32.mrf.mxu0
        %5170 = vdwg.mxu0
        %5171 = vmatprep.subr.bf16.mxu0 %v3709
        %5172 = vmatpush1.bf16.msra.mxu0 %v3708
        %5173 = vmatprep.subr.bf16.mxu0 %v3697
        %5174 = vmatpush1.bf16.msra.mxu0 %v3696
        %5175 = vmatprep.subr.bf16.mxu0 %v3685
        %5176 = vmatpush1.bf16.msra.mxu0 %v3684
        %5177 = vmatprep.subr.bf16.mxu0 %v3673
        %5178 = vmatpush1.bf16.msra.mxu0 %v3672
        %5179 = vmatprep.subr.bf16.mxu0 %v3661
        %5180 = vmatpush1.bf16.msra.mxu0 %v3660
        %5181 = vmatprep.subr.bf16.mxu0 %v3649
        %5182 = vmatpush1.bf16.msra.mxu0 %v3648
        %5183 = vmatprep.subr.bf16.mxu0 %v3637
        %5184 = vmatpush1.bf16.msra.mxu0 %v3636
        %5185 = vmatprep.subr.bf16.mxu0 %v3625
        %5186 = vmatpush1.bf16.msra.mxu0 %v3624
        %5187 = vmatprep.subr.bf16.mxu0 %v3805
        %5188 = vmatpush2.bf16.msra.mxu0 %v3804
        %5189 = vmatprep.subr.bf16.mxu0 %v3793
        %5190 = vmatpush2.bf16.msra.mxu0 %v3792
        %5191 = vmatprep.subr.bf16.mxu0 %v3781
        %5192 = vmatpush2.bf16.msra.mxu0 %v3780
        %5193 = vmatprep.subr.bf16.mxu0 %v3769
        %5194 = vmatpush2.bf16.msra.mxu0 %v3768
        %5195 = vmatprep.subr.bf16.mxu0 %v3757
        %5196 = vmatpush2.bf16.msra.mxu0 %v3756
        %5197 = vmatprep.subr.bf16.mxu0 %v3745
        %5198 = vmatpush2.bf16.msra.mxu0 %v3744
        %5199 = vmatprep.subr.bf16.mxu0 %v3733
        %5200 = vmatpush2.bf16.msra.mxu0 %v3732
        %5201 = vmatprep.subr.bf16.mxu0 %v3721
        %5202 = vmatpush2.bf16.msra.mxu0 %v3720
        %5203 = vmatprep.mubr.bf16.mxu0 %v1100
        %5204 = vmatmul.mubr.bf16.gmra.mxu0 %v1098
        %v5205 = vpop.f32.mrf.mxu0
        %v5206 = vadd.f32 %v5165, %v5205
        %v5207 = vpop.f32.mrf.mxu0
        %v5208 = vadd.f32 %v5167, %v5207
        %v5209 = vpop.f32.mrf.mxu0
        %v5210 = vpop.f32.mrf.mxu0
        %5211 = vdwg.mxu0
        %5212 = vmatprep.subr.bf16.mxu0 %v3901
        %5213 = vmatpush1.bf16.msra.mxu0 %v3900
        %5214 = vmatprep.subr.bf16.mxu0 %v3889
        %5215 = vmatpush1.bf16.msra.mxu0 %v3888
        %5216 = vmatprep.subr.bf16.mxu0 %v3877
        %5217 = vmatpush1.bf16.msra.mxu0 %v3876
        %5218 = vmatprep.subr.bf16.mxu0 %v3865
        %5219 = vmatpush1.bf16.msra.mxu0 %v3864
        %5220 = vmatprep.subr.bf16.mxu0 %v3853
        %5221 = vmatpush1.bf16.msra.mxu0 %v3852
        %5222 = vmatprep.subr.bf16.mxu0 %v3841
        %5223 = vmatpush1.bf16.msra.mxu0 %v3840
        %5224 = vmatprep.subr.bf16.mxu0 %v3829
        %5225 = vmatpush1.bf16.msra.mxu0 %v3828
        %5226 = vmatprep.subr.bf16.mxu0 %v3817
        %5227 = vmatpush1.bf16.msra.mxu0 %v3816
        %5228 = vmatprep.subr.bf16.mxu0 %v3997
        %5229 = vmatpush2.bf16.msra.mxu0 %v3996
        %5230 = vmatprep.subr.bf16.mxu0 %v3985
        %5231 = vmatpush2.bf16.msra.mxu0 %v3984
        %5232 = vmatprep.subr.bf16.mxu0 %v3973
        %5233 = vmatpush2.bf16.msra.mxu0 %v3972
        %5234 = vmatprep.subr.bf16.mxu0 %v3961
        %5235 = vmatpush2.bf16.msra.mxu0 %v3960
        %5236 = vmatprep.subr.bf16.mxu0 %v3949
        %5237 = vmatpush2.bf16.msra.mxu0 %v3948
        %5238 = vmatprep.subr.bf16.mxu0 %v3937
        %5239 = vmatpush2.bf16.msra.mxu0 %v3936
        %5240 = vmatprep.subr.bf16.mxu0 %v3925
        %5241 = vmatpush2.bf16.msra.mxu0 %v3924
        %5242 = vmatprep.subr.bf16.mxu0 %v3913
        %5243 = vmatpush2.bf16.msra.mxu0 %v3912
        %5244 = vmatprep.mubr.bf16.mxu0 %v1116
        %5245 = vmatmul.mubr.bf16.gmra.mxu0 %v1108
        %v5246 = vpop.f32.mrf.mxu0
        %v5247 = vadd.f32 %v5206, %v5246
        %v5248 = vpop.f32.mrf.mxu0
        %v5249 = vadd.f32 %v5208, %v5248
        %v5250 = vpop.f32.mrf.mxu0
        %v5251 = vpop.f32.mrf.mxu0
        %5252 = vdwg.mxu0
        %5253 = vmatprep.subr.bf16.mxu0 %v4093
        %5254 = vmatpush1.bf16.msra.mxu0 %v4092
        %5255 = vmatprep.subr.bf16.mxu0 %v4081
        %5256 = vmatpush1.bf16.msra.mxu0 %v4080
        %5257 = vmatprep.subr.bf16.mxu0 %v4069
        %5258 = vmatpush1.bf16.msra.mxu0 %v4068
        %5259 = vmatprep.subr.bf16.mxu0 %v4057
        %5260 = vmatpush1.bf16.msra.mxu0 %v4056
        %5261 = vmatprep.subr.bf16.mxu0 %v4045
        %5262 = vmatpush1.bf16.msra.mxu0 %v4044
        %5263 = vmatprep.subr.bf16.mxu0 %v4033
        %5264 = vmatpush1.bf16.msra.mxu0 %v4032
        %5265 = vmatprep.subr.bf16.mxu0 %v4021
        %5266 = vmatpush1.bf16.msra.mxu0 %v4020
        %5267 = vmatprep.subr.bf16.mxu0 %v4009
        %5268 = vmatpush1.bf16.msra.mxu0 %v4008
        %5269 = vmatprep.subr.bf16.mxu0 %v4189
        %5270 = vmatpush2.bf16.msra.mxu0 %v4188
        %5271 = vmatprep.subr.bf16.mxu0 %v4177
        %5272 = vmatpush2.bf16.msra.mxu0 %v4176
        %5273 = vmatprep.subr.bf16.mxu0 %v4165
        %5274 = vmatpush2.bf16.msra.mxu0 %v4164
        %5275 = vmatprep.subr.bf16.mxu0 %v4153
        %5276 = vmatpush2.bf16.msra.mxu0 %v4152
        %5277 = vmatprep.subr.bf16.mxu0 %v4141
        %5278 = vmatpush2.bf16.msra.mxu0 %v4140
        %5279 = vmatprep.subr.bf16.mxu0 %v4129
        %5280 = vmatpush2.bf16.msra.mxu0 %v4128
        %5281 = vmatprep.subr.bf16.mxu0 %v4117
        %5282 = vmatpush2.bf16.msra.mxu0 %v4116
        %5283 = vmatprep.subr.bf16.mxu0 %v4105
        %5284 = vmatpush2.bf16.msra.mxu0 %v4104
        %5285 = vmatprep.mubr.bf16.mxu0 %v1117
        %5286 = vmatmul.mubr.bf16.gmra.mxu0 %v1115
        %v5287 = vpop.f32.mrf.mxu0
        %v5288 = vadd.f32 %v5247, %v5287
        %v5289 = vpop.f32.mrf.mxu0
        %v5290 = vadd.f32 %v5249, %v5289
        %v5291 = vpop.f32.mrf.mxu0
        %v5292 = vpop.f32.mrf.mxu0
        %5293 = vdwg.mxu0
        %5294 = vmatprep.subr.bf16.mxu0 %v3519
        %5295 = vmatpush1.bf16.msra.mxu0 %v3518
        %5296 = vmatprep.subr.bf16.mxu0 %v3507
        %5297 = vmatpush1.bf16.msra.mxu0 %v3506
        %5298 = vmatprep.subr.bf16.mxu0 %v3495
        %5299 = vmatpush1.bf16.msra.mxu0 %v3494
        %5300 = vmatprep.subr.bf16.mxu0 %v3483
        %5301 = vmatpush1.bf16.msra.mxu0 %v3482
        %5302 = vmatprep.subr.bf16.mxu0 %v3471
        %5303 = vmatpush1.bf16.msra.mxu0 %v3470
        %5304 = vmatprep.subr.bf16.mxu0 %v3459
        %5305 = vmatpush1.bf16.msra.mxu0 %v3458
        %5306 = vmatprep.subr.bf16.mxu0 %v3447
        %5307 = vmatpush1.bf16.msra.mxu0 %v3446
        %5308 = vmatprep.subr.bf16.mxu0 %v3435
        %5309 = vmatpush1.bf16.msra.mxu0 %v3434
        %5310 = vmatprep.subr.bf16.mxu0 %v3615
        %5311 = vmatpush2.bf16.msra.mxu0 %v3614
        %5312 = vmatprep.subr.bf16.mxu0 %v3603
        %5313 = vmatpush2.bf16.msra.mxu0 %v3602
        %5314 = vmatprep.subr.bf16.mxu0 %v3591
        %5315 = vmatpush2.bf16.msra.mxu0 %v3590
        %5316 = vmatprep.subr.bf16.mxu0 %v3579
        %5317 = vmatpush2.bf16.msra.mxu0 %v3578
        %5318 = vmatprep.subr.bf16.mxu0 %v3567
        %5319 = vmatpush2.bf16.msra.mxu0 %v3566
        %5320 = vmatprep.subr.bf16.mxu0 %v3555
        %5321 = vmatpush2.bf16.msra.mxu0 %v3554
        %5322 = vmatprep.subr.bf16.mxu0 %v3543
        %5323 = vmatpush2.bf16.msra.mxu0 %v3542
        %5324 = vmatprep.subr.bf16.mxu0 %v3531
        %5325 = vmatpush2.bf16.msra.mxu0 %v3530
        %5326 = vmatprep.mubr.bf16.mxu0 %v1099
        %5327 = vmatmul.mubr.bf16.gmra.mxu0 %v1091
        %v5328 = vpop.f32.mrf.mxu0
        %v5329 = vadd.f32 0.0, %v5328
        %v5330 = vpop.f32.mrf.mxu0
        %v5331 = vadd.f32 0.0, %v5330
        %v5332 = vpop.f32.mrf.mxu0
        %v5333 = vpop.f32.mrf.mxu0
        %5334 = vdwg.mxu0
        %5335 = vmatprep.subr.bf16.mxu0 %v3711
        %5336 = vmatpush1.bf16.msra.mxu0 %v3710
        %5337 = vmatprep.subr.bf16.mxu0 %v3699
        %5338 = vmatpush1.bf16.msra.mxu0 %v3698
        %5339 = vmatprep.subr.bf16.mxu0 %v3687
        %5340 = vmatpush1.bf16.msra.mxu0 %v3686
        %5341 = vmatprep.subr.bf16.mxu0 %v3675
        %5342 = vmatpush1.bf16.msra.mxu0 %v3674
        %5343 = vmatprep.subr.bf16.mxu0 %v3663
        %5344 = vmatpush1.bf16.msra.mxu0 %v3662
        %5345 = vmatprep.subr.bf16.mxu0 %v3651
        %5346 = vmatpush1.bf16.msra.mxu0 %v3650
        %5347 = vmatprep.subr.bf16.mxu0 %v3639
        %5348 = vmatpush1.bf16.msra.mxu0 %v3638
        %5349 = vmatprep.subr.bf16.mxu0 %v3627
        %5350 = vmatpush1.bf16.msra.mxu0 %v3626
        %5351 = vmatprep.subr.bf16.mxu0 %v3807
        %5352 = vmatpush2.bf16.msra.mxu0 %v3806
        %5353 = vmatprep.subr.bf16.mxu0 %v3795
        %5354 = vmatpush2.bf16.msra.mxu0 %v3794
        %5355 = vmatprep.subr.bf16.mxu0 %v3783
        %5356 = vmatpush2.bf16.msra.mxu0 %v3782
        %5357 = vmatprep.subr.bf16.mxu0 %v3771
        %5358 = vmatpush2.bf16.msra.mxu0 %v3770
        %5359 = vmatprep.subr.bf16.mxu0 %v3759
        %5360 = vmatpush2.bf16.msra.mxu0 %v3758
        %5361 = vmatprep.subr.bf16.mxu0 %v3747
        %5362 = vmatpush2.bf16.msra.mxu0 %v3746
        %5363 = vmatprep.subr.bf16.mxu0 %v3735
        %5364 = vmatpush2.bf16.msra.mxu0 %v3734
        %5365 = vmatprep.subr.bf16.mxu0 %v3723
        %5366 = vmatpush2.bf16.msra.mxu0 %v3722
        %5367 = vmatprep.mubr.bf16.mxu0 %v1100
        %5368 = vmatmul.mubr.bf16.gmra.mxu0 %v1098
        %v5369 = vpop.f32.mrf.mxu0
        %v5370 = vadd.f32 %v5329, %v5369
        %v5371 = vpop.f32.mrf.mxu0
        %v5372 = vadd.f32 %v5331, %v5371
        %v5373 = vpop.f32.mrf.mxu0
        %v5374 = vpop.f32.mrf.mxu0
        %5375 = vdwg.mxu0
        %5376 = vmatprep.subr.bf16.mxu0 %v3903
        %5377 = vmatpush1.bf16.msra.mxu0 %v3902
        %5378 = vmatprep.subr.bf16.mxu0 %v3891
        %5379 = vmatpush1.bf16.msra.mxu0 %v3890
        %5380 = vmatprep.subr.bf16.mxu0 %v3879
        %5381 = vmatpush1.bf16.msra.mxu0 %v3878
        %5382 = vmatprep.subr.bf16.mxu0 %v3867
        %5383 = vmatpush1.bf16.msra.mxu0 %v3866
        %5384 = vmatprep.subr.bf16.mxu0 %v3855
        %5385 = vmatpush1.bf16.msra.mxu0 %v3854
        %5386 = vmatprep.subr.bf16.mxu0 %v3843
        %5387 = vmatpush1.bf16.msra.mxu0 %v3842
        %5388 = vmatprep.subr.bf16.mxu0 %v3831
        %5389 = vmatpush1.bf16.msra.mxu0 %v3830
        %5390 = vmatprep.subr.bf16.mxu0 %v3819
        %5391 = vmatpush1.bf16.msra.mxu0 %v3818
        %5392 = vmatprep.subr.bf16.mxu0 %v3999
        %5393 = vmatpush2.bf16.msra.mxu0 %v3998
        %5394 = vmatprep.subr.bf16.mxu0 %v3987
        %5395 = vmatpush2.bf16.msra.mxu0 %v3986
        %5396 = vmatprep.subr.bf16.mxu0 %v3975
        %5397 = vmatpush2.bf16.msra.mxu0 %v3974
        %5398 = vmatprep.subr.bf16.mxu0 %v3963
        %5399 = vmatpush2.bf16.msra.mxu0 %v3962
        %5400 = vmatprep.subr.bf16.mxu0 %v3951
        %5401 = vmatpush2.bf16.msra.mxu0 %v3950
        %5402 = vmatprep.subr.bf16.mxu0 %v3939
        %5403 = vmatpush2.bf16.msra.mxu0 %v3938
        %5404 = vmatprep.subr.bf16.mxu0 %v3927
        %5405 = vmatpush2.bf16.msra.mxu0 %v3926
        %5406 = vmatprep.subr.bf16.mxu0 %v3915
        %5407 = vmatpush2.bf16.msra.mxu0 %v3914
        %5408 = vmatprep.mubr.bf16.mxu0 %v1116
        %5409 = vmatmul.mubr.bf16.gmra.mxu0 %v1108
        %v5410 = vpop.f32.mrf.mxu0
        %v5411 = vadd.f32 %v5370, %v5410
        %v5412 = vpop.f32.mrf.mxu0
        %v5413 = vadd.f32 %v5372, %v5412
        %v5414 = vpop.f32.mrf.mxu0
        %v5415 = vpop.f32.mrf.mxu0
        %5416 = vdwg.mxu0
        %5417 = vmatprep.subr.bf16.mxu0 %v4095
        %5418 = vmatpush1.bf16.msra.mxu0 %v4094
        %5419 = vmatprep.subr.bf16.mxu0 %v4083
        %5420 = vmatpush1.bf16.msra.mxu0 %v4082
        %5421 = vmatprep.subr.bf16.mxu0 %v4071
        %5422 = vmatpush1.bf16.msra.mxu0 %v4070
        %5423 = vmatprep.subr.bf16.mxu0 %v4059
        %5424 = vmatpush1.bf16.msra.mxu0 %v4058
        %5425 = vmatprep.subr.bf16.mxu0 %v4047
        %5426 = vmatpush1.bf16.msra.mxu0 %v4046
        %5427 = vmatprep.subr.bf16.mxu0 %v4035
        %5428 = vmatpush1.bf16.msra.mxu0 %v4034
        %5429 = vmatprep.subr.bf16.mxu0 %v4023
        %5430 = vmatpush1.bf16.msra.mxu0 %v4022
        %5431 = vmatprep.subr.bf16.mxu0 %v4011
        %5432 = vmatpush1.bf16.msra.mxu0 %v4010
        %5433 = vmatprep.subr.bf16.mxu0 %v4191
        %5434 = vmatpush2.bf16.msra.mxu0 %v4190
        %5435 = vmatprep.subr.bf16.mxu0 %v4179
        %5436 = vmatpush2.bf16.msra.mxu0 %v4178
        %5437 = vmatprep.subr.bf16.mxu0 %v4167
        %5438 = vmatpush2.bf16.msra.mxu0 %v4166
        %5439 = vmatprep.subr.bf16.mxu0 %v4155
        %5440 = vmatpush2.bf16.msra.mxu0 %v4154
        %5441 = vmatprep.subr.bf16.mxu0 %v4143
        %5442 = vmatpush2.bf16.msra.mxu0 %v4142
        %5443 = vmatprep.subr.bf16.mxu0 %v4131
        %5444 = vmatpush2.bf16.msra.mxu0 %v4130
        %5445 = vmatprep.subr.bf16.mxu0 %v4119
        %5446 = vmatpush2.bf16.msra.mxu0 %v4118
        %5447 = vmatprep.subr.bf16.mxu0 %v4107
        %5448 = vmatpush2.bf16.msra.mxu0 %v4106
        %5449 = vmatprep.mubr.bf16.mxu0 %v1117
        %5450 = vmatmul.mubr.bf16.gmra.mxu0 %v1115
        %v5451 = vpop.f32.mrf.mxu0
        %v5452 = vadd.f32 %v5411, %v5451
        %v5453 = vpop.f32.mrf.mxu0
        %v5454 = vadd.f32 %v5413, %v5453
        %v5455 = vpop.f32.mrf.mxu0
        %v5456 = vpop.f32.mrf.mxu0
        %5457 = vdwg.mxu0
        %5458 = vmatprep.subr.bf16.mxu0 %v3521
        %5459 = vmatpush1.bf16.msra.mxu0 %v3520
        %5460 = vmatprep.subr.bf16.mxu0 %v3509
        %5461 = vmatpush1.bf16.msra.mxu0 %v3508
        %5462 = vmatprep.subr.bf16.mxu0 %v3497
        %5463 = vmatpush1.bf16.msra.mxu0 %v3496
        %5464 = vmatprep.subr.bf16.mxu0 %v3485
        %5465 = vmatpush1.bf16.msra.mxu0 %v3484
        %5466 = vmatprep.subr.bf16.mxu0 %v3473
        %5467 = vmatpush1.bf16.msra.mxu0 %v3472
        %5468 = vmatprep.subr.bf16.mxu0 %v3461
        %5469 = vmatpush1.bf16.msra.mxu0 %v3460
        %5470 = vmatprep.subr.bf16.mxu0 %v3449
        %5471 = vmatpush1.bf16.msra.mxu0 %v3448
        %5472 = vmatprep.subr.bf16.mxu0 %v3437
        %5473 = vmatpush1.bf16.msra.mxu0 %v3436
        %5474 = vmatprep.subr.bf16.mxu0 %v3617
        %5475 = vmatpush2.bf16.msra.mxu0 %v3616
        %5476 = vmatprep.subr.bf16.mxu0 %v3605
        %5477 = vmatpush2.bf16.msra.mxu0 %v3604
        %5478 = vmatprep.subr.bf16.mxu0 %v3593
        %5479 = vmatpush2.bf16.msra.mxu0 %v3592
        %5480 = vmatprep.subr.bf16.mxu0 %v3581
        %5481 = vmatpush2.bf16.msra.mxu0 %v3580
        %5482 = vmatprep.subr.bf16.mxu0 %v3569
        %5483 = vmatpush2.bf16.msra.mxu0 %v3568
        %5484 = vmatprep.subr.bf16.mxu0 %v3557
        %5485 = vmatpush2.bf16.msra.mxu0 %v3556
        %5486 = vmatprep.subr.bf16.mxu0 %v3545
        %5487 = vmatpush2.bf16.msra.mxu0 %v3544
        %5488 = vmatprep.subr.bf16.mxu0 %v3533
        %5489 = vmatpush2.bf16.msra.mxu0 %v3532
        %5490 = vmatprep.mubr.bf16.mxu0 %v1099
        %5491 = vmatmul.mubr.bf16.gmra.mxu0 %v1091
        %v5492 = vpop.f32.mrf.mxu0
        %v5493 = vadd.f32 0.0, %v5492
        %v5494 = vpop.f32.mrf.mxu0
        %v5495 = vadd.f32 0.0, %v5494
        %v5496 = vpop.f32.mrf.mxu0
        %v5497 = vpop.f32.mrf.mxu0
        %5498 = vdwg.mxu0
        %5499 = vmatprep.subr.bf16.mxu0 %v3713
        %5500 = vmatpush1.bf16.msra.mxu0 %v3712
        %5501 = vmatprep.subr.bf16.mxu0 %v3701
        %5502 = vmatpush1.bf16.msra.mxu0 %v3700
        %5503 = vmatprep.subr.bf16.mxu0 %v3689
        %5504 = vmatpush1.bf16.msra.mxu0 %v3688
        %5505 = vmatprep.subr.bf16.mxu0 %v3677
        %5506 = vmatpush1.bf16.msra.mxu0 %v3676
        %5507 = vmatprep.subr.bf16.mxu0 %v3665
        %5508 = vmatpush1.bf16.msra.mxu0 %v3664
        %5509 = vmatprep.subr.bf16.mxu0 %v3653
        %5510 = vmatpush1.bf16.msra.mxu0 %v3652
        %5511 = vmatprep.subr.bf16.mxu0 %v3641
        %5512 = vmatpush1.bf16.msra.mxu0 %v3640
        %5513 = vmatprep.subr.bf16.mxu0 %v3629
        %5514 = vmatpush1.bf16.msra.mxu0 %v3628
        %5515 = vmatprep.subr.bf16.mxu0 %v3809
        %5516 = vmatpush2.bf16.msra.mxu0 %v3808
        %5517 = vmatprep.subr.bf16.mxu0 %v3797
        %5518 = vmatpush2.bf16.msra.mxu0 %v3796
        %5519 = vmatprep.subr.bf16.mxu0 %v3785
        %5520 = vmatpush2.bf16.msra.mxu0 %v3784
        %5521 = vmatprep.subr.bf16.mxu0 %v3773
        %5522 = vmatpush2.bf16.msra.mxu0 %v3772
        %5523 = vmatprep.subr.bf16.mxu0 %v3761
        %5524 = vmatpush2.bf16.msra.mxu0 %v3760
        %5525 = vmatprep.subr.bf16.mxu0 %v3749
        %5526 = vmatpush2.bf16.msra.mxu0 %v3748
        %5527 = vmatprep.subr.bf16.mxu0 %v3737
        %5528 = vmatpush2.bf16.msra.mxu0 %v3736
        %5529 = vmatprep.subr.bf16.mxu0 %v3725
        %5530 = vmatpush2.bf16.msra.mxu0 %v3724
        %5531 = vmatprep.mubr.bf16.mxu0 %v1100
        %5532 = vmatmul.mubr.bf16.gmra.mxu0 %v1098
        %v5533 = vpop.f32.mrf.mxu0
        %v5534 = vadd.f32 %v5493, %v5533
        %v5535 = vpop.f32.mrf.mxu0
        %v5536 = vadd.f32 %v5495, %v5535
        %v5537 = vpop.f32.mrf.mxu0
        %v5538 = vpop.f32.mrf.mxu0
        %5539 = vdwg.mxu0
        %5540 = vmatprep.subr.bf16.mxu0 %v3905
        %5541 = vmatpush1.bf16.msra.mxu0 %v3904
        %5542 = vmatprep.subr.bf16.mxu0 %v3893
        %5543 = vmatpush1.bf16.msra.mxu0 %v3892
        %5544 = vmatprep.subr.bf16.mxu0 %v3881
        %5545 = vmatpush1.bf16.msra.mxu0 %v3880
        %5546 = vmatprep.subr.bf16.mxu0 %v3869
        %5547 = vmatpush1.bf16.msra.mxu0 %v3868
        %5548 = vmatprep.subr.bf16.mxu0 %v3857
        %5549 = vmatpush1.bf16.msra.mxu0 %v3856
        %5550 = vmatprep.subr.bf16.mxu0 %v3845
        %5551 = vmatpush1.bf16.msra.mxu0 %v3844
        %5552 = vmatprep.subr.bf16.mxu0 %v3833
        %5553 = vmatpush1.bf16.msra.mxu0 %v3832
        %5554 = vmatprep.subr.bf16.mxu0 %v3821
        %5555 = vmatpush1.bf16.msra.mxu0 %v3820
        %5556 = vmatprep.subr.bf16.mxu0 %v4001
        %5557 = vmatpush2.bf16.msra.mxu0 %v4000
        %5558 = vmatprep.subr.bf16.mxu0 %v3989
        %5559 = vmatpush2.bf16.msra.mxu0 %v3988
        %5560 = vmatprep.subr.bf16.mxu0 %v3977
        %5561 = vmatpush2.bf16.msra.mxu0 %v3976
        %5562 = vmatprep.subr.bf16.mxu0 %v3965
        %5563 = vmatpush2.bf16.msra.mxu0 %v3964
        %5564 = vmatprep.subr.bf16.mxu0 %v3953
        %5565 = vmatpush2.bf16.msra.mxu0 %v3952
        %5566 = vmatprep.subr.bf16.mxu0 %v3941
        %5567 = vmatpush2.bf16.msra.mxu0 %v3940
        %5568 = vmatprep.subr.bf16.mxu0 %v3929
        %5569 = vmatpush2.bf16.msra.mxu0 %v3928
        %5570 = vmatprep.subr.bf16.mxu0 %v3917
        %5571 = vmatpush2.bf16.msra.mxu0 %v3916
        %5572 = vmatprep.mubr.bf16.mxu0 %v1116
        %5573 = vmatmul.mubr.bf16.gmra.mxu0 %v1108
        %v5574 = vpop.f32.mrf.mxu0
        %v5575 = vadd.f32 %v5534, %v5574
        %v5576 = vpop.f32.mrf.mxu0
        %v5577 = vadd.f32 %v5536, %v5576
        %v5578 = vpop.f32.mrf.mxu0
        %v5579 = vpop.f32.mrf.mxu0
        %5580 = vdwg.mxu0
        %5581 = vmatprep.subr.bf16.mxu0 %v4097
        %5582 = vmatpush1.bf16.msra.mxu0 %v4096
        %5583 = vmatprep.subr.bf16.mxu0 %v4085
        %5584 = vmatpush1.bf16.msra.mxu0 %v4084
        %5585 = vmatprep.subr.bf16.mxu0 %v4073
        %5586 = vmatpush1.bf16.msra.mxu0 %v4072
        %5587 = vmatprep.subr.bf16.mxu0 %v4061
        %5588 = vmatpush1.bf16.msra.mxu0 %v4060
        %5589 = vmatprep.subr.bf16.mxu0 %v4049
        %5590 = vmatpush1.bf16.msra.mxu0 %v4048
        %5591 = vmatprep.subr.bf16.mxu0 %v4037
        %5592 = vmatpush1.bf16.msra.mxu0 %v4036
        %5593 = vmatprep.subr.bf16.mxu0 %v4025
        %5594 = vmatpush1.bf16.msra.mxu0 %v4024
        %5595 = vmatprep.subr.bf16.mxu0 %v4013
        %5596 = vmatpush1.bf16.msra.mxu0 %v4012
        %5597 = vmatprep.subr.bf16.mxu0 %v4193
        %5598 = vmatpush2.bf16.msra.mxu0 %v4192
        %5599 = vmatprep.subr.bf16.mxu0 %v4181
        %5600 = vmatpush2.bf16.msra.mxu0 %v4180
        %5601 = vmatprep.subr.bf16.mxu0 %v4169
        %5602 = vmatpush2.bf16.msra.mxu0 %v4168
        %5603 = vmatprep.subr.bf16.mxu0 %v4157
        %5604 = vmatpush2.bf16.msra.mxu0 %v4156
        %5605 = vmatprep.subr.bf16.mxu0 %v4145
        %5606 = vmatpush2.bf16.msra.mxu0 %v4144
        %5607 = vmatprep.subr.bf16.mxu0 %v4133
        %5608 = vmatpush2.bf16.msra.mxu0 %v4132
        %5609 = vmatprep.subr.bf16.mxu0 %v4121
        %5610 = vmatpush2.bf16.msra.mxu0 %v4120
        %5611 = vmatprep.subr.bf16.mxu0 %v4109
        %5612 = vmatpush2.bf16.msra.mxu0 %v4108
        %5613 = vmatprep.mubr.bf16.mxu0 %v1117
        %5614 = vmatmul.mubr.bf16.gmra.mxu0 %v1115
        %v5615 = vpop.f32.mrf.mxu0
        %v5616 = vadd.f32 %v5575, %v5615
        %v5617 = vpop.f32.mrf.mxu0
        %v5618 = vadd.f32 %v5577, %v5617
        %v5619 = vpop.f32.mrf.mxu0
        %v5620 = vpop.f32.mrf.mxu0
        %5621 = vdwg.mxu0
        %5622 = vmatprep.subr.bf16.mxu0 %v3523
        %5623 = vmatpush1.bf16.msra.mxu0 %v3522
        %5624 = vmatprep.subr.bf16.mxu0 %v3511
        %5625 = vmatpush1.bf16.msra.mxu0 %v3510
        %5626 = vmatprep.subr.bf16.mxu0 %v3499
        %5627 = vmatpush1.bf16.msra.mxu0 %v3498
        %5628 = vmatprep.subr.bf16.mxu0 %v3487
        %5629 = vmatpush1.bf16.msra.mxu0 %v3486
        %5630 = vmatprep.subr.bf16.mxu0 %v3475
        %5631 = vmatpush1.bf16.msra.mxu0 %v3474
        %5632 = vmatprep.subr.bf16.mxu0 %v3463
        %5633 = vmatpush1.bf16.msra.mxu0 %v3462
        %5634 = vmatprep.subr.bf16.mxu0 %v3451
        %5635 = vmatpush1.bf16.msra.mxu0 %v3450
        %5636 = vmatprep.subr.bf16.mxu0 %v3439
        %5637 = vmatpush1.bf16.msra.mxu0 %v3438
        %5638 = vmatprep.subr.bf16.mxu0 %v3619
        %5639 = vmatpush2.bf16.msra.mxu0 %v3618
        %5640 = vmatprep.subr.bf16.mxu0 %v3607
        %5641 = vmatpush2.bf16.msra.mxu0 %v3606
        %5642 = vmatprep.subr.bf16.mxu0 %v3595
        %5643 = vmatpush2.bf16.msra.mxu0 %v3594
        %5644 = vmatprep.subr.bf16.mxu0 %v3583
        %5645 = vmatpush2.bf16.msra.mxu0 %v3582
        %5646 = vmatprep.subr.bf16.mxu0 %v3571
        %5647 = vmatpush2.bf16.msra.mxu0 %v3570
        %5648 = vmatprep.subr.bf16.mxu0 %v3559
        %5649 = vmatpush2.bf16.msra.mxu0 %v3558
        %5650 = vmatprep.subr.bf16.mxu0 %v3547
        %5651 = vmatpush2.bf16.msra.mxu0 %v3546
        %5652 = vmatprep.subr.bf16.mxu0 %v3535
        %5653 = vmatpush2.bf16.msra.mxu0 %v3534
        %5654 = vmatprep.mubr.bf16.mxu0 %v1099
        %5655 = vmatmul.mubr.bf16.gmra.mxu0 %v1091
        %v5656 = vpop.f32.mrf.mxu0
        %v5657 = vadd.f32 0.0, %v5656
        %v5658 = vpop.f32.mrf.mxu0
        %v5659 = vadd.f32 0.0, %v5658
        %v5660 = vpop.f32.mrf.mxu0
        %v5661 = vpop.f32.mrf.mxu0
        %5662 = vdwg.mxu0
        %5663 = vmatprep.subr.bf16.mxu0 %v3715
        %5664 = vmatpush1.bf16.msra.mxu0 %v3714
        %5665 = vmatprep.subr.bf16.mxu0 %v3703
        %5666 = vmatpush1.bf16.msra.mxu0 %v3702
        %5667 = vmatprep.subr.bf16.mxu0 %v3691
        %5668 = vmatpush1.bf16.msra.mxu0 %v3690
        %5669 = vmatprep.subr.bf16.mxu0 %v3679
        %5670 = vmatpush1.bf16.msra.mxu0 %v3678
        %5671 = vmatprep.subr.bf16.mxu0 %v3667
        %5672 = vmatpush1.bf16.msra.mxu0 %v3666
        %5673 = vmatprep.subr.bf16.mxu0 %v3655
        %5674 = vmatpush1.bf16.msra.mxu0 %v3654
        %5675 = vmatprep.subr.bf16.mxu0 %v3643
        %5676 = vmatpush1.bf16.msra.mxu0 %v3642
        %5677 = vmatprep.subr.bf16.mxu0 %v3631
        %5678 = vmatpush1.bf16.msra.mxu0 %v3630
        %5679 = vmatprep.subr.bf16.mxu0 %v3811
        %5680 = vmatpush2.bf16.msra.mxu0 %v3810
        %5681 = vmatprep.subr.bf16.mxu0 %v3799
        %5682 = vmatpush2.bf16.msra.mxu0 %v3798
        %5683 = vmatprep.subr.bf16.mxu0 %v3787
        %5684 = vmatpush2.bf16.msra.mxu0 %v3786
        %5685 = vmatprep.subr.bf16.mxu0 %v3775
        %5686 = vmatpush2.bf16.msra.mxu0 %v3774
        %5687 = vmatprep.subr.bf16.mxu0 %v3763
        %5688 = vmatpush2.bf16.msra.mxu0 %v3762
        %5689 = vmatprep.subr.bf16.mxu0 %v3751
        %5690 = vmatpush2.bf16.msra.mxu0 %v3750
        %5691 = vmatprep.subr.bf16.mxu0 %v3739
        %5692 = vmatpush2.bf16.msra.mxu0 %v3738
        %5693 = vmatprep.subr.bf16.mxu0 %v3727
        %5694 = vmatpush2.bf16.msra.mxu0 %v3726
        %5695 = vmatprep.mubr.bf16.mxu0 %v1100
        %5696 = vmatmul.mubr.bf16.gmra.mxu0 %v1098
        %v5697 = vpop.f32.mrf.mxu0
        %v5698 = vadd.f32 %v5657, %v5697
        %v5699 = vpop.f32.mrf.mxu0
        %v5700 = vadd.f32 %v5659, %v5699
        %v5701 = vpop.f32.mrf.mxu0
        %v5702 = vpop.f32.mrf.mxu0
        %5703 = vdwg.mxu0
        %5704 = vmatprep.subr.bf16.mxu0 %v3907
        %5705 = vmatpush1.bf16.msra.mxu0 %v3906
        %5706 = vmatprep.subr.bf16.mxu0 %v3895
        %5707 = vmatpush1.bf16.msra.mxu0 %v3894
        %5708 = vmatprep.subr.bf16.mxu0 %v3883
        %5709 = vmatpush1.bf16.msra.mxu0 %v3882
        %5710 = vmatprep.subr.bf16.mxu0 %v3871
        %5711 = vmatpush1.bf16.msra.mxu0 %v3870
        %5712 = vmatprep.subr.bf16.mxu0 %v3859
        %5713 = vmatpush1.bf16.msra.mxu0 %v3858
        %5714 = vmatprep.subr.bf16.mxu0 %v3847
        %5715 = vmatpush1.bf16.msra.mxu0 %v3846
        %5716 = vmatprep.subr.bf16.mxu0 %v3835
        %5717 = vmatpush1.bf16.msra.mxu0 %v3834
        %5718 = vmatprep.subr.bf16.mxu0 %v3823
        %5719 = vmatpush1.bf16.msra.mxu0 %v3822
        %5720 = vmatprep.subr.bf16.mxu0 %v4003
        %5721 = vmatpush2.bf16.msra.mxu0 %v4002
        %5722 = vmatprep.subr.bf16.mxu0 %v3991
        %5723 = vmatpush2.bf16.msra.mxu0 %v3990
        %5724 = vmatprep.subr.bf16.mxu0 %v3979
        %5725 = vmatpush2.bf16.msra.mxu0 %v3978
        %5726 = vmatprep.subr.bf16.mxu0 %v3967
        %5727 = vmatpush2.bf16.msra.mxu0 %v3966
        %5728 = vmatprep.subr.bf16.mxu0 %v3955
        %5729 = vmatpush2.bf16.msra.mxu0 %v3954
        %5730 = vmatprep.subr.bf16.mxu0 %v3943
        %5731 = vmatpush2.bf16.msra.mxu0 %v3942
        %5732 = vmatprep.subr.bf16.mxu0 %v3931
        %5733 = vmatpush2.bf16.msra.mxu0 %v3930
        %5734 = vmatprep.subr.bf16.mxu0 %v3919
        %5735 = vmatpush2.bf16.msra.mxu0 %v3918
        %5736 = vmatprep.mubr.bf16.mxu0 %v1116
        %5737 = vmatmul.mubr.bf16.gmra.mxu0 %v1108
        %v5738 = vpop.f32.mrf.mxu0
        %v5739 = vadd.f32 %v5698, %v5738
        %v5740 = vpop.f32.mrf.mxu0
        %v5741 = vadd.f32 %v5700, %v5740
        %v5742 = vpop.f32.mrf.mxu0
        %v5743 = vpop.f32.mrf.mxu0
        %5744 = vdwg.mxu0
        %5745 = vmatprep.subr.bf16.mxu0 %v4099
        %5746 = vmatpush1.bf16.msra.mxu0 %v4098
        %5747 = vmatprep.subr.bf16.mxu0 %v4087
        %5748 = vmatpush1.bf16.msra.mxu0 %v4086
        %5749 = vmatprep.subr.bf16.mxu0 %v4075
        %5750 = vmatpush1.bf16.msra.mxu0 %v4074
        %5751 = vmatprep.subr.bf16.mxu0 %v4063
        %5752 = vmatpush1.bf16.msra.mxu0 %v4062
        %5753 = vmatprep.subr.bf16.mxu0 %v4051
        %5754 = vmatpush1.bf16.msra.mxu0 %v4050
        %5755 = vmatprep.subr.bf16.mxu0 %v4039
        %5756 = vmatpush1.bf16.msra.mxu0 %v4038
        %5757 = vmatprep.subr.bf16.mxu0 %v4027
        %5758 = vmatpush1.bf16.msra.mxu0 %v4026
        %5759 = vmatprep.subr.bf16.mxu0 %v4015
        %5760 = vmatpush1.bf16.msra.mxu0 %v4014
        %5761 = vmatprep.subr.bf16.mxu0 %v4195
        %5762 = vmatpush2.bf16.msra.mxu0 %v4194
        %5763 = vmatprep.subr.bf16.mxu0 %v4183
        %5764 = vmatpush2.bf16.msra.mxu0 %v4182
        %5765 = vmatprep.subr.bf16.mxu0 %v4171
        %5766 = vmatpush2.bf16.msra.mxu0 %v4170
        %5767 = vmatprep.subr.bf16.mxu0 %v4159
        %5768 = vmatpush2.bf16.msra.mxu0 %v4158
        %5769 = vmatprep.subr.bf16.mxu0 %v4147
        %5770 = vmatpush2.bf16.msra.mxu0 %v4146
        %5771 = vmatprep.subr.bf16.mxu0 %v4135
        %5772 = vmatpush2.bf16.msra.mxu0 %v4134
        %5773 = vmatprep.subr.bf16.mxu0 %v4123
        %5774 = vmatpush2.bf16.msra.mxu0 %v4122
        %5775 = vmatprep.subr.bf16.mxu0 %v4111
        %5776 = vmatpush2.bf16.msra.mxu0 %v4110
        %5777 = vmatprep.mubr.bf16.mxu0 %v1117
        %5778 = vmatmul.mubr.bf16.gmra.mxu0 %v1115
        %v5779 = vpop.f32.mrf.mxu0
        %v5780 = vadd.f32 %v5739, %v5779
        %v5781 = vpop.f32.mrf.mxu0
        %v5782 = vadd.f32 %v5741, %v5781
        %v5783 = vpop.f32.mrf.mxu0
        %v5784 = vpop.f32.mrf.mxu0
        %5785 = vdwg.mxu0
        %5786 = vmatprep.subr.bf16.mxu0 %v3525
        %5787 = vmatpush1.bf16.msra.mxu0 %v3524
        %5788 = vmatprep.subr.bf16.mxu0 %v3513
        %5789 = vmatpush1.bf16.msra.mxu0 %v3512
        %5790 = vmatprep.subr.bf16.mxu0 %v3501
        %5791 = vmatpush1.bf16.msra.mxu0 %v3500
        %5792 = vmatprep.subr.bf16.mxu0 %v3489
        %5793 = vmatpush1.bf16.msra.mxu0 %v3488
        %5794 = vmatprep.subr.bf16.mxu0 %v3477
        %5795 = vmatpush1.bf16.msra.mxu0 %v3476
        %5796 = vmatprep.subr.bf16.mxu0 %v3465
        %5797 = vmatpush1.bf16.msra.mxu0 %v3464
        %5798 = vmatprep.subr.bf16.mxu0 %v3453
        %5799 = vmatpush1.bf16.msra.mxu0 %v3452
        %5800 = vmatprep.subr.bf16.mxu0 %v3441
        %5801 = vmatpush1.bf16.msra.mxu0 %v3440
        %5802 = vmatprep.subr.bf16.mxu0 %v3621
        %5803 = vmatpush2.bf16.msra.mxu0 %v3620
        %5804 = vmatprep.subr.bf16.mxu0 %v3609
        %5805 = vmatpush2.bf16.msra.mxu0 %v3608
        %5806 = vmatprep.subr.bf16.mxu0 %v3597
        %5807 = vmatpush2.bf16.msra.mxu0 %v3596
        %5808 = vmatprep.subr.bf16.mxu0 %v3585
        %5809 = vmatpush2.bf16.msra.mxu0 %v3584
        %5810 = vmatprep.subr.bf16.mxu0 %v3573
        %5811 = vmatpush2.bf16.msra.mxu0 %v3572
        %5812 = vmatprep.subr.bf16.mxu0 %v3561
        %5813 = vmatpush2.bf16.msra.mxu0 %v3560
        %5814 = vmatprep.subr.bf16.mxu0 %v3549
        %5815 = vmatpush2.bf16.msra.mxu0 %v3548
        %5816 = vmatprep.subr.bf16.mxu0 %v3537
        %5817 = vmatpush2.bf16.msra.mxu0 %v3536
        %5818 = vmatprep.mubr.bf16.mxu0 %v1099
        %5819 = vmatmul.mubr.bf16.gmra.mxu0 %v1091
        %v5820 = vpop.f32.mrf.mxu0
        %v5821 = vadd.f32 0.0, %v5820
        %v5822 = vpop.f32.mrf.mxu0
        %v5823 = vadd.f32 0.0, %v5822
        %v5824 = vpop.f32.mrf.mxu0
        %v5825 = vpop.f32.mrf.mxu0
        %5826 = vdwg.mxu0
        %5827 = vmatprep.subr.bf16.mxu0 %v3717
        %5828 = vmatpush1.bf16.msra.mxu0 %v3716
        %5829 = vmatprep.subr.bf16.mxu0 %v3705
        %5830 = vmatpush1.bf16.msra.mxu0 %v3704
        %5831 = vmatprep.subr.bf16.mxu0 %v3693
        %5832 = vmatpush1.bf16.msra.mxu0 %v3692
        %5833 = vmatprep.subr.bf16.mxu0 %v3681
        %5834 = vmatpush1.bf16.msra.mxu0 %v3680
        %5835 = vmatprep.subr.bf16.mxu0 %v3669
        %5836 = vmatpush1.bf16.msra.mxu0 %v3668
        %5837 = vmatprep.subr.bf16.mxu0 %v3657
        %5838 = vmatpush1.bf16.msra.mxu0 %v3656
        %5839 = vmatprep.subr.bf16.mxu0 %v3645
        %5840 = vmatpush1.bf16.msra.mxu0 %v3644
        %5841 = vmatprep.subr.bf16.mxu0 %v3633
        %5842 = vmatpush1.bf16.msra.mxu0 %v3632
        %5843 = vmatprep.subr.bf16.mxu0 %v3813
        %5844 = vmatpush2.bf16.msra.mxu0 %v3812
        %5845 = vmatprep.subr.bf16.mxu0 %v3801
        %5846 = vmatpush2.bf16.msra.mxu0 %v3800
        %5847 = vmatprep.subr.bf16.mxu0 %v3789
        %5848 = vmatpush2.bf16.msra.mxu0 %v3788
        %5849 = vmatprep.subr.bf16.mxu0 %v3777
        %5850 = vmatpush2.bf16.msra.mxu0 %v3776
        %5851 = vmatprep.subr.bf16.mxu0 %v3765
        %5852 = vmatpush2.bf16.msra.mxu0 %v3764
        %5853 = vmatprep.subr.bf16.mxu0 %v3753
        %5854 = vmatpush2.bf16.msra.mxu0 %v3752
        %5855 = vmatprep.subr.bf16.mxu0 %v3741
        %5856 = vmatpush2.bf16.msra.mxu0 %v3740
        %5857 = vmatprep.subr.bf16.mxu0 %v3729
        %5858 = vmatpush2.bf16.msra.mxu0 %v3728
        %5859 = vmatprep.mubr.bf16.mxu0 %v1100
        %5860 = vmatmul.mubr.bf16.gmra.mxu0 %v1098
        %v5861 = vpop.f32.mrf.mxu0
        %v5862 = vadd.f32 %v5821, %v5861
        %v5863 = vpop.f32.mrf.mxu0
        %v5864 = vadd.f32 %v5823, %v5863
        %v5865 = vpop.f32.mrf.mxu0
        %v5866 = vpop.f32.mrf.mxu0
        %5867 = vdwg.mxu0
        %5868 = vmatprep.subr.bf16.mxu0 %v3909
        %5869 = vmatpush1.bf16.msra.mxu0 %v3908
        %5870 = vmatprep.subr.bf16.mxu0 %v3897
        %5871 = vmatpush1.bf16.msra.mxu0 %v3896
        %5872 = vmatprep.subr.bf16.mxu0 %v3885
        %5873 = vmatpush1.bf16.msra.mxu0 %v3884
        %5874 = vmatprep.subr.bf16.mxu0 %v3873
        %5875 = vmatpush1.bf16.msra.mxu0 %v3872
        %5876 = vmatprep.subr.bf16.mxu0 %v3861
        %5877 = vmatpush1.bf16.msra.mxu0 %v3860
        %5878 = vmatprep.subr.bf16.mxu0 %v3849
        %5879 = vmatpush1.bf16.msra.mxu0 %v3848
        %5880 = vmatprep.subr.bf16.mxu0 %v3837
        %5881 = vmatpush1.bf16.msra.mxu0 %v3836
        %5882 = vmatprep.subr.bf16.mxu0 %v3825
        %5883 = vmatpush1.bf16.msra.mxu0 %v3824
        %5884 = vmatprep.subr.bf16.mxu0 %v4005
        %5885 = vmatpush2.bf16.msra.mxu0 %v4004
        %5886 = vmatprep.subr.bf16.mxu0 %v3993
        %5887 = vmatpush2.bf16.msra.mxu0 %v3992
        %5888 = vmatprep.subr.bf16.mxu0 %v3981
        %5889 = vmatpush2.bf16.msra.mxu0 %v3980
        %5890 = vmatprep.subr.bf16.mxu0 %v3969
        %5891 = vmatpush2.bf16.msra.mxu0 %v3968
        %5892 = vmatprep.subr.bf16.mxu0 %v3957
        %5893 = vmatpush2.bf16.msra.mxu0 %v3956
        %5894 = vmatprep.subr.bf16.mxu0 %v3945
        %5895 = vmatpush2.bf16.msra.mxu0 %v3944
        %5896 = vmatprep.subr.bf16.mxu0 %v3933
        %5897 = vmatpush2.bf16.msra.mxu0 %v3932
        %5898 = vmatprep.subr.bf16.mxu0 %v3921
        %5899 = vmatpush2.bf16.msra.mxu0 %v3920
        %5900 = vmatprep.mubr.bf16.mxu0 %v1116
        %5901 = vmatmul.mubr.bf16.gmra.mxu0 %v1108
        %v5902 = vpop.f32.mrf.mxu0
        %v5903 = vadd.f32 %v5862, %v5902
        %v5904 = vpop.f32.mrf.mxu0
        %v5905 = vadd.f32 %v5864, %v5904
        %v5906 = vpop.f32.mrf.mxu0
        %v5907 = vpop.f32.mrf.mxu0
        %5908 = vdwg.mxu0
        %5909 = vmatprep.subr.bf16.mxu0 %v4101
        %5910 = vmatpush1.bf16.msra.mxu0 %v4100
        %5911 = vmatprep.subr.bf16.mxu0 %v4089
        %5912 = vmatpush1.bf16.msra.mxu0 %v4088
        %5913 = vmatprep.subr.bf16.mxu0 %v4077
        %5914 = vmatpush1.bf16.msra.mxu0 %v4076
        %5915 = vmatprep.subr.bf16.mxu0 %v4065
        %5916 = vmatpush1.bf16.msra.mxu0 %v4064
        %5917 = vmatprep.subr.bf16.mxu0 %v4053
        %5918 = vmatpush1.bf16.msra.mxu0 %v4052
        %5919 = vmatprep.subr.bf16.mxu0 %v4041
        %5920 = vmatpush1.bf16.msra.mxu0 %v4040
        %5921 = vmatprep.subr.bf16.mxu0 %v4029
        %5922 = vmatpush1.bf16.msra.mxu0 %v4028
        %5923 = vmatprep.subr.bf16.mxu0 %v4017
        %5924 = vmatpush1.bf16.msra.mxu0 %v4016
        %5925 = vmatprep.subr.bf16.mxu0 %v4197
        %5926 = vmatpush2.bf16.msra.mxu0 %v4196
        %5927 = vmatprep.subr.bf16.mxu0 %v4185
        %5928 = vmatpush2.bf16.msra.mxu0 %v4184
        %5929 = vmatprep.subr.bf16.mxu0 %v4173
        %5930 = vmatpush2.bf16.msra.mxu0 %v4172
        %5931 = vmatprep.subr.bf16.mxu0 %v4161
        %5932 = vmatpush2.bf16.msra.mxu0 %v4160
        %5933 = vmatprep.subr.bf16.mxu0 %v4149
        %5934 = vmatpush2.bf16.msra.mxu0 %v4148
        %5935 = vmatprep.subr.bf16.mxu0 %v4137
        %5936 = vmatpush2.bf16.msra.mxu0 %v4136
        %5937 = vmatprep.subr.bf16.mxu0 %v4125
        %5938 = vmatpush2.bf16.msra.mxu0 %v4124
        %5939 = vmatprep.subr.bf16.mxu0 %v4113
        %5940 = vmatpush2.bf16.msra.mxu0 %v4112
        %5941 = vmatprep.mubr.bf16.mxu0 %v1117
        %5942 = vmatmul.mubr.bf16.gmra.mxu0 %v1115
        %v5943 = vpop.f32.mrf.mxu0
        %v5944 = vadd.f32 %v5903, %v5943
        %v5945 = vpop.f32.mrf.mxu0
        %v5946 = vadd.f32 %v5905, %v5945
        %v5947 = vpop.f32.mrf.mxu0
        %v5948 = vpop.f32.mrf.mxu0
        %5949 = vdwg.mxu0
        %v5962 = vcombine.low %v5124, %v5126
        %v5963 = vcombine.low %v5288, %v5290
        %v5964 = vcombine.low %v5452, %v5454
        %v5965 = vcombine.low %v5616, %v5618
        %v5966 = vcombine.low %v5780, %v5782
        %v5967 = vcombine.low %v5944, %v5946
        %v5974 = vadd.f32 %v306, %v5962
        %v5975 = vadd.f32 %v307, %v5963
        %v5976 = vadd.f32 %v308, %v5964
        %v5977 = vadd.f32 %v309, %v5965
        %v5978 = vadd.f32 %v310, %v5966
        %v5979 = vadd.f32 %v311, %v5967
        %5980 = vst [vmem:[#allocation2] sm:$0xff] %v5974
        %5981 = vst [vmem:[#allocation2 + $0x8] sm:$0xff] %v5975
        %5982 = vst [vmem:[#allocation2 + $0x10] sm:$0xff] %v5976
        %5983 = vst [vmem:[#allocation2 + $0x18] sm:$0xff] %v5977
        %5984 = vst [vmem:[#allocation2 + $0x20] sm:$0xff] %v5978
        %vm5985 = vcmask 1043456
        %vm5986 = vcmask 752644
        %vm5987 = vmor %vm5986, %vm5985
        %5988 = vst.msk [vmem:[#allocation2 + $0x28] sm:$0xff] %vm5987, %v5979
        %p5989 = scmp.eq.s32.totalorder %s19, 2
        // Predicated region
        $region53: #{tpu_custom_call.1} parent=47 // pred_check
          %p5990 = pneg %p5989
        $region54: #{tpu_custom_call.1} parent=47 // pred_check_branch
          %5992 = sbr.rel (%p5990) target = $region56
        $region55: #{tpu_custom_call.1} parent=47 // pred_region
          %v5993 = vld [vmem:[#allocation2] sm:$0xff]
          %v5994 = vld [vmem:[#allocation2 + $0x8] sm:$0xff]
          %v5995 = vld [vmem:[#allocation2 + $0x10] sm:$0xff]
          %v5996 = vld [vmem:[#allocation2 + $0x18] sm:$0xff]
          %v5997 = vld [vmem:[#allocation2 + $0x20] sm:$0xff]
          %v5998 = vld [vmem:[#allocation2 + $0x28] sm:$0xff]
          %v5999 = vld [vmem:[%s2] sm:$0xff]
          %v6000 = vld [vmem:[%s2 + $0x8] sm:$0xf]
          %v6003 = vlaneseq
          %v6004 = vshrl.u32 %v6003, 7
          %v6005 = vsub.s32 0, %v6004
          %v6006 = vrot.slane %v5999, %v6005
          %v6007 = vlaneseq
          %v6008 = vshrl.u32 %v6007, 7
          %v6009 = vsub.s32 1, %v6008
          %v6010 = vrot.slane %v5999, %v6009
          %v6011 = vlaneseq
          %v6012 = vshrl.u32 %v6011, 7
          %v6013 = vsub.s32 2, %v6012
          %v6014 = vrot.slane %v5999, %v6013
          %v6015 = vlaneseq
          %v6016 = vshrl.u32 %v6015, 7
          %v6017 = vsub.s32 3, %v6016
          %v6018 = vrot.slane %v5999, %v6017
          %v6019 = vlaneseq
          %v6020 = vshrl.u32 %v6019, 7
          %v6021 = vsub.s32 4, %v6020
          %v6022 = vrot.slane %v5999, %v6021
          %v6023 = vlaneseq
          %v6024 = vshrl.u32 %v6023, 7
          %v6025 = vsub.s32 5, %v6024
          %v6026 = vrot.slane %v5999, %v6025
          %v6027 = vlaneseq
          %v6028 = vshrl.u32 %v6027, 7
          %v6029 = vsub.s32 6, %v6028
          %v6030 = vrot.slane %v5999, %v6029
          %v6031 = vlaneseq
          %v6032 = vshrl.u32 %v6031, 7
          %v6033 = vsub.s32 7, %v6032
          %v6034 = vrot.slane %v5999, %v6033
          %v6035 = vlaneseq
          %v6036 = vshrl.u32 %v6035, 7
          %v6037 = vsub.s32 0, %v6036
          %v6038 = vrot.slane %v6000, %v6037
          %v6039 = vlaneseq
          %v6040 = vshrl.u32 %v6039, 7
          %v6041 = vsub.s32 1, %v6040
          %v6042 = vrot.slane %v6000, %v6041
          %v6043 = vlaneseq
          %v6044 = vshrl.u32 %v6043, 7
          %v6045 = vsub.s32 2, %v6044
          %v6046 = vrot.slane %v6000, %v6045
          %v6047 = vlaneseq
          %v6048 = vshrl.u32 %v6047, 7
          %v6049 = vsub.s32 3, %v6048
          %v6050 = vrot.slane %v6000, %v6049
          %v6051 = vcombine.low %v6006, %v6010
          %v6052 = vcombine.low %v6014, %v6018
          %v6053 = vcombine.low %v6022, %v6026
          %v6054 = vcombine.low %v6030, %v6034
          %v6055 = vcombine.low %v6038, %v6042
          %v6056 = vcombine.low %v6046, %v6050
          %v6063 = vadd.f32 %v5993, %v6051
          %v6064 = vadd.f32 %v5994, %v6052
          %v6065 = vadd.f32 %v5995, %v6053
          %v6066 = vadd.f32 %v5996, %v6054
          %v6067 = vadd.f32 %v5997, %v6055
          %v6068 = vadd.f32 %v5998, %v6056
          %v6069 = vmax.f32 %v6063, 0.0
          %v6070 = vmax.f32 %v6064, 0.0
          %v6071 = vmax.f32 %v6065, 0.0
          %v6072 = vmax.f32 %v6066, 0.0
          %v6073 = vmax.f32 %v6067, 0.0
          %v6074 = vmax.f32 %v6068, 0.0
          %v6081 = vcombine.high %v6069, %v6069
          %v6082 = vcombine.high %v6070, %v6070
          %v6083 = vcombine.high %v6071, %v6071
          %v6084 = vcombine.high %v6072, %v6072
          %v6085 = vcombine.high %v6073, %v6073
          %v6086 = vcombine.high %v6074, %v6074
          %v6093 = vpack.c.bf16 %v6069, %v6069
          %v6094 = vpack.c.bf16 %v6081, %v6081
          %v6095 = vpack.c.bf16 %v6070, %v6070
          %v6096 = vpack.c.bf16 %v6082, %v6082
          %v6097 = vpack.c.bf16 %v6071, %v6071
          %v6098 = vpack.c.bf16 %v6083, %v6083
          %v6099 = vpack.c.bf16 %v6072, %v6072
          %v6100 = vpack.c.bf16 %v6084, %v6084
          %v6101 = vpack.c.bf16 %v6073, %v6073
          %v6102 = vpack.c.bf16 %v6085, %v6085
          %v6103 = vpack.c.bf16 %v6074, %v6074
          %v6104 = vpack.c.bf16 %v6086, %v6086
          %v6105 = vld [vmem:[%s3] sm:$0xff]
          %v6106 = vld [vmem:[%s3 + $0x8] sm:$0xff]
          %v6107 = vld [vmem:[%s3 + $0x10] sm:$0xff]
          %v6108 = vld [vmem:[%s3 + $0x18] sm:$0xff]
          %v6109 = vld [vmem:[%s3 + $0x20] sm:$0xff]
          %v6110 = vld [vmem:[%s3 + $0x28] sm:$0xff]
          %v6111 = vld [vmem:[%s3 + $0x30] sm:$0xff]
          %v6112 = vld [vmem:[%s3 + $0x38] sm:$0xff]
          %v6113 = vld [vmem:[%s3 + $0x40] sm:$0xff]
          %v6114 = vld [vmem:[%s3 + $0x48] sm:$0xff]
          %v6115 = vld [vmem:[%s3 + $0x50] sm:$0xff]
          %v6116 = vld [vmem:[%s3 + $0x58] sm:$0xff]
          %v6117 = vld [vmem:[%s3 + $0x60] sm:$0xff]
          %v6118 = vld [vmem:[%s3 + $0x68] sm:$0xff]
          %v6119 = vld [vmem:[%s3 + $0x70] sm:$0xff]
          %v6120 = vld [vmem:[%s3 + $0x78] sm:$0xff]
          %v6121 = vld [vmem:[%s3 + $0x80] sm:$0xff]
          %v6122 = vld [vmem:[%s3 + $0x88] sm:$0xff]
          %v6123 = vld [vmem:[%s3 + $0x90] sm:$0xff]
          %v6124 = vld [vmem:[%s3 + $0x98] sm:$0xff]
          %v6125 = vld [vmem:[%s3 + $0xa0] sm:$0xff]
          %v6126 = vld [vmem:[%s3 + $0xa8] sm:$0xff]
          %v6127 = vld [vmem:[%s3 + $0xb0] sm:$0xff]
          %v6128 = vld [vmem:[%s3 + $0xb8] sm:$0xff]
          %v6129 = vld [vmem:[%s3 + $0xc0] sm:$0xff]
          %v6130 = vld [vmem:[%s3 + $0xc8] sm:$0xff]
          %v6131 = vld [vmem:[%s3 + $0xd0] sm:$0xff]
          %v6132 = vld [vmem:[%s3 + $0xd8] sm:$0xff]
          %v6133 = vld [vmem:[%s3 + $0xe0] sm:$0xff]
          %v6134 = vld [vmem:[%s3 + $0xe8] sm:$0xff]
          %v6135 = vld [vmem:[%s3 + $0xf0] sm:$0xff]
          %v6136 = vld [vmem:[%s3 + $0xf8] sm:$0xff]
          %v6137 = vld [vmem:[%s3 + $0x100] sm:$0xff]
          %v6138 = vld [vmem:[%s3 + $0x108] sm:$0xff]
          %v6139 = vld [vmem:[%s3 + $0x110] sm:$0xff]
          %v6140 = vld [vmem:[%s3 + $0x118] sm:$0xff]
          %v6141 = vld [vmem:[%s3 + $0x120] sm:$0xff]
          %v6142 = vld [vmem:[%s3 + $0x128] sm:$0xff]
          %v6143 = vld [vmem:[%s3 + $0x130] sm:$0xff]
          %v6144 = vld [vmem:[%s3 + $0x138] sm:$0xff]
          %v6145 = vld [vmem:[%s3 + $0x140] sm:$0xff]
          %v6146 = vld [vmem:[%s3 + $0x148] sm:$0xff]
          %v6147 = vld [vmem:[%s3 + $0x150] sm:$0xff]
          %v6148 = vld [vmem:[%s3 + $0x158] sm:$0xff]
          %v6149 = vld [vmem:[%s3 + $0x160] sm:$0xff]
          %v6150 = vld [vmem:[%s3 + $0x168] sm:$0xff]
          %v6151 = vld [vmem:[%s3 + $0x170] sm:$0xff]
          %v6152 = vld [vmem:[%s3 + $0x178] sm:$0xff]
          %v6153 = vld [vmem:[%s3 + $0x180] sm:$0xff]
          %v6154 = vld [vmem:[%s3 + $0x188] sm:$0xff]
          %v6155 = vld [vmem:[%s3 + $0x190] sm:$0xff]
          %v6156 = vld [vmem:[%s3 + $0x198] sm:$0xff]
          %v6157 = vld [vmem:[%s3 + $0x1a0] sm:$0xff]
          %v6158 = vld [vmem:[%s3 + $0x1a8] sm:$0xff]
          %v6159 = vld [vmem:[%s3 + $0x1b0] sm:$0xff]
          %v6160 = vld [vmem:[%s3 + $0x1b8] sm:$0xff]
          %v6161 = vld [vmem:[%s3 + $0x1c0] sm:$0xff]
          %v6162 = vld [vmem:[%s3 + $0x1c8] sm:$0xff]
          %v6163 = vld [vmem:[%s3 + $0x1d0] sm:$0xff]
          %v6164 = vld [vmem:[%s3 + $0x1d8] sm:$0xff]
          %v6165 = vld [vmem:[%s3 + $0x1e0] sm:$0xff]
          %v6166 = vld [vmem:[%s3 + $0x1e8] sm:$0xff]
          %v6167 = vld [vmem:[%s3 + $0x1f0] sm:$0xff]
          %v6168 = vld [vmem:[%s3 + $0x1f8] sm:$0xff]
          %v6169 = vld [vmem:[%s3 + $0x200] sm:$0xff]
          %v6170 = vld [vmem:[%s3 + $0x208] sm:$0xff]
          %v6171 = vld [vmem:[%s3 + $0x210] sm:$0xff]
          %v6172 = vld [vmem:[%s3 + $0x218] sm:$0xff]
          %v6173 = vld [vmem:[%s3 + $0x220] sm:$0xff]
          %v6174 = vld [vmem:[%s3 + $0x228] sm:$0xff]
          %v6175 = vld [vmem:[%s3 + $0x230] sm:$0xff]
          %v6176 = vld [vmem:[%s3 + $0x238] sm:$0xff]
          %v6177 = vld [vmem:[%s3 + $0x240] sm:$0xff]
          %v6178 = vld [vmem:[%s3 + $0x248] sm:$0xff]
          %v6179 = vld [vmem:[%s3 + $0x250] sm:$0xff]
          %v6180 = vld [vmem:[%s3 + $0x258] sm:$0xff]
          %v6181 = vld [vmem:[%s3 + $0x260] sm:$0xff]
          %v6182 = vld [vmem:[%s3 + $0x268] sm:$0xff]
          %v6183 = vld [vmem:[%s3 + $0x270] sm:$0xff]
          %v6184 = vld [vmem:[%s3 + $0x278] sm:$0xff]
          %v6185 = vld [vmem:[%s3 + $0x280] sm:$0xff]
          %v6186 = vld [vmem:[%s3 + $0x288] sm:$0xff]
          %v6187 = vld [vmem:[%s3 + $0x290] sm:$0xff]
          %v6188 = vld [vmem:[%s3 + $0x298] sm:$0xff]
          %v6189 = vld [vmem:[%s3 + $0x2a0] sm:$0xff]
          %v6190 = vld [vmem:[%s3 + $0x2a8] sm:$0xff]
          %v6191 = vld [vmem:[%s3 + $0x2b0] sm:$0xff]
          %v6192 = vld [vmem:[%s3 + $0x2b8] sm:$0xff]
          %v6193 = vld [vmem:[%s3 + $0x2c0] sm:$0xff]
          %v6194 = vld [vmem:[%s3 + $0x2c8] sm:$0xff]
          %v6195 = vld [vmem:[%s3 + $0x2d0] sm:$0xff]
          %v6196 = vld [vmem:[%s3 + $0x2d8] sm:$0xff]
          %v6197 = vld [vmem:[%s3 + $0x2e0] sm:$0xff]
          %v6198 = vld [vmem:[%s3 + $0x2e8] sm:$0xff]
          %v6199 = vld [vmem:[%s3 + $0x2f0] sm:$0xff]
          %v6200 = vld [vmem:[%s3 + $0x2f8] sm:$0xff]
          %v6201 = vld [vmem:[%s3 + $0x300] sm:$0xff]
          %v6202 = vld [vmem:[%s3 + $0x308] sm:$0xff]
          %v6203 = vld [vmem:[%s3 + $0x310] sm:$0xff]
          %v6204 = vld [vmem:[%s3 + $0x318] sm:$0xff]
          %v6205 = vld [vmem:[%s3 + $0x320] sm:$0xff]
          %v6206 = vld [vmem:[%s3 + $0x328] sm:$0xff]
          %v6207 = vld [vmem:[%s3 + $0x330] sm:$0xff]
          %v6208 = vld [vmem:[%s3 + $0x338] sm:$0xff]
          %v6209 = vld [vmem:[%s3 + $0x340] sm:$0xff]
          %v6210 = vld [vmem:[%s3 + $0x348] sm:$0xff]
          %v6211 = vld [vmem:[%s3 + $0x350] sm:$0xff]
          %v6212 = vld [vmem:[%s3 + $0x358] sm:$0xff]
          %v6213 = vld [vmem:[%s3 + $0x360] sm:$0xff]
          %v6214 = vld [vmem:[%s3 + $0x368] sm:$0xff]
          %v6215 = vld [vmem:[%s3 + $0x370] sm:$0xff]
          %v6216 = vld [vmem:[%s3 + $0x378] sm:$0xff]
          %v6217 = vld [vmem:[%s3 + $0x380] sm:$0xff]
          %v6218 = vld [vmem:[%s3 + $0x388] sm:$0xff]
          %v6219 = vld [vmem:[%s3 + $0x390] sm:$0xff]
          %v6220 = vld [vmem:[%s3 + $0x398] sm:$0xff]
          %v6221 = vld [vmem:[%s3 + $0x3a0] sm:$0xff]
          %v6222 = vld [vmem:[%s3 + $0x3a8] sm:$0xff]
          %v6223 = vld [vmem:[%s3 + $0x3b0] sm:$0xff]
          %v6224 = vld [vmem:[%s3 + $0x3b8] sm:$0xff]
          %v6225 = vld [vmem:[%s3 + $0x3c0] sm:$0xff]
          %v6226 = vld [vmem:[%s3 + $0x3c8] sm:$0xff]
          %v6227 = vld [vmem:[%s3 + $0x3d0] sm:$0xff]
          %v6228 = vld [vmem:[%s3 + $0x3d8] sm:$0xff]
          %v6229 = vld [vmem:[%s3 + $0x3e0] sm:$0xff]
          %v6230 = vld [vmem:[%s3 + $0x3e8] sm:$0xff]
          %v6231 = vld [vmem:[%s3 + $0x3f0] sm:$0xff]
          %v6232 = vld [vmem:[%s3 + $0x3f8] sm:$0xff]
          %v6233 = vld [vmem:[%s3 + $0x400] sm:$0xff]
          %v6234 = vld [vmem:[%s3 + $0x408] sm:$0xff]
          %v6235 = vld [vmem:[%s3 + $0x410] sm:$0xff]
          %v6236 = vld [vmem:[%s3 + $0x418] sm:$0xff]
          %v6237 = vld [vmem:[%s3 + $0x420] sm:$0xff]
          %v6238 = vld [vmem:[%s3 + $0x428] sm:$0xff]
          %v6239 = vld [vmem:[%s3 + $0x430] sm:$0xff]
          %v6240 = vld [vmem:[%s3 + $0x438] sm:$0xff]
          %v6241 = vld [vmem:[%s3 + $0x440] sm:$0xff]
          %v6242 = vld [vmem:[%s3 + $0x448] sm:$0xff]
          %v6243 = vld [vmem:[%s3 + $0x450] sm:$0xff]
          %v6244 = vld [vmem:[%s3 + $0x458] sm:$0xff]
          %v6245 = vld [vmem:[%s3 + $0x460] sm:$0xff]
          %v6246 = vld [vmem:[%s3 + $0x468] sm:$0xff]
          %v6247 = vld [vmem:[%s3 + $0x470] sm:$0xff]
          %v6248 = vld [vmem:[%s3 + $0x478] sm:$0xff]
          %v6249 = vld [vmem:[%s3 + $0x480] sm:$0xff]
          %v6250 = vld [vmem:[%s3 + $0x488] sm:$0xff]
          %v6251 = vld [vmem:[%s3 + $0x490] sm:$0xff]
          %v6252 = vld [vmem:[%s3 + $0x498] sm:$0xff]
          %v6253 = vld [vmem:[%s3 + $0x4a0] sm:$0xff]
          %v6254 = vld [vmem:[%s3 + $0x4a8] sm:$0xff]
          %v6255 = vld [vmem:[%s3 + $0x4b0] sm:$0xff]
          %v6256 = vld [vmem:[%s3 + $0x4b8] sm:$0xff]
          %v6257 = vld [vmem:[%s3 + $0x4c0] sm:$0xff]
          %v6258 = vld [vmem:[%s3 + $0x4c8] sm:$0xff]
          %v6259 = vld [vmem:[%s3 + $0x4d0] sm:$0xff]
          %v6260 = vld [vmem:[%s3 + $0x4d8] sm:$0xff]
          %v6261 = vld [vmem:[%s3 + $0x4e0] sm:$0xff]
          %v6262 = vld [vmem:[%s3 + $0x4e8] sm:$0xff]
          %v6263 = vld [vmem:[%s3 + $0x4f0] sm:$0xff]
          %v6264 = vld [vmem:[%s3 + $0x4f8] sm:$0xff]
          %v6265 = vld [vmem:[%s3 + $0x500] sm:$0xff]
          %v6266 = vld [vmem:[%s3 + $0x508] sm:$0xff]
          %v6267 = vld [vmem:[%s3 + $0x510] sm:$0xff]
          %v6268 = vld [vmem:[%s3 + $0x518] sm:$0xff]
          %v6269 = vld [vmem:[%s3 + $0x520] sm:$0xff]
          %v6270 = vld [vmem:[%s3 + $0x528] sm:$0xff]
          %v6271 = vld [vmem:[%s3 + $0x530] sm:$0xff]
          %v6272 = vld [vmem:[%s3 + $0x538] sm:$0xff]
          %v6273 = vld [vmem:[%s3 + $0x540] sm:$0xff]
          %v6274 = vld [vmem:[%s3 + $0x548] sm:$0xff]
          %v6275 = vld [vmem:[%s3 + $0x550] sm:$0xff]
          %v6276 = vld [vmem:[%s3 + $0x558] sm:$0xff]
          %v6277 = vld [vmem:[%s3 + $0x560] sm:$0xff]
          %v6278 = vld [vmem:[%s3 + $0x568] sm:$0xff]
          %v6279 = vld [vmem:[%s3 + $0x570] sm:$0xff]
          %v6280 = vld [vmem:[%s3 + $0x578] sm:$0xff]
          %v6281 = vld [vmem:[%s3 + $0x580] sm:$0xff]
          %v6282 = vld [vmem:[%s3 + $0x588] sm:$0xff]
          %v6283 = vld [vmem:[%s3 + $0x590] sm:$0xff]
          %v6284 = vld [vmem:[%s3 + $0x598] sm:$0xff]
          %v6285 = vld [vmem:[%s3 + $0x5a0] sm:$0xff]
          %v6286 = vld [vmem:[%s3 + $0x5a8] sm:$0xff]
          %v6287 = vld [vmem:[%s3 + $0x5b0] sm:$0xff]
          %v6288 = vld [vmem:[%s3 + $0x5b8] sm:$0xff]
          %v6289 = vld [vmem:[%s3 + $0x5c0] sm:$0xff]
          %v6290 = vld [vmem:[%s3 + $0x5c8] sm:$0xff]
          %v6291 = vld [vmem:[%s3 + $0x5d0] sm:$0xff]
          %v6292 = vld [vmem:[%s3 + $0x5d8] sm:$0xff]
          %v6293 = vld [vmem:[%s3 + $0x5e0] sm:$0xff]
          %v6294 = vld [vmem:[%s3 + $0x5e8] sm:$0xff]
          %v6295 = vld [vmem:[%s3 + $0x5f0] sm:$0xff]
          %v6296 = vld [vmem:[%s3 + $0x5f8] sm:$0xff]
          %v6297 = vld [vmem:[%s3 + $0x600] sm:$0xff]
          %v6298 = vld [vmem:[%s3 + $0x608] sm:$0xff]
          %v6299 = vld [vmem:[%s3 + $0x610] sm:$0xff]
          %v6300 = vld [vmem:[%s3 + $0x618] sm:$0xff]
          %v6301 = vld [vmem:[%s3 + $0x620] sm:$0xff]
          %v6302 = vld [vmem:[%s3 + $0x628] sm:$0xff]
          %v6303 = vld [vmem:[%s3 + $0x630] sm:$0xff]
          %v6304 = vld [vmem:[%s3 + $0x638] sm:$0xff]
          %v6305 = vld [vmem:[%s3 + $0x640] sm:$0xff]
          %v6306 = vld [vmem:[%s3 + $0x648] sm:$0xff]
          %v6307 = vld [vmem:[%s3 + $0x650] sm:$0xff]
          %v6308 = vld [vmem:[%s3 + $0x658] sm:$0xff]
          %v6309 = vld [vmem:[%s3 + $0x660] sm:$0xff]
          %v6310 = vld [vmem:[%s3 + $0x668] sm:$0xff]
          %v6311 = vld [vmem:[%s3 + $0x670] sm:$0xff]
          %v6312 = vld [vmem:[%s3 + $0x678] sm:$0xff]
          %v6313 = vld [vmem:[%s3 + $0x680] sm:$0xff]
          %v6314 = vld [vmem:[%s3 + $0x688] sm:$0xff]
          %v6315 = vld [vmem:[%s3 + $0x690] sm:$0xff]
          %v6316 = vld [vmem:[%s3 + $0x698] sm:$0xff]
          %v6317 = vld [vmem:[%s3 + $0x6a0] sm:$0xff]
          %v6318 = vld [vmem:[%s3 + $0x6a8] sm:$0xff]
          %v6319 = vld [vmem:[%s3 + $0x6b0] sm:$0xff]
          %v6320 = vld [vmem:[%s3 + $0x6b8] sm:$0xff]
          %v6321 = vld [vmem:[%s3 + $0x6c0] sm:$0xff]
          %v6322 = vld [vmem:[%s3 + $0x6c8] sm:$0xff]
          %v6323 = vld [vmem:[%s3 + $0x6d0] sm:$0xff]
          %v6324 = vld [vmem:[%s3 + $0x6d8] sm:$0xff]
          %v6325 = vld [vmem:[%s3 + $0x6e0] sm:$0xff]
          %v6326 = vld [vmem:[%s3 + $0x6e8] sm:$0xff]
          %v6327 = vld [vmem:[%s3 + $0x6f0] sm:$0xff]
          %v6328 = vld [vmem:[%s3 + $0x6f8] sm:$0xff]
          %v6329 = vld [vmem:[%s3 + $0x700] sm:$0xff]
          %v6330 = vld [vmem:[%s3 + $0x708] sm:$0xff]
          %v6331 = vld [vmem:[%s3 + $0x710] sm:$0xff]
          %v6332 = vld [vmem:[%s3 + $0x718] sm:$0xff]
          %v6333 = vld [vmem:[%s3 + $0x720] sm:$0xff]
          %v6334 = vld [vmem:[%s3 + $0x728] sm:$0xff]
          %v6335 = vld [vmem:[%s3 + $0x730] sm:$0xff]
          %v6336 = vld [vmem:[%s3 + $0x738] sm:$0xff]
          %v6337 = vld [vmem:[%s3 + $0x740] sm:$0xff]
          %v6338 = vld [vmem:[%s3 + $0x748] sm:$0xff]
          %v6339 = vld [vmem:[%s3 + $0x750] sm:$0xff]
          %v6340 = vld [vmem:[%s3 + $0x758] sm:$0xff]
          %v6341 = vld [vmem:[%s3 + $0x760] sm:$0xff]
          %v6342 = vld [vmem:[%s3 + $0x768] sm:$0xff]
          %v6343 = vld [vmem:[%s3 + $0x770] sm:$0xff]
          %v6344 = vld [vmem:[%s3 + $0x778] sm:$0xff]
          %v6345 = vld [vmem:[%s3 + $0x780] sm:$0xff]
          %v6346 = vld [vmem:[%s3 + $0x788] sm:$0xff]
          %v6347 = vld [vmem:[%s3 + $0x790] sm:$0xff]
          %v6348 = vld [vmem:[%s3 + $0x798] sm:$0xff]
          %v6349 = vld [vmem:[%s3 + $0x7a0] sm:$0xff]
          %v6350 = vld [vmem:[%s3 + $0x7a8] sm:$0xff]
          %v6351 = vld [vmem:[%s3 + $0x7b0] sm:$0xff]
          %v6352 = vld [vmem:[%s3 + $0x7b8] sm:$0xff]
          %v6353 = vld [vmem:[%s3 + $0x7c0] sm:$0xff]
          %v6354 = vld [vmem:[%s3 + $0x7c8] sm:$0xff]
          %v6355 = vld [vmem:[%s3 + $0x7d0] sm:$0xff]
          %v6356 = vld [vmem:[%s3 + $0x7d8] sm:$0xff]
          %v6357 = vld [vmem:[%s3 + $0x7e0] sm:$0xff]
          %v6358 = vld [vmem:[%s3 + $0x7e8] sm:$0xff]
          %v6359 = vld [vmem:[%s3 + $0x7f0] sm:$0xff]
          %v6360 = vld [vmem:[%s3 + $0x7f8] sm:$0xff]
          %v6361 = vld [vmem:[%s3 + $0x800] sm:$0xff]
          %v6362 = vld [vmem:[%s3 + $0x808] sm:$0xff]
          %v6363 = vld [vmem:[%s3 + $0x810] sm:$0xff]
          %v6364 = vld [vmem:[%s3 + $0x818] sm:$0xff]
          %v6365 = vld [vmem:[%s3 + $0x820] sm:$0xff]
          %v6366 = vld [vmem:[%s3 + $0x828] sm:$0xff]
          %v6367 = vld [vmem:[%s3 + $0x830] sm:$0xff]
          %v6368 = vld [vmem:[%s3 + $0x838] sm:$0xff]
          %v6369 = vld [vmem:[%s3 + $0x840] sm:$0xff]
          %v6370 = vld [vmem:[%s3 + $0x848] sm:$0xff]
          %v6371 = vld [vmem:[%s3 + $0x850] sm:$0xff]
          %v6372 = vld [vmem:[%s3 + $0x858] sm:$0xff]
          %v6373 = vld [vmem:[%s3 + $0x860] sm:$0xff]
          %v6374 = vld [vmem:[%s3 + $0x868] sm:$0xff]
          %v6375 = vld [vmem:[%s3 + $0x870] sm:$0xff]
          %v6376 = vld [vmem:[%s3 + $0x878] sm:$0xff]
          %v6377 = vld [vmem:[%s3 + $0x880] sm:$0xff]
          %v6378 = vld [vmem:[%s3 + $0x888] sm:$0xff]
          %v6379 = vld [vmem:[%s3 + $0x890] sm:$0xff]
          %v6380 = vld [vmem:[%s3 + $0x898] sm:$0xff]
          %v6381 = vld [vmem:[%s3 + $0x8a0] sm:$0xff]
          %v6382 = vld [vmem:[%s3 + $0x8a8] sm:$0xff]
          %v6383 = vld [vmem:[%s3 + $0x8b0] sm:$0xff]
          %v6384 = vld [vmem:[%s3 + $0x8b8] sm:$0xff]
          %v6385 = vld [vmem:[%s3 + $0x8c0] sm:$0xff]
          %v6386 = vld [vmem:[%s3 + $0x8c8] sm:$0xff]
          %v6387 = vld [vmem:[%s3 + $0x8d0] sm:$0xff]
          %v6388 = vld [vmem:[%s3 + $0x8d8] sm:$0xff]
          %v6389 = vld [vmem:[%s3 + $0x8e0] sm:$0xff]
          %v6390 = vld [vmem:[%s3 + $0x8e8] sm:$0xff]
          %v6391 = vld [vmem:[%s3 + $0x8f0] sm:$0xff]
          %v6392 = vld [vmem:[%s3 + $0x8f8] sm:$0xff]
          %v6393 = vld [vmem:[%s3 + $0x900] sm:$0xff]
          %v6394 = vld [vmem:[%s3 + $0x908] sm:$0xff]
          %v6395 = vld [vmem:[%s3 + $0x910] sm:$0xff]
          %v6396 = vld [vmem:[%s3 + $0x918] sm:$0xff]
          %v6397 = vld [vmem:[%s3 + $0x920] sm:$0xff]
          %v6398 = vld [vmem:[%s3 + $0x928] sm:$0xff]
          %v6399 = vld [vmem:[%s3 + $0x930] sm:$0xff]
          %v6400 = vld [vmem:[%s3 + $0x938] sm:$0xff]
          %v6401 = vld [vmem:[%s3 + $0x940] sm:$0xff]
          %v6402 = vld [vmem:[%s3 + $0x948] sm:$0xff]
          %v6403 = vld [vmem:[%s3 + $0x950] sm:$0xff]
          %v6404 = vld [vmem:[%s3 + $0x958] sm:$0xff]
          %v6405 = vld [vmem:[%s3 + $0x960] sm:$0xff]
          %v6406 = vld [vmem:[%s3 + $0x968] sm:$0xff]
          %v6407 = vld [vmem:[%s3 + $0x970] sm:$0xff]
          %v6408 = vld [vmem:[%s3 + $0x978] sm:$0xff]
          %v6409 = vld [vmem:[%s3 + $0x980] sm:$0xff]
          %v6410 = vld [vmem:[%s3 + $0x988] sm:$0xff]
          %v6411 = vld [vmem:[%s3 + $0x990] sm:$0xff]
          %v6412 = vld [vmem:[%s3 + $0x998] sm:$0xff]
          %v6413 = vld [vmem:[%s3 + $0x9a0] sm:$0xff]
          %v6414 = vld [vmem:[%s3 + $0x9a8] sm:$0xff]
          %v6415 = vld [vmem:[%s3 + $0x9b0] sm:$0xff]
          %v6416 = vld [vmem:[%s3 + $0x9b8] sm:$0xff]
          %v6417 = vld [vmem:[%s3 + $0x9c0] sm:$0xff]
          %v6418 = vld [vmem:[%s3 + $0x9c8] sm:$0xff]
          %v6419 = vld [vmem:[%s3 + $0x9d0] sm:$0xff]
          %v6420 = vld [vmem:[%s3 + $0x9d8] sm:$0xff]
          %v6421 = vld [vmem:[%s3 + $0x9e0] sm:$0xff]
          %v6422 = vld [vmem:[%s3 + $0x9e8] sm:$0xff]
          %v6423 = vld [vmem:[%s3 + $0x9f0] sm:$0xff]
          %v6424 = vld [vmem:[%s3 + $0x9f8] sm:$0xff]
          %v6425 = vld [vmem:[%s3 + $0xa00] sm:$0xff]
          %v6426 = vld [vmem:[%s3 + $0xa08] sm:$0xff]
          %v6427 = vld [vmem:[%s3 + $0xa10] sm:$0xff]
          %v6428 = vld [vmem:[%s3 + $0xa18] sm:$0xff]
          %v6429 = vld [vmem:[%s3 + $0xa20] sm:$0xff]
          %v6430 = vld [vmem:[%s3 + $0xa28] sm:$0xff]
          %v6431 = vld [vmem:[%s3 + $0xa30] sm:$0xff]
          %v6432 = vld [vmem:[%s3 + $0xa38] sm:$0xff]
          %v6433 = vld [vmem:[%s3 + $0xa40] sm:$0xff]
          %v6434 = vld [vmem:[%s3 + $0xa48] sm:$0xff]
          %v6435 = vld [vmem:[%s3 + $0xa50] sm:$0xff]
          %v6436 = vld [vmem:[%s3 + $0xa58] sm:$0xff]
          %v6437 = vld [vmem:[%s3 + $0xa60] sm:$0xff]
          %v6438 = vld [vmem:[%s3 + $0xa68] sm:$0xff]
          %v6439 = vld [vmem:[%s3 + $0xa70] sm:$0xff]
          %v6440 = vld [vmem:[%s3 + $0xa78] sm:$0xff]
          %v6441 = vld [vmem:[%s3 + $0xa80] sm:$0xff]
          %v6442 = vld [vmem:[%s3 + $0xa88] sm:$0xff]
          %v6443 = vld [vmem:[%s3 + $0xa90] sm:$0xff]
          %v6444 = vld [vmem:[%s3 + $0xa98] sm:$0xff]
          %v6445 = vld [vmem:[%s3 + $0xaa0] sm:$0xff]
          %v6446 = vld [vmem:[%s3 + $0xaa8] sm:$0xff]
          %v6447 = vld [vmem:[%s3 + $0xab0] sm:$0xff]
          %v6448 = vld [vmem:[%s3 + $0xab8] sm:$0xff]
          %v6449 = vld [vmem:[%s3 + $0xac0] sm:$0xff]
          %v6450 = vld [vmem:[%s3 + $0xac8] sm:$0xff]
          %v6451 = vld [vmem:[%s3 + $0xad0] sm:$0xff]
          %v6452 = vld [vmem:[%s3 + $0xad8] sm:$0xff]
          %v6453 = vld [vmem:[%s3 + $0xae0] sm:$0xff]
          %v6454 = vld [vmem:[%s3 + $0xae8] sm:$0xff]
          %v6455 = vld [vmem:[%s3 + $0xaf0] sm:$0xff]
          %v6456 = vld [vmem:[%s3 + $0xaf8] sm:$0xff]
          %v6457 = vld [vmem:[%s3 + $0xb00] sm:$0xff]
          %v6458 = vld [vmem:[%s3 + $0xb08] sm:$0xff]
          %v6459 = vld [vmem:[%s3 + $0xb10] sm:$0xff]
          %v6460 = vld [vmem:[%s3 + $0xb18] sm:$0xff]
          %v6461 = vld [vmem:[%s3 + $0xb20] sm:$0xff]
          %v6462 = vld [vmem:[%s3 + $0xb28] sm:$0xff]
          %v6463 = vld [vmem:[%s3 + $0xb30] sm:$0xff]
          %v6464 = vld [vmem:[%s3 + $0xb38] sm:$0xff]
          %v6465 = vld [vmem:[%s3 + $0xb40] sm:$0xff]
          %v6466 = vld [vmem:[%s3 + $0xb48] sm:$0xff]
          %v6467 = vld [vmem:[%s3 + $0xb50] sm:$0xff]
          %v6468 = vld [vmem:[%s3 + $0xb58] sm:$0xff]
          %v6469 = vld [vmem:[%s3 + $0xb60] sm:$0xff]
          %v6470 = vld [vmem:[%s3 + $0xb68] sm:$0xff]
          %v6471 = vld [vmem:[%s3 + $0xb70] sm:$0xff]
          %v6472 = vld [vmem:[%s3 + $0xb78] sm:$0xff]
          %v6473 = vld [vmem:[%s3 + $0xb80] sm:$0xff]
          %v6474 = vld [vmem:[%s3 + $0xb88] sm:$0xff]
          %v6475 = vld [vmem:[%s3 + $0xb90] sm:$0xff]
          %v6476 = vld [vmem:[%s3 + $0xb98] sm:$0xff]
          %v6477 = vld [vmem:[%s3 + $0xba0] sm:$0xff]
          %v6478 = vld [vmem:[%s3 + $0xba8] sm:$0xff]
          %v6479 = vld [vmem:[%s3 + $0xbb0] sm:$0xff]
          %v6480 = vld [vmem:[%s3 + $0xbb8] sm:$0xff]
          %v6481 = vld [vmem:[%s3 + $0xbc0] sm:$0xff]
          %v6482 = vld [vmem:[%s3 + $0xbc8] sm:$0xff]
          %v6483 = vld [vmem:[%s3 + $0xbd0] sm:$0xff]
          %v6484 = vld [vmem:[%s3 + $0xbd8] sm:$0xff]
          %v6485 = vld [vmem:[%s3 + $0xbe0] sm:$0xff]
          %v6486 = vld [vmem:[%s3 + $0xbe8] sm:$0xff]
          %v6487 = vld [vmem:[%s3 + $0xbf0] sm:$0xff]
          %v6488 = vld [vmem:[%s3 + $0xbf8] sm:$0xff]
          %v6489 = vld [vmem:[%s3 + $0xc00] sm:$0xff]
          %v6490 = vld [vmem:[%s3 + $0xc08] sm:$0xff]
          %v6491 = vld [vmem:[%s3 + $0xc10] sm:$0xff]
          %v6492 = vld [vmem:[%s3 + $0xc18] sm:$0xff]
          %v6493 = vld [vmem:[%s3 + $0xc20] sm:$0xff]
          %v6494 = vld [vmem:[%s3 + $0xc28] sm:$0xff]
          %v6495 = vld [vmem:[%s3 + $0xc30] sm:$0xff]
          %v6496 = vld [vmem:[%s3 + $0xc38] sm:$0xff]
          %v6497 = vld [vmem:[%s3 + $0xc40] sm:$0xff]
          %v6498 = vld [vmem:[%s3 + $0xc48] sm:$0xff]
          %v6499 = vld [vmem:[%s3 + $0xc50] sm:$0xff]
          %v6500 = vld [vmem:[%s3 + $0xc58] sm:$0xff]
          %v6501 = vld [vmem:[%s3 + $0xc60] sm:$0xff]
          %v6502 = vld [vmem:[%s3 + $0xc68] sm:$0xff]
          %v6503 = vld [vmem:[%s3 + $0xc70] sm:$0xff]
          %v6504 = vld [vmem:[%s3 + $0xc78] sm:$0xff]
          %v6505 = vld [vmem:[%s3 + $0xc80] sm:$0xff]
          %v6506 = vld [vmem:[%s3 + $0xc88] sm:$0xff]
          %v6507 = vld [vmem:[%s3 + $0xc90] sm:$0xff]
          %v6508 = vld [vmem:[%s3 + $0xc98] sm:$0xff]
          %v6509 = vld [vmem:[%s3 + $0xca0] sm:$0xff]
          %v6510 = vld [vmem:[%s3 + $0xca8] sm:$0xff]
          %v6511 = vld [vmem:[%s3 + $0xcb0] sm:$0xff]
          %v6512 = vld [vmem:[%s3 + $0xcb8] sm:$0xff]
          %v6513 = vld [vmem:[%s3 + $0xcc0] sm:$0xff]
          %v6514 = vld [vmem:[%s3 + $0xcc8] sm:$0xff]
          %v6515 = vld [vmem:[%s3 + $0xcd0] sm:$0xff]
          %v6516 = vld [vmem:[%s3 + $0xcd8] sm:$0xff]
          %v6517 = vld [vmem:[%s3 + $0xce0] sm:$0xff]
          %v6518 = vld [vmem:[%s3 + $0xce8] sm:$0xff]
          %v6519 = vld [vmem:[%s3 + $0xcf0] sm:$0xff]
          %v6520 = vld [vmem:[%s3 + $0xcf8] sm:$0xff]
          %v6521 = vld [vmem:[%s3 + $0xd00] sm:$0xff]
          %v6522 = vld [vmem:[%s3 + $0xd08] sm:$0xff]
          %v6523 = vld [vmem:[%s3 + $0xd10] sm:$0xff]
          %v6524 = vld [vmem:[%s3 + $0xd18] sm:$0xff]
          %v6525 = vld [vmem:[%s3 + $0xd20] sm:$0xff]
          %v6526 = vld [vmem:[%s3 + $0xd28] sm:$0xff]
          %v6527 = vld [vmem:[%s3 + $0xd30] sm:$0xff]
          %v6528 = vld [vmem:[%s3 + $0xd38] sm:$0xff]
          %v6529 = vld [vmem:[%s3 + $0xd40] sm:$0xff]
          %v6530 = vld [vmem:[%s3 + $0xd48] sm:$0xff]
          %v6531 = vld [vmem:[%s3 + $0xd50] sm:$0xff]
          %v6532 = vld [vmem:[%s3 + $0xd58] sm:$0xff]
          %v6533 = vld [vmem:[%s3 + $0xd60] sm:$0xff]
          %v6534 = vld [vmem:[%s3 + $0xd68] sm:$0xff]
          %v6535 = vld [vmem:[%s3 + $0xd70] sm:$0xff]
          %v6536 = vld [vmem:[%s3 + $0xd78] sm:$0xff]
          %v6537 = vld [vmem:[%s3 + $0xd80] sm:$0xff]
          %v6538 = vld [vmem:[%s3 + $0xd88] sm:$0xff]
          %v6539 = vld [vmem:[%s3 + $0xd90] sm:$0xff]
          %v6540 = vld [vmem:[%s3 + $0xd98] sm:$0xff]
          %v6541 = vld [vmem:[%s3 + $0xda0] sm:$0xff]
          %v6542 = vld [vmem:[%s3 + $0xda8] sm:$0xff]
          %v6543 = vld [vmem:[%s3 + $0xdb0] sm:$0xff]
          %v6544 = vld [vmem:[%s3 + $0xdb8] sm:$0xff]
          %v6545 = vld [vmem:[%s3 + $0xdc0] sm:$0xff]
          %v6546 = vld [vmem:[%s3 + $0xdc8] sm:$0xff]
          %v6547 = vld [vmem:[%s3 + $0xdd0] sm:$0xff]
          %v6548 = vld [vmem:[%s3 + $0xdd8] sm:$0xff]
          %v6549 = vld [vmem:[%s3 + $0xde0] sm:$0xff]
          %v6550 = vld [vmem:[%s3 + $0xde8] sm:$0xff]
          %v6551 = vld [vmem:[%s3 + $0xdf0] sm:$0xff]
          %v6552 = vld [vmem:[%s3 + $0xdf8] sm:$0xff]
          %v6553 = vld [vmem:[%s3 + $0xe00] sm:$0xff]
          %v6554 = vld [vmem:[%s3 + $0xe08] sm:$0xff]
          %v6555 = vld [vmem:[%s3 + $0xe10] sm:$0xff]
          %v6556 = vld [vmem:[%s3 + $0xe18] sm:$0xff]
          %v6557 = vld [vmem:[%s3 + $0xe20] sm:$0xff]
          %v6558 = vld [vmem:[%s3 + $0xe28] sm:$0xff]
          %v6559 = vld [vmem:[%s3 + $0xe30] sm:$0xff]
          %v6560 = vld [vmem:[%s3 + $0xe38] sm:$0xff]
          %v6561 = vld [vmem:[%s3 + $0xe40] sm:$0xff]
          %v6562 = vld [vmem:[%s3 + $0xe48] sm:$0xff]
          %v6563 = vld [vmem:[%s3 + $0xe50] sm:$0xff]
          %v6564 = vld [vmem:[%s3 + $0xe58] sm:$0xff]
          %v6565 = vld [vmem:[%s3 + $0xe60] sm:$0xff]
          %v6566 = vld [vmem:[%s3 + $0xe68] sm:$0xff]
          %v6567 = vld [vmem:[%s3 + $0xe70] sm:$0xff]
          %v6568 = vld [vmem:[%s3 + $0xe78] sm:$0xff]
          %v6569 = vld [vmem:[%s3 + $0xe80] sm:$0xff]
          %v6570 = vld [vmem:[%s3 + $0xe88] sm:$0xff]
          %v6571 = vld [vmem:[%s3 + $0xe90] sm:$0xff]
          %v6572 = vld [vmem:[%s3 + $0xe98] sm:$0xff]
          %v6573 = vld [vmem:[%s3 + $0xea0] sm:$0xff]
          %v6574 = vld [vmem:[%s3 + $0xea8] sm:$0xff]
          %v6575 = vld [vmem:[%s3 + $0xeb0] sm:$0xff]
          %v6576 = vld [vmem:[%s3 + $0xeb8] sm:$0xff]
          %v6577 = vld [vmem:[%s3 + $0xec0] sm:$0xff]
          %v6578 = vld [vmem:[%s3 + $0xec8] sm:$0xff]
          %v6579 = vld [vmem:[%s3 + $0xed0] sm:$0xff]
          %v6580 = vld [vmem:[%s3 + $0xed8] sm:$0xff]
          %v6581 = vld [vmem:[%s3 + $0xee0] sm:$0xff]
          %v6582 = vld [vmem:[%s3 + $0xee8] sm:$0xff]
          %v6583 = vld [vmem:[%s3 + $0xef0] sm:$0xff]
          %v6584 = vld [vmem:[%s3 + $0xef8] sm:$0xff]
          %v6585 = vld [vmem:[%s3 + $0xf00] sm:$0xff]
          %v6586 = vld [vmem:[%s3 + $0xf08] sm:$0xff]
          %v6587 = vld [vmem:[%s3 + $0xf10] sm:$0xff]
          %v6588 = vld [vmem:[%s3 + $0xf18] sm:$0xff]
          %v6589 = vld [vmem:[%s3 + $0xf20] sm:$0xff]
          %v6590 = vld [vmem:[%s3 + $0xf28] sm:$0xff]
          %v6591 = vld [vmem:[%s3 + $0xf30] sm:$0xff]
          %v6592 = vld [vmem:[%s3 + $0xf38] sm:$0xff]
          %v6593 = vld [vmem:[%s3 + $0xf40] sm:$0xff]
          %v6594 = vld [vmem:[%s3 + $0xf48] sm:$0xff]
          %v6595 = vld [vmem:[%s3 + $0xf50] sm:$0xff]
          %v6596 = vld [vmem:[%s3 + $0xf58] sm:$0xff]
          %v6597 = vld [vmem:[%s3 + $0xf60] sm:$0xff]
          %v6598 = vld [vmem:[%s3 + $0xf68] sm:$0xff]
          %v6599 = vld [vmem:[%s3 + $0xf70] sm:$0xff]
          %v6600 = vld [vmem:[%s3 + $0xf78] sm:$0xff]
          %v6601 = vld [vmem:[%s3 + $0xf80] sm:$0xff]
          %v6602 = vld [vmem:[%s3 + $0xf88] sm:$0xff]
          %v6603 = vld [vmem:[%s3 + $0xf90] sm:$0xff]
          %v6604 = vld [vmem:[%s3 + $0xf98] sm:$0xff]
          %v6605 = vld [vmem:[%s3 + $0xfa0] sm:$0xff]
          %v6606 = vld [vmem:[%s3 + $0xfa8] sm:$0xff]
          %v6607 = vld [vmem:[%s3 + $0xfb0] sm:$0xff]
          %v6608 = vld [vmem:[%s3 + $0xfb8] sm:$0xff]
          %v6609 = vld [vmem:[%s3 + $0xfc0] sm:$0xff]
          %v6610 = vld [vmem:[%s3 + $0xfc8] sm:$0xff]
          %v6611 = vld [vmem:[%s3 + $0xfd0] sm:$0xff]
          %v6612 = vld [vmem:[%s3 + $0xfd8] sm:$0xff]
          %v6613 = vld [vmem:[%s3 + $0xfe0] sm:$0xff]
          %v6614 = vld [vmem:[%s3 + $0xfe8] sm:$0xff]
          %v6615 = vld [vmem:[%s3 + $0xff0] sm:$0xff]
          %v6616 = vld [vmem:[%s3 + $0xff8] sm:$0xff]
          %v6617 = vld [vmem:[%s3 + $0x1000] sm:$0xff]
          %v6618 = vld [vmem:[%s3 + $0x1008] sm:$0xff]
          %v6619 = vld [vmem:[%s3 + $0x1010] sm:$0xff]
          %v6620 = vld [vmem:[%s3 + $0x1018] sm:$0xff]
          %v6621 = vld [vmem:[%s3 + $0x1020] sm:$0xff]
          %v6622 = vld [vmem:[%s3 + $0x1028] sm:$0xff]
          %v6623 = vld [vmem:[%s3 + $0x1030] sm:$0xff]
          %v6624 = vld [vmem:[%s3 + $0x1038] sm:$0xff]
          %v6625 = vld [vmem:[%s3 + $0x1040] sm:$0xff]
          %v6626 = vld [vmem:[%s3 + $0x1048] sm:$0xff]
          %v6627 = vld [vmem:[%s3 + $0x1050] sm:$0xff]
          %v6628 = vld [vmem:[%s3 + $0x1058] sm:$0xff]
          %v6629 = vld [vmem:[%s3 + $0x1060] sm:$0xff]
          %v6630 = vld [vmem:[%s3 + $0x1068] sm:$0xff]
          %v6631 = vld [vmem:[%s3 + $0x1070] sm:$0xff]
          %v6632 = vld [vmem:[%s3 + $0x1078] sm:$0xff]
          %v6633 = vld [vmem:[%s3 + $0x1080] sm:$0xff]
          %v6634 = vld [vmem:[%s3 + $0x1088] sm:$0xff]
          %v6635 = vld [vmem:[%s3 + $0x1090] sm:$0xff]
          %v6636 = vld [vmem:[%s3 + $0x1098] sm:$0xff]
          %v6637 = vld [vmem:[%s3 + $0x10a0] sm:$0xff]
          %v6638 = vld [vmem:[%s3 + $0x10a8] sm:$0xff]
          %v6639 = vld [vmem:[%s3 + $0x10b0] sm:$0xff]
          %v6640 = vld [vmem:[%s3 + $0x10b8] sm:$0xff]
          %v6641 = vld [vmem:[%s3 + $0x10c0] sm:$0xff]
          %v6642 = vld [vmem:[%s3 + $0x10c8] sm:$0xff]
          %v6643 = vld [vmem:[%s3 + $0x10d0] sm:$0xff]
          %v6644 = vld [vmem:[%s3 + $0x10d8] sm:$0xff]
          %v6645 = vld [vmem:[%s3 + $0x10e0] sm:$0xff]
          %v6646 = vld [vmem:[%s3 + $0x10e8] sm:$0xff]
          %v6647 = vld [vmem:[%s3 + $0x10f0] sm:$0xff]
          %v6648 = vld [vmem:[%s3 + $0x10f8] sm:$0xff]
          %v6649 = vld [vmem:[%s3 + $0x1100] sm:$0xff]
          %v6650 = vld [vmem:[%s3 + $0x1108] sm:$0xff]
          %v6651 = vld [vmem:[%s3 + $0x1110] sm:$0xff]
          %v6652 = vld [vmem:[%s3 + $0x1118] sm:$0xff]
          %v6653 = vld [vmem:[%s3 + $0x1120] sm:$0xff]
          %v6654 = vld [vmem:[%s3 + $0x1128] sm:$0xff]
          %v6655 = vld [vmem:[%s3 + $0x1130] sm:$0xff]
          %v6656 = vld [vmem:[%s3 + $0x1138] sm:$0xff]
          %v6657 = vld [vmem:[%s3 + $0x1140] sm:$0xff]
          %v6658 = vld [vmem:[%s3 + $0x1148] sm:$0xff]
          %v6659 = vld [vmem:[%s3 + $0x1150] sm:$0xff]
          %v6660 = vld [vmem:[%s3 + $0x1158] sm:$0xff]
          %v6661 = vld [vmem:[%s3 + $0x1160] sm:$0xff]
          %v6662 = vld [vmem:[%s3 + $0x1168] sm:$0xff]
          %v6663 = vld [vmem:[%s3 + $0x1170] sm:$0xff]
          %v6664 = vld [vmem:[%s3 + $0x1178] sm:$0xff]
          %v6665 = vld [vmem:[%s3 + $0x1180] sm:$0xff]
          %v6666 = vld [vmem:[%s3 + $0x1188] sm:$0x33]
          %v6667 = vld [vmem:[%s3 + $0x1190] sm:$0x33]
          %v6668 = vld [vmem:[%s3 + $0x1198] sm:$0x33]
          %v6669 = vld [vmem:[%s4] sm:$0x3f]
          %v6671 = vlaneseq
          %v6672 = vshrl.u32 %v6671, 7
          %v6673 = vsub.s32 0, %v6672
          %v6674 = vrot.slane %v6669, %v6673
          %v6675 = vlaneseq
          %v6676 = vshrl.u32 %v6675, 7
          %v6677 = vsub.s32 1, %v6676
          %v6678 = vrot.slane %v6669, %v6677
          %v6679 = vlaneseq
          %v6680 = vshrl.u32 %v6679, 7
          %v6681 = vsub.s32 2, %v6680
          %v6682 = vrot.slane %v6669, %v6681
          %v6683 = vlaneseq
          %v6684 = vshrl.u32 %v6683, 7
          %v6685 = vsub.s32 3, %v6684
          %v6686 = vrot.slane %v6669, %v6685
          %v6687 = vlaneseq
          %v6688 = vshrl.u32 %v6687, 7
          %v6689 = vsub.s32 4, %v6688
          %v6690 = vrot.slane %v6669, %v6689
          %v6691 = vlaneseq
          %v6692 = vshrl.u32 %v6691, 7
          %v6693 = vsub.s32 5, %v6692
          %v6694 = vrot.slane %v6669, %v6693
          %v7265 = vunpack.c.l.b16 %v6105
          %v7266 = vunpack.c.h.b16 %v6105
          %v7267 = vunpack.c.l.b16 %v6106
          %v7268 = vunpack.c.h.b16 %v6106
          %v7269 = vunpack.c.l.b16 %v6107
          %v7270 = vunpack.c.h.b16 %v6107
          %v7271 = vunpack.c.l.b16 %v6108
          %v7272 = vunpack.c.h.b16 %v6108
          %v7273 = vunpack.c.l.b16 %v6109
          %v7274 = vunpack.c.h.b16 %v6109
          %v7275 = vunpack.c.l.b16 %v6110
          %v7276 = vunpack.c.h.b16 %v6110
          %v7277 = vunpack.c.l.b16 %v6111
          %v7278 = vunpack.c.h.b16 %v6111
          %v7279 = vunpack.c.l.b16 %v6112
          %v7280 = vunpack.c.h.b16 %v6112
          %v7281 = vunpack.c.l.b16 %v6113
          %v7282 = vunpack.c.h.b16 %v6113
          %v7283 = vunpack.c.l.b16 %v6114
          %v7284 = vunpack.c.h.b16 %v6114
          %v7285 = vunpack.c.l.b16 %v6115
          %v7286 = vunpack.c.h.b16 %v6115
          %v7287 = vunpack.c.l.b16 %v6116
          %v7288 = vunpack.c.h.b16 %v6116
          %v7289 = vunpack.c.l.b16 %v6117
          %v7290 = vunpack.c.h.b16 %v6117
          %v7291 = vunpack.c.l.b16 %v6118
          %v7292 = vunpack.c.h.b16 %v6118
          %v7293 = vunpack.c.l.b16 %v6119
          %v7294 = vunpack.c.h.b16 %v6119
          %v7295 = vunpack.c.l.b16 %v6120
          %v7296 = vunpack.c.h.b16 %v6120
          %v7297 = vunpack.c.l.b16 %v6121
          %v7298 = vunpack.c.h.b16 %v6121
          %v7299 = vunpack.c.l.b16 %v6122
          %v7300 = vunpack.c.h.b16 %v6122
          %v7301 = vunpack.c.l.b16 %v6123
          %v7302 = vunpack.c.h.b16 %v6123
          %v7303 = vunpack.c.l.b16 %v6124
          %v7304 = vunpack.c.h.b16 %v6124
          %v7305 = vunpack.c.l.b16 %v6125
          %v7306 = vunpack.c.h.b16 %v6125
          %v7307 = vunpack.c.l.b16 %v6126
          %v7308 = vunpack.c.h.b16 %v6126
          %v7309 = vunpack.c.l.b16 %v6127
          %v7310 = vunpack.c.h.b16 %v6127
          %v7311 = vunpack.c.l.b16 %v6128
          %v7312 = vunpack.c.h.b16 %v6128
          %v7313 = vunpack.c.l.b16 %v6129
          %v7314 = vunpack.c.h.b16 %v6129
          %v7315 = vunpack.c.l.b16 %v6130
          %v7316 = vunpack.c.h.b16 %v6130
          %v7317 = vunpack.c.l.b16 %v6131
          %v7318 = vunpack.c.h.b16 %v6131
          %v7319 = vunpack.c.l.b16 %v6132
          %v7320 = vunpack.c.h.b16 %v6132
          %v7321 = vunpack.c.l.b16 %v6133
          %v7322 = vunpack.c.h.b16 %v6133
          %v7323 = vunpack.c.l.b16 %v6134
          %v7324 = vunpack.c.h.b16 %v6134
          %v7325 = vunpack.c.l.b16 %v6135
          %v7326 = vunpack.c.h.b16 %v6135
          %v7327 = vunpack.c.l.b16 %v6136
          %v7328 = vunpack.c.h.b16 %v6136
          %v7329 = vunpack.c.l.b16 %v6137
          %v7330 = vunpack.c.h.b16 %v6137
          %v7331 = vunpack.c.l.b16 %v6138
          %v7332 = vunpack.c.h.b16 %v6138
          %v7333 = vunpack.c.l.b16 %v6139
          %v7334 = vunpack.c.h.b16 %v6139
          %v7335 = vunpack.c.l.b16 %v6140
          %v7336 = vunpack.c.h.b16 %v6140
          %v7337 = vunpack.c.l.b16 %v6141
          %v7338 = vunpack.c.h.b16 %v6141
          %v7339 = vunpack.c.l.b16 %v6142
          %v7340 = vunpack.c.h.b16 %v6142
          %v7341 = vunpack.c.l.b16 %v6143
          %v7342 = vunpack.c.h.b16 %v6143
          %v7343 = vunpack.c.l.b16 %v6144
          %v7344 = vunpack.c.h.b16 %v6144
          %v7345 = vunpack.c.l.b16 %v6145
          %v7346 = vunpack.c.h.b16 %v6145
          %v7347 = vunpack.c.l.b16 %v6146
          %v7348 = vunpack.c.h.b16 %v6146
          %v7349 = vunpack.c.l.b16 %v6147
          %v7350 = vunpack.c.h.b16 %v6147
          %v7351 = vunpack.c.l.b16 %v6148
          %v7352 = vunpack.c.h.b16 %v6148
          %v7353 = vunpack.c.l.b16 %v6149
          %v7354 = vunpack.c.h.b16 %v6149
          %v7355 = vunpack.c.l.b16 %v6150
          %v7356 = vunpack.c.h.b16 %v6150
          %v7357 = vunpack.c.l.b16 %v6151
          %v7358 = vunpack.c.h.b16 %v6151
          %v7359 = vunpack.c.l.b16 %v6152
          %v7360 = vunpack.c.h.b16 %v6152
          %v7361 = vunpack.c.l.b16 %v6153
          %v7362 = vunpack.c.h.b16 %v6153
          %v7363 = vunpack.c.l.b16 %v6154
          %v7364 = vunpack.c.h.b16 %v6154
          %v7365 = vunpack.c.l.b16 %v6155
          %v7366 = vunpack.c.h.b16 %v6155
          %v7367 = vunpack.c.l.b16 %v6156
          %v7368 = vunpack.c.h.b16 %v6156
          %v7369 = vunpack.c.l.b16 %v6157
          %v7370 = vunpack.c.h.b16 %v6157
          %v7371 = vunpack.c.l.b16 %v6158
          %v7372 = vunpack.c.h.b16 %v6158
          %v7373 = vunpack.c.l.b16 %v6159
          %v7374 = vunpack.c.h.b16 %v6159
          %v7375 = vunpack.c.l.b16 %v6160
          %v7376 = vunpack.c.h.b16 %v6160
          %v7377 = vunpack.c.l.b16 %v6161
          %v7378 = vunpack.c.h.b16 %v6161
          %v7379 = vunpack.c.l.b16 %v6162
          %v7380 = vunpack.c.h.b16 %v6162
          %v7381 = vunpack.c.l.b16 %v6163
          %v7382 = vunpack.c.h.b16 %v6163
          %v7383 = vunpack.c.l.b16 %v6164
          %v7384 = vunpack.c.h.b16 %v6164
          %v7385 = vunpack.c.l.b16 %v6165
          %v7386 = vunpack.c.h.b16 %v6165
          %v7387 = vunpack.c.l.b16 %v6166
          %v7388 = vunpack.c.h.b16 %v6166
          %v7389 = vunpack.c.l.b16 %v6167
          %v7390 = vunpack.c.h.b16 %v6167
          %v7391 = vunpack.c.l.b16 %v6168
          %v7392 = vunpack.c.h.b16 %v6168
          %v7393 = vunpack.c.l.b16 %v6169
          %v7394 = vunpack.c.h.b16 %v6169
          %v7395 = vunpack.c.l.b16 %v6170
          %v7396 = vunpack.c.h.b16 %v6170
          %v7397 = vunpack.c.l.b16 %v6171
          %v7398 = vunpack.c.h.b16 %v6171
          %v7399 = vunpack.c.l.b16 %v6172
          %v7400 = vunpack.c.h.b16 %v6172
          %v7401 = vunpack.c.l.b16 %v6173
          %v7402 = vunpack.c.h.b16 %v6173
          %v7403 = vunpack.c.l.b16 %v6174
          %v7404 = vunpack.c.h.b16 %v6174
          %v7405 = vunpack.c.l.b16 %v6175
          %v7406 = vunpack.c.h.b16 %v6175
          %v7407 = vunpack.c.l.b16 %v6176
          %v7408 = vunpack.c.h.b16 %v6176
          %v7409 = vunpack.c.l.b16 %v6177
          %v7410 = vunpack.c.h.b16 %v6177
          %v7411 = vunpack.c.l.b16 %v6178
          %v7412 = vunpack.c.h.b16 %v6178
          %v7413 = vunpack.c.l.b16 %v6179
          %v7414 = vunpack.c.h.b16 %v6179
          %v7415 = vunpack.c.l.b16 %v6180
          %v7416 = vunpack.c.h.b16 %v6180
          %v7417 = vunpack.c.l.b16 %v6181
          %v7418 = vunpack.c.h.b16 %v6181
          %v7419 = vunpack.c.l.b16 %v6182
          %v7420 = vunpack.c.h.b16 %v6182
          %v7421 = vunpack.c.l.b16 %v6183
          %v7422 = vunpack.c.h.b16 %v6183
          %v7423 = vunpack.c.l.b16 %v6184
          %v7424 = vunpack.c.h.b16 %v6184
          %v7425 = vunpack.c.l.b16 %v6185
          %v7426 = vunpack.c.h.b16 %v6185
          %v7427 = vunpack.c.l.b16 %v6186
          %v7428 = vunpack.c.h.b16 %v6186
          %v7429 = vunpack.c.l.b16 %v6187
          %v7430 = vunpack.c.h.b16 %v6187
          %v7431 = vunpack.c.l.b16 %v6188
          %v7432 = vunpack.c.h.b16 %v6188
          %v7433 = vunpack.c.l.b16 %v6189
          %v7434 = vunpack.c.h.b16 %v6189
          %v7435 = vunpack.c.l.b16 %v6190
          %v7436 = vunpack.c.h.b16 %v6190
          %v7437 = vunpack.c.l.b16 %v6191
          %v7438 = vunpack.c.h.b16 %v6191
          %v7439 = vunpack.c.l.b16 %v6192
          %v7440 = vunpack.c.h.b16 %v6192
          %v7441 = vunpack.c.l.b16 %v6193
          %v7442 = vunpack.c.h.b16 %v6193
          %v7443 = vunpack.c.l.b16 %v6194
          %v7444 = vunpack.c.h.b16 %v6194
          %v7445 = vunpack.c.l.b16 %v6195
          %v7446 = vunpack.c.h.b16 %v6195
          %v7447 = vunpack.c.l.b16 %v6196
          %v7448 = vunpack.c.h.b16 %v6196
          %v7449 = vunpack.c.l.b16 %v6197
          %v7450 = vunpack.c.h.b16 %v6197
          %v7451 = vunpack.c.l.b16 %v6198
          %v7452 = vunpack.c.h.b16 %v6198
          %v7453 = vunpack.c.l.b16 %v6199
          %v7454 = vunpack.c.h.b16 %v6199
          %v7455 = vunpack.c.l.b16 %v6200
          %v7456 = vunpack.c.h.b16 %v6200
          %v7457 = vunpack.c.l.b16 %v6201
          %v7458 = vunpack.c.h.b16 %v6201
          %v7459 = vunpack.c.l.b16 %v6202
          %v7460 = vunpack.c.h.b16 %v6202
          %v7461 = vunpack.c.l.b16 %v6203
          %v7462 = vunpack.c.h.b16 %v6203
          %v7463 = vunpack.c.l.b16 %v6204
          %v7464 = vunpack.c.h.b16 %v6204
          %v7465 = vunpack.c.l.b16 %v6205
          %v7466 = vunpack.c.h.b16 %v6205
          %v7467 = vunpack.c.l.b16 %v6206
          %v7468 = vunpack.c.h.b16 %v6206
          %v7469 = vunpack.c.l.b16 %v6207
          %v7470 = vunpack.c.h.b16 %v6207
          %v7471 = vunpack.c.l.b16 %v6208
          %v7472 = vunpack.c.h.b16 %v6208
          %v7473 = vunpack.c.l.b16 %v6209
          %v7474 = vunpack.c.h.b16 %v6209
          %v7475 = vunpack.c.l.b16 %v6210
          %v7476 = vunpack.c.h.b16 %v6210
          %v7477 = vunpack.c.l.b16 %v6211
          %v7478 = vunpack.c.h.b16 %v6211
          %v7479 = vunpack.c.l.b16 %v6212
          %v7480 = vunpack.c.h.b16 %v6212
          %v7481 = vunpack.c.l.b16 %v6213
          %v7482 = vunpack.c.h.b16 %v6213
          %v7483 = vunpack.c.l.b16 %v6214
          %v7484 = vunpack.c.h.b16 %v6214
          %v7485 = vunpack.c.l.b16 %v6215
          %v7486 = vunpack.c.h.b16 %v6215
          %v7487 = vunpack.c.l.b16 %v6216
          %v7488 = vunpack.c.h.b16 %v6216
          %v7489 = vunpack.c.l.b16 %v6217
          %v7490 = vunpack.c.h.b16 %v6217
          %v7491 = vunpack.c.l.b16 %v6218
          %v7492 = vunpack.c.h.b16 %v6218
          %v7493 = vunpack.c.l.b16 %v6219
          %v7494 = vunpack.c.h.b16 %v6219
          %v7495 = vunpack.c.l.b16 %v6220
          %v7496 = vunpack.c.h.b16 %v6220
          %v7497 = vunpack.c.l.b16 %v6221
          %v7498 = vunpack.c.h.b16 %v6221
          %v7499 = vunpack.c.l.b16 %v6222
          %v7500 = vunpack.c.h.b16 %v6222
          %v7501 = vunpack.c.l.b16 %v6223
          %v7502 = vunpack.c.h.b16 %v6223
          %v7503 = vunpack.c.l.b16 %v6224
          %v7504 = vunpack.c.h.b16 %v6224
          %v7505 = vunpack.c.l.b16 %v6225
          %v7506 = vunpack.c.h.b16 %v6225
          %v7507 = vunpack.c.l.b16 %v6226
          %v7508 = vunpack.c.h.b16 %v6226
          %v7509 = vunpack.c.l.b16 %v6227
          %v7510 = vunpack.c.h.b16 %v6227
          %v7511 = vunpack.c.l.b16 %v6228
          %v7512 = vunpack.c.h.b16 %v6228
          %v7513 = vunpack.c.l.b16 %v6229
          %v7514 = vunpack.c.h.b16 %v6229
          %v7515 = vunpack.c.l.b16 %v6230
          %v7516 = vunpack.c.h.b16 %v6230
          %v7517 = vunpack.c.l.b16 %v6231
          %v7518 = vunpack.c.h.b16 %v6231
          %v7519 = vunpack.c.l.b16 %v6232
          %v7520 = vunpack.c.h.b16 %v6232
          %v7521 = vunpack.c.l.b16 %v6233
          %v7522 = vunpack.c.h.b16 %v6233
          %v7523 = vunpack.c.l.b16 %v6234
          %v7524 = vunpack.c.h.b16 %v6234
          %v7525 = vunpack.c.l.b16 %v6235
          %v7526 = vunpack.c.h.b16 %v6235
          %v7527 = vunpack.c.l.b16 %v6236
          %v7528 = vunpack.c.h.b16 %v6236
          %v7529 = vunpack.c.l.b16 %v6237
          %v7530 = vunpack.c.h.b16 %v6237
          %v7531 = vunpack.c.l.b16 %v6238
          %v7532 = vunpack.c.h.b16 %v6238
          %v7533 = vunpack.c.l.b16 %v6239
          %v7534 = vunpack.c.h.b16 %v6239
          %v7535 = vunpack.c.l.b16 %v6240
          %v7536 = vunpack.c.h.b16 %v6240
          %v7537 = vunpack.c.l.b16 %v6241
          %v7538 = vunpack.c.h.b16 %v6241
          %v7539 = vunpack.c.l.b16 %v6242
          %v7540 = vunpack.c.h.b16 %v6242
          %v7541 = vunpack.c.l.b16 %v6243
          %v7542 = vunpack.c.h.b16 %v6243
          %v7543 = vunpack.c.l.b16 %v6244
          %v7544 = vunpack.c.h.b16 %v6244
          %v7545 = vunpack.c.l.b16 %v6245
          %v7546 = vunpack.c.h.b16 %v6245
          %v7547 = vunpack.c.l.b16 %v6246
          %v7548 = vunpack.c.h.b16 %v6246
          %v7549 = vunpack.c.l.b16 %v6247
          %v7550 = vunpack.c.h.b16 %v6247
          %v7551 = vunpack.c.l.b16 %v6248
          %v7552 = vunpack.c.h.b16 %v6248
          %v7553 = vunpack.c.l.b16 %v6249
          %v7554 = vunpack.c.h.b16 %v6249
          %v7555 = vunpack.c.l.b16 %v6250
          %v7556 = vunpack.c.h.b16 %v6250
          %v7557 = vunpack.c.l.b16 %v6251
          %v7558 = vunpack.c.h.b16 %v6251
          %v7559 = vunpack.c.l.b16 %v6252
          %v7560 = vunpack.c.h.b16 %v6252
          %v7561 = vunpack.c.l.b16 %v6253
          %v7562 = vunpack.c.h.b16 %v6253
          %v7563 = vunpack.c.l.b16 %v6254
          %v7564 = vunpack.c.h.b16 %v6254
          %v7565 = vunpack.c.l.b16 %v6255
          %v7566 = vunpack.c.h.b16 %v6255
          %v7567 = vunpack.c.l.b16 %v6256
          %v7568 = vunpack.c.h.b16 %v6256
          %v7569 = vunpack.c.l.b16 %v6257
          %v7570 = vunpack.c.h.b16 %v6257
          %v7571 = vunpack.c.l.b16 %v6258
          %v7572 = vunpack.c.h.b16 %v6258
          %v7573 = vunpack.c.l.b16 %v6259
          %v7574 = vunpack.c.h.b16 %v6259
          %v7575 = vunpack.c.l.b16 %v6260
          %v7576 = vunpack.c.h.b16 %v6260
          %v7577 = vunpack.c.l.b16 %v6261
          %v7578 = vunpack.c.h.b16 %v6261
          %v7579 = vunpack.c.l.b16 %v6262
          %v7580 = vunpack.c.h.b16 %v6262
          %v7581 = vunpack.c.l.b16 %v6263
          %v7582 = vunpack.c.h.b16 %v6263
          %v7583 = vunpack.c.l.b16 %v6264
          %v7584 = vunpack.c.h.b16 %v6264
          %v7585 = vunpack.c.l.b16 %v6265
          %v7586 = vunpack.c.h.b16 %v6265
          %v7587 = vunpack.c.l.b16 %v6266
          %v7588 = vunpack.c.h.b16 %v6266
          %v7589 = vunpack.c.l.b16 %v6267
          %v7590 = vunpack.c.h.b16 %v6267
          %v7591 = vunpack.c.l.b16 %v6268
          %v7592 = vunpack.c.h.b16 %v6268
          %v7593 = vunpack.c.l.b16 %v6269
          %v7594 = vunpack.c.h.b16 %v6269
          %v7595 = vunpack.c.l.b16 %v6270
          %v7596 = vunpack.c.h.b16 %v6270
          %v7597 = vunpack.c.l.b16 %v6271
          %v7598 = vunpack.c.h.b16 %v6271
          %v7599 = vunpack.c.l.b16 %v6272
          %v7600 = vunpack.c.h.b16 %v6272
          %v7601 = vunpack.c.l.b16 %v6273
          %v7602 = vunpack.c.h.b16 %v6273
          %v7603 = vunpack.c.l.b16 %v6274
          %v7604 = vunpack.c.h.b16 %v6274
          %v7605 = vunpack.c.l.b16 %v6275
          %v7606 = vunpack.c.h.b16 %v6275
          %v7607 = vunpack.c.l.b16 %v6276
          %v7608 = vunpack.c.h.b16 %v6276
          %v7609 = vunpack.c.l.b16 %v6277
          %v7610 = vunpack.c.h.b16 %v6277
          %v7611 = vunpack.c.l.b16 %v6278
          %v7612 = vunpack.c.h.b16 %v6278
          %v7613 = vunpack.c.l.b16 %v6279
          %v7614 = vunpack.c.h.b16 %v6279
          %v7615 = vunpack.c.l.b16 %v6280
          %v7616 = vunpack.c.h.b16 %v6280
          %v7617 = vunpack.c.l.b16 %v6281
          %v7618 = vunpack.c.h.b16 %v6281
          %v7619 = vunpack.c.l.b16 %v6282
          %v7620 = vunpack.c.h.b16 %v6282
          %v7621 = vunpack.c.l.b16 %v6283
          %v7622 = vunpack.c.h.b16 %v6283
          %v7623 = vunpack.c.l.b16 %v6284
          %v7624 = vunpack.c.h.b16 %v6284
          %v7625 = vunpack.c.l.b16 %v6285
          %v7626 = vunpack.c.h.b16 %v6285
          %v7627 = vunpack.c.l.b16 %v6286
          %v7628 = vunpack.c.h.b16 %v6286
          %v7629 = vunpack.c.l.b16 %v6287
          %v7630 = vunpack.c.h.b16 %v6287
          %v7631 = vunpack.c.l.b16 %v6288
          %v7632 = vunpack.c.h.b16 %v6288
          %v7633 = vunpack.c.l.b16 %v6289
          %v7634 = vunpack.c.h.b16 %v6289
          %v7635 = vunpack.c.l.b16 %v6290
          %v7636 = vunpack.c.h.b16 %v6290
          %v7637 = vunpack.c.l.b16 %v6291
          %v7638 = vunpack.c.h.b16 %v6291
          %v7639 = vunpack.c.l.b16 %v6292
          %v7640 = vunpack.c.h.b16 %v6292
          %v7641 = vunpack.c.l.b16 %v6293
          %v7642 = vunpack.c.h.b16 %v6293
          %v7643 = vunpack.c.l.b16 %v6294
          %v7644 = vunpack.c.h.b16 %v6294
          %v7645 = vunpack.c.l.b16 %v6295
          %v7646 = vunpack.c.h.b16 %v6295
          %v7647 = vunpack.c.l.b16 %v6296
          %v7648 = vunpack.c.h.b16 %v6296
          %v7649 = vunpack.c.l.b16 %v6297
          %v7650 = vunpack.c.h.b16 %v6297
          %v7651 = vunpack.c.l.b16 %v6298
          %v7652 = vunpack.c.h.b16 %v6298
          %v7653 = vunpack.c.l.b16 %v6299
          %v7654 = vunpack.c.h.b16 %v6299
          %v7655 = vunpack.c.l.b16 %v6300
          %v7656 = vunpack.c.h.b16 %v6300
          %v7657 = vunpack.c.l.b16 %v6301
          %v7658 = vunpack.c.h.b16 %v6301
          %v7659 = vunpack.c.l.b16 %v6302
          %v7660 = vunpack.c.h.b16 %v6302
          %v7661 = vunpack.c.l.b16 %v6303
          %v7662 = vunpack.c.h.b16 %v6303
          %v7663 = vunpack.c.l.b16 %v6304
          %v7664 = vunpack.c.h.b16 %v6304
          %v7665 = vunpack.c.l.b16 %v6305
          %v7666 = vunpack.c.h.b16 %v6305
          %v7667 = vunpack.c.l.b16 %v6306
          %v7668 = vunpack.c.h.b16 %v6306
          %v7669 = vunpack.c.l.b16 %v6307
          %v7670 = vunpack.c.h.b16 %v6307
          %v7671 = vunpack.c.l.b16 %v6308
          %v7672 = vunpack.c.h.b16 %v6308
          %v7673 = vunpack.c.l.b16 %v6309
          %v7674 = vunpack.c.h.b16 %v6309
          %v7675 = vunpack.c.l.b16 %v6310
          %v7676 = vunpack.c.h.b16 %v6310
          %v7677 = vunpack.c.l.b16 %v6311
          %v7678 = vunpack.c.h.b16 %v6311
          %v7679 = vunpack.c.l.b16 %v6312
          %v7680 = vunpack.c.h.b16 %v6312
          %v7681 = vunpack.c.l.b16 %v6313
          %v7682 = vunpack.c.h.b16 %v6313
          %v7683 = vunpack.c.l.b16 %v6314
          %v7684 = vunpack.c.h.b16 %v6314
          %v7685 = vunpack.c.l.b16 %v6315
          %v7686 = vunpack.c.h.b16 %v6315
          %v7687 = vunpack.c.l.b16 %v6316
          %v7688 = vunpack.c.h.b16 %v6316
          %v7689 = vunpack.c.l.b16 %v6317
          %v7690 = vunpack.c.h.b16 %v6317
          %v7691 = vunpack.c.l.b16 %v6318
          %v7692 = vunpack.c.h.b16 %v6318
          %v7693 = vunpack.c.l.b16 %v6319
          %v7694 = vunpack.c.h.b16 %v6319
          %v7695 = vunpack.c.l.b16 %v6320
          %v7696 = vunpack.c.h.b16 %v6320
          %v7697 = vunpack.c.l.b16 %v6321
          %v7698 = vunpack.c.h.b16 %v6321
          %v7699 = vunpack.c.l.b16 %v6322
          %v7700 = vunpack.c.h.b16 %v6322
          %v7701 = vunpack.c.l.b16 %v6323
          %v7702 = vunpack.c.h.b16 %v6323
          %v7703 = vunpack.c.l.b16 %v6324
          %v7704 = vunpack.c.h.b16 %v6324
          %v7705 = vunpack.c.l.b16 %v6325
          %v7706 = vunpack.c.h.b16 %v6325
          %v7707 = vunpack.c.l.b16 %v6326
          %v7708 = vunpack.c.h.b16 %v6326
          %v7709 = vunpack.c.l.b16 %v6327
          %v7710 = vunpack.c.h.b16 %v6327
          %v7711 = vunpack.c.l.b16 %v6328
          %v7712 = vunpack.c.h.b16 %v6328
          %v7713 = vunpack.c.l.b16 %v6329
          %v7714 = vunpack.c.h.b16 %v6329
          %v7715 = vunpack.c.l.b16 %v6330
          %v7716 = vunpack.c.h.b16 %v6330
          %v7717 = vunpack.c.l.b16 %v6331
          %v7718 = vunpack.c.h.b16 %v6331
          %v7719 = vunpack.c.l.b16 %v6332
          %v7720 = vunpack.c.h.b16 %v6332
          %v7721 = vunpack.c.l.b16 %v6333
          %v7722 = vunpack.c.h.b16 %v6333
          %v7723 = vunpack.c.l.b16 %v6334
          %v7724 = vunpack.c.h.b16 %v6334
          %v7725 = vunpack.c.l.b16 %v6335
          %v7726 = vunpack.c.h.b16 %v6335
          %v7727 = vunpack.c.l.b16 %v6336
          %v7728 = vunpack.c.h.b16 %v6336
          %v7729 = vunpack.c.l.b16 %v6337
          %v7730 = vunpack.c.h.b16 %v6337
          %v7731 = vunpack.c.l.b16 %v6338
          %v7732 = vunpack.c.h.b16 %v6338
          %v7733 = vunpack.c.l.b16 %v6339
          %v7734 = vunpack.c.h.b16 %v6339
          %v7735 = vunpack.c.l.b16 %v6340
          %v7736 = vunpack.c.h.b16 %v6340
          %v7737 = vunpack.c.l.b16 %v6341
          %v7738 = vunpack.c.h.b16 %v6341
          %v7739 = vunpack.c.l.b16 %v6342
          %v7740 = vunpack.c.h.b16 %v6342
          %v7741 = vunpack.c.l.b16 %v6343
          %v7742 = vunpack.c.h.b16 %v6343
          %v7743 = vunpack.c.l.b16 %v6344
          %v7744 = vunpack.c.h.b16 %v6344
          %v7745 = vunpack.c.l.b16 %v6345
          %v7746 = vunpack.c.h.b16 %v6345
          %v7747 = vunpack.c.l.b16 %v6346
          %v7748 = vunpack.c.h.b16 %v6346
          %v7749 = vunpack.c.l.b16 %v6347
          %v7750 = vunpack.c.h.b16 %v6347
          %v7751 = vunpack.c.l.b16 %v6348
          %v7752 = vunpack.c.h.b16 %v6348
          %v7753 = vunpack.c.l.b16 %v6349
          %v7754 = vunpack.c.h.b16 %v6349
          %v7755 = vunpack.c.l.b16 %v6350
          %v7756 = vunpack.c.h.b16 %v6350
          %v7757 = vunpack.c.l.b16 %v6351
          %v7758 = vunpack.c.h.b16 %v6351
          %v7759 = vunpack.c.l.b16 %v6352
          %v7760 = vunpack.c.h.b16 %v6352
          %v7761 = vunpack.c.l.b16 %v6353
          %v7762 = vunpack.c.h.b16 %v6353
          %v7763 = vunpack.c.l.b16 %v6354
          %v7764 = vunpack.c.h.b16 %v6354
          %v7765 = vunpack.c.l.b16 %v6355
          %v7766 = vunpack.c.h.b16 %v6355
          %v7767 = vunpack.c.l.b16 %v6356
          %v7768 = vunpack.c.h.b16 %v6356
          %v7769 = vunpack.c.l.b16 %v6357
          %v7770 = vunpack.c.h.b16 %v6357
          %v7771 = vunpack.c.l.b16 %v6358
          %v7772 = vunpack.c.h.b16 %v6358
          %v7773 = vunpack.c.l.b16 %v6359
          %v7774 = vunpack.c.h.b16 %v6359
          %v7775 = vunpack.c.l.b16 %v6360
          %v7776 = vunpack.c.h.b16 %v6360
          %v7777 = vunpack.c.l.b16 %v6361
          %v7778 = vunpack.c.h.b16 %v6361
          %v7779 = vunpack.c.l.b16 %v6362
          %v7780 = vunpack.c.h.b16 %v6362
          %v7781 = vunpack.c.l.b16 %v6363
          %v7782 = vunpack.c.h.b16 %v6363
          %v7783 = vunpack.c.l.b16 %v6364
          %v7784 = vunpack.c.h.b16 %v6364
          %v7785 = vunpack.c.l.b16 %v6365
          %v7786 = vunpack.c.h.b16 %v6365
          %v7787 = vunpack.c.l.b16 %v6366
          %v7788 = vunpack.c.h.b16 %v6366
          %v7789 = vunpack.c.l.b16 %v6367
          %v7790 = vunpack.c.h.b16 %v6367
          %v7791 = vunpack.c.l.b16 %v6368
          %v7792 = vunpack.c.h.b16 %v6368
          %v7793 = vunpack.c.l.b16 %v6369
          %v7794 = vunpack.c.h.b16 %v6369
          %v7795 = vunpack.c.l.b16 %v6370
          %v7796 = vunpack.c.h.b16 %v6370
          %v7797 = vunpack.c.l.b16 %v6371
          %v7798 = vunpack.c.h.b16 %v6371
          %v7799 = vunpack.c.l.b16 %v6372
          %v7800 = vunpack.c.h.b16 %v6372
          %v7801 = vunpack.c.l.b16 %v6373
          %v7802 = vunpack.c.h.b16 %v6373
          %v7803 = vunpack.c.l.b16 %v6374
          %v7804 = vunpack.c.h.b16 %v6374
          %v7805 = vunpack.c.l.b16 %v6375
          %v7806 = vunpack.c.h.b16 %v6375
          %v7807 = vunpack.c.l.b16 %v6376
          %v7808 = vunpack.c.h.b16 %v6376
          %v7809 = vunpack.c.l.b16 %v6377
          %v7810 = vunpack.c.h.b16 %v6377
          %v7811 = vunpack.c.l.b16 %v6378
          %v7812 = vunpack.c.h.b16 %v6378
          %v7813 = vunpack.c.l.b16 %v6379
          %v7814 = vunpack.c.h.b16 %v6379
          %v7815 = vunpack.c.l.b16 %v6380
          %v7816 = vunpack.c.h.b16 %v6380
          %v7817 = vunpack.c.l.b16 %v6381
          %v7818 = vunpack.c.h.b16 %v6381
          %v7819 = vunpack.c.l.b16 %v6382
          %v7820 = vunpack.c.h.b16 %v6382
          %v7821 = vunpack.c.l.b16 %v6383
          %v7822 = vunpack.c.h.b16 %v6383
          %v7823 = vunpack.c.l.b16 %v6384
          %v7824 = vunpack.c.h.b16 %v6384
          %v7825 = vunpack.c.l.b16 %v6385
          %v7826 = vunpack.c.h.b16 %v6385
          %v7827 = vunpack.c.l.b16 %v6386
          %v7828 = vunpack.c.h.b16 %v6386
          %v7829 = vunpack.c.l.b16 %v6387
          %v7830 = vunpack.c.h.b16 %v6387
          %v7831 = vunpack.c.l.b16 %v6388
          %v7832 = vunpack.c.h.b16 %v6388
          %v7833 = vunpack.c.l.b16 %v6389
          %v7834 = vunpack.c.h.b16 %v6389
          %v7835 = vunpack.c.l.b16 %v6390
          %v7836 = vunpack.c.h.b16 %v6390
          %v7837 = vunpack.c.l.b16 %v6391
          %v7838 = vunpack.c.h.b16 %v6391
          %v7839 = vunpack.c.l.b16 %v6392
          %v7840 = vunpack.c.h.b16 %v6392
          %v7841 = vunpack.c.l.b16 %v6393
          %v7842 = vunpack.c.h.b16 %v6393
          %v7843 = vunpack.c.l.b16 %v6394
          %v7844 = vunpack.c.h.b16 %v6394
          %v7845 = vunpack.c.l.b16 %v6395
          %v7846 = vunpack.c.h.b16 %v6395
          %v7847 = vunpack.c.l.b16 %v6396
          %v7848 = vunpack.c.h.b16 %v6396
          %v7849 = vunpack.c.l.b16 %v6397
          %v7850 = vunpack.c.h.b16 %v6397
          %v7851 = vunpack.c.l.b16 %v6398
          %v7852 = vunpack.c.h.b16 %v6398
          %v7853 = vunpack.c.l.b16 %v6399
          %v7854 = vunpack.c.h.b16 %v6399
          %v7855 = vunpack.c.l.b16 %v6400
          %v7856 = vunpack.c.h.b16 %v6400
          %v7857 = vunpack.c.l.b16 %v6401
          %v7858 = vunpack.c.h.b16 %v6401
          %v7859 = vunpack.c.l.b16 %v6402
          %v7860 = vunpack.c.h.b16 %v6402
          %v7861 = vunpack.c.l.b16 %v6403
          %v7862 = vunpack.c.h.b16 %v6403
          %v7863 = vunpack.c.l.b16 %v6404
          %v7864 = vunpack.c.h.b16 %v6404
          %v7865 = vunpack.c.l.b16 %v6405
          %v7866 = vunpack.c.h.b16 %v6405
          %v7867 = vunpack.c.l.b16 %v6406
          %v7868 = vunpack.c.h.b16 %v6406
          %v7869 = vunpack.c.l.b16 %v6407
          %v7870 = vunpack.c.h.b16 %v6407
          %v7871 = vunpack.c.l.b16 %v6408
          %v7872 = vunpack.c.h.b16 %v6408
          %v7873 = vunpack.c.l.b16 %v6409
          %v7874 = vunpack.c.h.b16 %v6409
          %v7875 = vunpack.c.l.b16 %v6410
          %v7876 = vunpack.c.h.b16 %v6410
          %v7877 = vunpack.c.l.b16 %v6411
          %v7878 = vunpack.c.h.b16 %v6411
          %v7879 = vunpack.c.l.b16 %v6412
          %v7880 = vunpack.c.h.b16 %v6412
          %v7881 = vunpack.c.l.b16 %v6413
          %v7882 = vunpack.c.h.b16 %v6413
          %v7883 = vunpack.c.l.b16 %v6414
          %v7884 = vunpack.c.h.b16 %v6414
          %v7885 = vunpack.c.l.b16 %v6415
          %v7886 = vunpack.c.h.b16 %v6415
          %v7887 = vunpack.c.l.b16 %v6416
          %v7888 = vunpack.c.h.b16 %v6416
          %v7889 = vunpack.c.l.b16 %v6417
          %v7890 = vunpack.c.h.b16 %v6417
          %v7891 = vunpack.c.l.b16 %v6418
          %v7892 = vunpack.c.h.b16 %v6418
          %v7893 = vunpack.c.l.b16 %v6419
          %v7894 = vunpack.c.h.b16 %v6419
          %v7895 = vunpack.c.l.b16 %v6420
          %v7896 = vunpack.c.h.b16 %v6420
          %v7897 = vunpack.c.l.b16 %v6421
          %v7898 = vunpack.c.h.b16 %v6421
          %v7899 = vunpack.c.l.b16 %v6422
          %v7900 = vunpack.c.h.b16 %v6422
          %v7901 = vunpack.c.l.b16 %v6423
          %v7902 = vunpack.c.h.b16 %v6423
          %v7903 = vunpack.c.l.b16 %v6424
          %v7904 = vunpack.c.h.b16 %v6424
          %v7905 = vunpack.c.l.b16 %v6425
          %v7906 = vunpack.c.h.b16 %v6425
          %v7907 = vunpack.c.l.b16 %v6426
          %v7908 = vunpack.c.h.b16 %v6426
          %v7909 = vunpack.c.l.b16 %v6427
          %v7910 = vunpack.c.h.b16 %v6427
          %v7911 = vunpack.c.l.b16 %v6428
          %v7912 = vunpack.c.h.b16 %v6428
          %v7913 = vunpack.c.l.b16 %v6429
          %v7914 = vunpack.c.h.b16 %v6429
          %v7915 = vunpack.c.l.b16 %v6430
          %v7916 = vunpack.c.h.b16 %v6430
          %v7917 = vunpack.c.l.b16 %v6431
          %v7918 = vunpack.c.h.b16 %v6431
          %v7919 = vunpack.c.l.b16 %v6432
          %v7920 = vunpack.c.h.b16 %v6432
          %v7921 = vunpack.c.l.b16 %v6433
          %v7922 = vunpack.c.h.b16 %v6433
          %v7923 = vunpack.c.l.b16 %v6434
          %v7924 = vunpack.c.h.b16 %v6434
          %v7925 = vunpack.c.l.b16 %v6435
          %v7926 = vunpack.c.h.b16 %v6435
          %v7927 = vunpack.c.l.b16 %v6436
          %v7928 = vunpack.c.h.b16 %v6436
          %v7929 = vunpack.c.l.b16 %v6437
          %v7930 = vunpack.c.h.b16 %v6437
          %v7931 = vunpack.c.l.b16 %v6438
          %v7932 = vunpack.c.h.b16 %v6438
          %v7933 = vunpack.c.l.b16 %v6439
          %v7934 = vunpack.c.h.b16 %v6439
          %v7935 = vunpack.c.l.b16 %v6440
          %v7936 = vunpack.c.h.b16 %v6440
          %v7937 = vunpack.c.l.b16 %v6441
          %v7938 = vunpack.c.h.b16 %v6441
          %v7939 = vunpack.c.l.b16 %v6442
          %v7940 = vunpack.c.h.b16 %v6442
          %v7941 = vunpack.c.l.b16 %v6443
          %v7942 = vunpack.c.h.b16 %v6443
          %v7943 = vunpack.c.l.b16 %v6444
          %v7944 = vunpack.c.h.b16 %v6444
          %v7945 = vunpack.c.l.b16 %v6445
          %v7946 = vunpack.c.h.b16 %v6445
          %v7947 = vunpack.c.l.b16 %v6446
          %v7948 = vunpack.c.h.b16 %v6446
          %v7949 = vunpack.c.l.b16 %v6447
          %v7950 = vunpack.c.h.b16 %v6447
          %v7951 = vunpack.c.l.b16 %v6448
          %v7952 = vunpack.c.h.b16 %v6448
          %v7953 = vunpack.c.l.b16 %v6449
          %v7954 = vunpack.c.h.b16 %v6449
          %v7955 = vunpack.c.l.b16 %v6450
          %v7956 = vunpack.c.h.b16 %v6450
          %v7957 = vunpack.c.l.b16 %v6451
          %v7958 = vunpack.c.h.b16 %v6451
          %v7959 = vunpack.c.l.b16 %v6452
          %v7960 = vunpack.c.h.b16 %v6452
          %v7961 = vunpack.c.l.b16 %v6453
          %v7962 = vunpack.c.h.b16 %v6453
          %v7963 = vunpack.c.l.b16 %v6454
          %v7964 = vunpack.c.h.b16 %v6454
          %v7965 = vunpack.c.l.b16 %v6455
          %v7966 = vunpack.c.h.b16 %v6455
          %v7967 = vunpack.c.l.b16 %v6456
          %v7968 = vunpack.c.h.b16 %v6456
          %v7969 = vunpack.c.l.b16 %v6457
          %v7970 = vunpack.c.h.b16 %v6457
          %v7971 = vunpack.c.l.b16 %v6458
          %v7972 = vunpack.c.h.b16 %v6458
          %v7973 = vunpack.c.l.b16 %v6459
          %v7974 = vunpack.c.h.b16 %v6459
          %v7975 = vunpack.c.l.b16 %v6460
          %v7976 = vunpack.c.h.b16 %v6460
          %v7977 = vunpack.c.l.b16 %v6461
          %v7978 = vunpack.c.h.b16 %v6461
          %v7979 = vunpack.c.l.b16 %v6462
          %v7980 = vunpack.c.h.b16 %v6462
          %v7981 = vunpack.c.l.b16 %v6463
          %v7982 = vunpack.c.h.b16 %v6463
          %v7983 = vunpack.c.l.b16 %v6464
          %v7984 = vunpack.c.h.b16 %v6464
          %v7985 = vunpack.c.l.b16 %v6465
          %v7986 = vunpack.c.h.b16 %v6465
          %v7987 = vunpack.c.l.b16 %v6466
          %v7988 = vunpack.c.h.b16 %v6466
          %v7989 = vunpack.c.l.b16 %v6467
          %v7990 = vunpack.c.h.b16 %v6467
          %v7991 = vunpack.c.l.b16 %v6468
          %v7992 = vunpack.c.h.b16 %v6468
          %v7993 = vunpack.c.l.b16 %v6469
          %v7994 = vunpack.c.h.b16 %v6469
          %v7995 = vunpack.c.l.b16 %v6470
          %v7996 = vunpack.c.h.b16 %v6470
          %v7997 = vunpack.c.l.b16 %v6471
          %v7998 = vunpack.c.h.b16 %v6471
          %v7999 = vunpack.c.l.b16 %v6472
          %v8000 = vunpack.c.h.b16 %v6472
          %v8001 = vunpack.c.l.b16 %v6473
          %v8002 = vunpack.c.h.b16 %v6473
          %v8003 = vunpack.c.l.b16 %v6474
          %v8004 = vunpack.c.h.b16 %v6474
          %v8005 = vunpack.c.l.b16 %v6475
          %v8006 = vunpack.c.h.b16 %v6475
          %v8007 = vunpack.c.l.b16 %v6476
          %v8008 = vunpack.c.h.b16 %v6476
          %v8009 = vunpack.c.l.b16 %v6477
          %v8010 = vunpack.c.h.b16 %v6477
          %v8011 = vunpack.c.l.b16 %v6478
          %v8012 = vunpack.c.h.b16 %v6478
          %v8013 = vunpack.c.l.b16 %v6479
          %v8014 = vunpack.c.h.b16 %v6479
          %v8015 = vunpack.c.l.b16 %v6480
          %v8016 = vunpack.c.h.b16 %v6480
          %v8017 = vunpack.c.l.b16 %v6481
          %v8018 = vunpack.c.h.b16 %v6481
          %v8019 = vunpack.c.l.b16 %v6482
          %v8020 = vunpack.c.h.b16 %v6482
          %v8021 = vunpack.c.l.b16 %v6483
          %v8022 = vunpack.c.h.b16 %v6483
          %v8023 = vunpack.c.l.b16 %v6484
          %v8024 = vunpack.c.h.b16 %v6484
          %v8025 = vunpack.c.l.b16 %v6485
          %v8026 = vunpack.c.h.b16 %v6485
          %v8027 = vunpack.c.l.b16 %v6486
          %v8028 = vunpack.c.h.b16 %v6486
          %v8029 = vunpack.c.l.b16 %v6487
          %v8030 = vunpack.c.h.b16 %v6487
          %v8031 = vunpack.c.l.b16 %v6488
          %v8032 = vunpack.c.h.b16 %v6488
          %v8033 = vunpack.c.l.b16 %v6489
          %v8034 = vunpack.c.h.b16 %v6489
          %v8035 = vunpack.c.l.b16 %v6490
          %v8036 = vunpack.c.h.b16 %v6490
          %v8037 = vunpack.c.l.b16 %v6491
          %v8038 = vunpack.c.h.b16 %v6491
          %v8039 = vunpack.c.l.b16 %v6492
          %v8040 = vunpack.c.h.b16 %v6492
          %v8041 = vunpack.c.l.b16 %v6493
          %v8042 = vunpack.c.h.b16 %v6493
          %v8043 = vunpack.c.l.b16 %v6494
          %v8044 = vunpack.c.h.b16 %v6494
          %v8045 = vunpack.c.l.b16 %v6495
          %v8046 = vunpack.c.h.b16 %v6495
          %v8047 = vunpack.c.l.b16 %v6496
          %v8048 = vunpack.c.h.b16 %v6496
          %v8049 = vunpack.c.l.b16 %v6497
          %v8050 = vunpack.c.h.b16 %v6497
          %v8051 = vunpack.c.l.b16 %v6498
          %v8052 = vunpack.c.h.b16 %v6498
          %v8053 = vunpack.c.l.b16 %v6499
          %v8054 = vunpack.c.h.b16 %v6499
          %v8055 = vunpack.c.l.b16 %v6500
          %v8056 = vunpack.c.h.b16 %v6500
          %v8057 = vunpack.c.l.b16 %v6501
          %v8058 = vunpack.c.h.b16 %v6501
          %v8059 = vunpack.c.l.b16 %v6502
          %v8060 = vunpack.c.h.b16 %v6502
          %v8061 = vunpack.c.l.b16 %v6503
          %v8062 = vunpack.c.h.b16 %v6503
          %v8063 = vunpack.c.l.b16 %v6504
          %v8064 = vunpack.c.h.b16 %v6504
          %v8065 = vunpack.c.l.b16 %v6505
          %v8066 = vunpack.c.h.b16 %v6505
          %v8067 = vunpack.c.l.b16 %v6506
          %v8068 = vunpack.c.h.b16 %v6506
          %v8069 = vunpack.c.l.b16 %v6507
          %v8070 = vunpack.c.h.b16 %v6507
          %v8071 = vunpack.c.l.b16 %v6508
          %v8072 = vunpack.c.h.b16 %v6508
          %v8073 = vunpack.c.l.b16 %v6509
          %v8074 = vunpack.c.h.b16 %v6509
          %v8075 = vunpack.c.l.b16 %v6510
          %v8076 = vunpack.c.h.b16 %v6510
          %v8077 = vunpack.c.l.b16 %v6511
          %v8078 = vunpack.c.h.b16 %v6511
          %v8079 = vunpack.c.l.b16 %v6512
          %v8080 = vunpack.c.h.b16 %v6512
          %v8081 = vunpack.c.l.b16 %v6513
          %v8082 = vunpack.c.h.b16 %v6513
          %v8083 = vunpack.c.l.b16 %v6514
          %v8084 = vunpack.c.h.b16 %v6514
          %v8085 = vunpack.c.l.b16 %v6515
          %v8086 = vunpack.c.h.b16 %v6515
          %v8087 = vunpack.c.l.b16 %v6516
          %v8088 = vunpack.c.h.b16 %v6516
          %v8089 = vunpack.c.l.b16 %v6517
          %v8090 = vunpack.c.h.b16 %v6517
          %v8091 = vunpack.c.l.b16 %v6518
          %v8092 = vunpack.c.h.b16 %v6518
          %v8093 = vunpack.c.l.b16 %v6519
          %v8094 = vunpack.c.h.b16 %v6519
          %v8095 = vunpack.c.l.b16 %v6520
          %v8096 = vunpack.c.h.b16 %v6520
          %v8097 = vunpack.c.l.b16 %v6521
          %v8098 = vunpack.c.h.b16 %v6521
          %v8099 = vunpack.c.l.b16 %v6522
          %v8100 = vunpack.c.h.b16 %v6522
          %v8101 = vunpack.c.l.b16 %v6523
          %v8102 = vunpack.c.h.b16 %v6523
          %v8103 = vunpack.c.l.b16 %v6524
          %v8104 = vunpack.c.h.b16 %v6524
          %v8105 = vunpack.c.l.b16 %v6525
          %v8106 = vunpack.c.h.b16 %v6525
          %v8107 = vunpack.c.l.b16 %v6526
          %v8108 = vunpack.c.h.b16 %v6526
          %v8109 = vunpack.c.l.b16 %v6527
          %v8110 = vunpack.c.h.b16 %v6527
          %v8111 = vunpack.c.l.b16 %v6528
          %v8112 = vunpack.c.h.b16 %v6528
          %v8113 = vunpack.c.l.b16 %v6529
          %v8114 = vunpack.c.h.b16 %v6529
          %v8115 = vunpack.c.l.b16 %v6530
          %v8116 = vunpack.c.h.b16 %v6530
          %v8117 = vunpack.c.l.b16 %v6531
          %v8118 = vunpack.c.h.b16 %v6531
          %v8119 = vunpack.c.l.b16 %v6532
          %v8120 = vunpack.c.h.b16 %v6532
          %v8121 = vunpack.c.l.b16 %v6533
          %v8122 = vunpack.c.h.b16 %v6533
          %v8123 = vunpack.c.l.b16 %v6534
          %v8124 = vunpack.c.h.b16 %v6534
          %v8125 = vunpack.c.l.b16 %v6535
          %v8126 = vunpack.c.h.b16 %v6535
          %v8127 = vunpack.c.l.b16 %v6536
          %v8128 = vunpack.c.h.b16 %v6536
          %v8129 = vunpack.c.l.b16 %v6537
          %v8130 = vunpack.c.h.b16 %v6537
          %v8131 = vunpack.c.l.b16 %v6538
          %v8132 = vunpack.c.h.b16 %v6538
          %v8133 = vunpack.c.l.b16 %v6539
          %v8134 = vunpack.c.h.b16 %v6539
          %v8135 = vunpack.c.l.b16 %v6540
          %v8136 = vunpack.c.h.b16 %v6540
          %v8137 = vunpack.c.l.b16 %v6541
          %v8138 = vunpack.c.h.b16 %v6541
          %v8139 = vunpack.c.l.b16 %v6542
          %v8140 = vunpack.c.h.b16 %v6542
          %v8141 = vunpack.c.l.b16 %v6543
          %v8142 = vunpack.c.h.b16 %v6543
          %v8143 = vunpack.c.l.b16 %v6544
          %v8144 = vunpack.c.h.b16 %v6544
          %v8145 = vunpack.c.l.b16 %v6545
          %v8146 = vunpack.c.h.b16 %v6545
          %v8147 = vunpack.c.l.b16 %v6546
          %v8148 = vunpack.c.h.b16 %v6546
          %v8149 = vunpack.c.l.b16 %v6547
          %v8150 = vunpack.c.h.b16 %v6547
          %v8151 = vunpack.c.l.b16 %v6548
          %v8152 = vunpack.c.h.b16 %v6548
          %v8153 = vunpack.c.l.b16 %v6549
          %v8154 = vunpack.c.h.b16 %v6549
          %v8155 = vunpack.c.l.b16 %v6550
          %v8156 = vunpack.c.h.b16 %v6550
          %v8157 = vunpack.c.l.b16 %v6551
          %v8158 = vunpack.c.h.b16 %v6551
          %v8159 = vunpack.c.l.b16 %v6552
          %v8160 = vunpack.c.h.b16 %v6552
          %v8161 = vunpack.c.l.b16 %v6553
          %v8162 = vunpack.c.h.b16 %v6553
          %v8163 = vunpack.c.l.b16 %v6554
          %v8164 = vunpack.c.h.b16 %v6554
          %v8165 = vunpack.c.l.b16 %v6555
          %v8166 = vunpack.c.h.b16 %v6555
          %v8167 = vunpack.c.l.b16 %v6556
          %v8168 = vunpack.c.h.b16 %v6556
          %v8169 = vunpack.c.l.b16 %v6557
          %v8170 = vunpack.c.h.b16 %v6557
          %v8171 = vunpack.c.l.b16 %v6558
          %v8172 = vunpack.c.h.b16 %v6558
          %v8173 = vunpack.c.l.b16 %v6559
          %v8174 = vunpack.c.h.b16 %v6559
          %v8175 = vunpack.c.l.b16 %v6560
          %v8176 = vunpack.c.h.b16 %v6560
          %v8177 = vunpack.c.l.b16 %v6561
          %v8178 = vunpack.c.h.b16 %v6561
          %v8179 = vunpack.c.l.b16 %v6562
          %v8180 = vunpack.c.h.b16 %v6562
          %v8181 = vunpack.c.l.b16 %v6563
          %v8182 = vunpack.c.h.b16 %v6563
          %v8183 = vunpack.c.l.b16 %v6564
          %v8184 = vunpack.c.h.b16 %v6564
          %v8185 = vunpack.c.l.b16 %v6565
          %v8186 = vunpack.c.h.b16 %v6565
          %v8187 = vunpack.c.l.b16 %v6566
          %v8188 = vunpack.c.h.b16 %v6566
          %v8189 = vunpack.c.l.b16 %v6567
          %v8190 = vunpack.c.h.b16 %v6567
          %v8191 = vunpack.c.l.b16 %v6568
          %v8192 = vunpack.c.h.b16 %v6568
          %v8193 = vunpack.c.l.b16 %v6569
          %v8194 = vunpack.c.h.b16 %v6569
          %v8195 = vunpack.c.l.b16 %v6570
          %v8196 = vunpack.c.h.b16 %v6570
          %v8197 = vunpack.c.l.b16 %v6571
          %v8198 = vunpack.c.h.b16 %v6571
          %v8199 = vunpack.c.l.b16 %v6572
          %v8200 = vunpack.c.h.b16 %v6572
          %v8201 = vunpack.c.l.b16 %v6573
          %v8202 = vunpack.c.h.b16 %v6573
          %v8203 = vunpack.c.l.b16 %v6574
          %v8204 = vunpack.c.h.b16 %v6574
          %v8205 = vunpack.c.l.b16 %v6575
          %v8206 = vunpack.c.h.b16 %v6575
          %v8207 = vunpack.c.l.b16 %v6576
          %v8208 = vunpack.c.h.b16 %v6576
          %v8209 = vunpack.c.l.b16 %v6577
          %v8210 = vunpack.c.h.b16 %v6577
          %v8211 = vunpack.c.l.b16 %v6578
          %v8212 = vunpack.c.h.b16 %v6578
          %v8213 = vunpack.c.l.b16 %v6579
          %v8214 = vunpack.c.h.b16 %v6579
          %v8215 = vunpack.c.l.b16 %v6580
          %v8216 = vunpack.c.h.b16 %v6580
          %v8217 = vunpack.c.l.b16 %v6581
          %v8218 = vunpack.c.h.b16 %v6581
          %v8219 = vunpack.c.l.b16 %v6582
          %v8220 = vunpack.c.h.b16 %v6582
          %v8221 = vunpack.c.l.b16 %v6583
          %v8222 = vunpack.c.h.b16 %v6583
          %v8223 = vunpack.c.l.b16 %v6584
          %v8224 = vunpack.c.h.b16 %v6584
          %v8225 = vunpack.c.l.b16 %v6585
          %v8226 = vunpack.c.h.b16 %v6585
          %v8227 = vunpack.c.l.b16 %v6586
          %v8228 = vunpack.c.h.b16 %v6586
          %v8229 = vunpack.c.l.b16 %v6587
          %v8230 = vunpack.c.h.b16 %v6587
          %v8231 = vunpack.c.l.b16 %v6588
          %v8232 = vunpack.c.h.b16 %v6588
          %v8233 = vunpack.c.l.b16 %v6589
          %v8234 = vunpack.c.h.b16 %v6589
          %v8235 = vunpack.c.l.b16 %v6590
          %v8236 = vunpack.c.h.b16 %v6590
          %v8237 = vunpack.c.l.b16 %v6591
          %v8238 = vunpack.c.h.b16 %v6591
          %v8239 = vunpack.c.l.b16 %v6592
          %v8240 = vunpack.c.h.b16 %v6592
          %v8241 = vunpack.c.l.b16 %v6593
          %v8242 = vunpack.c.h.b16 %v6593
          %v8243 = vunpack.c.l.b16 %v6594
          %v8244 = vunpack.c.h.b16 %v6594
          %v8245 = vunpack.c.l.b16 %v6595
          %v8246 = vunpack.c.h.b16 %v6595
          %v8247 = vunpack.c.l.b16 %v6596
          %v8248 = vunpack.c.h.b16 %v6596
          %v8249 = vunpack.c.l.b16 %v6597
          %v8250 = vunpack.c.h.b16 %v6597
          %v8251 = vunpack.c.l.b16 %v6598
          %v8252 = vunpack.c.h.b16 %v6598
          %v8253 = vunpack.c.l.b16 %v6599
          %v8254 = vunpack.c.h.b16 %v6599
          %v8255 = vunpack.c.l.b16 %v6600
          %v8256 = vunpack.c.h.b16 %v6600
          %v8257 = vunpack.c.l.b16 %v6601
          %v8258 = vunpack.c.h.b16 %v6601
          %v8259 = vunpack.c.l.b16 %v6602
          %v8260 = vunpack.c.h.b16 %v6602
          %v8261 = vunpack.c.l.b16 %v6603
          %v8262 = vunpack.c.h.b16 %v6603
          %v8263 = vunpack.c.l.b16 %v6604
          %v8264 = vunpack.c.h.b16 %v6604
          %v8265 = vunpack.c.l.b16 %v6605
          %v8266 = vunpack.c.h.b16 %v6605
          %v8267 = vunpack.c.l.b16 %v6606
          %v8268 = vunpack.c.h.b16 %v6606
          %v8269 = vunpack.c.l.b16 %v6607
          %v8270 = vunpack.c.h.b16 %v6607
          %v8271 = vunpack.c.l.b16 %v6608
          %v8272 = vunpack.c.h.b16 %v6608
          %v8273 = vunpack.c.l.b16 %v6609
          %v8274 = vunpack.c.h.b16 %v6609
          %v8275 = vunpack.c.l.b16 %v6610
          %v8276 = vunpack.c.h.b16 %v6610
          %v8277 = vunpack.c.l.b16 %v6611
          %v8278 = vunpack.c.h.b16 %v6611
          %v8279 = vunpack.c.l.b16 %v6612
          %v8280 = vunpack.c.h.b16 %v6612
          %v8281 = vunpack.c.l.b16 %v6613
          %v8282 = vunpack.c.h.b16 %v6613
          %v8283 = vunpack.c.l.b16 %v6614
          %v8284 = vunpack.c.h.b16 %v6614
          %v8285 = vunpack.c.l.b16 %v6615
          %v8286 = vunpack.c.h.b16 %v6615
          %v8287 = vunpack.c.l.b16 %v6616
          %v8288 = vunpack.c.h.b16 %v6616
          %v8289 = vunpack.c.l.b16 %v6617
          %v8290 = vunpack.c.h.b16 %v6617
          %v8291 = vunpack.c.l.b16 %v6618
          %v8292 = vunpack.c.h.b16 %v6618
          %v8293 = vunpack.c.l.b16 %v6619
          %v8294 = vunpack.c.h.b16 %v6619
          %v8295 = vunpack.c.l.b16 %v6620
          %v8296 = vunpack.c.h.b16 %v6620
          %v8297 = vunpack.c.l.b16 %v6621
          %v8298 = vunpack.c.h.b16 %v6621
          %v8299 = vunpack.c.l.b16 %v6622
          %v8300 = vunpack.c.h.b16 %v6622
          %v8301 = vunpack.c.l.b16 %v6623
          %v8302 = vunpack.c.h.b16 %v6623
          %v8303 = vunpack.c.l.b16 %v6624
          %v8304 = vunpack.c.h.b16 %v6624
          %v8305 = vunpack.c.l.b16 %v6625
          %v8306 = vunpack.c.h.b16 %v6625
          %v8307 = vunpack.c.l.b16 %v6626
          %v8308 = vunpack.c.h.b16 %v6626
          %v8309 = vunpack.c.l.b16 %v6627
          %v8310 = vunpack.c.h.b16 %v6627
          %v8311 = vunpack.c.l.b16 %v6628
          %v8312 = vunpack.c.h.b16 %v6628
          %v8313 = vunpack.c.l.b16 %v6629
          %v8314 = vunpack.c.h.b16 %v6629
          %v8315 = vunpack.c.l.b16 %v6630
          %v8316 = vunpack.c.h.b16 %v6630
          %v8317 = vunpack.c.l.b16 %v6631
          %v8318 = vunpack.c.h.b16 %v6631
          %v8319 = vunpack.c.l.b16 %v6632
          %v8320 = vunpack.c.h.b16 %v6632
          %v8321 = vunpack.c.l.b16 %v6633
          %v8322 = vunpack.c.h.b16 %v6633
          %v8323 = vunpack.c.l.b16 %v6634
          %v8324 = vunpack.c.h.b16 %v6634
          %v8325 = vunpack.c.l.b16 %v6635
          %v8326 = vunpack.c.h.b16 %v6635
          %v8327 = vunpack.c.l.b16 %v6636
          %v8328 = vunpack.c.h.b16 %v6636
          %v8329 = vunpack.c.l.b16 %v6637
          %v8330 = vunpack.c.h.b16 %v6637
          %v8331 = vunpack.c.l.b16 %v6638
          %v8332 = vunpack.c.h.b16 %v6638
          %v8333 = vunpack.c.l.b16 %v6639
          %v8334 = vunpack.c.h.b16 %v6639
          %v8335 = vunpack.c.l.b16 %v6640
          %v8336 = vunpack.c.h.b16 %v6640
          %v8337 = vunpack.c.l.b16 %v6641
          %v8338 = vunpack.c.h.b16 %v6641
          %v8339 = vunpack.c.l.b16 %v6642
          %v8340 = vunpack.c.h.b16 %v6642
          %v8341 = vunpack.c.l.b16 %v6643
          %v8342 = vunpack.c.h.b16 %v6643
          %v8343 = vunpack.c.l.b16 %v6644
          %v8344 = vunpack.c.h.b16 %v6644
          %v8345 = vunpack.c.l.b16 %v6645
          %v8346 = vunpack.c.h.b16 %v6645
          %v8347 = vunpack.c.l.b16 %v6646
          %v8348 = vunpack.c.h.b16 %v6646
          %v8349 = vunpack.c.l.b16 %v6647
          %v8350 = vunpack.c.h.b16 %v6647
          %v8351 = vunpack.c.l.b16 %v6648
          %v8352 = vunpack.c.h.b16 %v6648
          %v8353 = vunpack.c.l.b16 %v6649
          %v8354 = vunpack.c.h.b16 %v6649
          %v8355 = vunpack.c.l.b16 %v6650
          %v8356 = vunpack.c.h.b16 %v6650
          %v8357 = vunpack.c.l.b16 %v6651
          %v8358 = vunpack.c.h.b16 %v6651
          %v8359 = vunpack.c.l.b16 %v6652
          %v8360 = vunpack.c.h.b16 %v6652
          %v8361 = vunpack.c.l.b16 %v6653
          %v8362 = vunpack.c.h.b16 %v6653
          %v8363 = vunpack.c.l.b16 %v6654
          %v8364 = vunpack.c.h.b16 %v6654
          %v8365 = vunpack.c.l.b16 %v6655
          %v8366 = vunpack.c.h.b16 %v6655
          %v8367 = vunpack.c.l.b16 %v6656
          %v8368 = vunpack.c.h.b16 %v6656
          %v8369 = vunpack.c.l.b16 %v6657
          %v8370 = vunpack.c.h.b16 %v6657
          %v8371 = vunpack.c.l.b16 %v6658
          %v8372 = vunpack.c.h.b16 %v6658
          %v8373 = vunpack.c.l.b16 %v6659
          %v8374 = vunpack.c.h.b16 %v6659
          %v8375 = vunpack.c.l.b16 %v6660
          %v8376 = vunpack.c.h.b16 %v6660
          %v8377 = vunpack.c.l.b16 %v6661
          %v8378 = vunpack.c.h.b16 %v6661
          %v8379 = vunpack.c.l.b16 %v6662
          %v8380 = vunpack.c.h.b16 %v6662
          %v8381 = vunpack.c.l.b16 %v6663
          %v8382 = vunpack.c.h.b16 %v6663
          %v8383 = vunpack.c.l.b16 %v6664
          %v8384 = vunpack.c.h.b16 %v6664
          %v8385 = vunpack.c.l.b16 %v6665
          %v8386 = vunpack.c.h.b16 %v6665
          %v8387 = vunpack.c.l.b16 %v6666
          %v8388 = vunpack.c.h.b16 %v6666
          %v8389 = vunpack.c.l.b16 %v6667
          %v8390 = vunpack.c.h.b16 %v6667
          %v8391 = vunpack.c.l.b16 %v6668
          %v8392 = vunpack.c.h.b16 %v6668
          %v8393 = vpack.c.b16 %v7271, %v7265
          %v8394 = vpack.c.b16 %v7272, %v7266
          %v8395 = vpack.c.b16 %v7273, %v7267
          %v8396 = vpack.c.b16 %v7274, %v7268
          %v8397 = vpack.c.b16 %v7275, %v7269
          %v8398 = vpack.c.b16 %v7276, %v7270
          %v8399 = vpack.c.b16 %v7283, %v7277
          %v8400 = vpack.c.b16 %v7284, %v7278
          %v8401 = vpack.c.b16 %v7285, %v7279
          %v8402 = vpack.c.b16 %v7286, %v7280
          %v8403 = vpack.c.b16 %v7287, %v7281
          %v8404 = vpack.c.b16 %v7288, %v7282
          %v8405 = vpack.c.b16 %v7295, %v7289
          %v8406 = vpack.c.b16 %v7296, %v7290
          %v8407 = vpack.c.b16 %v7297, %v7291
          %v8408 = vpack.c.b16 %v7298, %v7292
          %v8409 = vpack.c.b16 %v7299, %v7293
          %v8410 = vpack.c.b16 %v7300, %v7294
          %v8411 = vpack.c.b16 %v7307, %v7301
          %v8412 = vpack.c.b16 %v7308, %v7302
          %v8413 = vpack.c.b16 %v7309, %v7303
          %v8414 = vpack.c.b16 %v7310, %v7304
          %v8415 = vpack.c.b16 %v7311, %v7305
          %v8416 = vpack.c.b16 %v7312, %v7306
          %v8417 = vpack.c.b16 %v7319, %v7313
          %v8418 = vpack.c.b16 %v7320, %v7314
          %v8419 = vpack.c.b16 %v7321, %v7315
          %v8420 = vpack.c.b16 %v7322, %v7316
          %v8421 = vpack.c.b16 %v7323, %v7317
          %v8422 = vpack.c.b16 %v7324, %v7318
          %v8423 = vpack.c.b16 %v7331, %v7325
          %v8424 = vpack.c.b16 %v7332, %v7326
          %v8425 = vpack.c.b16 %v7333, %v7327
          %v8426 = vpack.c.b16 %v7334, %v7328
          %v8427 = vpack.c.b16 %v7335, %v7329
          %v8428 = vpack.c.b16 %v7336, %v7330
          %v8429 = vpack.c.b16 %v7343, %v7337
          %v8430 = vpack.c.b16 %v7344, %v7338
          %v8431 = vpack.c.b16 %v7345, %v7339
          %v8432 = vpack.c.b16 %v7346, %v7340
          %v8433 = vpack.c.b16 %v7347, %v7341
          %v8434 = vpack.c.b16 %v7348, %v7342
          %v8435 = vpack.c.b16 %v7355, %v7349
          %v8436 = vpack.c.b16 %v7356, %v7350
          %v8437 = vpack.c.b16 %v7357, %v7351
          %v8438 = vpack.c.b16 %v7358, %v7352
          %v8439 = vpack.c.b16 %v7359, %v7353
          %v8440 = vpack.c.b16 %v7360, %v7354
          %v8441 = vpack.c.b16 %v7367, %v7361
          %v8442 = vpack.c.b16 %v7368, %v7362
          %v8443 = vpack.c.b16 %v7369, %v7363
          %v8444 = vpack.c.b16 %v7370, %v7364
          %v8445 = vpack.c.b16 %v7371, %v7365
          %v8446 = vpack.c.b16 %v7372, %v7366
          %v8447 = vpack.c.b16 %v7379, %v7373
          %v8448 = vpack.c.b16 %v7380, %v7374
          %v8449 = vpack.c.b16 %v7381, %v7375
          %v8450 = vpack.c.b16 %v7382, %v7376
          %v8451 = vpack.c.b16 %v7383, %v7377
          %v8452 = vpack.c.b16 %v7384, %v7378
          %v8453 = vpack.c.b16 %v7391, %v7385
          %v8454 = vpack.c.b16 %v7392, %v7386
          %v8455 = vpack.c.b16 %v7393, %v7387
          %v8456 = vpack.c.b16 %v7394, %v7388
          %v8457 = vpack.c.b16 %v7395, %v7389
          %v8458 = vpack.c.b16 %v7396, %v7390
          %v8459 = vpack.c.b16 %v7403, %v7397
          %v8460 = vpack.c.b16 %v7404, %v7398
          %v8461 = vpack.c.b16 %v7405, %v7399
          %v8462 = vpack.c.b16 %v7406, %v7400
          %v8463 = vpack.c.b16 %v7407, %v7401
          %v8464 = vpack.c.b16 %v7408, %v7402
          %v8465 = vpack.c.b16 %v7415, %v7409
          %v8466 = vpack.c.b16 %v7416, %v7410
          %v8467 = vpack.c.b16 %v7417, %v7411
          %v8468 = vpack.c.b16 %v7418, %v7412
          %v8469 = vpack.c.b16 %v7419, %v7413
          %v8470 = vpack.c.b16 %v7420, %v7414
          %v8471 = vpack.c.b16 %v7427, %v7421
          %v8472 = vpack.c.b16 %v7428, %v7422
          %v8473 = vpack.c.b16 %v7429, %v7423
          %v8474 = vpack.c.b16 %v7430, %v7424
          %v8475 = vpack.c.b16 %v7431, %v7425
          %v8476 = vpack.c.b16 %v7432, %v7426
          %v8477 = vpack.c.b16 %v7439, %v7433
          %v8478 = vpack.c.b16 %v7440, %v7434
          %v8479 = vpack.c.b16 %v7441, %v7435
          %v8480 = vpack.c.b16 %v7442, %v7436
          %v8481 = vpack.c.b16 %v7443, %v7437
          %v8482 = vpack.c.b16 %v7444, %v7438
          %v8483 = vpack.c.b16 %v7451, %v7445
          %v8484 = vpack.c.b16 %v7452, %v7446
          %v8485 = vpack.c.b16 %v7453, %v7447
          %v8486 = vpack.c.b16 %v7454, %v7448
          %v8487 = vpack.c.b16 %v7455, %v7449
          %v8488 = vpack.c.b16 %v7456, %v7450
          %v8489 = vpack.c.b16 %v7463, %v7457
          %v8490 = vpack.c.b16 %v7464, %v7458
          %v8491 = vpack.c.b16 %v7465, %v7459
          %v8492 = vpack.c.b16 %v7466, %v7460
          %v8493 = vpack.c.b16 %v7467, %v7461
          %v8494 = vpack.c.b16 %v7468, %v7462
          %v8495 = vpack.c.b16 %v7475, %v7469
          %v8496 = vpack.c.b16 %v7476, %v7470
          %v8497 = vpack.c.b16 %v7477, %v7471
          %v8498 = vpack.c.b16 %v7478, %v7472
          %v8499 = vpack.c.b16 %v7479, %v7473
          %v8500 = vpack.c.b16 %v7480, %v7474
          %v8501 = vpack.c.b16 %v7487, %v7481
          %v8502 = vpack.c.b16 %v7488, %v7482
          %v8503 = vpack.c.b16 %v7489, %v7483
          %v8504 = vpack.c.b16 %v7490, %v7484
          %v8505 = vpack.c.b16 %v7491, %v7485
          %v8506 = vpack.c.b16 %v7492, %v7486
          %v8507 = vpack.c.b16 %v7499, %v7493
          %v8508 = vpack.c.b16 %v7500, %v7494
          %v8509 = vpack.c.b16 %v7501, %v7495
          %v8510 = vpack.c.b16 %v7502, %v7496
          %v8511 = vpack.c.b16 %v7503, %v7497
          %v8512 = vpack.c.b16 %v7504, %v7498
          %v8513 = vpack.c.b16 %v7511, %v7505
          %v8514 = vpack.c.b16 %v7512, %v7506
          %v8515 = vpack.c.b16 %v7513, %v7507
          %v8516 = vpack.c.b16 %v7514, %v7508
          %v8517 = vpack.c.b16 %v7515, %v7509
          %v8518 = vpack.c.b16 %v7516, %v7510
          %v8519 = vpack.c.b16 %v7523, %v7517
          %v8520 = vpack.c.b16 %v7524, %v7518
          %v8521 = vpack.c.b16 %v7525, %v7519
          %v8522 = vpack.c.b16 %v7526, %v7520
          %v8523 = vpack.c.b16 %v7527, %v7521
          %v8524 = vpack.c.b16 %v7528, %v7522
          %v8525 = vpack.c.b16 %v7535, %v7529
          %v8526 = vpack.c.b16 %v7536, %v7530
          %v8527 = vpack.c.b16 %v7537, %v7531
          %v8528 = vpack.c.b16 %v7538, %v7532
          %v8529 = vpack.c.b16 %v7539, %v7533
          %v8530 = vpack.c.b16 %v7540, %v7534
          %v8531 = vpack.c.b16 %v7547, %v7541
          %v8532 = vpack.c.b16 %v7548, %v7542
          %v8533 = vpack.c.b16 %v7549, %v7543
          %v8534 = vpack.c.b16 %v7550, %v7544
          %v8535 = vpack.c.b16 %v7551, %v7545
          %v8536 = vpack.c.b16 %v7552, %v7546
          %v8537 = vpack.c.b16 %v7559, %v7553
          %v8538 = vpack.c.b16 %v7560, %v7554
          %v8539 = vpack.c.b16 %v7561, %v7555
          %v8540 = vpack.c.b16 %v7562, %v7556
          %v8541 = vpack.c.b16 %v7563, %v7557
          %v8542 = vpack.c.b16 %v7564, %v7558
          %v8543 = vpack.c.b16 %v7571, %v7565
          %v8544 = vpack.c.b16 %v7572, %v7566
          %v8545 = vpack.c.b16 %v7573, %v7567
          %v8546 = vpack.c.b16 %v7574, %v7568
          %v8547 = vpack.c.b16 %v7575, %v7569
          %v8548 = vpack.c.b16 %v7576, %v7570
          %v8549 = vpack.c.b16 %v7583, %v7577
          %v8550 = vpack.c.b16 %v7584, %v7578
          %v8551 = vpack.c.b16 %v7585, %v7579
          %v8552 = vpack.c.b16 %v7586, %v7580
          %v8553 = vpack.c.b16 %v7587, %v7581
          %v8554 = vpack.c.b16 %v7588, %v7582
          %v8555 = vpack.c.b16 %v7595, %v7589
          %v8556 = vpack.c.b16 %v7596, %v7590
          %v8557 = vpack.c.b16 %v7597, %v7591
          %v8558 = vpack.c.b16 %v7598, %v7592
          %v8559 = vpack.c.b16 %v7599, %v7593
          %v8560 = vpack.c.b16 %v7600, %v7594
          %v8561 = vpack.c.b16 %v7607, %v7601
          %v8562 = vpack.c.b16 %v7608, %v7602
          %v8563 = vpack.c.b16 %v7609, %v7603
          %v8564 = vpack.c.b16 %v7610, %v7604
          %v8565 = vpack.c.b16 %v7611, %v7605
          %v8566 = vpack.c.b16 %v7612, %v7606
          %v8567 = vpack.c.b16 %v7619, %v7613
          %v8568 = vpack.c.b16 %v7620, %v7614
          %v8569 = vpack.c.b16 %v7621, %v7615
          %v8570 = vpack.c.b16 %v7622, %v7616
          %v8571 = vpack.c.b16 %v7623, %v7617
          %v8572 = vpack.c.b16 %v7624, %v7618
          %v8573 = vpack.c.b16 %v7631, %v7625
          %v8574 = vpack.c.b16 %v7632, %v7626
          %v8575 = vpack.c.b16 %v7633, %v7627
          %v8576 = vpack.c.b16 %v7634, %v7628
          %v8577 = vpack.c.b16 %v7635, %v7629
          %v8578 = vpack.c.b16 %v7636, %v7630
          %v8579 = vpack.c.b16 %v7643, %v7637
          %v8580 = vpack.c.b16 %v7644, %v7638
          %v8581 = vpack.c.b16 %v7645, %v7639
          %v8582 = vpack.c.b16 %v7646, %v7640
          %v8583 = vpack.c.b16 %v7647, %v7641
          %v8584 = vpack.c.b16 %v7648, %v7642
          %v8585 = vpack.c.b16 %v7655, %v7649
          %v8586 = vpack.c.b16 %v7656, %v7650
          %v8587 = vpack.c.b16 %v7657, %v7651
          %v8588 = vpack.c.b16 %v7658, %v7652
          %v8589 = vpack.c.b16 %v7659, %v7653
          %v8590 = vpack.c.b16 %v7660, %v7654
          %v8591 = vpack.c.b16 %v7667, %v7661
          %v8592 = vpack.c.b16 %v7668, %v7662
          %v8593 = vpack.c.b16 %v7669, %v7663
          %v8594 = vpack.c.b16 %v7670, %v7664
          %v8595 = vpack.c.b16 %v7671, %v7665
          %v8596 = vpack.c.b16 %v7672, %v7666
          %v8597 = vpack.c.b16 %v7679, %v7673
          %v8598 = vpack.c.b16 %v7680, %v7674
          %v8599 = vpack.c.b16 %v7681, %v7675
          %v8600 = vpack.c.b16 %v7682, %v7676
          %v8601 = vpack.c.b16 %v7683, %v7677
          %v8602 = vpack.c.b16 %v7684, %v7678
          %v8603 = vpack.c.b16 %v7691, %v7685
          %v8604 = vpack.c.b16 %v7692, %v7686
          %v8605 = vpack.c.b16 %v7693, %v7687
          %v8606 = vpack.c.b16 %v7694, %v7688
          %v8607 = vpack.c.b16 %v7695, %v7689
          %v8608 = vpack.c.b16 %v7696, %v7690
          %v8609 = vpack.c.b16 %v7703, %v7697
          %v8610 = vpack.c.b16 %v7704, %v7698
          %v8611 = vpack.c.b16 %v7705, %v7699
          %v8612 = vpack.c.b16 %v7706, %v7700
          %v8613 = vpack.c.b16 %v7707, %v7701
          %v8614 = vpack.c.b16 %v7708, %v7702
          %v8615 = vpack.c.b16 %v7715, %v7709
          %v8616 = vpack.c.b16 %v7716, %v7710
          %v8617 = vpack.c.b16 %v7717, %v7711
          %v8618 = vpack.c.b16 %v7718, %v7712
          %v8619 = vpack.c.b16 %v7719, %v7713
          %v8620 = vpack.c.b16 %v7720, %v7714
          %v8621 = vpack.c.b16 %v7727, %v7721
          %v8622 = vpack.c.b16 %v7728, %v7722
          %v8623 = vpack.c.b16 %v7729, %v7723
          %v8624 = vpack.c.b16 %v7730, %v7724
          %v8625 = vpack.c.b16 %v7731, %v7725
          %v8626 = vpack.c.b16 %v7732, %v7726
          %v8627 = vpack.c.b16 %v7739, %v7733
          %v8628 = vpack.c.b16 %v7740, %v7734
          %v8629 = vpack.c.b16 %v7741, %v7735
          %v8630 = vpack.c.b16 %v7742, %v7736
          %v8631 = vpack.c.b16 %v7743, %v7737
          %v8632 = vpack.c.b16 %v7744, %v7738
          %v8633 = vpack.c.b16 %v7751, %v7745
          %v8634 = vpack.c.b16 %v7752, %v7746
          %v8635 = vpack.c.b16 %v7753, %v7747
          %v8636 = vpack.c.b16 %v7754, %v7748
          %v8637 = vpack.c.b16 %v7755, %v7749
          %v8638 = vpack.c.b16 %v7756, %v7750
          %v8639 = vpack.c.b16 %v7763, %v7757
          %v8640 = vpack.c.b16 %v7764, %v7758
          %v8641 = vpack.c.b16 %v7765, %v7759
          %v8642 = vpack.c.b16 %v7766, %v7760
          %v8643 = vpack.c.b16 %v7767, %v7761
          %v8644 = vpack.c.b16 %v7768, %v7762
          %v8645 = vpack.c.b16 %v7775, %v7769
          %v8646 = vpack.c.b16 %v7776, %v7770
          %v8647 = vpack.c.b16 %v7777, %v7771
          %v8648 = vpack.c.b16 %v7778, %v7772
          %v8649 = vpack.c.b16 %v7779, %v7773
          %v8650 = vpack.c.b16 %v7780, %v7774
          %v8651 = vpack.c.b16 %v7787, %v7781
          %v8652 = vpack.c.b16 %v7788, %v7782
          %v8653 = vpack.c.b16 %v7789, %v7783
          %v8654 = vpack.c.b16 %v7790, %v7784
          %v8655 = vpack.c.b16 %v7791, %v7785
          %v8656 = vpack.c.b16 %v7792, %v7786
          %v8657 = vpack.c.b16 %v7799, %v7793
          %v8658 = vpack.c.b16 %v7800, %v7794
          %v8659 = vpack.c.b16 %v7801, %v7795
          %v8660 = vpack.c.b16 %v7802, %v7796
          %v8661 = vpack.c.b16 %v7803, %v7797
          %v8662 = vpack.c.b16 %v7804, %v7798
          %v8663 = vpack.c.b16 %v7811, %v7805
          %v8664 = vpack.c.b16 %v7812, %v7806
          %v8665 = vpack.c.b16 %v7813, %v7807
          %v8666 = vpack.c.b16 %v7814, %v7808
          %v8667 = vpack.c.b16 %v7815, %v7809
          %v8668 = vpack.c.b16 %v7816, %v7810
          %v8669 = vpack.c.b16 %v7823, %v7817
          %v8670 = vpack.c.b16 %v7824, %v7818
          %v8671 = vpack.c.b16 %v7825, %v7819
          %v8672 = vpack.c.b16 %v7826, %v7820
          %v8673 = vpack.c.b16 %v7827, %v7821
          %v8674 = vpack.c.b16 %v7828, %v7822
          %v8675 = vpack.c.b16 %v7835, %v7829
          %v8676 = vpack.c.b16 %v7836, %v7830
          %v8677 = vpack.c.b16 %v7837, %v7831
          %v8678 = vpack.c.b16 %v7838, %v7832
          %v8679 = vpack.c.b16 %v7839, %v7833
          %v8680 = vpack.c.b16 %v7840, %v7834
          %v8681 = vpack.c.b16 %v7847, %v7841
          %v8682 = vpack.c.b16 %v7848, %v7842
          %v8683 = vpack.c.b16 %v7849, %v7843
          %v8684 = vpack.c.b16 %v7850, %v7844
          %v8685 = vpack.c.b16 %v7851, %v7845
          %v8686 = vpack.c.b16 %v7852, %v7846
          %v8687 = vpack.c.b16 %v7859, %v7853
          %v8688 = vpack.c.b16 %v7860, %v7854
          %v8689 = vpack.c.b16 %v7861, %v7855
          %v8690 = vpack.c.b16 %v7862, %v7856
          %v8691 = vpack.c.b16 %v7863, %v7857
          %v8692 = vpack.c.b16 %v7864, %v7858
          %v8693 = vpack.c.b16 %v7871, %v7865
          %v8694 = vpack.c.b16 %v7872, %v7866
          %v8695 = vpack.c.b16 %v7873, %v7867
          %v8696 = vpack.c.b16 %v7874, %v7868
          %v8697 = vpack.c.b16 %v7875, %v7869
          %v8698 = vpack.c.b16 %v7876, %v7870
          %v8699 = vpack.c.b16 %v7883, %v7877
          %v8700 = vpack.c.b16 %v7884, %v7878
          %v8701 = vpack.c.b16 %v7885, %v7879
          %v8702 = vpack.c.b16 %v7886, %v7880
          %v8703 = vpack.c.b16 %v7887, %v7881
          %v8704 = vpack.c.b16 %v7888, %v7882
          %v8705 = vpack.c.b16 %v7895, %v7889
          %v8706 = vpack.c.b16 %v7896, %v7890
          %v8707 = vpack.c.b16 %v7897, %v7891
          %v8708 = vpack.c.b16 %v7898, %v7892
          %v8709 = vpack.c.b16 %v7899, %v7893
          %v8710 = vpack.c.b16 %v7900, %v7894
          %v8711 = vpack.c.b16 %v7907, %v7901
          %v8712 = vpack.c.b16 %v7908, %v7902
          %v8713 = vpack.c.b16 %v7909, %v7903
          %v8714 = vpack.c.b16 %v7910, %v7904
          %v8715 = vpack.c.b16 %v7911, %v7905
          %v8716 = vpack.c.b16 %v7912, %v7906
          %v8717 = vpack.c.b16 %v7919, %v7913
          %v8718 = vpack.c.b16 %v7920, %v7914
          %v8719 = vpack.c.b16 %v7921, %v7915
          %v8720 = vpack.c.b16 %v7922, %v7916
          %v8721 = vpack.c.b16 %v7923, %v7917
          %v8722 = vpack.c.b16 %v7924, %v7918
          %v8723 = vpack.c.b16 %v7931, %v7925
          %v8724 = vpack.c.b16 %v7932, %v7926
          %v8725 = vpack.c.b16 %v7933, %v7927
          %v8726 = vpack.c.b16 %v7934, %v7928
          %v8727 = vpack.c.b16 %v7935, %v7929
          %v8728 = vpack.c.b16 %v7936, %v7930
          %v8729 = vpack.c.b16 %v7943, %v7937
          %v8730 = vpack.c.b16 %v7944, %v7938
          %v8731 = vpack.c.b16 %v7945, %v7939
          %v8732 = vpack.c.b16 %v7946, %v7940
          %v8733 = vpack.c.b16 %v7947, %v7941
          %v8734 = vpack.c.b16 %v7948, %v7942
          %v8735 = vpack.c.b16 %v7955, %v7949
          %v8736 = vpack.c.b16 %v7956, %v7950
          %v8737 = vpack.c.b16 %v7957, %v7951
          %v8738 = vpack.c.b16 %v7958, %v7952
          %v8739 = vpack.c.b16 %v7959, %v7953
          %v8740 = vpack.c.b16 %v7960, %v7954
          %v8741 = vpack.c.b16 %v7967, %v7961
          %v8742 = vpack.c.b16 %v7968, %v7962
          %v8743 = vpack.c.b16 %v7969, %v7963
          %v8744 = vpack.c.b16 %v7970, %v7964
          %v8745 = vpack.c.b16 %v7971, %v7965
          %v8746 = vpack.c.b16 %v7972, %v7966
          %v8747 = vpack.c.b16 %v7979, %v7973
          %v8748 = vpack.c.b16 %v7980, %v7974
          %v8749 = vpack.c.b16 %v7981, %v7975
          %v8750 = vpack.c.b16 %v7982, %v7976
          %v8751 = vpack.c.b16 %v7983, %v7977
          %v8752 = vpack.c.b16 %v7984, %v7978
          %v8753 = vpack.c.b16 %v7991, %v7985
          %v8754 = vpack.c.b16 %v7992, %v7986
          %v8755 = vpack.c.b16 %v7993, %v7987
          %v8756 = vpack.c.b16 %v7994, %v7988
          %v8757 = vpack.c.b16 %v7995, %v7989
          %v8758 = vpack.c.b16 %v7996, %v7990
          %v8759 = vpack.c.b16 %v8003, %v7997
          %v8760 = vpack.c.b16 %v8004, %v7998
          %v8761 = vpack.c.b16 %v8005, %v7999
          %v8762 = vpack.c.b16 %v8006, %v8000
          %v8763 = vpack.c.b16 %v8007, %v8001
          %v8764 = vpack.c.b16 %v8008, %v8002
          %v8765 = vpack.c.b16 %v8015, %v8009
          %v8766 = vpack.c.b16 %v8016, %v8010
          %v8767 = vpack.c.b16 %v8017, %v8011
          %v8768 = vpack.c.b16 %v8018, %v8012
          %v8769 = vpack.c.b16 %v8019, %v8013
          %v8770 = vpack.c.b16 %v8020, %v8014
          %v8771 = vpack.c.b16 %v8027, %v8021
          %v8772 = vpack.c.b16 %v8028, %v8022
          %v8773 = vpack.c.b16 %v8029, %v8023
          %v8774 = vpack.c.b16 %v8030, %v8024
          %v8775 = vpack.c.b16 %v8031, %v8025
          %v8776 = vpack.c.b16 %v8032, %v8026
          %v8777 = vpack.c.b16 %v8039, %v8033
          %v8778 = vpack.c.b16 %v8040, %v8034
          %v8779 = vpack.c.b16 %v8041, %v8035
          %v8780 = vpack.c.b16 %v8042, %v8036
          %v8781 = vpack.c.b16 %v8043, %v8037
          %v8782 = vpack.c.b16 %v8044, %v8038
          %v8783 = vpack.c.b16 %v8051, %v8045
          %v8784 = vpack.c.b16 %v8052, %v8046
          %v8785 = vpack.c.b16 %v8053, %v8047
          %v8786 = vpack.c.b16 %v8054, %v8048
          %v8787 = vpack.c.b16 %v8055, %v8049
          %v8788 = vpack.c.b16 %v8056, %v8050
          %v8789 = vpack.c.b16 %v8063, %v8057
          %v8790 = vpack.c.b16 %v8064, %v8058
          %v8791 = vpack.c.b16 %v8065, %v8059
          %v8792 = vpack.c.b16 %v8066, %v8060
          %v8793 = vpack.c.b16 %v8067, %v8061
          %v8794 = vpack.c.b16 %v8068, %v8062
          %v8795 = vpack.c.b16 %v8075, %v8069
          %v8796 = vpack.c.b16 %v8076, %v8070
          %v8797 = vpack.c.b16 %v8077, %v8071
          %v8798 = vpack.c.b16 %v8078, %v8072
          %v8799 = vpack.c.b16 %v8079, %v8073
          %v8800 = vpack.c.b16 %v8080, %v8074
          %v8801 = vpack.c.b16 %v8087, %v8081
          %v8802 = vpack.c.b16 %v8088, %v8082
          %v8803 = vpack.c.b16 %v8089, %v8083
          %v8804 = vpack.c.b16 %v8090, %v8084
          %v8805 = vpack.c.b16 %v8091, %v8085
          %v8806 = vpack.c.b16 %v8092, %v8086
          %v8807 = vpack.c.b16 %v8099, %v8093
          %v8808 = vpack.c.b16 %v8100, %v8094
          %v8809 = vpack.c.b16 %v8101, %v8095
          %v8810 = vpack.c.b16 %v8102, %v8096
          %v8811 = vpack.c.b16 %v8103, %v8097
          %v8812 = vpack.c.b16 %v8104, %v8098
          %v8813 = vpack.c.b16 %v8111, %v8105
          %v8814 = vpack.c.b16 %v8112, %v8106
          %v8815 = vpack.c.b16 %v8113, %v8107
          %v8816 = vpack.c.b16 %v8114, %v8108
          %v8817 = vpack.c.b16 %v8115, %v8109
          %v8818 = vpack.c.b16 %v8116, %v8110
          %v8819 = vpack.c.b16 %v8123, %v8117
          %v8820 = vpack.c.b16 %v8124, %v8118
          %v8821 = vpack.c.b16 %v8125, %v8119
          %v8822 = vpack.c.b16 %v8126, %v8120
          %v8823 = vpack.c.b16 %v8127, %v8121
          %v8824 = vpack.c.b16 %v8128, %v8122
          %v8825 = vpack.c.b16 %v8135, %v8129
          %v8826 = vpack.c.b16 %v8136, %v8130
          %v8827 = vpack.c.b16 %v8137, %v8131
          %v8828 = vpack.c.b16 %v8138, %v8132
          %v8829 = vpack.c.b16 %v8139, %v8133
          %v8830 = vpack.c.b16 %v8140, %v8134
          %v8831 = vpack.c.b16 %v8147, %v8141
          %v8832 = vpack.c.b16 %v8148, %v8142
          %v8833 = vpack.c.b16 %v8149, %v8143
          %v8834 = vpack.c.b16 %v8150, %v8144
          %v8835 = vpack.c.b16 %v8151, %v8145
          %v8836 = vpack.c.b16 %v8152, %v8146
          %v8837 = vpack.c.b16 %v8159, %v8153
          %v8838 = vpack.c.b16 %v8160, %v8154
          %v8839 = vpack.c.b16 %v8161, %v8155
          %v8840 = vpack.c.b16 %v8162, %v8156
          %v8841 = vpack.c.b16 %v8163, %v8157
          %v8842 = vpack.c.b16 %v8164, %v8158
          %v8843 = vpack.c.b16 %v8171, %v8165
          %v8844 = vpack.c.b16 %v8172, %v8166
          %v8845 = vpack.c.b16 %v8173, %v8167
          %v8846 = vpack.c.b16 %v8174, %v8168
          %v8847 = vpack.c.b16 %v8175, %v8169
          %v8848 = vpack.c.b16 %v8176, %v8170
          %v8849 = vpack.c.b16 %v8183, %v8177
          %v8850 = vpack.c.b16 %v8184, %v8178
          %v8851 = vpack.c.b16 %v8185, %v8179
          %v8852 = vpack.c.b16 %v8186, %v8180
          %v8853 = vpack.c.b16 %v8187, %v8181
          %v8854 = vpack.c.b16 %v8188, %v8182
          %v8855 = vpack.c.b16 %v8195, %v8189
          %v8856 = vpack.c.b16 %v8196, %v8190
          %v8857 = vpack.c.b16 %v8197, %v8191
          %v8858 = vpack.c.b16 %v8198, %v8192
          %v8859 = vpack.c.b16 %v8199, %v8193
          %v8860 = vpack.c.b16 %v8200, %v8194
          %v8861 = vpack.c.b16 %v8207, %v8201
          %v8862 = vpack.c.b16 %v8208, %v8202
          %v8863 = vpack.c.b16 %v8209, %v8203
          %v8864 = vpack.c.b16 %v8210, %v8204
          %v8865 = vpack.c.b16 %v8211, %v8205
          %v8866 = vpack.c.b16 %v8212, %v8206
          %v8867 = vpack.c.b16 %v8219, %v8213
          %v8868 = vpack.c.b16 %v8220, %v8214
          %v8869 = vpack.c.b16 %v8221, %v8215
          %v8870 = vpack.c.b16 %v8222, %v8216
          %v8871 = vpack.c.b16 %v8223, %v8217
          %v8872 = vpack.c.b16 %v8224, %v8218
          %v8873 = vpack.c.b16 %v8231, %v8225
          %v8874 = vpack.c.b16 %v8232, %v8226
          %v8875 = vpack.c.b16 %v8233, %v8227
          %v8876 = vpack.c.b16 %v8234, %v8228
          %v8877 = vpack.c.b16 %v8235, %v8229
          %v8878 = vpack.c.b16 %v8236, %v8230
          %v8879 = vpack.c.b16 %v8243, %v8237
          %v8880 = vpack.c.b16 %v8244, %v8238
          %v8881 = vpack.c.b16 %v8245, %v8239
          %v8882 = vpack.c.b16 %v8246, %v8240
          %v8883 = vpack.c.b16 %v8247, %v8241
          %v8884 = vpack.c.b16 %v8248, %v8242
          %v8885 = vpack.c.b16 %v8255, %v8249
          %v8886 = vpack.c.b16 %v8256, %v8250
          %v8887 = vpack.c.b16 %v8257, %v8251
          %v8888 = vpack.c.b16 %v8258, %v8252
          %v8889 = vpack.c.b16 %v8259, %v8253
          %v8890 = vpack.c.b16 %v8260, %v8254
          %v8891 = vpack.c.b16 %v8267, %v8261
          %v8892 = vpack.c.b16 %v8268, %v8262
          %v8893 = vpack.c.b16 %v8269, %v8263
          %v8894 = vpack.c.b16 %v8270, %v8264
          %v8895 = vpack.c.b16 %v8271, %v8265
          %v8896 = vpack.c.b16 %v8272, %v8266
          %v8897 = vpack.c.b16 %v8279, %v8273
          %v8898 = vpack.c.b16 %v8280, %v8274
          %v8899 = vpack.c.b16 %v8281, %v8275
          %v8900 = vpack.c.b16 %v8282, %v8276
          %v8901 = vpack.c.b16 %v8283, %v8277
          %v8902 = vpack.c.b16 %v8284, %v8278
          %v8903 = vpack.c.b16 %v8291, %v8285
          %v8904 = vpack.c.b16 %v8292, %v8286
          %v8905 = vpack.c.b16 %v8293, %v8287
          %v8906 = vpack.c.b16 %v8294, %v8288
          %v8907 = vpack.c.b16 %v8295, %v8289
          %v8908 = vpack.c.b16 %v8296, %v8290
          %v8909 = vpack.c.b16 %v8303, %v8297
          %v8910 = vpack.c.b16 %v8304, %v8298
          %v8911 = vpack.c.b16 %v8305, %v8299
          %v8912 = vpack.c.b16 %v8306, %v8300
          %v8913 = vpack.c.b16 %v8307, %v8301
          %v8914 = vpack.c.b16 %v8308, %v8302
          %v8915 = vpack.c.b16 %v8315, %v8309
          %v8916 = vpack.c.b16 %v8316, %v8310
          %v8917 = vpack.c.b16 %v8317, %v8311
          %v8918 = vpack.c.b16 %v8318, %v8312
          %v8919 = vpack.c.b16 %v8319, %v8313
          %v8920 = vpack.c.b16 %v8320, %v8314
          %v8921 = vpack.c.b16 %v8327, %v8321
          %v8922 = vpack.c.b16 %v8328, %v8322
          %v8923 = vpack.c.b16 %v8329, %v8323
          %v8924 = vpack.c.b16 %v8330, %v8324
          %v8925 = vpack.c.b16 %v8331, %v8325
          %v8926 = vpack.c.b16 %v8332, %v8326
          %v8927 = vpack.c.b16 %v8339, %v8333
          %v8928 = vpack.c.b16 %v8340, %v8334
          %v8929 = vpack.c.b16 %v8341, %v8335
          %v8930 = vpack.c.b16 %v8342, %v8336
          %v8931 = vpack.c.b16 %v8343, %v8337
          %v8932 = vpack.c.b16 %v8344, %v8338
          %v8933 = vpack.c.b16 %v8351, %v8345
          %v8934 = vpack.c.b16 %v8352, %v8346
          %v8935 = vpack.c.b16 %v8353, %v8347
          %v8936 = vpack.c.b16 %v8354, %v8348
          %v8937 = vpack.c.b16 %v8355, %v8349
          %v8938 = vpack.c.b16 %v8356, %v8350
          %v8939 = vpack.c.b16 %v8363, %v8357
          %v8940 = vpack.c.b16 %v8364, %v8358
          %v8941 = vpack.c.b16 %v8365, %v8359
          %v8942 = vpack.c.b16 %v8366, %v8360
          %v8943 = vpack.c.b16 %v8367, %v8361
          %v8944 = vpack.c.b16 %v8368, %v8362
          %v8945 = vpack.c.b16 %v8375, %v8369
          %v8946 = vpack.c.b16 %v8376, %v8370
          %v8947 = vpack.c.b16 %v8377, %v8371
          %v8948 = vpack.c.b16 %v8378, %v8372
          %v8949 = vpack.c.b16 %v8379, %v8373
          %v8950 = vpack.c.b16 %v8380, %v8374
          %v8951 = vpack.c.b16 %v8387, %v8381
          %v8952 = vpack.c.b16 %v8388, %v8382
          %v8953 = vpack.c.b16 %v8389, %v8383
          %v8954 = vpack.c.b16 %v8390, %v8384
          %v8955 = vpack.c.b16 %v8391, %v8385
          %v8956 = vpack.c.b16 %v8392, %v8386
          %vm9515 = vcmask 752640
          %v9517 = vsel %vm9515, %v6104, 0
          %vm9519 = vcmask 1045504
          %v9521 = vsel %vm9519, %v8951, 0
          %v9524 = vsel %vm9519, %v8952, 0
          %v9527 = vsel %vm9519, %v8953, 0
          %v9530 = vsel %vm9519, %v8954, 0
          %v9533 = vsel %vm9519, %v8955, 0
          %v9536 = vsel %vm9519, %v8956, 0
          %9538 = vmatprep.subr.bf16.mxu0 %v8436
          %9539 = vmatpush1.bf16.msra.mxu0 %v8435
          %9540 = vmatprep.subr.bf16.mxu0 %v8430
          %9541 = vmatpush1.bf16.msra.mxu0 %v8429
          %9542 = vmatprep.subr.bf16.mxu0 %v8424
          %9543 = vmatpush1.bf16.msra.mxu0 %v8423
          %9544 = vmatprep.subr.bf16.mxu0 %v8418
          %9545 = vmatpush1.bf16.msra.mxu0 %v8417
          %9546 = vmatprep.subr.bf16.mxu0 %v8412
          %9547 = vmatpush1.bf16.msra.mxu0 %v8411
          %9548 = vmatprep.subr.bf16.mxu0 %v8406
          %9549 = vmatpush1.bf16.msra.mxu0 %v8405
          %9550 = vmatprep.subr.bf16.mxu0 %v8400
          %9551 = vmatpush1.bf16.msra.mxu0 %v8399
          %9552 = vmatprep.subr.bf16.mxu0 %v8394
          %9553 = vmatpush1.bf16.msra.mxu0 %v8393
          %9554 = vmatprep.subr.bf16.mxu0 %v8484
          %9555 = vmatpush2.bf16.msra.mxu0 %v8483
          %9556 = vmatprep.subr.bf16.mxu0 %v8478
          %9557 = vmatpush2.bf16.msra.mxu0 %v8477
          %9558 = vmatprep.subr.bf16.mxu0 %v8472
          %9559 = vmatpush2.bf16.msra.mxu0 %v8471
          %9560 = vmatprep.subr.bf16.mxu0 %v8466
          %9561 = vmatpush2.bf16.msra.mxu0 %v8465
          %9562 = vmatprep.subr.bf16.mxu0 %v8460
          %9563 = vmatpush2.bf16.msra.mxu0 %v8459
          %9564 = vmatprep.subr.bf16.mxu0 %v8454
          %9565 = vmatpush2.bf16.msra.mxu0 %v8453
          %9566 = vmatprep.subr.bf16.mxu0 %v8448
          %9567 = vmatpush2.bf16.msra.mxu0 %v8447
          %9568 = vmatprep.subr.bf16.mxu0 %v8442
          %9569 = vmatpush2.bf16.msra.mxu0 %v8441
          %9570 = vmatprep.mubr.bf16.mxu0 %v6094
          %9571 = vmatmul.mubr.bf16.gmra.mxu0 %v6093
          %v9572 = vpop.f32.mrf.mxu0
          %v9573 = vadd.f32 %v6674, %v9572
          %v9574 = vpop.f32.mrf.mxu0
          %v9575 = vadd.f32 %v6678, %v9574
          %v9576 = vpop.f32.mrf.mxu0
          %v9577 = vpop.f32.mrf.mxu0
          %9578 = vdwg.mxu0
          %9579 = vmatprep.subr.bf16.mxu0 %v8532
          %9580 = vmatpush1.bf16.msra.mxu0 %v8531
          %9581 = vmatprep.subr.bf16.mxu0 %v8526
          %9582 = vmatpush1.bf16.msra.mxu0 %v8525
          %9583 = vmatprep.subr.bf16.mxu0 %v8520
          %9584 = vmatpush1.bf16.msra.mxu0 %v8519
          %9585 = vmatprep.subr.bf16.mxu0 %v8514
          %9586 = vmatpush1.bf16.msra.mxu0 %v8513
          %9587 = vmatprep.subr.bf16.mxu0 %v8508
          %9588 = vmatpush1.bf16.msra.mxu0 %v8507
          %9589 = vmatprep.subr.bf16.mxu0 %v8502
          %9590 = vmatpush1.bf16.msra.mxu0 %v8501
          %9591 = vmatprep.subr.bf16.mxu0 %v8496
          %9592 = vmatpush1.bf16.msra.mxu0 %v8495
          %9593 = vmatprep.subr.bf16.mxu0 %v8490
          %9594 = vmatpush1.bf16.msra.mxu0 %v8489
          %9595 = vmatprep.subr.bf16.mxu0 %v8580
          %9596 = vmatpush2.bf16.msra.mxu0 %v8579
          %9597 = vmatprep.subr.bf16.mxu0 %v8574
          %9598 = vmatpush2.bf16.msra.mxu0 %v8573
          %9599 = vmatprep.subr.bf16.mxu0 %v8568
          %9600 = vmatpush2.bf16.msra.mxu0 %v8567
          %9601 = vmatprep.subr.bf16.mxu0 %v8562
          %9602 = vmatpush2.bf16.msra.mxu0 %v8561
          %9603 = vmatprep.subr.bf16.mxu0 %v8556
          %9604 = vmatpush2.bf16.msra.mxu0 %v8555
          %9605 = vmatprep.subr.bf16.mxu0 %v8550
          %9606 = vmatpush2.bf16.msra.mxu0 %v8549
          %9607 = vmatprep.subr.bf16.mxu0 %v8544
          %9608 = vmatpush2.bf16.msra.mxu0 %v8543
          %9609 = vmatprep.subr.bf16.mxu0 %v8538
          %9610 = vmatpush2.bf16.msra.mxu0 %v8537
          %9611 = vmatprep.mubr.bf16.mxu0 %v6096
          %9612 = vmatmul.mubr.bf16.gmra.mxu0 %v6095
          %v9613 = vpop.f32.mrf.mxu0
          %v9614 = vadd.f32 %v9573, %v9613
          %v9615 = vpop.f32.mrf.mxu0
          %v9616 = vadd.f32 %v9575, %v9615
          %v9617 = vpop.f32.mrf.mxu0
          %v9618 = vpop.f32.mrf.mxu0
          %9619 = vdwg.mxu0
          %9620 = vmatprep.subr.bf16.mxu0 %v8628
          %9621 = vmatpush1.bf16.msra.mxu0 %v8627
          %9622 = vmatprep.subr.bf16.mxu0 %v8622
          %9623 = vmatpush1.bf16.msra.mxu0 %v8621
          %9624 = vmatprep.subr.bf16.mxu0 %v8616
          %9625 = vmatpush1.bf16.msra.mxu0 %v8615
          %9626 = vmatprep.subr.bf16.mxu0 %v8610
          %9627 = vmatpush1.bf16.msra.mxu0 %v8609
          %9628 = vmatprep.subr.bf16.mxu0 %v8604
          %9629 = vmatpush1.bf16.msra.mxu0 %v8603
          %9630 = vmatprep.subr.bf16.mxu0 %v8598
          %9631 = vmatpush1.bf16.msra.mxu0 %v8597
          %9632 = vmatprep.subr.bf16.mxu0 %v8592
          %9633 = vmatpush1.bf16.msra.mxu0 %v8591
          %9634 = vmatprep.subr.bf16.mxu0 %v8586
          %9635 = vmatpush1.bf16.msra.mxu0 %v8585
          %9636 = vmatprep.subr.bf16.mxu0 %v8676
          %9637 = vmatpush2.bf16.msra.mxu0 %v8675
          %9638 = vmatprep.subr.bf16.mxu0 %v8670
          %9639 = vmatpush2.bf16.msra.mxu0 %v8669
          %9640 = vmatprep.subr.bf16.mxu0 %v8664
          %9641 = vmatpush2.bf16.msra.mxu0 %v8663
          %9642 = vmatprep.subr.bf16.mxu0 %v8658
          %9643 = vmatpush2.bf16.msra.mxu0 %v8657
          %9644 = vmatprep.subr.bf16.mxu0 %v8652
          %9645 = vmatpush2.bf16.msra.mxu0 %v8651
          %9646 = vmatprep.subr.bf16.mxu0 %v8646
          %9647 = vmatpush2.bf16.msra.mxu0 %v8645
          %9648 = vmatprep.subr.bf16.mxu0 %v8640
          %9649 = vmatpush2.bf16.msra.mxu0 %v8639
          %9650 = vmatprep.subr.bf16.mxu0 %v8634
          %9651 = vmatpush2.bf16.msra.mxu0 %v8633
          %9652 = vmatprep.mubr.bf16.mxu0 %v6098
          %9653 = vmatmul.mubr.bf16.gmra.mxu0 %v6097
          %v9654 = vpop.f32.mrf.mxu0
          %v9655 = vadd.f32 %v9614, %v9654
          %v9656 = vpop.f32.mrf.mxu0
          %v9657 = vadd.f32 %v9616, %v9656
          %v9658 = vpop.f32.mrf.mxu0
          %v9659 = vpop.f32.mrf.mxu0
          %9660 = vdwg.mxu0
          %9661 = vmatprep.subr.bf16.mxu0 %v8724
          %9662 = vmatpush1.bf16.msra.mxu0 %v8723
          %9663 = vmatprep.subr.bf16.mxu0 %v8718
          %9664 = vmatpush1.bf16.msra.mxu0 %v8717
          %9665 = vmatprep.subr.bf16.mxu0 %v8712
          %9666 = vmatpush1.bf16.msra.mxu0 %v8711
          %9667 = vmatprep.subr.bf16.mxu0 %v8706
          %9668 = vmatpush1.bf16.msra.mxu0 %v8705
          %9669 = vmatprep.subr.bf16.mxu0 %v8700
          %9670 = vmatpush1.bf16.msra.mxu0 %v8699
          %9671 = vmatprep.subr.bf16.mxu0 %v8694
          %9672 = vmatpush1.bf16.msra.mxu0 %v8693
          %9673 = vmatprep.subr.bf16.mxu0 %v8688
          %9674 = vmatpush1.bf16.msra.mxu0 %v8687
          %9675 = vmatprep.subr.bf16.mxu0 %v8682
          %9676 = vmatpush1.bf16.msra.mxu0 %v8681
          %9677 = vmatprep.subr.bf16.mxu0 %v8772
          %9678 = vmatpush2.bf16.msra.mxu0 %v8771
          %9679 = vmatprep.subr.bf16.mxu0 %v8766
          %9680 = vmatpush2.bf16.msra.mxu0 %v8765
          %9681 = vmatprep.subr.bf16.mxu0 %v8760
          %9682 = vmatpush2.bf16.msra.mxu0 %v8759
          %9683 = vmatprep.subr.bf16.mxu0 %v8754
          %9684 = vmatpush2.bf16.msra.mxu0 %v8753
          %9685 = vmatprep.subr.bf16.mxu0 %v8748
          %9686 = vmatpush2.bf16.msra.mxu0 %v8747
          %9687 = vmatprep.subr.bf16.mxu0 %v8742
          %9688 = vmatpush2.bf16.msra.mxu0 %v8741
          %9689 = vmatprep.subr.bf16.mxu0 %v8736
          %9690 = vmatpush2.bf16.msra.mxu0 %v8735
          %9691 = vmatprep.subr.bf16.mxu0 %v8730
          %9692 = vmatpush2.bf16.msra.mxu0 %v8729
          %9693 = vmatprep.mubr.bf16.mxu0 %v6100
          %9694 = vmatmul.mubr.bf16.gmra.mxu0 %v6099
          %v9695 = vpop.f32.mrf.mxu0
          %v9696 = vadd.f32 %v9655, %v9695
          %v9697 = vpop.f32.mrf.mxu0
          %v9698 = vadd.f32 %v9657, %v9697
          %v9699 = vpop.f32.mrf.mxu0
          %v9700 = vpop.f32.mrf.mxu0
          %9701 = vdwg.mxu0
          %9702 = vmatprep.subr.bf16.mxu0 %v8820
          %9703 = vmatpush1.bf16.msra.mxu0 %v8819
          %9704 = vmatprep.subr.bf16.mxu0 %v8814
          %9705 = vmatpush1.bf16.msra.mxu0 %v8813
          %9706 = vmatprep.subr.bf16.mxu0 %v8808
          %9707 = vmatpush1.bf16.msra.mxu0 %v8807
          %9708 = vmatprep.subr.bf16.mxu0 %v8802
          %9709 = vmatpush1.bf16.msra.mxu0 %v8801
          %9710 = vmatprep.subr.bf16.mxu0 %v8796
          %9711 = vmatpush1.bf16.msra.mxu0 %v8795
          %9712 = vmatprep.subr.bf16.mxu0 %v8790
          %9713 = vmatpush1.bf16.msra.mxu0 %v8789
          %9714 = vmatprep.subr.bf16.mxu0 %v8784
          %9715 = vmatpush1.bf16.msra.mxu0 %v8783
          %9716 = vmatprep.subr.bf16.mxu0 %v8778
          %9717 = vmatpush1.bf16.msra.mxu0 %v8777
          %9718 = vmatprep.subr.bf16.mxu0 %v8868
          %9719 = vmatpush2.bf16.msra.mxu0 %v8867
          %9720 = vmatprep.subr.bf16.mxu0 %v8862
          %9721 = vmatpush2.bf16.msra.mxu0 %v8861
          %9722 = vmatprep.subr.bf16.mxu0 %v8856
          %9723 = vmatpush2.bf16.msra.mxu0 %v8855
          %9724 = vmatprep.subr.bf16.mxu0 %v8850
          %9725 = vmatpush2.bf16.msra.mxu0 %v8849
          %9726 = vmatprep.subr.bf16.mxu0 %v8844
          %9727 = vmatpush2.bf16.msra.mxu0 %v8843
          %9728 = vmatprep.subr.bf16.mxu0 %v8838
          %9729 = vmatpush2.bf16.msra.mxu0 %v8837
          %9730 = vmatprep.subr.bf16.mxu0 %v8832
          %9731 = vmatpush2.bf16.msra.mxu0 %v8831
          %9732 = vmatprep.subr.bf16.mxu0 %v8826
          %9733 = vmatpush2.bf16.msra.mxu0 %v8825
          %9734 = vmatprep.mubr.bf16.mxu0 %v6102
          %9735 = vmatmul.mubr.bf16.gmra.mxu0 %v6101
          %v9736 = vpop.f32.mrf.mxu0
          %v9737 = vadd.f32 %v9696, %v9736
          %v9738 = vpop.f32.mrf.mxu0
          %v9739 = vadd.f32 %v9698, %v9738
          %v9740 = vpop.f32.mrf.mxu0
          %v9741 = vpop.f32.mrf.mxu0
          %9742 = vdwg.mxu0
          %9743 = vmatprep.subr.bf16.mxu0 %v8916
          %9744 = vmatpush1.bf16.msra.mxu0 %v8915
          %9745 = vmatprep.subr.bf16.mxu0 %v8910
          %9746 = vmatpush1.bf16.msra.mxu0 %v8909
          %9747 = vmatprep.subr.bf16.mxu0 %v8904
          %9748 = vmatpush1.bf16.msra.mxu0 %v8903
          %9749 = vmatprep.subr.bf16.mxu0 %v8898
          %9750 = vmatpush1.bf16.msra.mxu0 %v8897
          %9751 = vmatprep.subr.bf16.mxu0 %v8892
          %9752 = vmatpush1.bf16.msra.mxu0 %v8891
          %9753 = vmatprep.subr.bf16.mxu0 %v8886
          %9754 = vmatpush1.bf16.msra.mxu0 %v8885
          %9755 = vmatprep.subr.bf16.mxu0 %v8880
          %9756 = vmatpush1.bf16.msra.mxu0 %v8879
          %9757 = vmatprep.subr.bf16.mxu0 %v8874
          %9758 = vmatpush1.bf16.msra.mxu0 %v8873
          %9759 = vmatprep.subr.bf16.mxu0 0
          %9760 = vmatpush2.bf16.msra.mxu0 0
          %9761 = vmatprep.subr.bf16.mxu0 0
          %9762 = vmatpush2.bf16.msra.mxu0 0
          %9763 = vmatprep.subr.bf16.mxu0 %v9524
          %9764 = vmatpush2.bf16.msra.mxu0 %v9521
          %9765 = vmatprep.subr.bf16.mxu0 %v8946
          %9766 = vmatpush2.bf16.msra.mxu0 %v8945
          %9767 = vmatprep.subr.bf16.mxu0 %v8940
          %9768 = vmatpush2.bf16.msra.mxu0 %v8939
          %9769 = vmatprep.subr.bf16.mxu0 %v8934
          %9770 = vmatpush2.bf16.msra.mxu0 %v8933
          %9771 = vmatprep.subr.bf16.mxu0 %v8928
          %9772 = vmatpush2.bf16.msra.mxu0 %v8927
          %9773 = vmatprep.subr.bf16.mxu0 %v8922
          %9774 = vmatpush2.bf16.msra.mxu0 %v8921
          %9775 = vmatprep.mubr.bf16.mxu0 %v9517
          %9776 = vmatmul.mubr.bf16.gmra.mxu0 %v6103
          %v9777 = vpop.f32.mrf.mxu0
          %v9778 = vadd.f32 %v9737, %v9777
          %v9779 = vpop.f32.mrf.mxu0
          %v9780 = vadd.f32 %v9739, %v9779
          %v9781 = vpop.f32.mrf.mxu0
          %v9782 = vpop.f32.mrf.mxu0
          %9783 = vdwg.mxu0
          %9784 = vmatprep.subr.bf16.mxu0 %v8438
          %9785 = vmatpush1.bf16.msra.mxu0 %v8437
          %9786 = vmatprep.subr.bf16.mxu0 %v8432
          %9787 = vmatpush1.bf16.msra.mxu0 %v8431
          %9788 = vmatprep.subr.bf16.mxu0 %v8426
          %9789 = vmatpush1.bf16.msra.mxu0 %v8425
          %9790 = vmatprep.subr.bf16.mxu0 %v8420
          %9791 = vmatpush1.bf16.msra.mxu0 %v8419
          %9792 = vmatprep.subr.bf16.mxu0 %v8414
          %9793 = vmatpush1.bf16.msra.mxu0 %v8413
          %9794 = vmatprep.subr.bf16.mxu0 %v8408
          %9795 = vmatpush1.bf16.msra.mxu0 %v8407
          %9796 = vmatprep.subr.bf16.mxu0 %v8402
          %9797 = vmatpush1.bf16.msra.mxu0 %v8401
          %9798 = vmatprep.subr.bf16.mxu0 %v8396
          %9799 = vmatpush1.bf16.msra.mxu0 %v8395
          %9800 = vmatprep.subr.bf16.mxu0 %v8486
          %9801 = vmatpush2.bf16.msra.mxu0 %v8485
          %9802 = vmatprep.subr.bf16.mxu0 %v8480
          %9803 = vmatpush2.bf16.msra.mxu0 %v8479
          %9804 = vmatprep.subr.bf16.mxu0 %v8474
          %9805 = vmatpush2.bf16.msra.mxu0 %v8473
          %9806 = vmatprep.subr.bf16.mxu0 %v8468
          %9807 = vmatpush2.bf16.msra.mxu0 %v8467
          %9808 = vmatprep.subr.bf16.mxu0 %v8462
          %9809 = vmatpush2.bf16.msra.mxu0 %v8461
          %9810 = vmatprep.subr.bf16.mxu0 %v8456
          %9811 = vmatpush2.bf16.msra.mxu0 %v8455
          %9812 = vmatprep.subr.bf16.mxu0 %v8450
          %9813 = vmatpush2.bf16.msra.mxu0 %v8449
          %9814 = vmatprep.subr.bf16.mxu0 %v8444
          %9815 = vmatpush2.bf16.msra.mxu0 %v8443
          %9816 = vmatprep.mubr.bf16.mxu0 %v6094
          %9817 = vmatmul.mubr.bf16.gmra.mxu0 %v6093
          %v9818 = vpop.f32.mrf.mxu0
          %v9819 = vadd.f32 %v6682, %v9818
          %v9820 = vpop.f32.mrf.mxu0
          %v9821 = vadd.f32 %v6686, %v9820
          %v9822 = vpop.f32.mrf.mxu0
          %v9823 = vpop.f32.mrf.mxu0
          %9824 = vdwg.mxu0
          %9825 = vmatprep.subr.bf16.mxu0 %v8534
          %9826 = vmatpush1.bf16.msra.mxu0 %v8533
          %9827 = vmatprep.subr.bf16.mxu0 %v8528
          %9828 = vmatpush1.bf16.msra.mxu0 %v8527
          %9829 = vmatprep.subr.bf16.mxu0 %v8522
          %9830 = vmatpush1.bf16.msra.mxu0 %v8521
          %9831 = vmatprep.subr.bf16.mxu0 %v8516
          %9832 = vmatpush1.bf16.msra.mxu0 %v8515
          %9833 = vmatprep.subr.bf16.mxu0 %v8510
          %9834 = vmatpush1.bf16.msra.mxu0 %v8509
          %9835 = vmatprep.subr.bf16.mxu0 %v8504
          %9836 = vmatpush1.bf16.msra.mxu0 %v8503
          %9837 = vmatprep.subr.bf16.mxu0 %v8498
          %9838 = vmatpush1.bf16.msra.mxu0 %v8497
          %9839 = vmatprep.subr.bf16.mxu0 %v8492
          %9840 = vmatpush1.bf16.msra.mxu0 %v8491
          %9841 = vmatprep.subr.bf16.mxu0 %v8582
          %9842 = vmatpush2.bf16.msra.mxu0 %v8581
          %9843 = vmatprep.subr.bf16.mxu0 %v8576
          %9844 = vmatpush2.bf16.msra.mxu0 %v8575
          %9845 = vmatprep.subr.bf16.mxu0 %v8570
          %9846 = vmatpush2.bf16.msra.mxu0 %v8569
          %9847 = vmatprep.subr.bf16.mxu0 %v8564
          %9848 = vmatpush2.bf16.msra.mxu0 %v8563
          %9849 = vmatprep.subr.bf16.mxu0 %v8558
          %9850 = vmatpush2.bf16.msra.mxu0 %v8557
          %9851 = vmatprep.subr.bf16.mxu0 %v8552
          %9852 = vmatpush2.bf16.msra.mxu0 %v8551
          %9853 = vmatprep.subr.bf16.mxu0 %v8546
          %9854 = vmatpush2.bf16.msra.mxu0 %v8545
          %9855 = vmatprep.subr.bf16.mxu0 %v8540
          %9856 = vmatpush2.bf16.msra.mxu0 %v8539
          %9857 = vmatprep.mubr.bf16.mxu0 %v6096
          %9858 = vmatmul.mubr.bf16.gmra.mxu0 %v6095
          %v9859 = vpop.f32.mrf.mxu0
          %v9860 = vadd.f32 %v9819, %v9859
          %v9861 = vpop.f32.mrf.mxu0
          %v9862 = vadd.f32 %v9821, %v9861
          %v9863 = vpop.f32.mrf.mxu0
          %v9864 = vpop.f32.mrf.mxu0
          %9865 = vdwg.mxu0
          %9866 = vmatprep.subr.bf16.mxu0 %v8630
          %9867 = vmatpush1.bf16.msra.mxu0 %v8629
          %9868 = vmatprep.subr.bf16.mxu0 %v8624
          %9869 = vmatpush1.bf16.msra.mxu0 %v8623
          %9870 = vmatprep.subr.bf16.mxu0 %v8618
          %9871 = vmatpush1.bf16.msra.mxu0 %v8617
          %9872 = vmatprep.subr.bf16.mxu0 %v8612
          %9873 = vmatpush1.bf16.msra.mxu0 %v8611
          %9874 = vmatprep.subr.bf16.mxu0 %v8606
          %9875 = vmatpush1.bf16.msra.mxu0 %v8605
          %9876 = vmatprep.subr.bf16.mxu0 %v8600
          %9877 = vmatpush1.bf16.msra.mxu0 %v8599
          %9878 = vmatprep.subr.bf16.mxu0 %v8594
          %9879 = vmatpush1.bf16.msra.mxu0 %v8593
          %9880 = vmatprep.subr.bf16.mxu0 %v8588
          %9881 = vmatpush1.bf16.msra.mxu0 %v8587
          %9882 = vmatprep.subr.bf16.mxu0 %v8678
          %9883 = vmatpush2.bf16.msra.mxu0 %v8677
          %9884 = vmatprep.subr.bf16.mxu0 %v8672
          %9885 = vmatpush2.bf16.msra.mxu0 %v8671
          %9886 = vmatprep.subr.bf16.mxu0 %v8666
          %9887 = vmatpush2.bf16.msra.mxu0 %v8665
          %9888 = vmatprep.subr.bf16.mxu0 %v8660
          %9889 = vmatpush2.bf16.msra.mxu0 %v8659
          %9890 = vmatprep.subr.bf16.mxu0 %v8654
          %9891 = vmatpush2.bf16.msra.mxu0 %v8653
          %9892 = vmatprep.subr.bf16.mxu0 %v8648
          %9893 = vmatpush2.bf16.msra.mxu0 %v8647
          %9894 = vmatprep.subr.bf16.mxu0 %v8642
          %9895 = vmatpush2.bf16.msra.mxu0 %v8641
          %9896 = vmatprep.subr.bf16.mxu0 %v8636
          %9897 = vmatpush2.bf16.msra.mxu0 %v8635
          %9898 = vmatprep.mubr.bf16.mxu0 %v6098
          %9899 = vmatmul.mubr.bf16.gmra.mxu0 %v6097
          %v9900 = vpop.f32.mrf.mxu0
          %v9901 = vadd.f32 %v9860, %v9900
          %v9902 = vpop.f32.mrf.mxu0
          %v9903 = vadd.f32 %v9862, %v9902
          %v9904 = vpop.f32.mrf.mxu0
          %v9905 = vpop.f32.mrf.mxu0
          %9906 = vdwg.mxu0
          %9907 = vmatprep.subr.bf16.mxu0 %v8726
          %9908 = vmatpush1.bf16.msra.mxu0 %v8725
          %9909 = vmatprep.subr.bf16.mxu0 %v8720
          %9910 = vmatpush1.bf16.msra.mxu0 %v8719
          %9911 = vmatprep.subr.bf16.mxu0 %v8714
          %9912 = vmatpush1.bf16.msra.mxu0 %v8713
          %9913 = vmatprep.subr.bf16.mxu0 %v8708
          %9914 = vmatpush1.bf16.msra.mxu0 %v8707
          %9915 = vmatprep.subr.bf16.mxu0 %v8702
          %9916 = vmatpush1.bf16.msra.mxu0 %v8701
          %9917 = vmatprep.subr.bf16.mxu0 %v8696
          %9918 = vmatpush1.bf16.msra.mxu0 %v8695
          %9919 = vmatprep.subr.bf16.mxu0 %v8690
          %9920 = vmatpush1.bf16.msra.mxu0 %v8689
          %9921 = vmatprep.subr.bf16.mxu0 %v8684
          %9922 = vmatpush1.bf16.msra.mxu0 %v8683
          %9923 = vmatprep.subr.bf16.mxu0 %v8774
          %9924 = vmatpush2.bf16.msra.mxu0 %v8773
          %9925 = vmatprep.subr.bf16.mxu0 %v8768
          %9926 = vmatpush2.bf16.msra.mxu0 %v8767
          %9927 = vmatprep.subr.bf16.mxu0 %v8762
          %9928 = vmatpush2.bf16.msra.mxu0 %v8761
          %9929 = vmatprep.subr.bf16.mxu0 %v8756
          %9930 = vmatpush2.bf16.msra.mxu0 %v8755
          %9931 = vmatprep.subr.bf16.mxu0 %v8750
          %9932 = vmatpush2.bf16.msra.mxu0 %v8749
          %9933 = vmatprep.subr.bf16.mxu0 %v8744
          %9934 = vmatpush2.bf16.msra.mxu0 %v8743
          %9935 = vmatprep.subr.bf16.mxu0 %v8738
          %9936 = vmatpush2.bf16.msra.mxu0 %v8737
          %9937 = vmatprep.subr.bf16.mxu0 %v8732
          %9938 = vmatpush2.bf16.msra.mxu0 %v8731
          %9939 = vmatprep.mubr.bf16.mxu0 %v6100
          %9940 = vmatmul.mubr.bf16.gmra.mxu0 %v6099
          %v9941 = vpop.f32.mrf.mxu0
          %v9942 = vadd.f32 %v9901, %v9941
          %v9943 = vpop.f32.mrf.mxu0
          %v9944 = vadd.f32 %v9903, %v9943
          %v9945 = vpop.f32.mrf.mxu0
          %v9946 = vpop.f32.mrf.mxu0
          %9947 = vdwg.mxu0
          %9948 = vmatprep.subr.bf16.mxu0 %v8822
          %9949 = vmatpush1.bf16.msra.mxu0 %v8821
          %9950 = vmatprep.subr.bf16.mxu0 %v8816
          %9951 = vmatpush1.bf16.msra.mxu0 %v8815
          %9952 = vmatprep.subr.bf16.mxu0 %v8810
          %9953 = vmatpush1.bf16.msra.mxu0 %v8809
          %9954 = vmatprep.subr.bf16.mxu0 %v8804
          %9955 = vmatpush1.bf16.msra.mxu0 %v8803
          %9956 = vmatprep.subr.bf16.mxu0 %v8798
          %9957 = vmatpush1.bf16.msra.mxu0 %v8797
          %9958 = vmatprep.subr.bf16.mxu0 %v8792
          %9959 = vmatpush1.bf16.msra.mxu0 %v8791
          %9960 = vmatprep.subr.bf16.mxu0 %v8786
          %9961 = vmatpush1.bf16.msra.mxu0 %v8785
          %9962 = vmatprep.subr.bf16.mxu0 %v8780
          %9963 = vmatpush1.bf16.msra.mxu0 %v8779
          %9964 = vmatprep.subr.bf16.mxu0 %v8870
          %9965 = vmatpush2.bf16.msra.mxu0 %v8869
          %9966 = vmatprep.subr.bf16.mxu0 %v8864
          %9967 = vmatpush2.bf16.msra.mxu0 %v8863
          %9968 = vmatprep.subr.bf16.mxu0 %v8858
          %9969 = vmatpush2.bf16.msra.mxu0 %v8857
          %9970 = vmatprep.subr.bf16.mxu0 %v8852
          %9971 = vmatpush2.bf16.msra.mxu0 %v8851
          %9972 = vmatprep.subr.bf16.mxu0 %v8846
          %9973 = vmatpush2.bf16.msra.mxu0 %v8845
          %9974 = vmatprep.subr.bf16.mxu0 %v8840
          %9975 = vmatpush2.bf16.msra.mxu0 %v8839
          %9976 = vmatprep.subr.bf16.mxu0 %v8834
          %9977 = vmatpush2.bf16.msra.mxu0 %v8833
          %9978 = vmatprep.subr.bf16.mxu0 %v8828
          %9979 = vmatpush2.bf16.msra.mxu0 %v8827
          %9980 = vmatprep.mubr.bf16.mxu0 %v6102
          %9981 = vmatmul.mubr.bf16.gmra.mxu0 %v6101
          %v9982 = vpop.f32.mrf.mxu0
          %v9983 = vadd.f32 %v9942, %v9982
          %v9984 = vpop.f32.mrf.mxu0
          %v9985 = vadd.f32 %v9944, %v9984
          %v9986 = vpop.f32.mrf.mxu0
          %v9987 = vpop.f32.mrf.mxu0
          %9988 = vdwg.mxu0
          %9989 = vmatprep.subr.bf16.mxu0 %v8918
          %9990 = vmatpush1.bf16.msra.mxu0 %v8917
          %9991 = vmatprep.subr.bf16.mxu0 %v8912
          %9992 = vmatpush1.bf16.msra.mxu0 %v8911
          %9993 = vmatprep.subr.bf16.mxu0 %v8906
          %9994 = vmatpush1.bf16.msra.mxu0 %v8905
          %9995 = vmatprep.subr.bf16.mxu0 %v8900
          %9996 = vmatpush1.bf16.msra.mxu0 %v8899
          %9997 = vmatprep.subr.bf16.mxu0 %v8894
          %9998 = vmatpush1.bf16.msra.mxu0 %v8893
          %9999 = vmatprep.subr.bf16.mxu0 %v8888
          %10000 = vmatpush1.bf16.msra.mxu0 %v8887
          %10001 = vmatprep.subr.bf16.mxu0 %v8882
          %10002 = vmatpush1.bf16.msra.mxu0 %v8881
          %10003 = vmatprep.subr.bf16.mxu0 %v8876
          %10004 = vmatpush1.bf16.msra.mxu0 %v8875
          %10005 = vmatprep.subr.bf16.mxu0 0
          %10006 = vmatpush2.bf16.msra.mxu0 0
          %10007 = vmatprep.subr.bf16.mxu0 0
          %10008 = vmatpush2.bf16.msra.mxu0 0
          %10009 = vmatprep.subr.bf16.mxu0 %v9530
          %10010 = vmatpush2.bf16.msra.mxu0 %v9527
          %10011 = vmatprep.subr.bf16.mxu0 %v8948
          %10012 = vmatpush2.bf16.msra.mxu0 %v8947
          %10013 = vmatprep.subr.bf16.mxu0 %v8942
          %10014 = vmatpush2.bf16.msra.mxu0 %v8941
          %10015 = vmatprep.subr.bf16.mxu0 %v8936
          %10016 = vmatpush2.bf16.msra.mxu0 %v8935
          %10017 = vmatprep.subr.bf16.mxu0 %v8930
          %10018 = vmatpush2.bf16.msra.mxu0 %v8929
          %10019 = vmatprep.subr.bf16.mxu0 %v8924
          %10020 = vmatpush2.bf16.msra.mxu0 %v8923
          %10021 = vmatprep.mubr.bf16.mxu0 %v9517
          %10022 = vmatmul.mubr.bf16.gmra.mxu0 %v6103
          %v10023 = vpop.f32.mrf.mxu0
          %v10024 = vadd.f32 %v9983, %v10023
          %v10025 = vpop.f32.mrf.mxu0
          %v10026 = vadd.f32 %v9985, %v10025
          %v10027 = vpop.f32.mrf.mxu0
          %v10028 = vpop.f32.mrf.mxu0
          %10029 = vdwg.mxu0
          %10030 = vmatprep.subr.bf16.mxu0 %v8440
          %10031 = vmatpush1.bf16.msra.mxu0 %v8439
          %10032 = vmatprep.subr.bf16.mxu0 %v8434
          %10033 = vmatpush1.bf16.msra.mxu0 %v8433
          %10034 = vmatprep.subr.bf16.mxu0 %v8428
          %10035 = vmatpush1.bf16.msra.mxu0 %v8427
          %10036 = vmatprep.subr.bf16.mxu0 %v8422
          %10037 = vmatpush1.bf16.msra.mxu0 %v8421
          %10038 = vmatprep.subr.bf16.mxu0 %v8416
          %10039 = vmatpush1.bf16.msra.mxu0 %v8415
          %10040 = vmatprep.subr.bf16.mxu0 %v8410
          %10041 = vmatpush1.bf16.msra.mxu0 %v8409
          %10042 = vmatprep.subr.bf16.mxu0 %v8404
          %10043 = vmatpush1.bf16.msra.mxu0 %v8403
          %10044 = vmatprep.subr.bf16.mxu0 %v8398
          %10045 = vmatpush1.bf16.msra.mxu0 %v8397
          %10046 = vmatprep.subr.bf16.mxu0 %v8488
          %10047 = vmatpush2.bf16.msra.mxu0 %v8487
          %10048 = vmatprep.subr.bf16.mxu0 %v8482
          %10049 = vmatpush2.bf16.msra.mxu0 %v8481
          %10050 = vmatprep.subr.bf16.mxu0 %v8476
          %10051 = vmatpush2.bf16.msra.mxu0 %v8475
          %10052 = vmatprep.subr.bf16.mxu0 %v8470
          %10053 = vmatpush2.bf16.msra.mxu0 %v8469
          %10054 = vmatprep.subr.bf16.mxu0 %v8464
          %10055 = vmatpush2.bf16.msra.mxu0 %v8463
          %10056 = vmatprep.subr.bf16.mxu0 %v8458
          %10057 = vmatpush2.bf16.msra.mxu0 %v8457
          %10058 = vmatprep.subr.bf16.mxu0 %v8452
          %10059 = vmatpush2.bf16.msra.mxu0 %v8451
          %10060 = vmatprep.subr.bf16.mxu0 %v8446
          %10061 = vmatpush2.bf16.msra.mxu0 %v8445
          %10062 = vmatprep.mubr.bf16.mxu0 %v6094
          %10063 = vmatmul.mubr.bf16.gmra.mxu0 %v6093
          %v10064 = vpop.f32.mrf.mxu0
          %v10065 = vadd.f32 %v6690, %v10064
          %v10066 = vpop.f32.mrf.mxu0
          %v10067 = vadd.f32 %v6694, %v10066
          %v10068 = vpop.f32.mrf.mxu0
          %v10069 = vpop.f32.mrf.mxu0
          %10070 = vdwg.mxu0
          %10071 = vmatprep.subr.bf16.mxu0 %v8536
          %10072 = vmatpush1.bf16.msra.mxu0 %v8535
          %10073 = vmatprep.subr.bf16.mxu0 %v8530
          %10074 = vmatpush1.bf16.msra.mxu0 %v8529
          %10075 = vmatprep.subr.bf16.mxu0 %v8524
          %10076 = vmatpush1.bf16.msra.mxu0 %v8523
          %10077 = vmatprep.subr.bf16.mxu0 %v8518
          %10078 = vmatpush1.bf16.msra.mxu0 %v8517
          %10079 = vmatprep.subr.bf16.mxu0 %v8512
          %10080 = vmatpush1.bf16.msra.mxu0 %v8511
          %10081 = vmatprep.subr.bf16.mxu0 %v8506
          %10082 = vmatpush1.bf16.msra.mxu0 %v8505
          %10083 = vmatprep.subr.bf16.mxu0 %v8500
          %10084 = vmatpush1.bf16.msra.mxu0 %v8499
          %10085 = vmatprep.subr.bf16.mxu0 %v8494
          %10086 = vmatpush1.bf16.msra.mxu0 %v8493
          %10087 = vmatprep.subr.bf16.mxu0 %v8584
          %10088 = vmatpush2.bf16.msra.mxu0 %v8583
          %10089 = vmatprep.subr.bf16.mxu0 %v8578
          %10090 = vmatpush2.bf16.msra.mxu0 %v8577
          %10091 = vmatprep.subr.bf16.mxu0 %v8572
          %10092 = vmatpush2.bf16.msra.mxu0 %v8571
          %10093 = vmatprep.subr.bf16.mxu0 %v8566
          %10094 = vmatpush2.bf16.msra.mxu0 %v8565
          %10095 = vmatprep.subr.bf16.mxu0 %v8560
          %10096 = vmatpush2.bf16.msra.mxu0 %v8559
          %10097 = vmatprep.subr.bf16.mxu0 %v8554
          %10098 = vmatpush2.bf16.msra.mxu0 %v8553
          %10099 = vmatprep.subr.bf16.mxu0 %v8548
          %10100 = vmatpush2.bf16.msra.mxu0 %v8547
          %10101 = vmatprep.subr.bf16.mxu0 %v8542
          %10102 = vmatpush2.bf16.msra.mxu0 %v8541
          %10103 = vmatprep.mubr.bf16.mxu0 %v6096
          %10104 = vmatmul.mubr.bf16.gmra.mxu0 %v6095
          %v10105 = vpop.f32.mrf.mxu0
          %v10106 = vadd.f32 %v10065, %v10105
          %v10107 = vpop.f32.mrf.mxu0
          %v10108 = vadd.f32 %v10067, %v10107
          %v10109 = vpop.f32.mrf.mxu0
          %v10110 = vpop.f32.mrf.mxu0
          %10111 = vdwg.mxu0
          %10112 = vmatprep.subr.bf16.mxu0 %v8632
          %10113 = vmatpush1.bf16.msra.mxu0 %v8631
          %10114 = vmatprep.subr.bf16.mxu0 %v8626
          %10115 = vmatpush1.bf16.msra.mxu0 %v8625
          %10116 = vmatprep.subr.bf16.mxu0 %v8620
          %10117 = vmatpush1.bf16.msra.mxu0 %v8619
          %10118 = vmatprep.subr.bf16.mxu0 %v8614
          %10119 = vmatpush1.bf16.msra.mxu0 %v8613
          %10120 = vmatprep.subr.bf16.mxu0 %v8608
          %10121 = vmatpush1.bf16.msra.mxu0 %v8607
          %10122 = vmatprep.subr.bf16.mxu0 %v8602
          %10123 = vmatpush1.bf16.msra.mxu0 %v8601
          %10124 = vmatprep.subr.bf16.mxu0 %v8596
          %10125 = vmatpush1.bf16.msra.mxu0 %v8595
          %10126 = vmatprep.subr.bf16.mxu0 %v8590
          %10127 = vmatpush1.bf16.msra.mxu0 %v8589
          %10128 = vmatprep.subr.bf16.mxu0 %v8680
          %10129 = vmatpush2.bf16.msra.mxu0 %v8679
          %10130 = vmatprep.subr.bf16.mxu0 %v8674
          %10131 = vmatpush2.bf16.msra.mxu0 %v8673
          %10132 = vmatprep.subr.bf16.mxu0 %v8668
          %10133 = vmatpush2.bf16.msra.mxu0 %v8667
          %10134 = vmatprep.subr.bf16.mxu0 %v8662
          %10135 = vmatpush2.bf16.msra.mxu0 %v8661
          %10136 = vmatprep.subr.bf16.mxu0 %v8656
          %10137 = vmatpush2.bf16.msra.mxu0 %v8655
          %10138 = vmatprep.subr.bf16.mxu0 %v8650
          %10139 = vmatpush2.bf16.msra.mxu0 %v8649
          %10140 = vmatprep.subr.bf16.mxu0 %v8644
          %10141 = vmatpush2.bf16.msra.mxu0 %v8643
          %10142 = vmatprep.subr.bf16.mxu0 %v8638
          %10143 = vmatpush2.bf16.msra.mxu0 %v8637
          %10144 = vmatprep.mubr.bf16.mxu0 %v6098
          %10145 = vmatmul.mubr.bf16.gmra.mxu0 %v6097
          %v10146 = vpop.f32.mrf.mxu0
          %v10147 = vadd.f32 %v10106, %v10146
          %v10148 = vpop.f32.mrf.mxu0
          %v10149 = vadd.f32 %v10108, %v10148
          %v10150 = vpop.f32.mrf.mxu0
          %v10151 = vpop.f32.mrf.mxu0
          %10152 = vdwg.mxu0
          %10153 = vmatprep.subr.bf16.mxu0 %v8728
          %10154 = vmatpush1.bf16.msra.mxu0 %v8727
          %10155 = vmatprep.subr.bf16.mxu0 %v8722
          %10156 = vmatpush1.bf16.msra.mxu0 %v8721
          %10157 = vmatprep.subr.bf16.mxu0 %v8716
          %10158 = vmatpush1.bf16.msra.mxu0 %v8715
          %10159 = vmatprep.subr.bf16.mxu0 %v8710
          %10160 = vmatpush1.bf16.msra.mxu0 %v8709
          %10161 = vmatprep.subr.bf16.mxu0 %v8704
          %10162 = vmatpush1.bf16.msra.mxu0 %v8703
          %10163 = vmatprep.subr.bf16.mxu0 %v8698
          %10164 = vmatpush1.bf16.msra.mxu0 %v8697
          %10165 = vmatprep.subr.bf16.mxu0 %v8692
          %10166 = vmatpush1.bf16.msra.mxu0 %v8691
          %10167 = vmatprep.subr.bf16.mxu0 %v8686
          %10168 = vmatpush1.bf16.msra.mxu0 %v8685
          %10169 = vmatprep.subr.bf16.mxu0 %v8776
          %10170 = vmatpush2.bf16.msra.mxu0 %v8775
          %10171 = vmatprep.subr.bf16.mxu0 %v8770
          %10172 = vmatpush2.bf16.msra.mxu0 %v8769
          %10173 = vmatprep.subr.bf16.mxu0 %v8764
          %10174 = vmatpush2.bf16.msra.mxu0 %v8763
          %10175 = vmatprep.subr.bf16.mxu0 %v8758
          %10176 = vmatpush2.bf16.msra.mxu0 %v8757
          %10177 = vmatprep.subr.bf16.mxu0 %v8752
          %10178 = vmatpush2.bf16.msra.mxu0 %v8751
          %10179 = vmatprep.subr.bf16.mxu0 %v8746
          %10180 = vmatpush2.bf16.msra.mxu0 %v8745
          %10181 = vmatprep.subr.bf16.mxu0 %v8740
          %10182 = vmatpush2.bf16.msra.mxu0 %v8739
          %10183 = vmatprep.subr.bf16.mxu0 %v8734
          %10184 = vmatpush2.bf16.msra.mxu0 %v8733
          %10185 = vmatprep.mubr.bf16.mxu0 %v6100
          %10186 = vmatmul.mubr.bf16.gmra.mxu0 %v6099
          %v10187 = vpop.f32.mrf.mxu0
          %v10188 = vadd.f32 %v10147, %v10187
          %v10189 = vpop.f32.mrf.mxu0
          %v10190 = vadd.f32 %v10149, %v10189
          %v10191 = vpop.f32.mrf.mxu0
          %v10192 = vpop.f32.mrf.mxu0
          %10193 = vdwg.mxu0
          %10194 = vmatprep.subr.bf16.mxu0 %v8824
          %10195 = vmatpush1.bf16.msra.mxu0 %v8823
          %10196 = vmatprep.subr.bf16.mxu0 %v8818
          %10197 = vmatpush1.bf16.msra.mxu0 %v8817
          %10198 = vmatprep.subr.bf16.mxu0 %v8812
          %10199 = vmatpush1.bf16.msra.mxu0 %v8811
          %10200 = vmatprep.subr.bf16.mxu0 %v8806
          %10201 = vmatpush1.bf16.msra.mxu0 %v8805
          %10202 = vmatprep.subr.bf16.mxu0 %v8800
          %10203 = vmatpush1.bf16.msra.mxu0 %v8799
          %10204 = vmatprep.subr.bf16.mxu0 %v8794
          %10205 = vmatpush1.bf16.msra.mxu0 %v8793
          %10206 = vmatprep.subr.bf16.mxu0 %v8788
          %10207 = vmatpush1.bf16.msra.mxu0 %v8787
          %10208 = vmatprep.subr.bf16.mxu0 %v8782
          %10209 = vmatpush1.bf16.msra.mxu0 %v8781
          %10210 = vmatprep.subr.bf16.mxu0 %v8872
          %10211 = vmatpush2.bf16.msra.mxu0 %v8871
          %10212 = vmatprep.subr.bf16.mxu0 %v8866
          %10213 = vmatpush2.bf16.msra.mxu0 %v8865
          %10214 = vmatprep.subr.bf16.mxu0 %v8860
          %10215 = vmatpush2.bf16.msra.mxu0 %v8859
          %10216 = vmatprep.subr.bf16.mxu0 %v8854
          %10217 = vmatpush2.bf16.msra.mxu0 %v8853
          %10218 = vmatprep.subr.bf16.mxu0 %v8848
          %10219 = vmatpush2.bf16.msra.mxu0 %v8847
          %10220 = vmatprep.subr.bf16.mxu0 %v8842
          %10221 = vmatpush2.bf16.msra.mxu0 %v8841
          %10222 = vmatprep.subr.bf16.mxu0 %v8836
          %10223 = vmatpush2.bf16.msra.mxu0 %v8835
          %10224 = vmatprep.subr.bf16.mxu0 %v8830
          %10225 = vmatpush2.bf16.msra.mxu0 %v8829
          %10226 = vmatprep.mubr.bf16.mxu0 %v6102
          %10227 = vmatmul.mubr.bf16.gmra.mxu0 %v6101
          %v10228 = vpop.f32.mrf.mxu0
          %v10229 = vadd.f32 %v10188, %v10228
          %v10230 = vpop.f32.mrf.mxu0
          %v10231 = vadd.f32 %v10190, %v10230
          %v10232 = vpop.f32.mrf.mxu0
          %v10233 = vpop.f32.mrf.mxu0
          %10234 = vdwg.mxu0
          %10235 = vmatprep.subr.bf16.mxu0 %v8920
          %10236 = vmatpush1.bf16.msra.mxu0 %v8919
          %10237 = vmatprep.subr.bf16.mxu0 %v8914
          %10238 = vmatpush1.bf16.msra.mxu0 %v8913
          %10239 = vmatprep.subr.bf16.mxu0 %v8908
          %10240 = vmatpush1.bf16.msra.mxu0 %v8907
          %10241 = vmatprep.subr.bf16.mxu0 %v8902
          %10242 = vmatpush1.bf16.msra.mxu0 %v8901
          %10243 = vmatprep.subr.bf16.mxu0 %v8896
          %10244 = vmatpush1.bf16.msra.mxu0 %v8895
          %10245 = vmatprep.subr.bf16.mxu0 %v8890
          %10246 = vmatpush1.bf16.msra.mxu0 %v8889
          %10247 = vmatprep.subr.bf16.mxu0 %v8884
          %10248 = vmatpush1.bf16.msra.mxu0 %v8883
          %10249 = vmatprep.subr.bf16.mxu0 %v8878
          %10250 = vmatpush1.bf16.msra.mxu0 %v8877
          %10251 = vmatprep.subr.bf16.mxu0 0
          %10252 = vmatpush2.bf16.msra.mxu0 0
          %10253 = vmatprep.subr.bf16.mxu0 0
          %10254 = vmatpush2.bf16.msra.mxu0 0
          %10255 = vmatprep.subr.bf16.mxu0 %v9536
          %10256 = vmatpush2.bf16.msra.mxu0 %v9533
          %10257 = vmatprep.subr.bf16.mxu0 %v8950
          %10258 = vmatpush2.bf16.msra.mxu0 %v8949
          %10259 = vmatprep.subr.bf16.mxu0 %v8944
          %10260 = vmatpush2.bf16.msra.mxu0 %v8943
          %10261 = vmatprep.subr.bf16.mxu0 %v8938
          %10262 = vmatpush2.bf16.msra.mxu0 %v8937
          %10263 = vmatprep.subr.bf16.mxu0 %v8932
          %10264 = vmatpush2.bf16.msra.mxu0 %v8931
          %10265 = vmatprep.subr.bf16.mxu0 %v8926
          %10266 = vmatpush2.bf16.msra.mxu0 %v8925
          %10267 = vmatprep.mubr.bf16.mxu0 %v9517
          %10268 = vmatmul.mubr.bf16.gmra.mxu0 %v6103
          %v10269 = vpop.f32.mrf.mxu0
          %v10270 = vadd.f32 %v10229, %v10269
          %v10271 = vpop.f32.mrf.mxu0
          %v10272 = vadd.f32 %v10231, %v10271
          %v10273 = vpop.f32.mrf.mxu0
          %v10274 = vpop.f32.mrf.mxu0
          %10275 = vdwg.mxu0
          %v10276 = vmax.f32 %v9778, 0.0
          %v10277 = vmax.f32 %v9780, 0.0
          %v10278 = vmax.f32 %v10024, 0.0
          %v10279 = vmax.f32 %v10026, 0.0
          %v10280 = vmax.f32 %v10270, 0.0
          %v10281 = vmax.f32 %v10272, 0.0
          %v10282 = vpack.c.bf16 %v10276, %v10276
          %v10283 = vpack.c.bf16 %v10277, %v10277
          %v10284 = vpack.c.bf16 %v10278, %v10278
          %v10285 = vpack.c.bf16 %v10279, %v10279
          %v10286 = vpack.c.bf16 %v10280, %v10280
          %v10287 = vpack.c.bf16 %v10281, %v10281
          %v10288 = vld [vmem:[%s5] sm:$0xff]
          %v10289 = vld [vmem:[%s5 + $0x8] sm:$0xff]
          %v10290 = vld [vmem:[%s5 + $0x10] sm:$0xff]
          %v10291 = vld [vmem:[%s5 + $0x18] sm:$0xff]
          %v10292 = vld [vmem:[%s5 + $0x20] sm:$0xff]
          %v10293 = vld [vmem:[%s5 + $0x28] sm:$0xff]
          %v10294 = vld [vmem:[%s5 + $0x30] sm:$0xff]
          %v10295 = vld [vmem:[%s5 + $0x38] sm:$0xff]
          %v10296 = vld [vmem:[%s5 + $0x40] sm:$0xff]
          %v10297 = vld [vmem:[%s5 + $0x48] sm:$0xff]
          %v10298 = vld [vmem:[%s5 + $0x50] sm:$0xff]
          %v10299 = vld [vmem:[%s5 + $0x58] sm:$0xff]
          %v10300 = vld [vmem:[%s5 + $0x60] sm:$0xff]
          %v10301 = vld [vmem:[%s5 + $0x68] sm:$0xff]
          %v10302 = vld [vmem:[%s5 + $0x70] sm:$0xff]
          %v10303 = vld [vmem:[%s5 + $0x78] sm:$0xff]
          %v10304 = vld [vmem:[%s5 + $0x80] sm:$0xff]
          %v10305 = vld [vmem:[%s5 + $0x88] sm:$0xff]
          %v10306 = vld [vmem:[%s5 + $0x90] sm:$0xff]
          %v10307 = vld [vmem:[%s5 + $0x98] sm:$0xff]
          %v10308 = vld [vmem:[%s5 + $0xa0] sm:$0xff]
          %v10309 = vld [vmem:[%s5 + $0xa8] sm:$0xff]
          %v10310 = vld [vmem:[%s5 + $0xb0] sm:$0xff]
          %v10311 = vld [vmem:[%s5 + $0xb8] sm:$0xff]
          %v10312 = vld [vmem:[%s5 + $0xc0] sm:$0xff]
          %v10313 = vld [vmem:[%s5 + $0xc8] sm:$0xff]
          %v10314 = vld [vmem:[%s5 + $0xd0] sm:$0xff]
          %v10315 = vld [vmem:[%s5 + $0xd8] sm:$0xff]
          %v10316 = vld [vmem:[%s5 + $0xe0] sm:$0xff]
          %v10317 = vld [vmem:[%s5 + $0xe8] sm:$0xff]
          %v10318 = vld [vmem:[%s5 + $0xf0] sm:$0xff]
          %v10319 = vld [vmem:[%s5 + $0xf8] sm:$0xff]
          %v10320 = vld [vmem:[%s5 + $0x100] sm:$0xff]
          %v10321 = vld [vmem:[%s5 + $0x108] sm:$0xff]
          %v10322 = vld [vmem:[%s5 + $0x110] sm:$0xff]
          %v10323 = vld [vmem:[%s5 + $0x118] sm:$0xff]
          %v10324 = vld [vmem:[%s5 + $0x120] sm:$0xff]
          %v10325 = vld [vmem:[%s5 + $0x128] sm:$0xff]
          %v10326 = vld [vmem:[%s5 + $0x130] sm:$0xff]
          %v10327 = vld [vmem:[%s5 + $0x138] sm:$0xff]
          %v10328 = vld [vmem:[%s5 + $0x140] sm:$0xff]
          %v10329 = vld [vmem:[%s5 + $0x148] sm:$0xff]
          %v10330 = vld [vmem:[%s5 + $0x150] sm:$0xff]
          %v10331 = vld [vmem:[%s5 + $0x158] sm:$0xff]
          %v10332 = vld [vmem:[%s5 + $0x160] sm:$0xff]
          %v10333 = vld [vmem:[%s5 + $0x168] sm:$0xff]
          %v10334 = vld [vmem:[%s5 + $0x170] sm:$0xff]
          %v10335 = vld [vmem:[%s5 + $0x178] sm:$0xff]
          %v10336 = vld [vmem:[%s5 + $0x180] sm:$0xff]
          %v10337 = vld [vmem:[%s5 + $0x188] sm:$0xff]
          %v10338 = vld [vmem:[%s5 + $0x190] sm:$0xff]
          %v10339 = vld [vmem:[%s5 + $0x198] sm:$0xff]
          %v10340 = vld [vmem:[%s5 + $0x1a0] sm:$0xff]
          %v10341 = vld [vmem:[%s5 + $0x1a8] sm:$0xff]
          %v10342 = vld [vmem:[%s5 + $0x1b0] sm:$0xff]
          %v10343 = vld [vmem:[%s5 + $0x1b8] sm:$0xff]
          %v10344 = vld [vmem:[%s5 + $0x1c0] sm:$0xff]
          %v10345 = vld [vmem:[%s5 + $0x1c8] sm:$0xff]
          %v10346 = vld [vmem:[%s5 + $0x1d0] sm:$0xff]
          %v10347 = vld [vmem:[%s5 + $0x1d8] sm:$0xff]
          %v10348 = vld [vmem:[%s5 + $0x1e0] sm:$0xff]
          %v10349 = vld [vmem:[%s5 + $0x1e8] sm:$0xff]
          %v10350 = vld [vmem:[%s5 + $0x1f0] sm:$0xff]
          %v10351 = vld [vmem:[%s5 + $0x1f8] sm:$0xff]
          %v10352 = vld [vmem:[%s5 + $0x200] sm:$0xff]
          %v10353 = vld [vmem:[%s5 + $0x208] sm:$0xff]
          %v10354 = vld [vmem:[%s5 + $0x210] sm:$0xff]
          %v10355 = vld [vmem:[%s5 + $0x218] sm:$0xff]
          %v10356 = vld [vmem:[%s5 + $0x220] sm:$0xff]
          %v10357 = vld [vmem:[%s5 + $0x228] sm:$0xff]
          %v10358 = vld [vmem:[%s5 + $0x230] sm:$0xff]
          %v10359 = vld [vmem:[%s5 + $0x238] sm:$0xff]
          %v10360 = vld [vmem:[%s5 + $0x240] sm:$0xff]
          %v10361 = vld [vmem:[%s5 + $0x248] sm:$0xff]
          %v10362 = vld [vmem:[%s5 + $0x250] sm:$0xff]
          %v10363 = vld [vmem:[%s5 + $0x258] sm:$0xff]
          %v10364 = vld [vmem:[%s5 + $0x260] sm:$0xff]
          %v10365 = vld [vmem:[%s5 + $0x268] sm:$0xff]
          %v10366 = vld [vmem:[%s5 + $0x270] sm:$0xff]
          %v10367 = vld [vmem:[%s5 + $0x278] sm:$0xff]
          %v10368 = vld [vmem:[%s5 + $0x280] sm:$0xff]
          %v10369 = vld [vmem:[%s5 + $0x288] sm:$0xff]
          %v10370 = vld [vmem:[%s5 + $0x290] sm:$0xff]
          %v10371 = vld [vmem:[%s5 + $0x298] sm:$0xff]
          %v10372 = vld [vmem:[%s5 + $0x2a0] sm:$0xff]
          %v10373 = vld [vmem:[%s5 + $0x2a8] sm:$0xff]
          %v10374 = vld [vmem:[%s5 + $0x2b0] sm:$0xff]
          %v10375 = vld [vmem:[%s5 + $0x2b8] sm:$0xff]
          %v10376 = vld [vmem:[%s5 + $0x2c0] sm:$0xff]
          %v10377 = vld [vmem:[%s5 + $0x2c8] sm:$0xff]
          %v10378 = vld [vmem:[%s5 + $0x2d0] sm:$0xff]
          %v10379 = vld [vmem:[%s5 + $0x2d8] sm:$0xff]
          %v10380 = vld [vmem:[%s5 + $0x2e0] sm:$0xff]
          %v10381 = vld [vmem:[%s5 + $0x2e8] sm:$0x77]
          %v10382 = vld [vmem:[%s6] sm:$0x3]
          %v10384 = vlaneseq
          %v10385 = vshrl.u32 %v10384, 7
          %v10386 = vsub.s32 0, %v10385
          %v10387 = vrot.slane %v10382, %v10386
          %v10388 = vlaneseq
          %v10389 = vshrl.u32 %v10388, 7
          %v10390 = vsub.s32 1, %v10389
          %v10391 = vrot.slane %v10382, %v10390
          %v10488 = vunpack.c.l.b16 %v10288
          %v10489 = vunpack.c.h.b16 %v10288
          %v10490 = vunpack.c.l.b16 %v10289
          %v10491 = vunpack.c.h.b16 %v10289
          %v10492 = vunpack.c.l.b16 %v10290
          %v10493 = vunpack.c.h.b16 %v10290
          %v10494 = vunpack.c.l.b16 %v10291
          %v10495 = vunpack.c.h.b16 %v10291
          %v10496 = vunpack.c.l.b16 %v10292
          %v10497 = vunpack.c.h.b16 %v10292
          %v10498 = vunpack.c.l.b16 %v10293
          %v10499 = vunpack.c.h.b16 %v10293
          %v10500 = vunpack.c.l.b16 %v10294
          %v10501 = vunpack.c.h.b16 %v10294
          %v10502 = vunpack.c.l.b16 %v10295
          %v10503 = vunpack.c.h.b16 %v10295
          %v10504 = vunpack.c.l.b16 %v10296
          %v10505 = vunpack.c.h.b16 %v10296
          %v10506 = vunpack.c.l.b16 %v10297
          %v10507 = vunpack.c.h.b16 %v10297
          %v10508 = vunpack.c.l.b16 %v10298
          %v10509 = vunpack.c.h.b16 %v10298
          %v10510 = vunpack.c.l.b16 %v10299
          %v10511 = vunpack.c.h.b16 %v10299
          %v10512 = vunpack.c.l.b16 %v10300
          %v10513 = vunpack.c.h.b16 %v10300
          %v10514 = vunpack.c.l.b16 %v10301
          %v10515 = vunpack.c.h.b16 %v10301
          %v10516 = vunpack.c.l.b16 %v10302
          %v10517 = vunpack.c.h.b16 %v10302
          %v10518 = vunpack.c.l.b16 %v10303
          %v10519 = vunpack.c.h.b16 %v10303
          %v10520 = vunpack.c.l.b16 %v10304
          %v10521 = vunpack.c.h.b16 %v10304
          %v10522 = vunpack.c.l.b16 %v10305
          %v10523 = vunpack.c.h.b16 %v10305
          %v10524 = vunpack.c.l.b16 %v10306
          %v10525 = vunpack.c.h.b16 %v10306
          %v10526 = vunpack.c.l.b16 %v10307
          %v10527 = vunpack.c.h.b16 %v10307
          %v10528 = vunpack.c.l.b16 %v10308
          %v10529 = vunpack.c.h.b16 %v10308
          %v10530 = vunpack.c.l.b16 %v10309
          %v10531 = vunpack.c.h.b16 %v10309
          %v10532 = vunpack.c.l.b16 %v10310
          %v10533 = vunpack.c.h.b16 %v10310
          %v10534 = vunpack.c.l.b16 %v10311
          %v10535 = vunpack.c.h.b16 %v10311
          %v10536 = vunpack.c.l.b16 %v10312
          %v10537 = vunpack.c.h.b16 %v10312
          %v10538 = vunpack.c.l.b16 %v10313
          %v10539 = vunpack.c.h.b16 %v10313
          %v10540 = vunpack.c.l.b16 %v10314
          %v10541 = vunpack.c.h.b16 %v10314
          %v10542 = vunpack.c.l.b16 %v10315
          %v10543 = vunpack.c.h.b16 %v10315
          %v10544 = vunpack.c.l.b16 %v10316
          %v10545 = vunpack.c.h.b16 %v10316
          %v10546 = vunpack.c.l.b16 %v10317
          %v10547 = vunpack.c.h.b16 %v10317
          %v10548 = vunpack.c.l.b16 %v10318
          %v10549 = vunpack.c.h.b16 %v10318
          %v10550 = vunpack.c.l.b16 %v10319
          %v10551 = vunpack.c.h.b16 %v10319
          %v10552 = vunpack.c.l.b16 %v10320
          %v10553 = vunpack.c.h.b16 %v10320
          %v10554 = vunpack.c.l.b16 %v10321
          %v10555 = vunpack.c.h.b16 %v10321
          %v10556 = vunpack.c.l.b16 %v10322
          %v10557 = vunpack.c.h.b16 %v10322
          %v10558 = vunpack.c.l.b16 %v10323
          %v10559 = vunpack.c.h.b16 %v10323
          %v10560 = vunpack.c.l.b16 %v10324
          %v10561 = vunpack.c.h.b16 %v10324
          %v10562 = vunpack.c.l.b16 %v10325
          %v10563 = vunpack.c.h.b16 %v10325
          %v10564 = vunpack.c.l.b16 %v10326
          %v10565 = vunpack.c.h.b16 %v10326
          %v10566 = vunpack.c.l.b16 %v10327
          %v10567 = vunpack.c.h.b16 %v10327
          %v10568 = vunpack.c.l.b16 %v10328
          %v10569 = vunpack.c.h.b16 %v10328
          %v10570 = vunpack.c.l.b16 %v10329
          %v10571 = vunpack.c.h.b16 %v10329
          %v10572 = vunpack.c.l.b16 %v10330
          %v10573 = vunpack.c.h.b16 %v10330
          %v10574 = vunpack.c.l.b16 %v10331
          %v10575 = vunpack.c.h.b16 %v10331
          %v10576 = vunpack.c.l.b16 %v10332
          %v10577 = vunpack.c.h.b16 %v10332
          %v10578 = vunpack.c.l.b16 %v10333
          %v10579 = vunpack.c.h.b16 %v10333
          %v10580 = vunpack.c.l.b16 %v10334
          %v10581 = vunpack.c.h.b16 %v10334
          %v10582 = vunpack.c.l.b16 %v10335
          %v10583 = vunpack.c.h.b16 %v10335
          %v10584 = vunpack.c.l.b16 %v10336
          %v10585 = vunpack.c.h.b16 %v10336
          %v10586 = vunpack.c.l.b16 %v10337
          %v10587 = vunpack.c.h.b16 %v10337
          %v10588 = vunpack.c.l.b16 %v10338
          %v10589 = vunpack.c.h.b16 %v10338
          %v10590 = vunpack.c.l.b16 %v10339
          %v10591 = vunpack.c.h.b16 %v10339
          %v10592 = vunpack.c.l.b16 %v10340
          %v10593 = vunpack.c.h.b16 %v10340
          %v10594 = vunpack.c.l.b16 %v10341
          %v10595 = vunpack.c.h.b16 %v10341
          %v10596 = vunpack.c.l.b16 %v10342
          %v10597 = vunpack.c.h.b16 %v10342
          %v10598 = vunpack.c.l.b16 %v10343
          %v10599 = vunpack.c.h.b16 %v10343
          %v10600 = vunpack.c.l.b16 %v10344
          %v10601 = vunpack.c.h.b16 %v10344
          %v10602 = vunpack.c.l.b16 %v10345
          %v10603 = vunpack.c.h.b16 %v10345
          %v10604 = vunpack.c.l.b16 %v10346
          %v10605 = vunpack.c.h.b16 %v10346
          %v10606 = vunpack.c.l.b16 %v10347
          %v10607 = vunpack.c.h.b16 %v10347
          %v10608 = vunpack.c.l.b16 %v10348
          %v10609 = vunpack.c.h.b16 %v10348
          %v10610 = vunpack.c.l.b16 %v10349
          %v10611 = vunpack.c.h.b16 %v10349
          %v10612 = vunpack.c.l.b16 %v10350
          %v10613 = vunpack.c.h.b16 %v10350
          %v10614 = vunpack.c.l.b16 %v10351
          %v10615 = vunpack.c.h.b16 %v10351
          %v10616 = vunpack.c.l.b16 %v10352
          %v10617 = vunpack.c.h.b16 %v10352
          %v10618 = vunpack.c.l.b16 %v10353
          %v10619 = vunpack.c.h.b16 %v10353
          %v10620 = vunpack.c.l.b16 %v10354
          %v10621 = vunpack.c.h.b16 %v10354
          %v10622 = vunpack.c.l.b16 %v10355
          %v10623 = vunpack.c.h.b16 %v10355
          %v10624 = vunpack.c.l.b16 %v10356
          %v10625 = vunpack.c.h.b16 %v10356
          %v10626 = vunpack.c.l.b16 %v10357
          %v10627 = vunpack.c.h.b16 %v10357
          %v10628 = vunpack.c.l.b16 %v10358
          %v10629 = vunpack.c.h.b16 %v10358
          %v10630 = vunpack.c.l.b16 %v10359
          %v10631 = vunpack.c.h.b16 %v10359
          %v10632 = vunpack.c.l.b16 %v10360
          %v10633 = vunpack.c.h.b16 %v10360
          %v10634 = vunpack.c.l.b16 %v10361
          %v10635 = vunpack.c.h.b16 %v10361
          %v10636 = vunpack.c.l.b16 %v10362
          %v10637 = vunpack.c.h.b16 %v10362
          %v10638 = vunpack.c.l.b16 %v10363
          %v10639 = vunpack.c.h.b16 %v10363
          %v10640 = vunpack.c.l.b16 %v10364
          %v10641 = vunpack.c.h.b16 %v10364
          %v10642 = vunpack.c.l.b16 %v10365
          %v10643 = vunpack.c.h.b16 %v10365
          %v10644 = vunpack.c.l.b16 %v10366
          %v10645 = vunpack.c.h.b16 %v10366
          %v10646 = vunpack.c.l.b16 %v10367
          %v10647 = vunpack.c.h.b16 %v10367
          %v10648 = vunpack.c.l.b16 %v10368
          %v10649 = vunpack.c.h.b16 %v10368
          %v10650 = vunpack.c.l.b16 %v10369
          %v10651 = vunpack.c.h.b16 %v10369
          %v10652 = vunpack.c.l.b16 %v10370
          %v10653 = vunpack.c.h.b16 %v10370
          %v10654 = vunpack.c.l.b16 %v10371
          %v10655 = vunpack.c.h.b16 %v10371
          %v10656 = vunpack.c.l.b16 %v10372
          %v10657 = vunpack.c.h.b16 %v10372
          %v10658 = vunpack.c.l.b16 %v10373
          %v10659 = vunpack.c.h.b16 %v10373
          %v10660 = vunpack.c.l.b16 %v10374
          %v10661 = vunpack.c.h.b16 %v10374
          %v10662 = vunpack.c.l.b16 %v10375
          %v10663 = vunpack.c.h.b16 %v10375
          %v10664 = vunpack.c.l.b16 %v10376
          %v10665 = vunpack.c.h.b16 %v10376
          %v10666 = vunpack.c.l.b16 %v10377
          %v10667 = vunpack.c.h.b16 %v10377
          %v10668 = vunpack.c.l.b16 %v10378
          %v10669 = vunpack.c.h.b16 %v10378
          %v10670 = vunpack.c.l.b16 %v10379
          %v10671 = vunpack.c.h.b16 %v10379
          %v10672 = vunpack.c.l.b16 %v10380
          %v10673 = vunpack.c.h.b16 %v10380
          %v10674 = vunpack.c.l.b16 %v10381
          %v10675 = vunpack.c.h.b16 %v10381
          %v10676 = vpack.c.b16 %v10490, %v10488
          %v10677 = vpack.c.b16 %v10491, %v10489
          %v10678 = vpack.c.b16 %v10494, %v10492
          %v10679 = vpack.c.b16 %v10495, %v10493
          %v10680 = vpack.c.b16 %v10498, %v10496
          %v10681 = vpack.c.b16 %v10499, %v10497
          %v10682 = vpack.c.b16 %v10502, %v10500
          %v10683 = vpack.c.b16 %v10503, %v10501
          %v10684 = vpack.c.b16 %v10506, %v10504
          %v10685 = vpack.c.b16 %v10507, %v10505
          %v10686 = vpack.c.b16 %v10510, %v10508
          %v10687 = vpack.c.b16 %v10511, %v10509
          %v10688 = vpack.c.b16 %v10514, %v10512
          %v10689 = vpack.c.b16 %v10515, %v10513
          %v10690 = vpack.c.b16 %v10518, %v10516
          %v10691 = vpack.c.b16 %v10519, %v10517
          %v10692 = vpack.c.b16 %v10522, %v10520
          %v10693 = vpack.c.b16 %v10523, %v10521
          %v10694 = vpack.c.b16 %v10526, %v10524
          %v10695 = vpack.c.b16 %v10527, %v10525
          %v10696 = vpack.c.b16 %v10530, %v10528
          %v10697 = vpack.c.b16 %v10531, %v10529
          %v10698 = vpack.c.b16 %v10534, %v10532
          %v10699 = vpack.c.b16 %v10535, %v10533
          %v10700 = vpack.c.b16 %v10538, %v10536
          %v10701 = vpack.c.b16 %v10539, %v10537
          %v10702 = vpack.c.b16 %v10542, %v10540
          %v10703 = vpack.c.b16 %v10543, %v10541
          %v10704 = vpack.c.b16 %v10546, %v10544
          %v10705 = vpack.c.b16 %v10547, %v10545
          %v10706 = vpack.c.b16 %v10550, %v10548
          %v10707 = vpack.c.b16 %v10551, %v10549
          %v10708 = vpack.c.b16 %v10554, %v10552
          %v10709 = vpack.c.b16 %v10555, %v10553
          %v10710 = vpack.c.b16 %v10558, %v10556
          %v10711 = vpack.c.b16 %v10559, %v10557
          %v10712 = vpack.c.b16 %v10562, %v10560
          %v10713 = vpack.c.b16 %v10563, %v10561
          %v10714 = vpack.c.b16 %v10566, %v10564
          %v10715 = vpack.c.b16 %v10567, %v10565
          %v10716 = vpack.c.b16 %v10570, %v10568
          %v10717 = vpack.c.b16 %v10571, %v10569
          %v10718 = vpack.c.b16 %v10574, %v10572
          %v10719 = vpack.c.b16 %v10575, %v10573
          %v10720 = vpack.c.b16 %v10578, %v10576
          %v10721 = vpack.c.b16 %v10579, %v10577
          %v10722 = vpack.c.b16 %v10582, %v10580
          %v10723 = vpack.c.b16 %v10583, %v10581
          %v10724 = vpack.c.b16 %v10586, %v10584
          %v10725 = vpack.c.b16 %v10587, %v10585
          %v10726 = vpack.c.b16 %v10590, %v10588
          %v10727 = vpack.c.b16 %v10591, %v10589
          %v10728 = vpack.c.b16 %v10594, %v10592
          %v10729 = vpack.c.b16 %v10595, %v10593
          %v10730 = vpack.c.b16 %v10598, %v10596
          %v10731 = vpack.c.b16 %v10599, %v10597
          %v10732 = vpack.c.b16 %v10602, %v10600
          %v10733 = vpack.c.b16 %v10603, %v10601
          %v10734 = vpack.c.b16 %v10606, %v10604
          %v10735 = vpack.c.b16 %v10607, %v10605
          %v10736 = vpack.c.b16 %v10610, %v10608
          %v10737 = vpack.c.b16 %v10611, %v10609
          %v10738 = vpack.c.b16 %v10614, %v10612
          %v10739 = vpack.c.b16 %v10615, %v10613
          %v10740 = vpack.c.b16 %v10618, %v10616
          %v10741 = vpack.c.b16 %v10619, %v10617
          %v10742 = vpack.c.b16 %v10622, %v10620
          %v10743 = vpack.c.b16 %v10623, %v10621
          %v10744 = vpack.c.b16 %v10626, %v10624
          %v10745 = vpack.c.b16 %v10627, %v10625
          %v10746 = vpack.c.b16 %v10630, %v10628
          %v10747 = vpack.c.b16 %v10631, %v10629
          %v10748 = vpack.c.b16 %v10634, %v10632
          %v10749 = vpack.c.b16 %v10635, %v10633
          %v10750 = vpack.c.b16 %v10638, %v10636
          %v10751 = vpack.c.b16 %v10639, %v10637
          %v10752 = vpack.c.b16 %v10642, %v10640
          %v10753 = vpack.c.b16 %v10643, %v10641
          %v10754 = vpack.c.b16 %v10646, %v10644
          %v10755 = vpack.c.b16 %v10647, %v10645
          %v10756 = vpack.c.b16 %v10650, %v10648
          %v10757 = vpack.c.b16 %v10651, %v10649
          %v10758 = vpack.c.b16 %v10654, %v10652
          %v10759 = vpack.c.b16 %v10655, %v10653
          %v10760 = vpack.c.b16 %v10658, %v10656
          %v10761 = vpack.c.b16 %v10659, %v10657
          %v10762 = vpack.c.b16 %v10662, %v10660
          %v10763 = vpack.c.b16 %v10663, %v10661
          %v10764 = vpack.c.b16 %v10666, %v10664
          %v10765 = vpack.c.b16 %v10667, %v10665
          %v10766 = vpack.c.b16 %v10670, %v10668
          %v10767 = vpack.c.b16 %v10671, %v10669
          %v10768 = vpack.c.b16 %v10674, %v10672
          %v10769 = vpack.c.b16 %v10675, %v10673
          %vm10862 = vcmask 900096
          %v10864 = vsel %vm10862, %v10287, 0
          %vm10866 = vcmask 1046528
          %v10868 = vsel %vm10866, %v10768, 0
          %v10871 = vsel %vm10866, %v10769, 0
          %10873 = vmatprep.subr.bf16.mxu0 %v10691
          %10874 = vmatpush1.bf16.msra.mxu0 %v10690
          %10875 = vmatprep.subr.bf16.mxu0 %v10689
          %10876 = vmatpush1.bf16.msra.mxu0 %v10688
          %10877 = vmatprep.subr.bf16.mxu0 %v10687
          %10878 = vmatpush1.bf16.msra.mxu0 %v10686
          %10879 = vmatprep.subr.bf16.mxu0 %v10685
          %10880 = vmatpush1.bf16.msra.mxu0 %v10684
          %10881 = vmatprep.subr.bf16.mxu0 %v10683
          %10882 = vmatpush1.bf16.msra.mxu0 %v10682
          %10883 = vmatprep.subr.bf16.mxu0 %v10681
          %10884 = vmatpush1.bf16.msra.mxu0 %v10680
          %10885 = vmatprep.subr.bf16.mxu0 %v10679
          %10886 = vmatpush1.bf16.msra.mxu0 %v10678
          %10887 = vmatprep.subr.bf16.mxu0 %v10677
          %10888 = vmatpush1.bf16.msra.mxu0 %v10676
          %10889 = vmatprep.subr.bf16.mxu0 %v10707
          %10890 = vmatpush2.bf16.msra.mxu0 %v10706
          %10891 = vmatprep.subr.bf16.mxu0 %v10705
          %10892 = vmatpush2.bf16.msra.mxu0 %v10704
          %10893 = vmatprep.subr.bf16.mxu0 %v10703
          %10894 = vmatpush2.bf16.msra.mxu0 %v10702
          %10895 = vmatprep.subr.bf16.mxu0 %v10701
          %10896 = vmatpush2.bf16.msra.mxu0 %v10700
          %10897 = vmatprep.subr.bf16.mxu0 %v10699
          %10898 = vmatpush2.bf16.msra.mxu0 %v10698
          %10899 = vmatprep.subr.bf16.mxu0 %v10697
          %10900 = vmatpush2.bf16.msra.mxu0 %v10696
          %10901 = vmatprep.subr.bf16.mxu0 %v10695
          %10902 = vmatpush2.bf16.msra.mxu0 %v10694
          %10903 = vmatprep.subr.bf16.mxu0 %v10693
          %10904 = vmatpush2.bf16.msra.mxu0 %v10692
          %10905 = vmatprep.mubr.bf16.mxu0 %v10283
          %10906 = vmatmul.mubr.bf16.gmra.mxu0 %v10282
          %v10907 = vpop.f32.mrf.mxu0
          %v10908 = vadd.f32 %v10387, %v10907
          %v10909 = vpop.f32.mrf.mxu0
          %v10910 = vadd.f32 %v10391, %v10909
          %v10911 = vpop.f32.mrf.mxu0
          %v10912 = vpop.f32.mrf.mxu0
          %10913 = vdwg.mxu0
          %10914 = vmatprep.subr.bf16.mxu0 %v10723
          %10915 = vmatpush1.bf16.msra.mxu0 %v10722
          %10916 = vmatprep.subr.bf16.mxu0 %v10721
          %10917 = vmatpush1.bf16.msra.mxu0 %v10720
          %10918 = vmatprep.subr.bf16.mxu0 %v10719
          %10919 = vmatpush1.bf16.msra.mxu0 %v10718
          %10920 = vmatprep.subr.bf16.mxu0 %v10717
          %10921 = vmatpush1.bf16.msra.mxu0 %v10716
          %10922 = vmatprep.subr.bf16.mxu0 %v10715
          %10923 = vmatpush1.bf16.msra.mxu0 %v10714
          %10924 = vmatprep.subr.bf16.mxu0 %v10713
          %10925 = vmatpush1.bf16.msra.mxu0 %v10712
          %10926 = vmatprep.subr.bf16.mxu0 %v10711
          %10927 = vmatpush1.bf16.msra.mxu0 %v10710
          %10928 = vmatprep.subr.bf16.mxu0 %v10709
          %10929 = vmatpush1.bf16.msra.mxu0 %v10708
          %10930 = vmatprep.subr.bf16.mxu0 %v10739
          %10931 = vmatpush2.bf16.msra.mxu0 %v10738
          %10932 = vmatprep.subr.bf16.mxu0 %v10737
          %10933 = vmatpush2.bf16.msra.mxu0 %v10736
          %10934 = vmatprep.subr.bf16.mxu0 %v10735
          %10935 = vmatpush2.bf16.msra.mxu0 %v10734
          %10936 = vmatprep.subr.bf16.mxu0 %v10733
          %10937 = vmatpush2.bf16.msra.mxu0 %v10732
          %10938 = vmatprep.subr.bf16.mxu0 %v10731
          %10939 = vmatpush2.bf16.msra.mxu0 %v10730
          %10940 = vmatprep.subr.bf16.mxu0 %v10729
          %10941 = vmatpush2.bf16.msra.mxu0 %v10728
          %10942 = vmatprep.subr.bf16.mxu0 %v10727
          %10943 = vmatpush2.bf16.msra.mxu0 %v10726
          %10944 = vmatprep.subr.bf16.mxu0 %v10725
          %10945 = vmatpush2.bf16.msra.mxu0 %v10724
          %10946 = vmatprep.mubr.bf16.mxu0 %v10285
          %10947 = vmatmul.mubr.bf16.gmra.mxu0 %v10284
          %v10948 = vpop.f32.mrf.mxu0
          %v10949 = vadd.f32 %v10908, %v10948
          %v10950 = vpop.f32.mrf.mxu0
          %v10951 = vadd.f32 %v10910, %v10950
          %v10952 = vpop.f32.mrf.mxu0
          %v10953 = vpop.f32.mrf.mxu0
          %10954 = vdwg.mxu0
          %10955 = vmatprep.subr.bf16.mxu0 %v10755
          %10956 = vmatpush1.bf16.msra.mxu0 %v10754
          %10957 = vmatprep.subr.bf16.mxu0 %v10753
          %10958 = vmatpush1.bf16.msra.mxu0 %v10752
          %10959 = vmatprep.subr.bf16.mxu0 %v10751
          %10960 = vmatpush1.bf16.msra.mxu0 %v10750
          %10961 = vmatprep.subr.bf16.mxu0 %v10749
          %10962 = vmatpush1.bf16.msra.mxu0 %v10748
          %10963 = vmatprep.subr.bf16.mxu0 %v10747
          %10964 = vmatpush1.bf16.msra.mxu0 %v10746
          %10965 = vmatprep.subr.bf16.mxu0 %v10745
          %10966 = vmatpush1.bf16.msra.mxu0 %v10744
          %10967 = vmatprep.subr.bf16.mxu0 %v10743
          %10968 = vmatpush1.bf16.msra.mxu0 %v10742
          %10969 = vmatprep.subr.bf16.mxu0 %v10741
          %10970 = vmatpush1.bf16.msra.mxu0 %v10740
          %10971 = vmatprep.subr.bf16.mxu0 0
          %10972 = vmatpush2.bf16.msra.mxu0 0
          %10973 = vmatprep.subr.bf16.mxu0 %v10871
          %10974 = vmatpush2.bf16.msra.mxu0 %v10868
          %10975 = vmatprep.subr.bf16.mxu0 %v10767
          %10976 = vmatpush2.bf16.msra.mxu0 %v10766
          %10977 = vmatprep.subr.bf16.mxu0 %v10765
          %10978 = vmatpush2.bf16.msra.mxu0 %v10764
          %10979 = vmatprep.subr.bf16.mxu0 %v10763
          %10980 = vmatpush2.bf16.msra.mxu0 %v10762
          %10981 = vmatprep.subr.bf16.mxu0 %v10761
          %10982 = vmatpush2.bf16.msra.mxu0 %v10760
          %10983 = vmatprep.subr.bf16.mxu0 %v10759
          %10984 = vmatpush2.bf16.msra.mxu0 %v10758
          %10985 = vmatprep.subr.bf16.mxu0 %v10757
          %10986 = vmatpush2.bf16.msra.mxu0 %v10756
          %10987 = vmatprep.mubr.bf16.mxu0 %v10864
          %10988 = vmatmul.mubr.bf16.gmra.mxu0 %v10286
          %v10989 = vpop.f32.mrf.mxu0
          %v10990 = vadd.f32 %v10949, %v10989
          %v10991 = vpop.f32.mrf.mxu0
          %v10992 = vadd.f32 %v10951, %v10991
          %v10993 = vpop.f32.mrf.mxu0
          %v10994 = vpop.f32.mrf.mxu0
          %10995 = vdwg.mxu0
          %v10998 = vcombine.low %v10990, %v10992
          %vm11000 = vcmask 179204
          %vm11001 = vmor %vm11000, %vm5985
          %11002 = vst.msk [vmem:[#allocation3] sm:$0xff] %vm11001, %v10998
        $region56: #{tpu_custom_call.1} parent=47 // pred_fallthru
          _
        // Predicated region
        $region57: #{tpu_custom_call.1} parent=47 // pred_check
          %p11003 = pneg %p189
        $region58: #{tpu_custom_call.1} parent=47 // pred_check_branch
          %11005 = sbr.rel (%p11003) target = $region60
        $region59: #{tpu_custom_call.1} parent=47 // pred_region
          %s11007 = ssub.s32 128, 128
          %11008 = vsyncadd [#allocation4], %s11007
          %s11010 = sshll.u32 [#allocation3], 4
          %s11011 = int_to_ptr.vmem [resolvable:$true] %s11010
          %11013 = dma.vmem_to_hbm [thread:$0]  %s11011, 128, %s7, [#allocation4]
        $region60: #{tpu_custom_call.1} parent=47 // pred_fallthru
          _
        // Predicated region
        $region61: #{tpu_custom_call.1} parent=47 // pred_check
          %p11014 = pneg %p189
        $region62: #{tpu_custom_call.1} parent=47 // pred_check_branch
          %11016 = sbr.rel (%p11014) target = $region64
        $region63: #{tpu_custom_call.1} parent=47 // pred_region
          %11017 = dma.done [#allocation4], 128
        $region64: #{tpu_custom_call.1} parent=47 // pred_fallthru
          _
      $region48: #{tpu_custom_call.1} parent=5 // pred_fallthru
        _
      %p11018 = scmp.le.s32.totalorder 2, %s14
      // Predicated region
      $region65: #{tpu_custom_call.1} parent=5 // pred_check
        %p11019 = pneg %p11018
      $region66: #{tpu_custom_call.1} parent=5 // pred_check_branch
        %11021 = sbr.rel (%p11019) target = $region68
      $region67: #{tpu_custom_call.1} parent=5 // pred_region
        %s11022 = ssub.s32 %s14, 2
      $region68: #{tpu_custom_call.1} parent=5 // pred_fallthru
        _
    $region6: #{tpu_custom_call.1} parent=1 // loop_footer
      %s18 = sadd.s32 1, %s14
    $region7: #{tpu_custom_call.1} parent=1 // loop_footer_branch
      %13 = sbr.rel target = $region3
    $region8: #{tpu_custom_call.1} parent=1 // loop_exit
      _
    %11023 = vsyncpa [#allocation4], 1
    %s11024 = scalar_lea.sflag [#allocation4], 1
    %11025 = vsyncpa %s11024, 1

</llo_original>
